<compile_context>
chip_gen: v5e
topology: v5e:2x2
jax: 0.10.0
libtpu: 0.0.40
codegen_flags: <defaults>
</compile_context>

<pallas_src>
import math

import jax
import jax.numpy as jnp
from jax import lax
from jax.experimental import pallas as pl
from jax.experimental.pallas import tpu as pltpu


def residual_block_forward(x_nchw, w1, b1, w2, b2, *, batch_tile=None):
    """relu(x + conv2(relu(conv1(x)))) with 3x3 / padding=1 convs.

    x_nchw : (N, C, H, W) float32          (PyTorch activation layout)
    w1, w2 : (C_out, C_in, 3, 3) float32   (PyTorch Conv2d weight layout)
    b1, b2 : (C,) float32
    returns: (N, C, H, W) float32
    """
    N, C, H, W = x_nchw.shape
    Hp, Wp = H + 2, W + 2
    TB = batch_tile if batch_tile is not None else math.gcd(N, 8)
    assert N % TB == 0, "batch_tile must divide the batch size"

    # NHWC (channels on the lane axis); zero-pad H/W once in the wrapper so
    # the kernel only does static slicing.
    x_nhwc = jnp.transpose(x_nchw, (0, 2, 3, 1))
    x_pad = jnp.pad(x_nhwc, ((0, 0), (1, 1), (1, 1), (0, 0)))

    # (C_out, C_in, kh, kw) -> (kh, kw, C_in, C_out): each tap is a plain
    # (C_in, C_out) right-hand matmul operand.
    w1_t = jnp.transpose(w1, (2, 3, 1, 0))
    w2_t = jnp.transpose(w2, (2, 3, 1, 0))
    b1_t = b1.reshape(1, C)
    b2_t = b2.reshape(1, C)

    M = TB * H * W  # MXU M-dim per grid step

    def kernel(xp_ref, w1_ref, b1_ref, w2_ref, b2_ref, o_ref, ybuf_ref):
        # TB padded images per grid step; everything stays in VMEM.

        def conv3x3(get_patch, w_ref, b_ref):
            # 3x3 "same" conv as 9 shifted (M, C) @ (C, C) matmuls.
            acc = jnp.zeros((M, C), jnp.float32)
            for kh in range(3):
                for kw in range(3):
                    acc = acc + jnp.dot(
                        get_patch(kh, kw), w_ref[kh, kw],
                        preferred_element_type=jnp.float32)
            return acc + b_ref[...]

        # ---- conv1 + ReLU --------------------------------------------------
        y1 = conv3x3(
            lambda kh, kw: xp_ref[:, kh:kh + H, kw:kw + W, :].reshape(M, C),
            w1_ref, b1_ref)
        y1 = jnp.maximum(y1, 0.0)

        # Zero-pad relu(conv1(x)) into the persistent VMEM scratch.
        # (Borders are re-zeroed every step: with "parallel" batch semantics
        #  each core owns its scratch, so no once-per-grid init is assumed.)
        ybuf_ref[...] = jnp.zeros((TB, Hp, Wp, C), jnp.float32)
        ybuf_ref[:, 1:H + 1, 1:W + 1, :] = y1.reshape(TB, H, W, C)

        # ---- conv2 ----------------------------------------------------------
        y2 = conv3x3(
            lambda kh, kw: ybuf_ref[:, kh:kh + H, kw:kw + W, :].reshape(M, C),
            w2_ref, b2_ref)

        # ---- residual add + ReLU --------------------------------------------
        x_in = xp_ref[:, 1:H + 1, 1:W + 1, :].reshape(M, C)
        out = jnp.maximum(x_in + y2, 0.0)
        o_ref[...] = out.reshape(TB, H, W, C).astype(o_ref.dtype)

    out_nhwc = pl.pallas_call(
        kernel,
        out_shape=jax.ShapeDtypeStruct((N, H, W, C), jnp.float32),
        grid_spec=pltpu.PrefetchScalarGridSpec(
            num_scalar_prefetch=0,
            grid=(N // TB,),
            in_specs=[
                # activations: one batch tile per step
                pl.BlockSpec((TB, Hp, Wp, C), lambda n: (n, 0, 0, 0)),
                # weights / biases: constant index_map -> stay VMEM-resident
                pl.BlockSpec((3, 3, C, C), lambda n: (0, 0, 0, 0)),
                pl.BlockSpec((1, C), lambda n: (0, 0)),
                pl.BlockSpec((3, 3, C, C), lambda n: (0, 0, 0, 0)),
                pl.BlockSpec((1, C), lambda n: (0, 0)),
            ],
            out_specs=pl.BlockSpec((TB, H, W, C), lambda n: (n, 0, 0, 0)),
            scratch_shapes=[pltpu.VMEM((TB, Hp, Wp, C), jnp.float32)],
        ),
        compiler_params=pltpu.CompilerParams(
            dimension_semantics=("parallel",)),
    )(x_pad, w1_t, b1_t, w2_t, b2_t)

    return jnp.transpose(out_nhwc, (0, 3, 1, 2))


def _conv_ref(x_nchw, w, b):
    y = lax.conv_general_dilated(
        x_nchw, w, window_strides=(1, 1), padding="SAME",
        dimension_numbers=("NCHW", "OIHW", "NCHW"))
    return y + b.reshape(1, -1, 1, 1)


if __name__ == "__main__":
    key = jax.random.PRNGKey(0)
    kx, k1, k2, k3, k4 = jax.random.split(key, 5)

    N, C, H, W = 2, 4, 16, 16
    x = jax.random.normal(kx, (N, C, H, W), dtype=jnp.float32)

    # torch.nn.Conv2d-style init: U(-1/sqrt(fan_in), +1/sqrt(fan_in))
    bound = 1.0 / float(math.sqrt(C * 3 * 3))
    w1 = jax.random.uniform(k1, (C, C, 3, 3), jnp.float32, -bound, bound)
    b1 = jax.random.uniform(k2, (C,), jnp.float32, -bound, bound)
    w2 = jax.random.uniform(k3, (C, C, 3, 3), jnp.float32, -bound, bound)
    b2 = jax.random.uniform(k4, (C,), jnp.float32, -bound, bound)

    out = residual_block_forward(x, w1, b1, w2, b2)
    out = jax.block_until_ready(out)

    # Pure-JAX reference: relu(x + conv2(relu(conv1(x)))).
    ref = jnp.maximum(_conv_ref(x, w1, b1), 0.0)
    ref = _conv_ref(ref, w2, b2)
    ref = jnp.maximum(x + ref, 0.0)

    assert out.shape == (N, C, H, W)
    assert jnp.allclose(out, ref, atol=1e-4, rtol=1e-4), "mismatch vs reference"

    print("KERNEL_OK")
</pallas_src>

<mosaic_0001>
module attributes {stable_mosaic.version = 11 : i64} {
  func.func @kernel(%arg0: i32, %arg1: memref<2x18x18x4xf32, #tpu.memory_space<vmem>>, %arg2: memref<3x3x4x4xf32, #tpu.memory_space<vmem>>, %arg3: memref<1x4xf32, #tpu.memory_space<vmem>>, %arg4: memref<3x3x4x4xf32, #tpu.memory_space<vmem>>, %arg5: memref<1x4xf32, #tpu.memory_space<vmem>>, %arg6: memref<2x16x16x4xf32, #tpu.memory_space<vmem>>, %arg7: memref<2x18x18x4xf32, #tpu.memory_space<vmem>>) attributes {dimension_semantics = [#tpu.dimension_semantics<parallel>], iteration_bounds = array<i64: 1>, scalar_prefetch = 0 : i64, scratch_operands = 1 : i64, tpu.core_type = #tpu.core_type<tc>, window_params = [{transform_indices = @transform_0, window_bounds = array<i64: 2, 18, 18, 4>}, {pipeline_mode = #tpu.pipeline_mode<synchronous>, transform_indices = @transform_1, window_bounds = array<i64: 3, 3, 4, 4>}, {pipeline_mode = #tpu.pipeline_mode<synchronous>, transform_indices = @transform_2, window_bounds = array<i64: 1, 4>}, {pipeline_mode = #tpu.pipeline_mode<synchronous>, transform_indices = @transform_3, window_bounds = array<i64: 3, 3, 4, 4>}, {pipeline_mode = #tpu.pipeline_mode<synchronous>, transform_indices = @transform_4, window_bounds = array<i64: 1, 4>}, {transform_indices = @transform_5, window_bounds = array<i64: 2, 16, 16, 4>}]} {
    %cst = arith.constant 0.000000e+00 : f32
    %0 = vector.broadcast %cst : f32 to vector<512x4xf32>
    %c0 = arith.constant 0 : index
    %c0_0 = arith.constant 0 : index
    %c0_1 = arith.constant 0 : index
    %c0_2 = arith.constant 0 : index
    %1 = vector.load %arg1[%c0, %c0_0, %c0_1, %c0_2] : memref<2x18x18x4xf32, #tpu.memory_space<vmem>>, vector<2x16x16x4xf32>
    %2 = vector.shape_cast %1 : vector<2x16x16x4xf32> to vector<512x4xf32>
    %c0_3 = arith.constant 0 : index
    %c0_4 = arith.constant 0 : index
    %c0_5 = arith.constant 0 : index
    %c0_6 = arith.constant 0 : index
    %3 = vector.load %arg2[%c0_3, %c0_4, %c0_5, %c0_6] : memref<3x3x4x4xf32, #tpu.memory_space<vmem>>, vector<1x1x4x4xf32>
    %4 = vector.shape_cast %3 : vector<1x1x4x4xf32> to vector<4x4xf32>
    %cst_7 = arith.constant dense<0.000000e+00> : vector<512x4xf32>
    %5 = tpu.matmul %2, %4, %cst_7 {dimension_numbers = #tpu.dot_dimension_numbers<[1], [0], [0], [1], [0, 0, 1, 1], [], []>} : vector<512x4xf32>, vector<4x4xf32>, vector<512x4xf32> -> vector<512x4xf32>
    %6 = arith.addf %0, %5 : vector<512x4xf32>
    %c0_8 = arith.constant 0 : index
    %c0_9 = arith.constant 0 : index
    %c1 = arith.constant 1 : index
    %c0_10 = arith.constant 0 : index
    %7 = vector.load %arg1[%c0_8, %c0_9, %c1, %c0_10] : memref<2x18x18x4xf32, #tpu.memory_space<vmem>>, vector<2x16x16x4xf32>
    %8 = vector.shape_cast %7 : vector<2x16x16x4xf32> to vector<512x4xf32>
    %c0_11 = arith.constant 0 : index
    %c1_12 = arith.constant 1 : index
    %c0_13 = arith.constant 0 : index
    %c0_14 = arith.constant 0 : index
    %9 = vector.load %arg2[%c0_11, %c1_12, %c0_13, %c0_14] : memref<3x3x4x4xf32, #tpu.memory_space<vmem>>, vector<1x1x4x4xf32>
    %10 = vector.shape_cast %9 : vector<1x1x4x4xf32> to vector<4x4xf32>
    %cst_15 = arith.constant dense<0.000000e+00> : vector<512x4xf32>
    %11 = tpu.matmul %8, %10, %cst_15 {dimension_numbers = #tpu.dot_dimension_numbers<[1], [0], [0], [1], [0, 0, 1, 1], [], []>} : vector<512x4xf32>, vector<4x4xf32>, vector<512x4xf32> -> vector<512x4xf32>
    %12 = arith.addf %6, %11 : vector<512x4xf32>
    %c0_16 = arith.constant 0 : index
    %c0_17 = arith.constant 0 : index
    %c2 = arith.constant 2 : index
    %c0_18 = arith.constant 0 : index
    %13 = vector.load %arg1[%c0_16, %c0_17, %c2, %c0_18] : memref<2x18x18x4xf32, #tpu.memory_space<vmem>>, vector<2x16x16x4xf32>
    %14 = vector.shape_cast %13 : vector<2x16x16x4xf32> to vector<512x4xf32>
    %c0_19 = arith.constant 0 : index
    %c2_20 = arith.constant 2 : index
    %c0_21 = arith.constant 0 : index
    %c0_22 = arith.constant 0 : index
    %15 = vector.load %arg2[%c0_19, %c2_20, %c0_21, %c0_22] : memref<3x3x4x4xf32, #tpu.memory_space<vmem>>, vector<1x1x4x4xf32>
    %16 = vector.shape_cast %15 : vector<1x1x4x4xf32> to vector<4x4xf32>
    %cst_23 = arith.constant dense<0.000000e+00> : vector<512x4xf32>
    %17 = tpu.matmul %14, %16, %cst_23 {dimension_numbers = #tpu.dot_dimension_numbers<[1], [0], [0], [1], [0, 0, 1, 1], [], []>} : vector<512x4xf32>, vector<4x4xf32>, vector<512x4xf32> -> vector<512x4xf32>
    %18 = arith.addf %12, %17 : vector<512x4xf32>
    %c0_24 = arith.constant 0 : index
    %c1_25 = arith.constant 1 : index
    %c0_26 = arith.constant 0 : index
    %c0_27 = arith.constant 0 : index
    %19 = vector.load %arg1[%c0_24, %c1_25, %c0_26, %c0_27] : memref<2x18x18x4xf32, #tpu.memory_space<vmem>>, vector<2x16x16x4xf32>
    %20 = vector.shape_cast %19 : vector<2x16x16x4xf32> to vector<512x4xf32>
    %c1_28 = arith.constant 1 : index
    %c0_29 = arith.constant 0 : index
    %c0_30 = arith.constant 0 : index
    %c0_31 = arith.constant 0 : index
    %21 = vector.load %arg2[%c1_28, %c0_29, %c0_30, %c0_31] : memref<3x3x4x4xf32, #tpu.memory_space<vmem>>, vector<1x1x4x4xf32>
    %22 = vector.shape_cast %21 : vector<1x1x4x4xf32> to vector<4x4xf32>
    %cst_32 = arith.constant dense<0.000000e+00> : vector<512x4xf32>
    %23 = tpu.matmul %20, %22, %cst_32 {dimension_numbers = #tpu.dot_dimension_numbers<[1], [0], [0], [1], [0, 0, 1, 1], [], []>} : vector<512x4xf32>, vector<4x4xf32>, vector<512x4xf32> -> vector<512x4xf32>
    %24 = arith.addf %18, %23 : vector<512x4xf32>
    %c0_33 = arith.constant 0 : index
    %c1_34 = arith.constant 1 : index
    %c1_35 = arith.constant 1 : index
    %c0_36 = arith.constant 0 : index
    %25 = vector.load %arg1[%c0_33, %c1_34, %c1_35, %c0_36] : memref<2x18x18x4xf32, #tpu.memory_space<vmem>>, vector<2x16x16x4xf32>
    %26 = vector.shape_cast %25 : vector<2x16x16x4xf32> to vector<512x4xf32>
    %c1_37 = arith.constant 1 : index
    %c1_38 = arith.constant 1 : index
    %c0_39 = arith.constant 0 : index
    %c0_40 = arith.constant 0 : index
    %27 = vector.load %arg2[%c1_37, %c1_38, %c0_39, %c0_40] : memref<3x3x4x4xf32, #tpu.memory_space<vmem>>, vector<1x1x4x4xf32>
    %28 = vector.shape_cast %27 : vector<1x1x4x4xf32> to vector<4x4xf32>
    %cst_41 = arith.constant dense<0.000000e+00> : vector<512x4xf32>
    %29 = tpu.matmul %26, %28, %cst_41 {dimension_numbers = #tpu.dot_dimension_numbers<[1], [0], [0], [1], [0, 0, 1, 1], [], []>} : vector<512x4xf32>, vector<4x4xf32>, vector<512x4xf32> -> vector<512x4xf32>
    %30 = arith.addf %24, %29 : vector<512x4xf32>
    %c0_42 = arith.constant 0 : index
    %c1_43 = arith.constant 1 : index
    %c2_44 = arith.constant 2 : index
    %c0_45 = arith.constant 0 : index
    %31 = vector.load %arg1[%c0_42, %c1_43, %c2_44, %c0_45] : memref<2x18x18x4xf32, #tpu.memory_space<vmem>>, vector<2x16x16x4xf32>
    %32 = vector.shape_cast %31 : vector<2x16x16x4xf32> to vector<512x4xf32>
    %c1_46 = arith.constant 1 : index
    %c2_47 = arith.constant 2 : index
    %c0_48 = arith.constant 0 : index
    %c0_49 = arith.constant 0 : index
    %33 = vector.load %arg2[%c1_46, %c2_47, %c0_48, %c0_49] : memref<3x3x4x4xf32, #tpu.memory_space<vmem>>, vector<1x1x4x4xf32>
    %34 = vector.shape_cast %33 : vector<1x1x4x4xf32> to vector<4x4xf32>
    %cst_50 = arith.constant dense<0.000000e+00> : vector<512x4xf32>
    %35 = tpu.matmul %32, %34, %cst_50 {dimension_numbers = #tpu.dot_dimension_numbers<[1], [0], [0], [1], [0, 0, 1, 1], [], []>} : vector<512x4xf32>, vector<4x4xf32>, vector<512x4xf32> -> vector<512x4xf32>
    %36 = arith.addf %30, %35 : vector<512x4xf32>
    %c0_51 = arith.constant 0 : index
    %c2_52 = arith.constant 2 : index
    %c0_53 = arith.constant 0 : index
    %c0_54 = arith.constant 0 : index
    %37 = vector.load %arg1[%c0_51, %c2_52, %c0_53, %c0_54] : memref<2x18x18x4xf32, #tpu.memory_space<vmem>>, vector<2x16x16x4xf32>
    %38 = vector.shape_cast %37 : vector<2x16x16x4xf32> to vector<512x4xf32>
    %c2_55 = arith.constant 2 : index
    %c0_56 = arith.constant 0 : index
    %c0_57 = arith.constant 0 : index
    %c0_58 = arith.constant 0 : index
    %39 = vector.load %arg2[%c2_55, %c0_56, %c0_57, %c0_58] : memref<3x3x4x4xf32, #tpu.memory_space<vmem>>, vector<1x1x4x4xf32>
    %40 = vector.shape_cast %39 : vector<1x1x4x4xf32> to vector<4x4xf32>
    %cst_59 = arith.constant dense<0.000000e+00> : vector<512x4xf32>
    %41 = tpu.matmul %38, %40, %cst_59 {dimension_numbers = #tpu.dot_dimension_numbers<[1], [0], [0], [1], [0, 0, 1, 1], [], []>} : vector<512x4xf32>, vector<4x4xf32>, vector<512x4xf32> -> vector<512x4xf32>
    %42 = arith.addf %36, %41 : vector<512x4xf32>
    %c0_60 = arith.constant 0 : index
    %c2_61 = arith.constant 2 : index
    %c1_62 = arith.constant 1 : index
    %c0_63 = arith.constant 0 : index
    %43 = vector.load %arg1[%c0_60, %c2_61, %c1_62, %c0_63] : memref<2x18x18x4xf32, #tpu.memory_space<vmem>>, vector<2x16x16x4xf32>
    %44 = vector.shape_cast %43 : vector<2x16x16x4xf32> to vector<512x4xf32>
    %c2_64 = arith.constant 2 : index
    %c1_65 = arith.constant 1 : index
    %c0_66 = arith.constant 0 : index
    %c0_67 = arith.constant 0 : index
    %45 = vector.load %arg2[%c2_64, %c1_65, %c0_66, %c0_67] : memref<3x3x4x4xf32, #tpu.memory_space<vmem>>, vector<1x1x4x4xf32>
    %46 = vector.shape_cast %45 : vector<1x1x4x4xf32> to vector<4x4xf32>
    %cst_68 = arith.constant dense<0.000000e+00> : vector<512x4xf32>
    %47 = tpu.matmul %44, %46, %cst_68 {dimension_numbers = #tpu.dot_dimension_numbers<[1], [0], [0], [1], [0, 0, 1, 1], [], []>} : vector<512x4xf32>, vector<4x4xf32>, vector<512x4xf32> -> vector<512x4xf32>
    %48 = arith.addf %42, %47 : vector<512x4xf32>
    %c0_69 = arith.constant 0 : index
    %c2_70 = arith.constant 2 : index
    %c2_71 = arith.constant 2 : index
    %c0_72 = arith.constant 0 : index
    %49 = vector.load %arg1[%c0_69, %c2_70, %c2_71, %c0_72] : memref<2x18x18x4xf32, #tpu.memory_space<vmem>>, vector<2x16x16x4xf32>
    %50 = vector.shape_cast %49 : vector<2x16x16x4xf32> to vector<512x4xf32>
    %c2_73 = arith.constant 2 : index
    %c2_74 = arith.constant 2 : index
    %c0_75 = arith.constant 0 : index
    %c0_76 = arith.constant 0 : index
    %51 = vector.load %arg2[%c2_73, %c2_74, %c0_75, %c0_76] : memref<3x3x4x4xf32, #tpu.memory_space<vmem>>, vector<1x1x4x4xf32>
    %52 = vector.shape_cast %51 : vector<1x1x4x4xf32> to vector<4x4xf32>
    %cst_77 = arith.constant dense<0.000000e+00> : vector<512x4xf32>
    %53 = tpu.matmul %50, %52, %cst_77 {dimension_numbers = #tpu.dot_dimension_numbers<[1], [0], [0], [1], [0, 0, 1, 1], [], []>} : vector<512x4xf32>, vector<4x4xf32>, vector<512x4xf32> -> vector<512x4xf32>
    %54 = arith.addf %48, %53 : vector<512x4xf32>
    %c0_78 = arith.constant 0 : index
    %c0_79 = arith.constant 0 : index
    %55 = vector.load %arg3[%c0_78, %c0_79] : memref<1x4xf32, #tpu.memory_space<vmem>>, vector<1x4xf32>
    %56 = vector.broadcast %55 : vector<1x4xf32> to vector<512x4xf32>
    %57 = arith.addf %54, %56 : vector<512x4xf32>
    %cst_80 = arith.constant 0.000000e+00 : f32
    %58 = vector.broadcast %cst_80 : f32 to vector<512x4xf32>
    %59 = arith.maximumf %57, %58 : vector<512x4xf32>
    %cst_81 = arith.constant 0.000000e+00 : f32
    %60 = vector.broadcast %cst_81 : f32 to vector<2x18x18x4xf32>
    %c0_82 = arith.constant 0 : index
    %c0_83 = arith.constant 0 : index
    %c0_84 = arith.constant 0 : index
    %c0_85 = arith.constant 0 : index
    %61 = vector.load %arg7[%c0_82, %c0_83, %c0_84, %c0_85] : memref<2x18x18x4xf32, #tpu.memory_space<vmem>>, vector<2x18x18x4xf32>
    tpu.vector_store %arg7[%c0_82, %c0_83, %c0_84, %c0_85], %60 {strides = array<i32>} : memref<2x18x18x4xf32, #tpu.memory_space<vmem>>, vector<2x18x18x4xf32>,
    %62 = vector.shape_cast %59 : vector<512x4xf32> to vector<2x16x16x4xf32>
    %c0_86 = arith.constant 0 : index
    %c1_87 = arith.constant 1 : index
    %c1_88 = arith.constant 1 : index
    %c0_89 = arith.constant 0 : index
    %63 = vector.load %arg7[%c0_86, %c1_87, %c1_88, %c0_89] : memref<2x18x18x4xf32, #tpu.memory_space<vmem>>, vector<2x16x16x4xf32>
    tpu.vector_store %arg7[%c0_86, %c1_87, %c1_88, %c0_89], %62 {strides = array<i32>} : memref<2x18x18x4xf32, #tpu.memory_space<vmem>>, vector<2x16x16x4xf32>,
    %cst_90 = arith.constant 0.000000e+00 : f32
    %64 = vector.broadcast %cst_90 : f32 to vector<512x4xf32>
    %c0_91 = arith.constant 0 : index
    %c0_92 = arith.constant 0 : index
    %c0_93 = arith.constant 0 : index
    %c0_94 = arith.constant 0 : index
    %65 = vector.load %arg7[%c0_91, %c0_92, %c0_93, %c0_94] : memref<2x18x18x4xf32, #tpu.memory_space<vmem>>, vector<2x16x16x4xf32>
    %66 = vector.shape_cast %65 : vector<2x16x16x4xf32> to vector<512x4xf32>
    %c0_95 = arith.constant 0 : index
    %c0_96 = arith.constant 0 : index
    %c0_97 = arith.constant 0 : index
    %c0_98 = arith.constant 0 : index
    %67 = vector.load %arg4[%c0_95, %c0_96, %c0_97, %c0_98] : memref<3x3x4x4xf32, #tpu.memory_space<vmem>>, vector<1x1x4x4xf32>
    %68 = vector.shape_cast %67 : vector<1x1x4x4xf32> to vector<4x4xf32>
    %cst_99 = arith.constant dense<0.000000e+00> : vector<512x4xf32>
    %69 = tpu.matmul %66, %68, %cst_99 {dimension_numbers = #tpu.dot_dimension_numbers<[1], [0], [0], [1], [0, 0, 1, 1], [], []>} : vector<512x4xf32>, vector<4x4xf32>, vector<512x4xf32> -> vector<512x4xf32>
    %70 = arith.addf %64, %69 : vector<512x4xf32>
    %c0_100 = arith.constant 0 : index
    %c0_101 = arith.constant 0 : index
    %c1_102 = arith.constant 1 : index
    %c0_103 = arith.constant 0 : index
    %71 = vector.load %arg7[%c0_100, %c0_101, %c1_102, %c0_103] : memref<2x18x18x4xf32, #tpu.memory_space<vmem>>, vector<2x16x16x4xf32>
    %72 = vector.shape_cast %71 : vector<2x16x16x4xf32> to vector<512x4xf32>
    %c0_104 = arith.constant 0 : index
    %c1_105 = arith.constant 1 : index
    %c0_106 = arith.constant 0 : index
    %c0_107 = arith.constant 0 : index
    %73 = vector.load %arg4[%c0_104, %c1_105, %c0_106, %c0_107] : memref<3x3x4x4xf32, #tpu.memory_space<vmem>>, vector<1x1x4x4xf32>
    %74 = vector.shape_cast %73 : vector<1x1x4x4xf32> to vector<4x4xf32>
    %cst_108 = arith.constant dense<0.000000e+00> : vector<512x4xf32>
    %75 = tpu.matmul %72, %74, %cst_108 {dimension_numbers = #tpu.dot_dimension_numbers<[1], [0], [0], [1], [0, 0, 1, 1], [], []>} : vector<512x4xf32>, vector<4x4xf32>, vector<512x4xf32> -> vector<512x4xf32>
    %76 = arith.addf %70, %75 : vector<512x4xf32>
    %c0_109 = arith.constant 0 : index
    %c0_110 = arith.constant 0 : index
    %c2_111 = arith.constant 2 : index
    %c0_112 = arith.constant 0 : index
    %77 = vector.load %arg7[%c0_109, %c0_110, %c2_111, %c0_112] : memref<2x18x18x4xf32, #tpu.memory_space<vmem>>, vector<2x16x16x4xf32>
    %78 = vector.shape_cast %77 : vector<2x16x16x4xf32> to vector<512x4xf32>
    %c0_113 = arith.constant 0 : index
    %c2_114 = arith.constant 2 : index
    %c0_115 = arith.constant 0 : index
    %c0_116 = arith.constant 0 : index
    %79 = vector.load %arg4[%c0_113, %c2_114, %c0_115, %c0_116] : memref<3x3x4x4xf32, #tpu.memory_space<vmem>>, vector<1x1x4x4xf32>
    %80 = vector.shape_cast %79 : vector<1x1x4x4xf32> to vector<4x4xf32>
    %cst_117 = arith.constant dense<0.000000e+00> : vector<512x4xf32>
    %81 = tpu.matmul %78, %80, %cst_117 {dimension_numbers = #tpu.dot_dimension_numbers<[1], [0], [0], [1], [0, 0, 1, 1], [], []>} : vector<512x4xf32>, vector<4x4xf32>, vector<512x4xf32> -> vector<512x4xf32>
    %82 = arith.addf %76, %81 : vector<512x4xf32>
    %c0_118 = arith.constant 0 : index
    %c1_119 = arith.constant 1 : index
    %c0_120 = arith.constant 0 : index
    %c0_121 = arith.constant 0 : index
    %83 = vector.load %arg7[%c0_118, %c1_119, %c0_120, %c0_121] : memref<2x18x18x4xf32, #tpu.memory_space<vmem>>, vector<2x16x16x4xf32>
    %84 = vector.shape_cast %83 : vector<2x16x16x4xf32> to vector<512x4xf32>
    %c1_122 = arith.constant 1 : index
    %c0_123 = arith.constant 0 : index
    %c0_124 = arith.constant 0 : index
    %c0_125 = arith.constant 0 : index
    %85 = vector.load %arg4[%c1_122, %c0_123, %c0_124, %c0_125] : memref<3x3x4x4xf32, #tpu.memory_space<vmem>>, vector<1x1x4x4xf32>
    %86 = vector.shape_cast %85 : vector<1x1x4x4xf32> to vector<4x4xf32>
    %cst_126 = arith.constant dense<0.000000e+00> : vector<512x4xf32>
    %87 = tpu.matmul %84, %86, %cst_126 {dimension_numbers = #tpu.dot_dimension_numbers<[1], [0], [0], [1], [0, 0, 1, 1], [], []>} : vector<512x4xf32>, vector<4x4xf32>, vector<512x4xf32> -> vector<512x4xf32>
    %88 = arith.addf %82, %87 : vector<512x4xf32>
    %c0_127 = arith.constant 0 : index
    %c1_128 = arith.constant 1 : index
    %c1_129 = arith.constant 1 : index
    %c0_130 = arith.constant 0 : index
    %89 = vector.load %arg7[%c0_127, %c1_128, %c1_129, %c0_130] : memref<2x18x18x4xf32, #tpu.memory_space<vmem>>, vector<2x16x16x4xf32>
    %90 = vector.shape_cast %89 : vector<2x16x16x4xf32> to vector<512x4xf32>
    %c1_131 = arith.constant 1 : index
    %c1_132 = arith.constant 1 : index
    %c0_133 = arith.constant 0 : index
    %c0_134 = arith.constant 0 : index
    %91 = vector.load %arg4[%c1_131, %c1_132, %c0_133, %c0_134] : memref<3x3x4x4xf32, #tpu.memory_space<vmem>>, vector<1x1x4x4xf32>
    %92 = vector.shape_cast %91 : vector<1x1x4x4xf32> to vector<4x4xf32>
    %cst_135 = arith.constant dense<0.000000e+00> : vector<512x4xf32>
    %93 = tpu.matmul %90, %92, %cst_135 {dimension_numbers = #tpu.dot_dimension_numbers<[1], [0], [0], [1], [0, 0, 1, 1], [], []>} : vector<512x4xf32>, vector<4x4xf32>, vector<512x4xf32> -> vector<512x4xf32>
    %94 = arith.addf %88, %93 : vector<512x4xf32>
    %c0_136 = arith.constant 0 : index
    %c1_137 = arith.constant 1 : index
    %c2_138 = arith.constant 2 : index
    %c0_139 = arith.constant 0 : index
    %95 = vector.load %arg7[%c0_136, %c1_137, %c2_138, %c0_139] : memref<2x18x18x4xf32, #tpu.memory_space<vmem>>, vector<2x16x16x4xf32>
    %96 = vector.shape_cast %95 : vector<2x16x16x4xf32> to vector<512x4xf32>
    %c1_140 = arith.constant 1 : index
    %c2_141 = arith.constant 2 : index
    %c0_142 = arith.constant 0 : index
    %c0_143 = arith.constant 0 : index
    %97 = vector.load %arg4[%c1_140, %c2_141, %c0_142, %c0_143] : memref<3x3x4x4xf32, #tpu.memory_space<vmem>>, vector<1x1x4x4xf32>
    %98 = vector.shape_cast %97 : vector<1x1x4x4xf32> to vector<4x4xf32>
    %cst_144 = arith.constant dense<0.000000e+00> : vector<512x4xf32>
    %99 = tpu.matmul %96, %98, %cst_144 {dimension_numbers = #tpu.dot_dimension_numbers<[1], [0], [0], [1], [0, 0, 1, 1], [], []>} : vector<512x4xf32>, vector<4x4xf32>, vector<512x4xf32> -> vector<512x4xf32>
    %100 = arith.addf %94, %99 : vector<512x4xf32>
    %c0_145 = arith.constant 0 : index
    %c2_146 = arith.constant 2 : index
    %c0_147 = arith.constant 0 : index
    %c0_148 = arith.constant 0 : index
    %101 = vector.load %arg7[%c0_145, %c2_146, %c0_147, %c0_148] : memref<2x18x18x4xf32, #tpu.memory_space<vmem>>, vector<2x16x16x4xf32>
    %102 = vector.shape_cast %101 : vector<2x16x16x4xf32> to vector<512x4xf32>
    %c2_149 = arith.constant 2 : index
    %c0_150 = arith.constant 0 : index
    %c0_151 = arith.constant 0 : index
    %c0_152 = arith.constant 0 : index
    %103 = vector.load %arg4[%c2_149, %c0_150, %c0_151, %c0_152] : memref<3x3x4x4xf32, #tpu.memory_space<vmem>>, vector<1x1x4x4xf32>
    %104 = vector.shape_cast %103 : vector<1x1x4x4xf32> to vector<4x4xf32>
    %cst_153 = arith.constant dense<0.000000e+00> : vector<512x4xf32>
    %105 = tpu.matmul %102, %104, %cst_153 {dimension_numbers = #tpu.dot_dimension_numbers<[1], [0], [0], [1], [0, 0, 1, 1], [], []>} : vector<512x4xf32>, vector<4x4xf32>, vector<512x4xf32> -> vector<512x4xf32>
    %106 = arith.addf %100, %105 : vector<512x4xf32>
    %c0_154 = arith.constant 0 : index
    %c2_155 = arith.constant 2 : index
    %c1_156 = arith.constant 1 : index
    %c0_157 = arith.constant 0 : index
    %107 = vector.load %arg7[%c0_154, %c2_155, %c1_156, %c0_157] : memref<2x18x18x4xf32, #tpu.memory_space<vmem>>, vector<2x16x16x4xf32>
    %108 = vector.shape_cast %107 : vector<2x16x16x4xf32> to vector<512x4xf32>
    %c2_158 = arith.constant 2 : index
    %c1_159 = arith.constant 1 : index
    %c0_160 = arith.constant 0 : index
    %c0_161 = arith.constant 0 : index
    %109 = vector.load %arg4[%c2_158, %c1_159, %c0_160, %c0_161] : memref<3x3x4x4xf32, #tpu.memory_space<vmem>>, vector<1x1x4x4xf32>
    %110 = vector.shape_cast %109 : vector<1x1x4x4xf32> to vector<4x4xf32>
    %cst_162 = arith.constant dense<0.000000e+00> : vector<512x4xf32>
    %111 = tpu.matmul %108, %110, %cst_162 {dimension_numbers = #tpu.dot_dimension_numbers<[1], [0], [0], [1], [0, 0, 1, 1], [], []>} : vector<512x4xf32>, vector<4x4xf32>, vector<512x4xf32> -> vector<512x4xf32>
    %112 = arith.addf %106, %111 : vector<512x4xf32>
    %c0_163 = arith.constant 0 : index
    %c2_164 = arith.constant 2 : index
    %c2_165 = arith.constant 2 : index
    %c0_166 = arith.constant 0 : index
    %113 = vector.load %arg7[%c0_163, %c2_164, %c2_165, %c0_166] : memref<2x18x18x4xf32, #tpu.memory_space<vmem>>, vector<2x16x16x4xf32>
    %114 = vector.shape_cast %113 : vector<2x16x16x4xf32> to vector<512x4xf32>
    %c2_167 = arith.constant 2 : index
    %c2_168 = arith.constant 2 : index
    %c0_169 = arith.constant 0 : index
    %c0_170 = arith.constant 0 : index
    %115 = vector.load %arg4[%c2_167, %c2_168, %c0_169, %c0_170] : memref<3x3x4x4xf32, #tpu.memory_space<vmem>>, vector<1x1x4x4xf32>
    %116 = vector.shape_cast %115 : vector<1x1x4x4xf32> to vector<4x4xf32>
    %cst_171 = arith.constant dense<0.000000e+00> : vector<512x4xf32>
    %117 = tpu.matmul %114, %116, %cst_171 {dimension_numbers = #tpu.dot_dimension_numbers<[1], [0], [0], [1], [0, 0, 1, 1], [], []>} : vector<512x4xf32>, vector<4x4xf32>, vector<512x4xf32> -> vector<512x4xf32>
    %118 = arith.addf %112, %117 : vector<512x4xf32>
    %c0_172 = arith.constant 0 : index
    %c0_173 = arith.constant 0 : index
    %119 = vector.load %arg5[%c0_172, %c0_173] : memref<1x4xf32, #tpu.memory_space<vmem>>, vector<1x4xf32>
    %120 = vector.broadcast %119 : vector<1x4xf32> to vector<512x4xf32>
    %121 = arith.addf %118, %120 : vector<512x4xf32>
    %c0_174 = arith.constant 0 : index
    %c1_175 = arith.constant 1 : index
    %c1_176 = arith.constant 1 : index
    %c0_177 = arith.constant 0 : index
    %122 = vector.load %arg1[%c0_174, %c1_175, %c1_176, %c0_177] : memref<2x18x18x4xf32, #tpu.memory_space<vmem>>, vector<2x16x16x4xf32>
    %123 = vector.shape_cast %122 : vector<2x16x16x4xf32> to vector<512x4xf32>
    %124 = arith.addf %123, %121 : vector<512x4xf32>
    %cst_178 = arith.constant 0.000000e+00 : f32
    %125 = vector.broadcast %cst_178 : f32 to vector<512x4xf32>
    %126 = arith.maximumf %124, %125 : vector<512x4xf32>
    %127 = vector.shape_cast %126 : vector<512x4xf32> to vector<2x16x16x4xf32>
    %c0_179 = arith.constant 0 : index
    %c0_180 = arith.constant 0 : index
    %c0_181 = arith.constant 0 : index
    %c0_182 = arith.constant 0 : index
    %128 = vector.load %arg6[%c0_179, %c0_180, %c0_181, %c0_182] : memref<2x16x16x4xf32, #tpu.memory_space<vmem>>, vector<2x16x16x4xf32>
    tpu.vector_store %arg6[%c0_179, %c0_180, %c0_181, %c0_182], %127 {strides = array<i32>} : memref<2x16x16x4xf32, #tpu.memory_space<vmem>>, vector<2x16x16x4xf32>,
    return
  }
  func.func @transform_0(%arg0: i32) -> (i32, i32, i32, i32) {
    %c0_i32 = arith.constant 0 : i32
    %c0_i32_0 = arith.constant 0 : i32
    %c0_i32_1 = arith.constant 0 : i32
    %c0_i32_2 = arith.constant 0 : i32
    return %arg0, %c0_i32, %c0_i32_0, %c0_i32_1 : i32, i32, i32, i32
  }
  func.func @transform_1(%arg0: i32) -> (i32, i32, i32, i32) {
    %c0_i32 = arith.constant 0 : i32
    %c0_i32_0 = arith.constant 0 : i32
    %c0_i32_1 = arith.constant 0 : i32
    %c0_i32_2 = arith.constant 0 : i32
    %c0_i32_3 = arith.constant 0 : i32
    return %c0_i32, %c0_i32_0, %c0_i32_1, %c0_i32_2 : i32, i32, i32, i32
  }
  func.func @transform_2(%arg0: i32) -> (i32, i32) {
    %c0_i32 = arith.constant 0 : i32
    %c0_i32_0 = arith.constant 0 : i32
    %c0_i32_1 = arith.constant 0 : i32
    return %c0_i32, %c0_i32_0 : i32, i32
  }
  func.func @transform_3(%arg0: i32) -> (i32, i32, i32, i32) {
    %c0_i32 = arith.constant 0 : i32
    %c0_i32_0 = arith.constant 0 : i32
    %c0_i32_1 = arith.constant 0 : i32
    %c0_i32_2 = arith.constant 0 : i32
    %c0_i32_3 = arith.constant 0 : i32
    return %c0_i32, %c0_i32_0, %c0_i32_1, %c0_i32_2 : i32, i32, i32, i32
  }
  func.func @transform_4(%arg0: i32) -> (i32, i32) {
    %c0_i32 = arith.constant 0 : i32
    %c0_i32_0 = arith.constant 0 : i32
    %c0_i32_1 = arith.constant 0 : i32
    return %c0_i32, %c0_i32_0 : i32, i32
  }
  func.func @transform_5(%arg0: i32) -> (i32, i32, i32, i32) {
    %c0_i32 = arith.constant 0 : i32
    %c0_i32_0 = arith.constant 0 : i32
    %c0_i32_1 = arith.constant 0 : i32
    %c0_i32_2 = arith.constant 0 : i32
    return %arg0, %c0_i32, %c0_i32_0, %c0_i32_1 : i32, i32, i32, i32
  }
}

</mosaic_0001>

<llo_original>
// kernel: tpu_custom_call.1
$region0: #{tpu_custom_call.1}
  #allocation0 [shape = 'u32[]', space=smem, size = 0x4, offset = 0x4, fixed_abs, tag = 'smem constant byte address 0x4 - core index']
  #allocation1 [shape = 'u32[72,128]{1,0:T(1,128)}', space=vmem, size = 0x9000, scoped, tag = 'internal scratch']
  #allocation2 [shape = 'f32[2,18,18,4]{3,2,1,0:T(8,128)}', space=vmem, size = 0x6c000, scoped, tag = 'scratch operand']
  %s0 = inlined_call_operand.vmem [shape: f32[2,18,18,4], index: 0, kind: input, shape index: {}]
  %s1 = inlined_call_operand.vmem [shape: f32[3,3,4,4], index: 1, kind: input, shape index: {}]
  %s2 = inlined_call_operand.vmem [shape: f32[1,4], index: 2, kind: input, shape index: {}]
  %s3 = inlined_call_operand.vmem [shape: f32[3,3,4,4], index: 3, kind: input, shape index: {}]
  %s4 = inlined_call_operand.vmem [shape: f32[1,4], index: 4, kind: input, shape index: {}]
  %s5 = inlined_call_operand.vmem [shape: f32[2,16,16,4], index: 5, kind: output, shape index: {}]
  %s6 = sld [smem:[#allocation0]]
  $region30: #{tpu_custom_call.1} parent=0
    _
  %s8 = ssub.s32 1, %s6
  %s9 = scalar_select 0, %s8, %s6
  // Predicated region
  $region2: #{tpu_custom_call.1} parent=0 // pred_check
    _
  $region3: #{tpu_custom_call.1} parent=0 // pred_check_branch
    %11 = sbr.rel (0) target = $region5
  $region4: #{tpu_custom_call.1} parent=0 // pred_region
    _
  $region5: #{tpu_custom_call.1} parent=0 // pred_fallthru
    _
  // Predicated region
  $region6: #{tpu_custom_call.1} parent=0 // pred_check
    _
  $region7: #{tpu_custom_call.1} parent=0 // pred_check_branch
    %13 = sbr.rel (0) target = $region9
  $region8: #{tpu_custom_call.1} parent=0 // pred_region
    _
  $region9: #{tpu_custom_call.1} parent=0 // pred_fallthru
    _
  // Predicated region
  $region10: #{tpu_custom_call.1} parent=0 // pred_check
    _
  $region11: #{tpu_custom_call.1} parent=0 // pred_check_branch
    %15 = sbr.rel (0) target = $region13
  $region12: #{tpu_custom_call.1} parent=0 // pred_region
    _
  $region13: #{tpu_custom_call.1} parent=0 // pred_fallthru
    _
  // Predicated region
  $region14: #{tpu_custom_call.1} parent=0 // pred_check
    _
  $region15: #{tpu_custom_call.1} parent=0 // pred_check_branch
    %17 = sbr.rel (0) target = $region17
  $region16: #{tpu_custom_call.1} parent=0 // pred_region
    _
  $region17: #{tpu_custom_call.1} parent=0 // pred_fallthru
    _
  // Predicated region
  $region18: #{tpu_custom_call.1} parent=0 // pred_check
    _
  $region19: #{tpu_custom_call.1} parent=0 // pred_check_branch
    %19 = sbr.rel (0) target = $region21
  $region20: #{tpu_custom_call.1} parent=0 // pred_region
    _
  $region21: #{tpu_custom_call.1} parent=0 // pred_fallthru
    _
  %v20 = vld [vmem:[%s0] sm:$0xff]
  %v21 = vld [vmem:[%s0 + $0x8] sm:$0xff]
  %v22 = vld [vmem:[%s0 + $0x18] sm:$0xff]
  %v23 = vld [vmem:[%s0 + $0x20] sm:$0xff]
  %v24 = vld [vmem:[%s0 + $0x30] sm:$0xff]
  %v25 = vld [vmem:[%s0 + $0x38] sm:$0xff]
  %v26 = vld [vmem:[%s0 + $0x48] sm:$0xff]
  %v27 = vld [vmem:[%s0 + $0x50] sm:$0xff]
  %v28 = vld [vmem:[%s0 + $0x60] sm:$0xff]
  %v29 = vld [vmem:[%s0 + $0x68] sm:$0xff]
  %v30 = vld [vmem:[%s0 + $0x78] sm:$0xff]
  %v31 = vld [vmem:[%s0 + $0x80] sm:$0xff]
  %v32 = vld [vmem:[%s0 + $0x90] sm:$0xff]
  %v33 = vld [vmem:[%s0 + $0x98] sm:$0xff]
  %v34 = vld [vmem:[%s0 + $0xa8] sm:$0xff]
  %v35 = vld [vmem:[%s0 + $0xb0] sm:$0xff]
  %v36 = vld [vmem:[%s0 + $0xc0] sm:$0xff]
  %v37 = vld [vmem:[%s0 + $0xc8] sm:$0xff]
  %v38 = vld [vmem:[%s0 + $0xd8] sm:$0xff]
  %v39 = vld [vmem:[%s0 + $0xe0] sm:$0xff]
  %v40 = vld [vmem:[%s0 + $0xf0] sm:$0xff]
  %v41 = vld [vmem:[%s0 + $0xf8] sm:$0xff]
  %v42 = vld [vmem:[%s0 + $0x108] sm:$0xff]
  %v43 = vld [vmem:[%s0 + $0x110] sm:$0xff]
  %v44 = vld [vmem:[%s0 + $0x120] sm:$0xff]
  %v45 = vld [vmem:[%s0 + $0x128] sm:$0xff]
  %v46 = vld [vmem:[%s0 + $0x138] sm:$0xff]
  %v47 = vld [vmem:[%s0 + $0x140] sm:$0xff]
  %v48 = vld [vmem:[%s0 + $0x150] sm:$0xff]
  %v49 = vld [vmem:[%s0 + $0x158] sm:$0xff]
  %v50 = vld [vmem:[%s0 + $0x168] sm:$0xff]
  %v51 = vld [vmem:[%s0 + $0x170] sm:$0xff]
  %v52 = vld [vmem:[%s0 + $0x1b0] sm:$0xff]
  %v53 = vld [vmem:[%s0 + $0x1b8] sm:$0xff]
  %v54 = vld [vmem:[%s0 + $0x1c8] sm:$0xff]
  %v55 = vld [vmem:[%s0 + $0x1d0] sm:$0xff]
  %v56 = vld [vmem:[%s0 + $0x1e0] sm:$0xff]
  %v57 = vld [vmem:[%s0 + $0x1e8] sm:$0xff]
  %v58 = vld [vmem:[%s0 + $0x1f8] sm:$0xff]
  %v59 = vld [vmem:[%s0 + $0x200] sm:$0xff]
  %v60 = vld [vmem:[%s0 + $0x210] sm:$0xff]
  %v61 = vld [vmem:[%s0 + $0x218] sm:$0xff]
  %v62 = vld [vmem:[%s0 + $0x228] sm:$0xff]
  %v63 = vld [vmem:[%s0 + $0x230] sm:$0xff]
  %v64 = vld [vmem:[%s0 + $0x240] sm:$0xff]
  %v65 = vld [vmem:[%s0 + $0x248] sm:$0xff]
  %v66 = vld [vmem:[%s0 + $0x258] sm:$0xff]
  %v67 = vld [vmem:[%s0 + $0x260] sm:$0xff]
  %v68 = vld [vmem:[%s0 + $0x270] sm:$0xff]
  %v69 = vld [vmem:[%s0 + $0x278] sm:$0xff]
  %v70 = vld [vmem:[%s0 + $0x288] sm:$0xff]
  %v71 = vld [vmem:[%s0 + $0x290] sm:$0xff]
  %v72 = vld [vmem:[%s0 + $0x2a0] sm:$0xff]
  %v73 = vld [vmem:[%s0 + $0x2a8] sm:$0xff]
  %v74 = vld [vmem:[%s0 + $0x2b8] sm:$0xff]
  %v75 = vld [vmem:[%s0 + $0x2c0] sm:$0xff]
  %v76 = vld [vmem:[%s0 + $0x2d0] sm:$0xff]
  %v77 = vld [vmem:[%s0 + $0x2d8] sm:$0xff]
  %v78 = vld [vmem:[%s0 + $0x2e8] sm:$0xff]
  %v79 = vld [vmem:[%s0 + $0x2f0] sm:$0xff]
  %v80 = vld [vmem:[%s0 + $0x300] sm:$0xff]
  %v81 = vld [vmem:[%s0 + $0x308] sm:$0xff]
  %v82 = vld [vmem:[%s0 + $0x318] sm:$0xff]
  %v83 = vld [vmem:[%s0 + $0x320] sm:$0xff]
  %v84 = vld [vmem:[%s1] sm:$0xf]
  %v85 = vld [vmem:[%s0 + $0x1] sm:$0xff]
  %v86 = vld [vmem:[%s0 + $0x9] sm:$0xff]
  %v87 = vld [vmem:[%s0 + $0x19] sm:$0xff]
  %v88 = vld [vmem:[%s0 + $0x21] sm:$0xff]
  %v89 = vld [vmem:[%s0 + $0x31] sm:$0xff]
  %v90 = vld [vmem:[%s0 + $0x39] sm:$0xff]
  %v91 = vld [vmem:[%s0 + $0x49] sm:$0xff]
  %v92 = vld [vmem:[%s0 + $0x51] sm:$0xff]
  %v93 = vld [vmem:[%s0 + $0x61] sm:$0xff]
  %v94 = vld [vmem:[%s0 + $0x69] sm:$0xff]
  %v95 = vld [vmem:[%s0 + $0x79] sm:$0xff]
  %v96 = vld [vmem:[%s0 + $0x81] sm:$0xff]
  %v97 = vld [vmem:[%s0 + $0x91] sm:$0xff]
  %v98 = vld [vmem:[%s0 + $0x99] sm:$0xff]
  %v99 = vld [vmem:[%s0 + $0xa9] sm:$0xff]
  %v100 = vld [vmem:[%s0 + $0xb1] sm:$0xff]
  %v101 = vld [vmem:[%s0 + $0xc1] sm:$0xff]
  %v102 = vld [vmem:[%s0 + $0xc9] sm:$0xff]
  %v103 = vld [vmem:[%s0 + $0xd9] sm:$0xff]
  %v104 = vld [vmem:[%s0 + $0xe1] sm:$0xff]
  %v105 = vld [vmem:[%s0 + $0xf1] sm:$0xff]
  %v106 = vld [vmem:[%s0 + $0xf9] sm:$0xff]
  %v107 = vld [vmem:[%s0 + $0x109] sm:$0xff]
  %v108 = vld [vmem:[%s0 + $0x111] sm:$0xff]
  %v109 = vld [vmem:[%s0 + $0x121] sm:$0xff]
  %v110 = vld [vmem:[%s0 + $0x129] sm:$0xff]
  %v111 = vld [vmem:[%s0 + $0x139] sm:$0xff]
  %v112 = vld [vmem:[%s0 + $0x141] sm:$0xff]
  %v113 = vld [vmem:[%s0 + $0x151] sm:$0xff]
  %v114 = vld [vmem:[%s0 + $0x159] sm:$0xff]
  %v115 = vld [vmem:[%s0 + $0x169] sm:$0xff]
  %v116 = vld [vmem:[%s0 + $0x171] sm:$0xff]
  %v117 = vld [vmem:[%s0 + $0x1b1] sm:$0xff]
  %v118 = vld [vmem:[%s0 + $0x1b9] sm:$0xff]
  %v119 = vld [vmem:[%s0 + $0x1c9] sm:$0xff]
  %v120 = vld [vmem:[%s0 + $0x1d1] sm:$0xff]
  %v121 = vld [vmem:[%s0 + $0x1e1] sm:$0xff]
  %v122 = vld [vmem:[%s0 + $0x1e9] sm:$0xff]
  %v123 = vld [vmem:[%s0 + $0x1f9] sm:$0xff]
  %v124 = vld [vmem:[%s0 + $0x201] sm:$0xff]
  %v125 = vld [vmem:[%s0 + $0x211] sm:$0xff]
  %v126 = vld [vmem:[%s0 + $0x219] sm:$0xff]
  %v127 = vld [vmem:[%s0 + $0x229] sm:$0xff]
  %v128 = vld [vmem:[%s0 + $0x231] sm:$0xff]
  %v129 = vld [vmem:[%s0 + $0x241] sm:$0xff]
  %v130 = vld [vmem:[%s0 + $0x249] sm:$0xff]
  %v131 = vld [vmem:[%s0 + $0x259] sm:$0xff]
  %v132 = vld [vmem:[%s0 + $0x261] sm:$0xff]
  %v133 = vld [vmem:[%s0 + $0x271] sm:$0xff]
  %v134 = vld [vmem:[%s0 + $0x279] sm:$0xff]
  %v135 = vld [vmem:[%s0 + $0x289] sm:$0xff]
  %v136 = vld [vmem:[%s0 + $0x291] sm:$0xff]
  %v137 = vld [vmem:[%s0 + $0x2a1] sm:$0xff]
  %v138 = vld [vmem:[%s0 + $0x2a9] sm:$0xff]
  %v139 = vld [vmem:[%s0 + $0x2b9] sm:$0xff]
  %v140 = vld [vmem:[%s0 + $0x2c1] sm:$0xff]
  %v141 = vld [vmem:[%s0 + $0x2d1] sm:$0xff]
  %v142 = vld [vmem:[%s0 + $0x2d9] sm:$0xff]
  %v143 = vld [vmem:[%s0 + $0x2e9] sm:$0xff]
  %v144 = vld [vmem:[%s0 + $0x2f1] sm:$0xff]
  %v145 = vld [vmem:[%s0 + $0x301] sm:$0xff]
  %v146 = vld [vmem:[%s0 + $0x309] sm:$0xff]
  %v147 = vld [vmem:[%s0 + $0x319] sm:$0xff]
  %v148 = vld [vmem:[%s0 + $0x321] sm:$0xff]
  %s149 = scalar_lea.vmem %s1, 4
  %v150 = vld [vmem:[%s149] sm:$0xf]
  %vm151 = vcmask 31744
  %v153 = vsel %vm151, %v85, 0
  %v156 = vsel %vm151, %v86, 0
  %v159 = vsel %vm151, %v87, 0
  %v162 = vsel %vm151, %v88, 0
  %v165 = vsel %vm151, %v89, 0
  %v168 = vsel %vm151, %v90, 0
  %v171 = vsel %vm151, %v91, 0
  %v174 = vsel %vm151, %v92, 0
  %v177 = vsel %vm151, %v93, 0
  %v180 = vsel %vm151, %v94, 0
  %v183 = vsel %vm151, %v95, 0
  %v186 = vsel %vm151, %v96, 0
  %v189 = vsel %vm151, %v97, 0
  %v192 = vsel %vm151, %v98, 0
  %v195 = vsel %vm151, %v99, 0
  %v198 = vsel %vm151, %v100, 0
  %v201 = vsel %vm151, %v101, 0
  %v204 = vsel %vm151, %v102, 0
  %v207 = vsel %vm151, %v103, 0
  %v210 = vsel %vm151, %v104, 0
  %v213 = vsel %vm151, %v105, 0
  %v216 = vsel %vm151, %v106, 0
  %v219 = vsel %vm151, %v107, 0
  %v222 = vsel %vm151, %v108, 0
  %v225 = vsel %vm151, %v109, 0
  %v228 = vsel %vm151, %v110, 0
  %v231 = vsel %vm151, %v111, 0
  %v234 = vsel %vm151, %v112, 0
  %v237 = vsel %vm151, %v113, 0
  %v240 = vsel %vm151, %v114, 0
  %v243 = vsel %vm151, %v115, 0
  %v246 = vsel %vm151, %v116, 0
  %v249 = vsel %vm151, %v117, 0
  %v252 = vsel %vm151, %v118, 0
  %v255 = vsel %vm151, %v119, 0
  %v258 = vsel %vm151, %v120, 0
  %v261 = vsel %vm151, %v121, 0
  %v264 = vsel %vm151, %v122, 0
  %v267 = vsel %vm151, %v123, 0
  %v270 = vsel %vm151, %v124, 0
  %v273 = vsel %vm151, %v125, 0
  %v276 = vsel %vm151, %v126, 0
  %v279 = vsel %vm151, %v127, 0
  %v282 = vsel %vm151, %v128, 0
  %v285 = vsel %vm151, %v129, 0
  %v288 = vsel %vm151, %v130, 0
  %v291 = vsel %vm151, %v131, 0
  %v294 = vsel %vm151, %v132, 0
  %v297 = vsel %vm151, %v133, 0
  %v300 = vsel %vm151, %v134, 0
  %v303 = vsel %vm151, %v135, 0
  %v306 = vsel %vm151, %v136, 0
  %v309 = vsel %vm151, %v137, 0
  %v312 = vsel %vm151, %v138, 0
  %v315 = vsel %vm151, %v139, 0
  %v318 = vsel %vm151, %v140, 0
  %v321 = vsel %vm151, %v141, 0
  %v324 = vsel %vm151, %v142, 0
  %v327 = vsel %vm151, %v143, 0
  %v330 = vsel %vm151, %v144, 0
  %v333 = vsel %vm151, %v145, 0
  %v336 = vsel %vm151, %v146, 0
  %v339 = vsel %vm151, %v147, 0
  %v342 = vsel %vm151, %v148, 0
  %vm344 = vcmask 1043456
  %v346 = vsel %vm344, %v150, 0
  %348 = vmatpush.msra.mxu0 0.0
  %349 = vmatpush.msra.mxu0 0.0
  %350 = vmatpush.msra.mxu0 0.0
  %351 = vmatpush.msra.mxu0 0.0
  %352 = vmatpush.msra.mxu0 0.0
  %353 = vmatpush.msra.mxu0 0.0
  %354 = vmatpush.msra.mxu0 0.0
  %355 = vmatpush.msra.mxu0 0.0
  %356 = vmatpush.msra.mxu0 0.0
  %357 = vmatpush.msra.mxu0 0.0
  %358 = vmatpush.msra.mxu0 0.0
  %359 = vmatpush.msra.mxu0 0.0
  %360 = vmatpush.msra.mxu0 0.0
  %361 = vmatpush.msra.mxu0 0.0
  %362 = vmatpush.msra.mxu0 0.0
  %363 = vmatpush.msra.mxu0 %v346
  %364 = vmatmul.f32.gmra.mxu0 %v153
  %v365 = vpop.f32.mrf.mxu0
  %v366 = vadd.f32 0.0, %v365
  %367 = vmatmul.f32.gmra.mxu0 %v156
  %v368 = vpop.f32.mrf.mxu0
  %v369 = vadd.f32 0.0, %v368
  %370 = vmatmul.f32.gmra.mxu0 %v159
  %v371 = vpop.f32.mrf.mxu0
  %v372 = vadd.f32 0.0, %v371
  %373 = vmatmul.f32.gmra.mxu0 %v162
  %v374 = vpop.f32.mrf.mxu0
  %v375 = vadd.f32 0.0, %v374
  %376 = vmatmul.f32.gmra.mxu0 %v165
  %v377 = vpop.f32.mrf.mxu0
  %v378 = vadd.f32 0.0, %v377
  %379 = vmatmul.f32.gmra.mxu0 %v168
  %v380 = vpop.f32.mrf.mxu0
  %v381 = vadd.f32 0.0, %v380
  %382 = vmatmul.f32.gmra.mxu0 %v171
  %v383 = vpop.f32.mrf.mxu0
  %v384 = vadd.f32 0.0, %v383
  %385 = vmatmul.f32.gmra.mxu0 %v174
  %v386 = vpop.f32.mrf.mxu0
  %v387 = vadd.f32 0.0, %v386
  %388 = vmatmul.f32.gmra.mxu0 %v177
  %v389 = vpop.f32.mrf.mxu0
  %v390 = vadd.f32 0.0, %v389
  %391 = vmatmul.f32.gmra.mxu0 %v180
  %v392 = vpop.f32.mrf.mxu0
  %v393 = vadd.f32 0.0, %v392
  %394 = vmatmul.f32.gmra.mxu0 %v183
  %v395 = vpop.f32.mrf.mxu0
  %v396 = vadd.f32 0.0, %v395
  %397 = vmatmul.f32.gmra.mxu0 %v186
  %v398 = vpop.f32.mrf.mxu0
  %v399 = vadd.f32 0.0, %v398
  %400 = vmatmul.f32.gmra.mxu0 %v189
  %v401 = vpop.f32.mrf.mxu0
  %v402 = vadd.f32 0.0, %v401
  %403 = vmatmul.f32.gmra.mxu0 %v192
  %v404 = vpop.f32.mrf.mxu0
  %v405 = vadd.f32 0.0, %v404
  %406 = vmatmul.f32.gmra.mxu0 %v195
  %v407 = vpop.f32.mrf.mxu0
  %v408 = vadd.f32 0.0, %v407
  %409 = vmatmul.f32.gmra.mxu0 %v198
  %v410 = vpop.f32.mrf.mxu0
  %v411 = vadd.f32 0.0, %v410
  %412 = vmatmul.f32.gmra.mxu0 %v201
  %v413 = vpop.f32.mrf.mxu0
  %v414 = vadd.f32 0.0, %v413
  %415 = vmatmul.f32.gmra.mxu0 %v204
  %v416 = vpop.f32.mrf.mxu0
  %v417 = vadd.f32 0.0, %v416
  %418 = vmatmul.f32.gmra.mxu0 %v207
  %v419 = vpop.f32.mrf.mxu0
  %v420 = vadd.f32 0.0, %v419
  %421 = vmatmul.f32.gmra.mxu0 %v210
  %v422 = vpop.f32.mrf.mxu0
  %v423 = vadd.f32 0.0, %v422
  %424 = vmatmul.f32.gmra.mxu0 %v213
  %v425 = vpop.f32.mrf.mxu0
  %v426 = vadd.f32 0.0, %v425
  %427 = vmatmul.f32.gmra.mxu0 %v216
  %v428 = vpop.f32.mrf.mxu0
  %v429 = vadd.f32 0.0, %v428
  %430 = vmatmul.f32.gmra.mxu0 %v219
  %v431 = vpop.f32.mrf.mxu0
  %v432 = vadd.f32 0.0, %v431
  %433 = vmatmul.f32.gmra.mxu0 %v222
  %v434 = vpop.f32.mrf.mxu0
  %v435 = vadd.f32 0.0, %v434
  %436 = vmatmul.f32.gmra.mxu0 %v225
  %v437 = vpop.f32.mrf.mxu0
  %v438 = vadd.f32 0.0, %v437
  %439 = vmatmul.f32.gmra.mxu0 %v228
  %v440 = vpop.f32.mrf.mxu0
  %v441 = vadd.f32 0.0, %v440
  %442 = vmatmul.f32.gmra.mxu0 %v231
  %v443 = vpop.f32.mrf.mxu0
  %v444 = vadd.f32 0.0, %v443
  %445 = vmatmul.f32.gmra.mxu0 %v234
  %v446 = vpop.f32.mrf.mxu0
  %v447 = vadd.f32 0.0, %v446
  %448 = vmatmul.f32.gmra.mxu0 %v237
  %v449 = vpop.f32.mrf.mxu0
  %v450 = vadd.f32 0.0, %v449
  %451 = vmatmul.f32.gmra.mxu0 %v240
  %v452 = vpop.f32.mrf.mxu0
  %v453 = vadd.f32 0.0, %v452
  %454 = vmatmul.f32.gmra.mxu0 %v243
  %v455 = vpop.f32.mrf.mxu0
  %v456 = vadd.f32 0.0, %v455
  %457 = vmatmul.f32.gmra.mxu0 %v246
  %v458 = vpop.f32.mrf.mxu0
  %v459 = vadd.f32 0.0, %v458
  %460 = vmatmul.f32.gmra.mxu0 %v249
  %v461 = vpop.f32.mrf.mxu0
  %v462 = vadd.f32 0.0, %v461
  %463 = vmatmul.f32.gmra.mxu0 %v252
  %v464 = vpop.f32.mrf.mxu0
  %v465 = vadd.f32 0.0, %v464
  %466 = vmatmul.f32.gmra.mxu0 %v255
  %v467 = vpop.f32.mrf.mxu0
  %v468 = vadd.f32 0.0, %v467
  %469 = vmatmul.f32.gmra.mxu0 %v258
  %v470 = vpop.f32.mrf.mxu0
  %v471 = vadd.f32 0.0, %v470
  %472 = vmatmul.f32.gmra.mxu0 %v261
  %v473 = vpop.f32.mrf.mxu0
  %v474 = vadd.f32 0.0, %v473
  %475 = vmatmul.f32.gmra.mxu0 %v264
  %v476 = vpop.f32.mrf.mxu0
  %v477 = vadd.f32 0.0, %v476
  %478 = vmatmul.f32.gmra.mxu0 %v267
  %v479 = vpop.f32.mrf.mxu0
  %v480 = vadd.f32 0.0, %v479
  %481 = vmatmul.f32.gmra.mxu0 %v270
  %v482 = vpop.f32.mrf.mxu0
  %v483 = vadd.f32 0.0, %v482
  %484 = vmatmul.f32.gmra.mxu0 %v273
  %v485 = vpop.f32.mrf.mxu0
  %v486 = vadd.f32 0.0, %v485
  %487 = vmatmul.f32.gmra.mxu0 %v276
  %v488 = vpop.f32.mrf.mxu0
  %v489 = vadd.f32 0.0, %v488
  %490 = vmatmul.f32.gmra.mxu0 %v279
  %v491 = vpop.f32.mrf.mxu0
  %v492 = vadd.f32 0.0, %v491
  %493 = vmatmul.f32.gmra.mxu0 %v282
  %v494 = vpop.f32.mrf.mxu0
  %v495 = vadd.f32 0.0, %v494
  %496 = vmatmul.f32.gmra.mxu0 %v285
  %v497 = vpop.f32.mrf.mxu0
  %v498 = vadd.f32 0.0, %v497
  %499 = vmatmul.f32.gmra.mxu0 %v288
  %v500 = vpop.f32.mrf.mxu0
  %v501 = vadd.f32 0.0, %v500
  %502 = vmatmul.f32.gmra.mxu0 %v291
  %v503 = vpop.f32.mrf.mxu0
  %v504 = vadd.f32 0.0, %v503
  %505 = vmatmul.f32.gmra.mxu0 %v294
  %v506 = vpop.f32.mrf.mxu0
  %v507 = vadd.f32 0.0, %v506
  %508 = vmatmul.f32.gmra.mxu0 %v297
  %v509 = vpop.f32.mrf.mxu0
  %v510 = vadd.f32 0.0, %v509
  %511 = vmatmul.f32.gmra.mxu0 %v300
  %v512 = vpop.f32.mrf.mxu0
  %v513 = vadd.f32 0.0, %v512
  %514 = vmatmul.f32.gmra.mxu0 %v303
  %v515 = vpop.f32.mrf.mxu0
  %v516 = vadd.f32 0.0, %v515
  %517 = vmatmul.f32.gmra.mxu0 %v306
  %v518 = vpop.f32.mrf.mxu0
  %v519 = vadd.f32 0.0, %v518
  %520 = vmatmul.f32.gmra.mxu0 %v309
  %v521 = vpop.f32.mrf.mxu0
  %v522 = vadd.f32 0.0, %v521
  %523 = vmatmul.f32.gmra.mxu0 %v312
  %v524 = vpop.f32.mrf.mxu0
  %v525 = vadd.f32 0.0, %v524
  %526 = vmatmul.f32.gmra.mxu0 %v315
  %v527 = vpop.f32.mrf.mxu0
  %v528 = vadd.f32 0.0, %v527
  %529 = vmatmul.f32.gmra.mxu0 %v318
  %v530 = vpop.f32.mrf.mxu0
  %v531 = vadd.f32 0.0, %v530
  %532 = vmatmul.f32.gmra.mxu0 %v321
  %v533 = vpop.f32.mrf.mxu0
  %v534 = vadd.f32 0.0, %v533
  %535 = vmatmul.f32.gmra.mxu0 %v324
  %v536 = vpop.f32.mrf.mxu0
  %v537 = vadd.f32 0.0, %v536
  %538 = vmatmul.f32.gmra.mxu0 %v327
  %v539 = vpop.f32.mrf.mxu0
  %v540 = vadd.f32 0.0, %v539
  %541 = vmatmul.f32.gmra.mxu0 %v330
  %v542 = vpop.f32.mrf.mxu0
  %v543 = vadd.f32 0.0, %v542
  %544 = vmatmul.f32.gmra.mxu0 %v333
  %v545 = vpop.f32.mrf.mxu0
  %v546 = vadd.f32 0.0, %v545
  %547 = vmatmul.f32.gmra.mxu0 %v336
  %v548 = vpop.f32.mrf.mxu0
  %v549 = vadd.f32 0.0, %v548
  %550 = vmatmul.f32.gmra.mxu0 %v339
  %v551 = vpop.f32.mrf.mxu0
  %v552 = vadd.f32 0.0, %v551
  %553 = vmatmul.f32.gmra.mxu0 %v342
  %v554 = vpop.f32.mrf.mxu0
  %v555 = vadd.f32 0.0, %v554
  %556 = vdwg.mxu0
  %v558 = vsel %vm151, %v20, 0
  %v561 = vsel %vm151, %v21, 0
  %v564 = vsel %vm151, %v22, 0
  %v567 = vsel %vm151, %v23, 0
  %v570 = vsel %vm151, %v24, 0
  %v573 = vsel %vm151, %v25, 0
  %v576 = vsel %vm151, %v26, 0
  %v579 = vsel %vm151, %v27, 0
  %v582 = vsel %vm151, %v28, 0
  %v585 = vsel %vm151, %v29, 0
  %v588 = vsel %vm151, %v30, 0
  %v591 = vsel %vm151, %v31, 0
  %v594 = vsel %vm151, %v32, 0
  %v597 = vsel %vm151, %v33, 0
  %v600 = vsel %vm151, %v34, 0
  %v603 = vsel %vm151, %v35, 0
  %v606 = vsel %vm151, %v36, 0
  %v609 = vsel %vm151, %v37, 0
  %v612 = vsel %vm151, %v38, 0
  %v615 = vsel %vm151, %v39, 0
  %v618 = vsel %vm151, %v40, 0
  %v621 = vsel %vm151, %v41, 0
  %v624 = vsel %vm151, %v42, 0
  %v627 = vsel %vm151, %v43, 0
  %v630 = vsel %vm151, %v44, 0
  %v633 = vsel %vm151, %v45, 0
  %v636 = vsel %vm151, %v46, 0
  %v639 = vsel %vm151, %v47, 0
  %v642 = vsel %vm151, %v48, 0
  %v645 = vsel %vm151, %v49, 0
  %v648 = vsel %vm151, %v50, 0
  %v651 = vsel %vm151, %v51, 0
  %v654 = vsel %vm151, %v52, 0
  %v657 = vsel %vm151, %v53, 0
  %v660 = vsel %vm151, %v54, 0
  %v663 = vsel %vm151, %v55, 0
  %v666 = vsel %vm151, %v56, 0
  %v669 = vsel %vm151, %v57, 0
  %v672 = vsel %vm151, %v58, 0
  %v675 = vsel %vm151, %v59, 0
  %v678 = vsel %vm151, %v60, 0
  %v681 = vsel %vm151, %v61, 0
  %v684 = vsel %vm151, %v62, 0
  %v687 = vsel %vm151, %v63, 0
  %v690 = vsel %vm151, %v64, 0
  %v693 = vsel %vm151, %v65, 0
  %v696 = vsel %vm151, %v66, 0
  %v699 = vsel %vm151, %v67, 0
  %v702 = vsel %vm151, %v68, 0
  %v705 = vsel %vm151, %v69, 0
  %v708 = vsel %vm151, %v70, 0
  %v711 = vsel %vm151, %v71, 0
  %v714 = vsel %vm151, %v72, 0
  %v717 = vsel %vm151, %v73, 0
  %v720 = vsel %vm151, %v74, 0
  %v723 = vsel %vm151, %v75, 0
  %v726 = vsel %vm151, %v76, 0
  %v729 = vsel %vm151, %v77, 0
  %v732 = vsel %vm151, %v78, 0
  %v735 = vsel %vm151, %v79, 0
  %v738 = vsel %vm151, %v80, 0
  %v741 = vsel %vm151, %v81, 0
  %v744 = vsel %vm151, %v82, 0
  %v747 = vsel %vm151, %v83, 0
  %v750 = vsel %vm344, %v84, 0
  %752 = vmatpush.msra.mxu0 0.0
  %753 = vmatpush.msra.mxu0 0.0
  %754 = vmatpush.msra.mxu0 0.0
  %755 = vmatpush.msra.mxu0 0.0
  %756 = vmatpush.msra.mxu0 0.0
  %757 = vmatpush.msra.mxu0 0.0
  %758 = vmatpush.msra.mxu0 0.0
  %759 = vmatpush.msra.mxu0 0.0
  %760 = vmatpush.msra.mxu0 0.0
  %761 = vmatpush.msra.mxu0 0.0
  %762 = vmatpush.msra.mxu0 0.0
  %763 = vmatpush.msra.mxu0 0.0
  %764 = vmatpush.msra.mxu0 0.0
  %765 = vmatpush.msra.mxu0 0.0
  %766 = vmatpush.msra.mxu0 0.0
  %767 = vmatpush.msra.mxu0 %v750
  %768 = vmatmul.f32.gmra.mxu0 %v558
  %v769 = vpop.f32.mrf.mxu0
  %v770 = vadd.f32 %v366, %v769
  %771 = vmatmul.f32.gmra.mxu0 %v561
  %v772 = vpop.f32.mrf.mxu0
  %v773 = vadd.f32 %v369, %v772
  %774 = vmatmul.f32.gmra.mxu0 %v564
  %v775 = vpop.f32.mrf.mxu0
  %v776 = vadd.f32 %v372, %v775
  %777 = vmatmul.f32.gmra.mxu0 %v567
  %v778 = vpop.f32.mrf.mxu0
  %v779 = vadd.f32 %v375, %v778
  %780 = vmatmul.f32.gmra.mxu0 %v570
  %v781 = vpop.f32.mrf.mxu0
  %v782 = vadd.f32 %v378, %v781
  %783 = vmatmul.f32.gmra.mxu0 %v573
  %v784 = vpop.f32.mrf.mxu0
  %v785 = vadd.f32 %v381, %v784
  %786 = vmatmul.f32.gmra.mxu0 %v576
  %v787 = vpop.f32.mrf.mxu0
  %v788 = vadd.f32 %v384, %v787
  %789 = vmatmul.f32.gmra.mxu0 %v579
  %v790 = vpop.f32.mrf.mxu0
  %v791 = vadd.f32 %v387, %v790
  %792 = vmatmul.f32.gmra.mxu0 %v582
  %v793 = vpop.f32.mrf.mxu0
  %v794 = vadd.f32 %v390, %v793
  %795 = vmatmul.f32.gmra.mxu0 %v585
  %v796 = vpop.f32.mrf.mxu0
  %v797 = vadd.f32 %v393, %v796
  %798 = vmatmul.f32.gmra.mxu0 %v588
  %v799 = vpop.f32.mrf.mxu0
  %v800 = vadd.f32 %v396, %v799
  %801 = vmatmul.f32.gmra.mxu0 %v591
  %v802 = vpop.f32.mrf.mxu0
  %v803 = vadd.f32 %v399, %v802
  %804 = vmatmul.f32.gmra.mxu0 %v594
  %v805 = vpop.f32.mrf.mxu0
  %v806 = vadd.f32 %v402, %v805
  %807 = vmatmul.f32.gmra.mxu0 %v597
  %v808 = vpop.f32.mrf.mxu0
  %v809 = vadd.f32 %v405, %v808
  %810 = vmatmul.f32.gmra.mxu0 %v600
  %v811 = vpop.f32.mrf.mxu0
  %v812 = vadd.f32 %v408, %v811
  %813 = vmatmul.f32.gmra.mxu0 %v603
  %v814 = vpop.f32.mrf.mxu0
  %v815 = vadd.f32 %v411, %v814
  %816 = vmatmul.f32.gmra.mxu0 %v606
  %v817 = vpop.f32.mrf.mxu0
  %v818 = vadd.f32 %v414, %v817
  %819 = vmatmul.f32.gmra.mxu0 %v609
  %v820 = vpop.f32.mrf.mxu0
  %v821 = vadd.f32 %v417, %v820
  %822 = vmatmul.f32.gmra.mxu0 %v612
  %v823 = vpop.f32.mrf.mxu0
  %v824 = vadd.f32 %v420, %v823
  %825 = vmatmul.f32.gmra.mxu0 %v615
  %v826 = vpop.f32.mrf.mxu0
  %v827 = vadd.f32 %v423, %v826
  %828 = vmatmul.f32.gmra.mxu0 %v618
  %v829 = vpop.f32.mrf.mxu0
  %v830 = vadd.f32 %v426, %v829
  %831 = vmatmul.f32.gmra.mxu0 %v621
  %v832 = vpop.f32.mrf.mxu0
  %v833 = vadd.f32 %v429, %v832
  %834 = vmatmul.f32.gmra.mxu0 %v624
  %v835 = vpop.f32.mrf.mxu0
  %v836 = vadd.f32 %v432, %v835
  %837 = vmatmul.f32.gmra.mxu0 %v627
  %v838 = vpop.f32.mrf.mxu0
  %v839 = vadd.f32 %v435, %v838
  %840 = vmatmul.f32.gmra.mxu0 %v630
  %v841 = vpop.f32.mrf.mxu0
  %v842 = vadd.f32 %v438, %v841
  %843 = vmatmul.f32.gmra.mxu0 %v633
  %v844 = vpop.f32.mrf.mxu0
  %v845 = vadd.f32 %v441, %v844
  %846 = vmatmul.f32.gmra.mxu0 %v636
  %v847 = vpop.f32.mrf.mxu0
  %v848 = vadd.f32 %v444, %v847
  %849 = vmatmul.f32.gmra.mxu0 %v639
  %v850 = vpop.f32.mrf.mxu0
  %v851 = vadd.f32 %v447, %v850
  %852 = vmatmul.f32.gmra.mxu0 %v642
  %v853 = vpop.f32.mrf.mxu0
  %v854 = vadd.f32 %v450, %v853
  %855 = vmatmul.f32.gmra.mxu0 %v645
  %v856 = vpop.f32.mrf.mxu0
  %v857 = vadd.f32 %v453, %v856
  %858 = vmatmul.f32.gmra.mxu0 %v648
  %v859 = vpop.f32.mrf.mxu0
  %v860 = vadd.f32 %v456, %v859
  %861 = vmatmul.f32.gmra.mxu0 %v651
  %v862 = vpop.f32.mrf.mxu0
  %v863 = vadd.f32 %v459, %v862
  %864 = vmatmul.f32.gmra.mxu0 %v654
  %v865 = vpop.f32.mrf.mxu0
  %v866 = vadd.f32 %v462, %v865
  %867 = vmatmul.f32.gmra.mxu0 %v657
  %v868 = vpop.f32.mrf.mxu0
  %v869 = vadd.f32 %v465, %v868
  %870 = vmatmul.f32.gmra.mxu0 %v660
  %v871 = vpop.f32.mrf.mxu0
  %v872 = vadd.f32 %v468, %v871
  %873 = vmatmul.f32.gmra.mxu0 %v663
  %v874 = vpop.f32.mrf.mxu0
  %v875 = vadd.f32 %v471, %v874
  %876 = vmatmul.f32.gmra.mxu0 %v666
  %v877 = vpop.f32.mrf.mxu0
  %v878 = vadd.f32 %v474, %v877
  %879 = vmatmul.f32.gmra.mxu0 %v669
  %v880 = vpop.f32.mrf.mxu0
  %v881 = vadd.f32 %v477, %v880
  %882 = vmatmul.f32.gmra.mxu0 %v672
  %v883 = vpop.f32.mrf.mxu0
  %v884 = vadd.f32 %v480, %v883
  %885 = vmatmul.f32.gmra.mxu0 %v675
  %v886 = vpop.f32.mrf.mxu0
  %v887 = vadd.f32 %v483, %v886
  %888 = vmatmul.f32.gmra.mxu0 %v678
  %v889 = vpop.f32.mrf.mxu0
  %v890 = vadd.f32 %v486, %v889
  %891 = vmatmul.f32.gmra.mxu0 %v681
  %v892 = vpop.f32.mrf.mxu0
  %v893 = vadd.f32 %v489, %v892
  %894 = vmatmul.f32.gmra.mxu0 %v684
  %v895 = vpop.f32.mrf.mxu0
  %v896 = vadd.f32 %v492, %v895
  %897 = vmatmul.f32.gmra.mxu0 %v687
  %v898 = vpop.f32.mrf.mxu0
  %v899 = vadd.f32 %v495, %v898
  %900 = vmatmul.f32.gmra.mxu0 %v690
  %v901 = vpop.f32.mrf.mxu0
  %v902 = vadd.f32 %v498, %v901
  %903 = vmatmul.f32.gmra.mxu0 %v693
  %v904 = vpop.f32.mrf.mxu0
  %v905 = vadd.f32 %v501, %v904
  %906 = vmatmul.f32.gmra.mxu0 %v696
  %v907 = vpop.f32.mrf.mxu0
  %v908 = vadd.f32 %v504, %v907
  %909 = vmatmul.f32.gmra.mxu0 %v699
  %v910 = vpop.f32.mrf.mxu0
  %v911 = vadd.f32 %v507, %v910
  %912 = vmatmul.f32.gmra.mxu0 %v702
  %v913 = vpop.f32.mrf.mxu0
  %v914 = vadd.f32 %v510, %v913
  %915 = vmatmul.f32.gmra.mxu0 %v705
  %v916 = vpop.f32.mrf.mxu0
  %v917 = vadd.f32 %v513, %v916
  %918 = vmatmul.f32.gmra.mxu0 %v708
  %v919 = vpop.f32.mrf.mxu0
  %v920 = vadd.f32 %v516, %v919
  %921 = vmatmul.f32.gmra.mxu0 %v711
  %v922 = vpop.f32.mrf.mxu0
  %v923 = vadd.f32 %v519, %v922
  %924 = vmatmul.f32.gmra.mxu0 %v714
  %v925 = vpop.f32.mrf.mxu0
  %v926 = vadd.f32 %v522, %v925
  %927 = vmatmul.f32.gmra.mxu0 %v717
  %v928 = vpop.f32.mrf.mxu0
  %v929 = vadd.f32 %v525, %v928
  %930 = vmatmul.f32.gmra.mxu0 %v720
  %v931 = vpop.f32.mrf.mxu0
  %v932 = vadd.f32 %v528, %v931
  %933 = vmatmul.f32.gmra.mxu0 %v723
  %v934 = vpop.f32.mrf.mxu0
  %v935 = vadd.f32 %v531, %v934
  %936 = vmatmul.f32.gmra.mxu0 %v726
  %v937 = vpop.f32.mrf.mxu0
  %v938 = vadd.f32 %v534, %v937
  %939 = vmatmul.f32.gmra.mxu0 %v729
  %v940 = vpop.f32.mrf.mxu0
  %v941 = vadd.f32 %v537, %v940
  %942 = vmatmul.f32.gmra.mxu0 %v732
  %v943 = vpop.f32.mrf.mxu0
  %v944 = vadd.f32 %v540, %v943
  %945 = vmatmul.f32.gmra.mxu0 %v735
  %v946 = vpop.f32.mrf.mxu0
  %v947 = vadd.f32 %v543, %v946
  %948 = vmatmul.f32.gmra.mxu0 %v738
  %v949 = vpop.f32.mrf.mxu0
  %v950 = vadd.f32 %v546, %v949
  %951 = vmatmul.f32.gmra.mxu0 %v741
  %v952 = vpop.f32.mrf.mxu0
  %v953 = vadd.f32 %v549, %v952
  %954 = vmatmul.f32.gmra.mxu0 %v744
  %v955 = vpop.f32.mrf.mxu0
  %v956 = vadd.f32 %v552, %v955
  %957 = vmatmul.f32.gmra.mxu0 %v747
  %v958 = vpop.f32.mrf.mxu0
  %v959 = vadd.f32 %v555, %v958
  %960 = vdwg.mxu0
  %v961 = vld [vmem:[%s0 + $0x2] sm:$0xff]
  %v962 = vld [vmem:[%s0 + $0xa] sm:$0xff]
  %v963 = vld [vmem:[%s0 + $0x1a] sm:$0xff]
  %v964 = vld [vmem:[%s0 + $0x22] sm:$0xff]
  %v965 = vld [vmem:[%s0 + $0x32] sm:$0xff]
  %v966 = vld [vmem:[%s0 + $0x3a] sm:$0xff]
  %v967 = vld [vmem:[%s0 + $0x4a] sm:$0xff]
  %v968 = vld [vmem:[%s0 + $0x52] sm:$0xff]
  %v969 = vld [vmem:[%s0 + $0x62] sm:$0xff]
  %v970 = vld [vmem:[%s0 + $0x6a] sm:$0xff]
  %v971 = vld [vmem:[%s0 + $0x7a] sm:$0xff]
  %v972 = vld [vmem:[%s0 + $0x82] sm:$0xff]
  %v973 = vld [vmem:[%s0 + $0x92] sm:$0xff]
  %v974 = vld [vmem:[%s0 + $0x9a] sm:$0xff]
  %v975 = vld [vmem:[%s0 + $0xaa] sm:$0xff]
  %v976 = vld [vmem:[%s0 + $0xb2] sm:$0xff]
  %v977 = vld [vmem:[%s0 + $0xc2] sm:$0xff]
  %v978 = vld [vmem:[%s0 + $0xca] sm:$0xff]
  %v979 = vld [vmem:[%s0 + $0xda] sm:$0xff]
  %v980 = vld [vmem:[%s0 + $0xe2] sm:$0xff]
  %v981 = vld [vmem:[%s0 + $0xf2] sm:$0xff]
  %v982 = vld [vmem:[%s0 + $0xfa] sm:$0xff]
  %v983 = vld [vmem:[%s0 + $0x10a] sm:$0xff]
  %v984 = vld [vmem:[%s0 + $0x112] sm:$0xff]
  %v985 = vld [vmem:[%s0 + $0x122] sm:$0xff]
  %v986 = vld [vmem:[%s0 + $0x12a] sm:$0xff]
  %v987 = vld [vmem:[%s0 + $0x13a] sm:$0xff]
  %v988 = vld [vmem:[%s0 + $0x142] sm:$0xff]
  %v989 = vld [vmem:[%s0 + $0x152] sm:$0xff]
  %v990 = vld [vmem:[%s0 + $0x15a] sm:$0xff]
  %v991 = vld [vmem:[%s0 + $0x16a] sm:$0xff]
  %v992 = vld [vmem:[%s0 + $0x172] sm:$0xff]
  %v993 = vld [vmem:[%s0 + $0x1b2] sm:$0xff]
  %v994 = vld [vmem:[%s0 + $0x1ba] sm:$0xff]
  %v995 = vld [vmem:[%s0 + $0x1ca] sm:$0xff]
  %v996 = vld [vmem:[%s0 + $0x1d2] sm:$0xff]
  %v997 = vld [vmem:[%s0 + $0x1e2] sm:$0xff]
  %v998 = vld [vmem:[%s0 + $0x1ea] sm:$0xff]
  %v999 = vld [vmem:[%s0 + $0x1fa] sm:$0xff]
  %v1000 = vld [vmem:[%s0 + $0x202] sm:$0xff]
  %v1001 = vld [vmem:[%s0 + $0x212] sm:$0xff]
  %v1002 = vld [vmem:[%s0 + $0x21a] sm:$0xff]
  %v1003 = vld [vmem:[%s0 + $0x22a] sm:$0xff]
  %v1004 = vld [vmem:[%s0 + $0x232] sm:$0xff]
  %v1005 = vld [vmem:[%s0 + $0x242] sm:$0xff]
  %v1006 = vld [vmem:[%s0 + $0x24a] sm:$0xff]
  %v1007 = vld [vmem:[%s0 + $0x25a] sm:$0xff]
  %v1008 = vld [vmem:[%s0 + $0x262] sm:$0xff]
  %v1009 = vld [vmem:[%s0 + $0x272] sm:$0xff]
  %v1010 = vld [vmem:[%s0 + $0x27a] sm:$0xff]
  %v1011 = vld [vmem:[%s0 + $0x28a] sm:$0xff]
  %v1012 = vld [vmem:[%s0 + $0x292] sm:$0xff]
  %v1013 = vld [vmem:[%s0 + $0x2a2] sm:$0xff]
  %v1014 = vld [vmem:[%s0 + $0x2aa] sm:$0xff]
  %v1015 = vld [vmem:[%s0 + $0x2ba] sm:$0xff]
  %v1016 = vld [vmem:[%s0 + $0x2c2] sm:$0xff]
  %v1017 = vld [vmem:[%s0 + $0x2d2] sm:$0xff]
  %v1018 = vld [vmem:[%s0 + $0x2da] sm:$0xff]
  %v1019 = vld [vmem:[%s0 + $0x2ea] sm:$0xff]
  %v1020 = vld [vmem:[%s0 + $0x2f2] sm:$0xff]
  %v1021 = vld [vmem:[%s0 + $0x302] sm:$0xff]
  %v1022 = vld [vmem:[%s0 + $0x30a] sm:$0xff]
  %v1023 = vld [vmem:[%s0 + $0x31a] sm:$0xff]
  %v1024 = vld [vmem:[%s0 + $0x322] sm:$0xff]
  %s1025 = scalar_lea.vmem %s1, 8
  %v1026 = vld [vmem:[%s1025] sm:$0xf]
  %v1028 = vsel %vm151, %v961, 0
  %v1031 = vsel %vm151, %v962, 0
  %v1034 = vsel %vm151, %v963, 0
  %v1037 = vsel %vm151, %v964, 0
  %v1040 = vsel %vm151, %v965, 0
  %v1043 = vsel %vm151, %v966, 0
  %v1046 = vsel %vm151, %v967, 0
  %v1049 = vsel %vm151, %v968, 0
  %v1052 = vsel %vm151, %v969, 0
  %v1055 = vsel %vm151, %v970, 0
  %v1058 = vsel %vm151, %v971, 0
  %v1061 = vsel %vm151, %v972, 0
  %v1064 = vsel %vm151, %v973, 0
  %v1067 = vsel %vm151, %v974, 0
  %v1070 = vsel %vm151, %v975, 0
  %v1073 = vsel %vm151, %v976, 0
  %v1076 = vsel %vm151, %v977, 0
  %v1079 = vsel %vm151, %v978, 0
  %v1082 = vsel %vm151, %v979, 0
  %v1085 = vsel %vm151, %v980, 0
  %v1088 = vsel %vm151, %v981, 0
  %v1091 = vsel %vm151, %v982, 0
  %v1094 = vsel %vm151, %v983, 0
  %v1097 = vsel %vm151, %v984, 0
  %v1100 = vsel %vm151, %v985, 0
  %v1103 = vsel %vm151, %v986, 0
  %v1106 = vsel %vm151, %v987, 0
  %v1109 = vsel %vm151, %v988, 0
  %v1112 = vsel %vm151, %v989, 0
  %v1115 = vsel %vm151, %v990, 0
  %v1118 = vsel %vm151, %v991, 0
  %v1121 = vsel %vm151, %v992, 0
  %v1124 = vsel %vm151, %v993, 0
  %v1127 = vsel %vm151, %v994, 0
  %v1130 = vsel %vm151, %v995, 0
  %v1133 = vsel %vm151, %v996, 0
  %v1136 = vsel %vm151, %v997, 0
  %v1139 = vsel %vm151, %v998, 0
  %v1142 = vsel %vm151, %v999, 0
  %v1145 = vsel %vm151, %v1000, 0
  %v1148 = vsel %vm151, %v1001, 0
  %v1151 = vsel %vm151, %v1002, 0
  %v1154 = vsel %vm151, %v1003, 0
  %v1157 = vsel %vm151, %v1004, 0
  %v1160 = vsel %vm151, %v1005, 0
  %v1163 = vsel %vm151, %v1006, 0
  %v1166 = vsel %vm151, %v1007, 0
  %v1169 = vsel %vm151, %v1008, 0
  %v1172 = vsel %vm151, %v1009, 0
  %v1175 = vsel %vm151, %v1010, 0
  %v1178 = vsel %vm151, %v1011, 0
  %v1181 = vsel %vm151, %v1012, 0
  %v1184 = vsel %vm151, %v1013, 0
  %v1187 = vsel %vm151, %v1014, 0
  %v1190 = vsel %vm151, %v1015, 0
  %v1193 = vsel %vm151, %v1016, 0
  %v1196 = vsel %vm151, %v1017, 0
  %v1199 = vsel %vm151, %v1018, 0
  %v1202 = vsel %vm151, %v1019, 0
  %v1205 = vsel %vm151, %v1020, 0
  %v1208 = vsel %vm151, %v1021, 0
  %v1211 = vsel %vm151, %v1022, 0
  %v1214 = vsel %vm151, %v1023, 0
  %v1217 = vsel %vm151, %v1024, 0
  %v1220 = vsel %vm344, %v1026, 0
  %1222 = vmatpush.msra.mxu0 0.0
  %1223 = vmatpush.msra.mxu0 0.0
  %1224 = vmatpush.msra.mxu0 0.0
  %1225 = vmatpush.msra.mxu0 0.0
  %1226 = vmatpush.msra.mxu0 0.0
  %1227 = vmatpush.msra.mxu0 0.0
  %1228 = vmatpush.msra.mxu0 0.0
  %1229 = vmatpush.msra.mxu0 0.0
  %1230 = vmatpush.msra.mxu0 0.0
  %1231 = vmatpush.msra.mxu0 0.0
  %1232 = vmatpush.msra.mxu0 0.0
  %1233 = vmatpush.msra.mxu0 0.0
  %1234 = vmatpush.msra.mxu0 0.0
  %1235 = vmatpush.msra.mxu0 0.0
  %1236 = vmatpush.msra.mxu0 0.0
  %1237 = vmatpush.msra.mxu0 %v1220
  %1238 = vmatmul.f32.gmra.mxu0 %v1028
  %v1239 = vpop.f32.mrf.mxu0
  %v1240 = vadd.f32 0.0, %v1239
  %1241 = vmatmul.f32.gmra.mxu0 %v1031
  %v1242 = vpop.f32.mrf.mxu0
  %v1243 = vadd.f32 0.0, %v1242
  %1244 = vmatmul.f32.gmra.mxu0 %v1034
  %v1245 = vpop.f32.mrf.mxu0
  %v1246 = vadd.f32 0.0, %v1245
  %1247 = vmatmul.f32.gmra.mxu0 %v1037
  %v1248 = vpop.f32.mrf.mxu0
  %v1249 = vadd.f32 0.0, %v1248
  %1250 = vmatmul.f32.gmra.mxu0 %v1040
  %v1251 = vpop.f32.mrf.mxu0
  %v1252 = vadd.f32 0.0, %v1251
  %1253 = vmatmul.f32.gmra.mxu0 %v1043
  %v1254 = vpop.f32.mrf.mxu0
  %v1255 = vadd.f32 0.0, %v1254
  %1256 = vmatmul.f32.gmra.mxu0 %v1046
  %v1257 = vpop.f32.mrf.mxu0
  %v1258 = vadd.f32 0.0, %v1257
  %1259 = vmatmul.f32.gmra.mxu0 %v1049
  %v1260 = vpop.f32.mrf.mxu0
  %v1261 = vadd.f32 0.0, %v1260
  %1262 = vmatmul.f32.gmra.mxu0 %v1052
  %v1263 = vpop.f32.mrf.mxu0
  %v1264 = vadd.f32 0.0, %v1263
  %1265 = vmatmul.f32.gmra.mxu0 %v1055
  %v1266 = vpop.f32.mrf.mxu0
  %v1267 = vadd.f32 0.0, %v1266
  %1268 = vmatmul.f32.gmra.mxu0 %v1058
  %v1269 = vpop.f32.mrf.mxu0
  %v1270 = vadd.f32 0.0, %v1269
  %1271 = vmatmul.f32.gmra.mxu0 %v1061
  %v1272 = vpop.f32.mrf.mxu0
  %v1273 = vadd.f32 0.0, %v1272
  %1274 = vmatmul.f32.gmra.mxu0 %v1064
  %v1275 = vpop.f32.mrf.mxu0
  %v1276 = vadd.f32 0.0, %v1275
  %1277 = vmatmul.f32.gmra.mxu0 %v1067
  %v1278 = vpop.f32.mrf.mxu0
  %v1279 = vadd.f32 0.0, %v1278
  %1280 = vmatmul.f32.gmra.mxu0 %v1070
  %v1281 = vpop.f32.mrf.mxu0
  %v1282 = vadd.f32 0.0, %v1281
  %1283 = vmatmul.f32.gmra.mxu0 %v1073
  %v1284 = vpop.f32.mrf.mxu0
  %v1285 = vadd.f32 0.0, %v1284
  %1286 = vmatmul.f32.gmra.mxu0 %v1076
  %v1287 = vpop.f32.mrf.mxu0
  %v1288 = vadd.f32 0.0, %v1287
  %1289 = vmatmul.f32.gmra.mxu0 %v1079
  %v1290 = vpop.f32.mrf.mxu0
  %v1291 = vadd.f32 0.0, %v1290
  %1292 = vmatmul.f32.gmra.mxu0 %v1082
  %v1293 = vpop.f32.mrf.mxu0
  %v1294 = vadd.f32 0.0, %v1293
  %1295 = vmatmul.f32.gmra.mxu0 %v1085
  %v1296 = vpop.f32.mrf.mxu0
  %v1297 = vadd.f32 0.0, %v1296
  %1298 = vmatmul.f32.gmra.mxu0 %v1088
  %v1299 = vpop.f32.mrf.mxu0
  %v1300 = vadd.f32 0.0, %v1299
  %1301 = vmatmul.f32.gmra.mxu0 %v1091
  %v1302 = vpop.f32.mrf.mxu0
  %v1303 = vadd.f32 0.0, %v1302
  %1304 = vmatmul.f32.gmra.mxu0 %v1094
  %v1305 = vpop.f32.mrf.mxu0
  %v1306 = vadd.f32 0.0, %v1305
  %1307 = vmatmul.f32.gmra.mxu0 %v1097
  %v1308 = vpop.f32.mrf.mxu0
  %v1309 = vadd.f32 0.0, %v1308
  %1310 = vmatmul.f32.gmra.mxu0 %v1100
  %v1311 = vpop.f32.mrf.mxu0
  %v1312 = vadd.f32 0.0, %v1311
  %1313 = vmatmul.f32.gmra.mxu0 %v1103
  %v1314 = vpop.f32.mrf.mxu0
  %v1315 = vadd.f32 0.0, %v1314
  %1316 = vmatmul.f32.gmra.mxu0 %v1106
  %v1317 = vpop.f32.mrf.mxu0
  %v1318 = vadd.f32 0.0, %v1317
  %1319 = vmatmul.f32.gmra.mxu0 %v1109
  %v1320 = vpop.f32.mrf.mxu0
  %v1321 = vadd.f32 0.0, %v1320
  %1322 = vmatmul.f32.gmra.mxu0 %v1112
  %v1323 = vpop.f32.mrf.mxu0
  %v1324 = vadd.f32 0.0, %v1323
  %1325 = vmatmul.f32.gmra.mxu0 %v1115
  %v1326 = vpop.f32.mrf.mxu0
  %v1327 = vadd.f32 0.0, %v1326
  %1328 = vmatmul.f32.gmra.mxu0 %v1118
  %v1329 = vpop.f32.mrf.mxu0
  %v1330 = vadd.f32 0.0, %v1329
  %1331 = vmatmul.f32.gmra.mxu0 %v1121
  %v1332 = vpop.f32.mrf.mxu0
  %v1333 = vadd.f32 0.0, %v1332
  %1334 = vmatmul.f32.gmra.mxu0 %v1124
  %v1335 = vpop.f32.mrf.mxu0
  %v1336 = vadd.f32 0.0, %v1335
  %1337 = vmatmul.f32.gmra.mxu0 %v1127
  %v1338 = vpop.f32.mrf.mxu0
  %v1339 = vadd.f32 0.0, %v1338
  %1340 = vmatmul.f32.gmra.mxu0 %v1130
  %v1341 = vpop.f32.mrf.mxu0
  %v1342 = vadd.f32 0.0, %v1341
  %1343 = vmatmul.f32.gmra.mxu0 %v1133
  %v1344 = vpop.f32.mrf.mxu0
  %v1345 = vadd.f32 0.0, %v1344
  %1346 = vmatmul.f32.gmra.mxu0 %v1136
  %v1347 = vpop.f32.mrf.mxu0
  %v1348 = vadd.f32 0.0, %v1347
  %1349 = vmatmul.f32.gmra.mxu0 %v1139
  %v1350 = vpop.f32.mrf.mxu0
  %v1351 = vadd.f32 0.0, %v1350
  %1352 = vmatmul.f32.gmra.mxu0 %v1142
  %v1353 = vpop.f32.mrf.mxu0
  %v1354 = vadd.f32 0.0, %v1353
  %1355 = vmatmul.f32.gmra.mxu0 %v1145
  %v1356 = vpop.f32.mrf.mxu0
  %v1357 = vadd.f32 0.0, %v1356
  %1358 = vmatmul.f32.gmra.mxu0 %v1148
  %v1359 = vpop.f32.mrf.mxu0
  %v1360 = vadd.f32 0.0, %v1359
  %1361 = vmatmul.f32.gmra.mxu0 %v1151
  %v1362 = vpop.f32.mrf.mxu0
  %v1363 = vadd.f32 0.0, %v1362
  %1364 = vmatmul.f32.gmra.mxu0 %v1154
  %v1365 = vpop.f32.mrf.mxu0
  %v1366 = vadd.f32 0.0, %v1365
  %1367 = vmatmul.f32.gmra.mxu0 %v1157
  %v1368 = vpop.f32.mrf.mxu0
  %v1369 = vadd.f32 0.0, %v1368
  %1370 = vmatmul.f32.gmra.mxu0 %v1160
  %v1371 = vpop.f32.mrf.mxu0
  %v1372 = vadd.f32 0.0, %v1371
  %1373 = vmatmul.f32.gmra.mxu0 %v1163
  %v1374 = vpop.f32.mrf.mxu0
  %v1375 = vadd.f32 0.0, %v1374
  %1376 = vmatmul.f32.gmra.mxu0 %v1166
  %v1377 = vpop.f32.mrf.mxu0
  %v1378 = vadd.f32 0.0, %v1377
  %1379 = vmatmul.f32.gmra.mxu0 %v1169
  %v1380 = vpop.f32.mrf.mxu0
  %v1381 = vadd.f32 0.0, %v1380
  %1382 = vmatmul.f32.gmra.mxu0 %v1172
  %v1383 = vpop.f32.mrf.mxu0
  %v1384 = vadd.f32 0.0, %v1383
  %1385 = vmatmul.f32.gmra.mxu0 %v1175
  %v1386 = vpop.f32.mrf.mxu0
  %v1387 = vadd.f32 0.0, %v1386
  %1388 = vmatmul.f32.gmra.mxu0 %v1178
  %v1389 = vpop.f32.mrf.mxu0
  %v1390 = vadd.f32 0.0, %v1389
  %1391 = vmatmul.f32.gmra.mxu0 %v1181
  %v1392 = vpop.f32.mrf.mxu0
  %v1393 = vadd.f32 0.0, %v1392
  %1394 = vmatmul.f32.gmra.mxu0 %v1184
  %v1395 = vpop.f32.mrf.mxu0
  %v1396 = vadd.f32 0.0, %v1395
  %1397 = vmatmul.f32.gmra.mxu0 %v1187
  %v1398 = vpop.f32.mrf.mxu0
  %v1399 = vadd.f32 0.0, %v1398
  %1400 = vmatmul.f32.gmra.mxu0 %v1190
  %v1401 = vpop.f32.mrf.mxu0
  %v1402 = vadd.f32 0.0, %v1401
  %1403 = vmatmul.f32.gmra.mxu0 %v1193
  %v1404 = vpop.f32.mrf.mxu0
  %v1405 = vadd.f32 0.0, %v1404
  %1406 = vmatmul.f32.gmra.mxu0 %v1196
  %v1407 = vpop.f32.mrf.mxu0
  %v1408 = vadd.f32 0.0, %v1407
  %1409 = vmatmul.f32.gmra.mxu0 %v1199
  %v1410 = vpop.f32.mrf.mxu0
  %v1411 = vadd.f32 0.0, %v1410
  %1412 = vmatmul.f32.gmra.mxu0 %v1202
  %v1413 = vpop.f32.mrf.mxu0
  %v1414 = vadd.f32 0.0, %v1413
  %1415 = vmatmul.f32.gmra.mxu0 %v1205
  %v1416 = vpop.f32.mrf.mxu0
  %v1417 = vadd.f32 0.0, %v1416
  %1418 = vmatmul.f32.gmra.mxu0 %v1208
  %v1419 = vpop.f32.mrf.mxu0
  %v1420 = vadd.f32 0.0, %v1419
  %1421 = vmatmul.f32.gmra.mxu0 %v1211
  %v1422 = vpop.f32.mrf.mxu0
  %v1423 = vadd.f32 0.0, %v1422
  %1424 = vmatmul.f32.gmra.mxu0 %v1214
  %v1425 = vpop.f32.mrf.mxu0
  %v1426 = vadd.f32 0.0, %v1425
  %1427 = vmatmul.f32.gmra.mxu0 %v1217
  %v1428 = vpop.f32.mrf.mxu0
  %v1429 = vadd.f32 0.0, %v1428
  %1430 = vdwg.mxu0
  %v1431 = vadd.f32 %v770, %v1240
  %v1432 = vadd.f32 %v773, %v1243
  %v1433 = vadd.f32 %v776, %v1246
  %v1434 = vadd.f32 %v779, %v1249
  %v1435 = vadd.f32 %v782, %v1252
  %v1436 = vadd.f32 %v785, %v1255
  %v1437 = vadd.f32 %v788, %v1258
  %v1438 = vadd.f32 %v791, %v1261
  %v1439 = vadd.f32 %v794, %v1264
  %v1440 = vadd.f32 %v797, %v1267
  %v1441 = vadd.f32 %v800, %v1270
  %v1442 = vadd.f32 %v803, %v1273
  %v1443 = vadd.f32 %v806, %v1276
  %v1444 = vadd.f32 %v809, %v1279
  %v1445 = vadd.f32 %v812, %v1282
  %v1446 = vadd.f32 %v815, %v1285
  %v1447 = vadd.f32 %v818, %v1288
  %v1448 = vadd.f32 %v821, %v1291
  %v1449 = vadd.f32 %v824, %v1294
  %v1450 = vadd.f32 %v827, %v1297
  %v1451 = vadd.f32 %v830, %v1300
  %v1452 = vadd.f32 %v833, %v1303
  %v1453 = vadd.f32 %v836, %v1306
  %v1454 = vadd.f32 %v839, %v1309
  %v1455 = vadd.f32 %v842, %v1312
  %v1456 = vadd.f32 %v845, %v1315
  %v1457 = vadd.f32 %v848, %v1318
  %v1458 = vadd.f32 %v851, %v1321
  %v1459 = vadd.f32 %v854, %v1324
  %v1460 = vadd.f32 %v857, %v1327
  %v1461 = vadd.f32 %v860, %v1330
  %v1462 = vadd.f32 %v863, %v1333
  %v1463 = vadd.f32 %v866, %v1336
  %v1464 = vadd.f32 %v869, %v1339
  %v1465 = vadd.f32 %v872, %v1342
  %v1466 = vadd.f32 %v875, %v1345
  %v1467 = vadd.f32 %v878, %v1348
  %v1468 = vadd.f32 %v881, %v1351
  %v1469 = vadd.f32 %v884, %v1354
  %v1470 = vadd.f32 %v887, %v1357
  %v1471 = vadd.f32 %v890, %v1360
  %v1472 = vadd.f32 %v893, %v1363
  %v1473 = vadd.f32 %v896, %v1366
  %v1474 = vadd.f32 %v899, %v1369
  %v1475 = vadd.f32 %v902, %v1372
  %v1476 = vadd.f32 %v905, %v1375
  %v1477 = vadd.f32 %v908, %v1378
  %v1478 = vadd.f32 %v911, %v1381
  %v1479 = vadd.f32 %v914, %v1384
  %v1480 = vadd.f32 %v917, %v1387
  %v1481 = vadd.f32 %v920, %v1390
  %v1482 = vadd.f32 %v923, %v1393
  %v1483 = vadd.f32 %v926, %v1396
  %v1484 = vadd.f32 %v929, %v1399
  %v1485 = vadd.f32 %v932, %v1402
  %v1486 = vadd.f32 %v935, %v1405
  %v1487 = vadd.f32 %v938, %v1408
  %v1488 = vadd.f32 %v941, %v1411
  %v1489 = vadd.f32 %v944, %v1414
  %v1490 = vadd.f32 %v947, %v1417
  %v1491 = vadd.f32 %v950, %v1420
  %v1492 = vadd.f32 %v953, %v1423
  %v1493 = vadd.f32 %v956, %v1426
  %v1494 = vadd.f32 %v959, %v1429
  %s1495 = scalar_lea.vmem %s0, 24
  %v1496 = vld [vmem:[%s1495] sm:$0xff]
  %v1497 = vld [vmem:[%s1495 + $0x8] sm:$0xff]
  %v1498 = vld [vmem:[%s1495 + $0x18] sm:$0xff]
  %v1499 = vld [vmem:[%s1495 + $0x20] sm:$0xff]
  %v1500 = vld [vmem:[%s1495 + $0x30] sm:$0xff]
  %v1501 = vld [vmem:[%s1495 + $0x38] sm:$0xff]
  %v1502 = vld [vmem:[%s1495 + $0x48] sm:$0xff]
  %v1503 = vld [vmem:[%s1495 + $0x50] sm:$0xff]
  %v1504 = vld [vmem:[%s1495 + $0x60] sm:$0xff]
  %v1505 = vld [vmem:[%s1495 + $0x68] sm:$0xff]
  %v1506 = vld [vmem:[%s1495 + $0x78] sm:$0xff]
  %v1507 = vld [vmem:[%s1495 + $0x80] sm:$0xff]
  %v1508 = vld [vmem:[%s1495 + $0x90] sm:$0xff]
  %v1509 = vld [vmem:[%s1495 + $0x98] sm:$0xff]
  %v1510 = vld [vmem:[%s1495 + $0xa8] sm:$0xff]
  %v1511 = vld [vmem:[%s1495 + $0xb0] sm:$0xff]
  %v1512 = vld [vmem:[%s1495 + $0xc0] sm:$0xff]
  %v1513 = vld [vmem:[%s1495 + $0xc8] sm:$0xff]
  %v1514 = vld [vmem:[%s1495 + $0xd8] sm:$0xff]
  %v1515 = vld [vmem:[%s1495 + $0xe0] sm:$0xff]
  %v1516 = vld [vmem:[%s1495 + $0xf0] sm:$0xff]
  %v1517 = vld [vmem:[%s1495 + $0xf8] sm:$0xff]
  %v1518 = vld [vmem:[%s1495 + $0x108] sm:$0xff]
  %v1519 = vld [vmem:[%s1495 + $0x110] sm:$0xff]
  %v1520 = vld [vmem:[%s1495 + $0x120] sm:$0xff]
  %v1521 = vld [vmem:[%s1495 + $0x128] sm:$0xff]
  %v1522 = vld [vmem:[%s1495 + $0x138] sm:$0xff]
  %v1523 = vld [vmem:[%s1495 + $0x140] sm:$0xff]
  %v1524 = vld [vmem:[%s1495 + $0x150] sm:$0xff]
  %v1525 = vld [vmem:[%s1495 + $0x158] sm:$0xff]
  %v1526 = vld [vmem:[%s1495 + $0x168] sm:$0xff]
  %v1527 = vld [vmem:[%s1495 + $0x170] sm:$0xff]
  %v1528 = vld [vmem:[%s1495 + $0x1b0] sm:$0xff]
  %v1529 = vld [vmem:[%s1495 + $0x1b8] sm:$0xff]
  %v1530 = vld [vmem:[%s1495 + $0x1c8] sm:$0xff]
  %v1531 = vld [vmem:[%s1495 + $0x1d0] sm:$0xff]
  %v1532 = vld [vmem:[%s1495 + $0x1e0] sm:$0xff]
  %v1533 = vld [vmem:[%s1495 + $0x1e8] sm:$0xff]
  %v1534 = vld [vmem:[%s1495 + $0x1f8] sm:$0xff]
  %v1535 = vld [vmem:[%s1495 + $0x200] sm:$0xff]
  %v1536 = vld [vmem:[%s1495 + $0x210] sm:$0xff]
  %v1537 = vld [vmem:[%s1495 + $0x218] sm:$0xff]
  %v1538 = vld [vmem:[%s1495 + $0x228] sm:$0xff]
  %v1539 = vld [vmem:[%s1495 + $0x230] sm:$0xff]
  %v1540 = vld [vmem:[%s1495 + $0x240] sm:$0xff]
  %v1541 = vld [vmem:[%s1495 + $0x248] sm:$0xff]
  %v1542 = vld [vmem:[%s1495 + $0x258] sm:$0xff]
  %v1543 = vld [vmem:[%s1495 + $0x260] sm:$0xff]
  %v1544 = vld [vmem:[%s1495 + $0x270] sm:$0xff]
  %v1545 = vld [vmem:[%s1495 + $0x278] sm:$0xff]
  %v1546 = vld [vmem:[%s1495 + $0x288] sm:$0xff]
  %v1547 = vld [vmem:[%s1495 + $0x290] sm:$0xff]
  %v1548 = vld [vmem:[%s1495 + $0x2a0] sm:$0xff]
  %v1549 = vld [vmem:[%s1495 + $0x2a8] sm:$0xff]
  %v1550 = vld [vmem:[%s1495 + $0x2b8] sm:$0xff]
  %v1551 = vld [vmem:[%s1495 + $0x2c0] sm:$0xff]
  %v1552 = vld [vmem:[%s1495 + $0x2d0] sm:$0xff]
  %v1553 = vld [vmem:[%s1495 + $0x2d8] sm:$0xff]
  %v1554 = vld [vmem:[%s1495 + $0x2e8] sm:$0xff]
  %v1555 = vld [vmem:[%s1495 + $0x2f0] sm:$0xff]
  %v1556 = vld [vmem:[%s1495 + $0x300] sm:$0xff]
  %v1557 = vld [vmem:[%s1495 + $0x308] sm:$0xff]
  %v1558 = vld [vmem:[%s1495 + $0x318] sm:$0xff]
  %v1559 = vld [vmem:[%s1495 + $0x320] sm:$0xff]
  %s1560 = scalar_lea.vmem %s1, 12
  %v1561 = vld [vmem:[%s1560] sm:$0xf]
  %v1563 = vsel %vm151, %v1496, 0
  %v1566 = vsel %vm151, %v1497, 0
  %v1569 = vsel %vm151, %v1498, 0
  %v1572 = vsel %vm151, %v1499, 0
  %v1575 = vsel %vm151, %v1500, 0
  %v1578 = vsel %vm151, %v1501, 0
  %v1581 = vsel %vm151, %v1502, 0
  %v1584 = vsel %vm151, %v1503, 0
  %v1587 = vsel %vm151, %v1504, 0
  %v1590 = vsel %vm151, %v1505, 0
  %v1593 = vsel %vm151, %v1506, 0
  %v1596 = vsel %vm151, %v1507, 0
  %v1599 = vsel %vm151, %v1508, 0
  %v1602 = vsel %vm151, %v1509, 0
  %v1605 = vsel %vm151, %v1510, 0
  %v1608 = vsel %vm151, %v1511, 0
  %v1611 = vsel %vm151, %v1512, 0
  %v1614 = vsel %vm151, %v1513, 0
  %v1617 = vsel %vm151, %v1514, 0
  %v1620 = vsel %vm151, %v1515, 0
  %v1623 = vsel %vm151, %v1516, 0
  %v1626 = vsel %vm151, %v1517, 0
  %v1629 = vsel %vm151, %v1518, 0
  %v1632 = vsel %vm151, %v1519, 0
  %v1635 = vsel %vm151, %v1520, 0
  %v1638 = vsel %vm151, %v1521, 0
  %v1641 = vsel %vm151, %v1522, 0
  %v1644 = vsel %vm151, %v1523, 0
  %v1647 = vsel %vm151, %v1524, 0
  %v1650 = vsel %vm151, %v1525, 0
  %v1653 = vsel %vm151, %v1526, 0
  %v1656 = vsel %vm151, %v1527, 0
  %v1659 = vsel %vm151, %v1528, 0
  %v1662 = vsel %vm151, %v1529, 0
  %v1665 = vsel %vm151, %v1530, 0
  %v1668 = vsel %vm151, %v1531, 0
  %v1671 = vsel %vm151, %v1532, 0
  %v1674 = vsel %vm151, %v1533, 0
  %v1677 = vsel %vm151, %v1534, 0
  %v1680 = vsel %vm151, %v1535, 0
  %v1683 = vsel %vm151, %v1536, 0
  %v1686 = vsel %vm151, %v1537, 0
  %v1689 = vsel %vm151, %v1538, 0
  %v1692 = vsel %vm151, %v1539, 0
  %v1695 = vsel %vm151, %v1540, 0
  %v1698 = vsel %vm151, %v1541, 0
  %v1701 = vsel %vm151, %v1542, 0
  %v1704 = vsel %vm151, %v1543, 0
  %v1707 = vsel %vm151, %v1544, 0
  %v1710 = vsel %vm151, %v1545, 0
  %v1713 = vsel %vm151, %v1546, 0
  %v1716 = vsel %vm151, %v1547, 0
  %v1719 = vsel %vm151, %v1548, 0
  %v1722 = vsel %vm151, %v1549, 0
  %v1725 = vsel %vm151, %v1550, 0
  %v1728 = vsel %vm151, %v1551, 0
  %v1731 = vsel %vm151, %v1552, 0
  %v1734 = vsel %vm151, %v1553, 0
  %v1737 = vsel %vm151, %v1554, 0
  %v1740 = vsel %vm151, %v1555, 0
  %v1743 = vsel %vm151, %v1556, 0
  %v1746 = vsel %vm151, %v1557, 0
  %v1749 = vsel %vm151, %v1558, 0
  %v1752 = vsel %vm151, %v1559, 0
  %v1755 = vsel %vm344, %v1561, 0
  %1757 = vmatpush.msra.mxu0 0.0
  %1758 = vmatpush.msra.mxu0 0.0
  %1759 = vmatpush.msra.mxu0 0.0
  %1760 = vmatpush.msra.mxu0 0.0
  %1761 = vmatpush.msra.mxu0 0.0
  %1762 = vmatpush.msra.mxu0 0.0
  %1763 = vmatpush.msra.mxu0 0.0
  %1764 = vmatpush.msra.mxu0 0.0
  %1765 = vmatpush.msra.mxu0 0.0
  %1766 = vmatpush.msra.mxu0 0.0
  %1767 = vmatpush.msra.mxu0 0.0
  %1768 = vmatpush.msra.mxu0 0.0
  %1769 = vmatpush.msra.mxu0 0.0
  %1770 = vmatpush.msra.mxu0 0.0
  %1771 = vmatpush.msra.mxu0 0.0
  %1772 = vmatpush.msra.mxu0 %v1755
  %1773 = vmatmul.f32.gmra.mxu0 %v1563
  %v1774 = vpop.f32.mrf.mxu0
  %v1775 = vadd.f32 0.0, %v1774
  %1776 = vmatmul.f32.gmra.mxu0 %v1566
  %v1777 = vpop.f32.mrf.mxu0
  %v1778 = vadd.f32 0.0, %v1777
  %1779 = vmatmul.f32.gmra.mxu0 %v1569
  %v1780 = vpop.f32.mrf.mxu0
  %v1781 = vadd.f32 0.0, %v1780
  %1782 = vmatmul.f32.gmra.mxu0 %v1572
  %v1783 = vpop.f32.mrf.mxu0
  %v1784 = vadd.f32 0.0, %v1783
  %1785 = vmatmul.f32.gmra.mxu0 %v1575
  %v1786 = vpop.f32.mrf.mxu0
  %v1787 = vadd.f32 0.0, %v1786
  %1788 = vmatmul.f32.gmra.mxu0 %v1578
  %v1789 = vpop.f32.mrf.mxu0
  %v1790 = vadd.f32 0.0, %v1789
  %1791 = vmatmul.f32.gmra.mxu0 %v1581
  %v1792 = vpop.f32.mrf.mxu0
  %v1793 = vadd.f32 0.0, %v1792
  %1794 = vmatmul.f32.gmra.mxu0 %v1584
  %v1795 = vpop.f32.mrf.mxu0
  %v1796 = vadd.f32 0.0, %v1795
  %1797 = vmatmul.f32.gmra.mxu0 %v1587
  %v1798 = vpop.f32.mrf.mxu0
  %v1799 = vadd.f32 0.0, %v1798
  %1800 = vmatmul.f32.gmra.mxu0 %v1590
  %v1801 = vpop.f32.mrf.mxu0
  %v1802 = vadd.f32 0.0, %v1801
  %1803 = vmatmul.f32.gmra.mxu0 %v1593
  %v1804 = vpop.f32.mrf.mxu0
  %v1805 = vadd.f32 0.0, %v1804
  %1806 = vmatmul.f32.gmra.mxu0 %v1596
  %v1807 = vpop.f32.mrf.mxu0
  %v1808 = vadd.f32 0.0, %v1807
  %1809 = vmatmul.f32.gmra.mxu0 %v1599
  %v1810 = vpop.f32.mrf.mxu0
  %v1811 = vadd.f32 0.0, %v1810
  %1812 = vmatmul.f32.gmra.mxu0 %v1602
  %v1813 = vpop.f32.mrf.mxu0
  %v1814 = vadd.f32 0.0, %v1813
  %1815 = vmatmul.f32.gmra.mxu0 %v1605
  %v1816 = vpop.f32.mrf.mxu0
  %v1817 = vadd.f32 0.0, %v1816
  %1818 = vmatmul.f32.gmra.mxu0 %v1608
  %v1819 = vpop.f32.mrf.mxu0
  %v1820 = vadd.f32 0.0, %v1819
  %1821 = vmatmul.f32.gmra.mxu0 %v1611
  %v1822 = vpop.f32.mrf.mxu0
  %v1823 = vadd.f32 0.0, %v1822
  %1824 = vmatmul.f32.gmra.mxu0 %v1614
  %v1825 = vpop.f32.mrf.mxu0
  %v1826 = vadd.f32 0.0, %v1825
  %1827 = vmatmul.f32.gmra.mxu0 %v1617
  %v1828 = vpop.f32.mrf.mxu0
  %v1829 = vadd.f32 0.0, %v1828
  %1830 = vmatmul.f32.gmra.mxu0 %v1620
  %v1831 = vpop.f32.mrf.mxu0
  %v1832 = vadd.f32 0.0, %v1831
  %1833 = vmatmul.f32.gmra.mxu0 %v1623
  %v1834 = vpop.f32.mrf.mxu0
  %v1835 = vadd.f32 0.0, %v1834
  %1836 = vmatmul.f32.gmra.mxu0 %v1626
  %v1837 = vpop.f32.mrf.mxu0
  %v1838 = vadd.f32 0.0, %v1837
  %1839 = vmatmul.f32.gmra.mxu0 %v1629
  %v1840 = vpop.f32.mrf.mxu0
  %v1841 = vadd.f32 0.0, %v1840
  %1842 = vmatmul.f32.gmra.mxu0 %v1632
  %v1843 = vpop.f32.mrf.mxu0
  %v1844 = vadd.f32 0.0, %v1843
  %1845 = vmatmul.f32.gmra.mxu0 %v1635
  %v1846 = vpop.f32.mrf.mxu0
  %v1847 = vadd.f32 0.0, %v1846
  %1848 = vmatmul.f32.gmra.mxu0 %v1638
  %v1849 = vpop.f32.mrf.mxu0
  %v1850 = vadd.f32 0.0, %v1849
  %1851 = vmatmul.f32.gmra.mxu0 %v1641
  %v1852 = vpop.f32.mrf.mxu0
  %v1853 = vadd.f32 0.0, %v1852
  %1854 = vmatmul.f32.gmra.mxu0 %v1644
  %v1855 = vpop.f32.mrf.mxu0
  %v1856 = vadd.f32 0.0, %v1855
  %1857 = vmatmul.f32.gmra.mxu0 %v1647
  %v1858 = vpop.f32.mrf.mxu0
  %v1859 = vadd.f32 0.0, %v1858
  %1860 = vmatmul.f32.gmra.mxu0 %v1650
  %v1861 = vpop.f32.mrf.mxu0
  %v1862 = vadd.f32 0.0, %v1861
  %1863 = vmatmul.f32.gmra.mxu0 %v1653
  %v1864 = vpop.f32.mrf.mxu0
  %v1865 = vadd.f32 0.0, %v1864
  %1866 = vmatmul.f32.gmra.mxu0 %v1656
  %v1867 = vpop.f32.mrf.mxu0
  %v1868 = vadd.f32 0.0, %v1867
  %1869 = vmatmul.f32.gmra.mxu0 %v1659
  %v1870 = vpop.f32.mrf.mxu0
  %v1871 = vadd.f32 0.0, %v1870
  %1872 = vmatmul.f32.gmra.mxu0 %v1662
  %v1873 = vpop.f32.mrf.mxu0
  %v1874 = vadd.f32 0.0, %v1873
  %1875 = vmatmul.f32.gmra.mxu0 %v1665
  %v1876 = vpop.f32.mrf.mxu0
  %v1877 = vadd.f32 0.0, %v1876
  %1878 = vmatmul.f32.gmra.mxu0 %v1668
  %v1879 = vpop.f32.mrf.mxu0
  %v1880 = vadd.f32 0.0, %v1879
  %1881 = vmatmul.f32.gmra.mxu0 %v1671
  %v1882 = vpop.f32.mrf.mxu0
  %v1883 = vadd.f32 0.0, %v1882
  %1884 = vmatmul.f32.gmra.mxu0 %v1674
  %v1885 = vpop.f32.mrf.mxu0
  %v1886 = vadd.f32 0.0, %v1885
  %1887 = vmatmul.f32.gmra.mxu0 %v1677
  %v1888 = vpop.f32.mrf.mxu0
  %v1889 = vadd.f32 0.0, %v1888
  %1890 = vmatmul.f32.gmra.mxu0 %v1680
  %v1891 = vpop.f32.mrf.mxu0
  %v1892 = vadd.f32 0.0, %v1891
  %1893 = vmatmul.f32.gmra.mxu0 %v1683
  %v1894 = vpop.f32.mrf.mxu0
  %v1895 = vadd.f32 0.0, %v1894
  %1896 = vmatmul.f32.gmra.mxu0 %v1686
  %v1897 = vpop.f32.mrf.mxu0
  %v1898 = vadd.f32 0.0, %v1897
  %1899 = vmatmul.f32.gmra.mxu0 %v1689
  %v1900 = vpop.f32.mrf.mxu0
  %v1901 = vadd.f32 0.0, %v1900
  %1902 = vmatmul.f32.gmra.mxu0 %v1692
  %v1903 = vpop.f32.mrf.mxu0
  %v1904 = vadd.f32 0.0, %v1903
  %1905 = vmatmul.f32.gmra.mxu0 %v1695
  %v1906 = vpop.f32.mrf.mxu0
  %v1907 = vadd.f32 0.0, %v1906
  %1908 = vmatmul.f32.gmra.mxu0 %v1698
  %v1909 = vpop.f32.mrf.mxu0
  %v1910 = vadd.f32 0.0, %v1909
  %1911 = vmatmul.f32.gmra.mxu0 %v1701
  %v1912 = vpop.f32.mrf.mxu0
  %v1913 = vadd.f32 0.0, %v1912
  %1914 = vmatmul.f32.gmra.mxu0 %v1704
  %v1915 = vpop.f32.mrf.mxu0
  %v1916 = vadd.f32 0.0, %v1915
  %1917 = vmatmul.f32.gmra.mxu0 %v1707
  %v1918 = vpop.f32.mrf.mxu0
  %v1919 = vadd.f32 0.0, %v1918
  %1920 = vmatmul.f32.gmra.mxu0 %v1710
  %v1921 = vpop.f32.mrf.mxu0
  %v1922 = vadd.f32 0.0, %v1921
  %1923 = vmatmul.f32.gmra.mxu0 %v1713
  %v1924 = vpop.f32.mrf.mxu0
  %v1925 = vadd.f32 0.0, %v1924
  %1926 = vmatmul.f32.gmra.mxu0 %v1716
  %v1927 = vpop.f32.mrf.mxu0
  %v1928 = vadd.f32 0.0, %v1927
  %1929 = vmatmul.f32.gmra.mxu0 %v1719
  %v1930 = vpop.f32.mrf.mxu0
  %v1931 = vadd.f32 0.0, %v1930
  %1932 = vmatmul.f32.gmra.mxu0 %v1722
  %v1933 = vpop.f32.mrf.mxu0
  %v1934 = vadd.f32 0.0, %v1933
  %1935 = vmatmul.f32.gmra.mxu0 %v1725
  %v1936 = vpop.f32.mrf.mxu0
  %v1937 = vadd.f32 0.0, %v1936
  %1938 = vmatmul.f32.gmra.mxu0 %v1728
  %v1939 = vpop.f32.mrf.mxu0
  %v1940 = vadd.f32 0.0, %v1939
  %1941 = vmatmul.f32.gmra.mxu0 %v1731
  %v1942 = vpop.f32.mrf.mxu0
  %v1943 = vadd.f32 0.0, %v1942
  %1944 = vmatmul.f32.gmra.mxu0 %v1734
  %v1945 = vpop.f32.mrf.mxu0
  %v1946 = vadd.f32 0.0, %v1945
  %1947 = vmatmul.f32.gmra.mxu0 %v1737
  %v1948 = vpop.f32.mrf.mxu0
  %v1949 = vadd.f32 0.0, %v1948
  %1950 = vmatmul.f32.gmra.mxu0 %v1740
  %v1951 = vpop.f32.mrf.mxu0
  %v1952 = vadd.f32 0.0, %v1951
  %1953 = vmatmul.f32.gmra.mxu0 %v1743
  %v1954 = vpop.f32.mrf.mxu0
  %v1955 = vadd.f32 0.0, %v1954
  %1956 = vmatmul.f32.gmra.mxu0 %v1746
  %v1957 = vpop.f32.mrf.mxu0
  %v1958 = vadd.f32 0.0, %v1957
  %1959 = vmatmul.f32.gmra.mxu0 %v1749
  %v1960 = vpop.f32.mrf.mxu0
  %v1961 = vadd.f32 0.0, %v1960
  %1962 = vmatmul.f32.gmra.mxu0 %v1752
  %v1963 = vpop.f32.mrf.mxu0
  %v1964 = vadd.f32 0.0, %v1963
  %1965 = vdwg.mxu0
  %v1966 = vadd.f32 %v1431, %v1775
  %v1967 = vadd.f32 %v1432, %v1778
  %v1968 = vadd.f32 %v1433, %v1781
  %v1969 = vadd.f32 %v1434, %v1784
  %v1970 = vadd.f32 %v1435, %v1787
  %v1971 = vadd.f32 %v1436, %v1790
  %v1972 = vadd.f32 %v1437, %v1793
  %v1973 = vadd.f32 %v1438, %v1796
  %v1974 = vadd.f32 %v1439, %v1799
  %v1975 = vadd.f32 %v1440, %v1802
  %v1976 = vadd.f32 %v1441, %v1805
  %v1977 = vadd.f32 %v1442, %v1808
  %v1978 = vadd.f32 %v1443, %v1811
  %v1979 = vadd.f32 %v1444, %v1814
  %v1980 = vadd.f32 %v1445, %v1817
  %v1981 = vadd.f32 %v1446, %v1820
  %v1982 = vadd.f32 %v1447, %v1823
  %v1983 = vadd.f32 %v1448, %v1826
  %v1984 = vadd.f32 %v1449, %v1829
  %v1985 = vadd.f32 %v1450, %v1832
  %v1986 = vadd.f32 %v1451, %v1835
  %v1987 = vadd.f32 %v1452, %v1838
  %v1988 = vadd.f32 %v1453, %v1841
  %v1989 = vadd.f32 %v1454, %v1844
  %v1990 = vadd.f32 %v1455, %v1847
  %v1991 = vadd.f32 %v1456, %v1850
  %v1992 = vadd.f32 %v1457, %v1853
  %v1993 = vadd.f32 %v1458, %v1856
  %v1994 = vadd.f32 %v1459, %v1859
  %v1995 = vadd.f32 %v1460, %v1862
  %v1996 = vadd.f32 %v1461, %v1865
  %v1997 = vadd.f32 %v1462, %v1868
  %v1998 = vadd.f32 %v1463, %v1871
  %v1999 = vadd.f32 %v1464, %v1874
  %v2000 = vadd.f32 %v1465, %v1877
  %v2001 = vadd.f32 %v1466, %v1880
  %v2002 = vadd.f32 %v1467, %v1883
  %v2003 = vadd.f32 %v1468, %v1886
  %v2004 = vadd.f32 %v1469, %v1889
  %v2005 = vadd.f32 %v1470, %v1892
  %v2006 = vadd.f32 %v1471, %v1895
  %v2007 = vadd.f32 %v1472, %v1898
  %v2008 = vadd.f32 %v1473, %v1901
  %v2009 = vadd.f32 %v1474, %v1904
  %v2010 = vadd.f32 %v1475, %v1907
  %v2011 = vadd.f32 %v1476, %v1910
  %v2012 = vadd.f32 %v1477, %v1913
  %v2013 = vadd.f32 %v1478, %v1916
  %v2014 = vadd.f32 %v1479, %v1919
  %v2015 = vadd.f32 %v1480, %v1922
  %v2016 = vadd.f32 %v1481, %v1925
  %v2017 = vadd.f32 %v1482, %v1928
  %v2018 = vadd.f32 %v1483, %v1931
  %v2019 = vadd.f32 %v1484, %v1934
  %v2020 = vadd.f32 %v1485, %v1937
  %v2021 = vadd.f32 %v1486, %v1940
  %v2022 = vadd.f32 %v1487, %v1943
  %v2023 = vadd.f32 %v1488, %v1946
  %v2024 = vadd.f32 %v1489, %v1949
  %v2025 = vadd.f32 %v1490, %v1952
  %v2026 = vadd.f32 %v1491, %v1955
  %v2027 = vadd.f32 %v1492, %v1958
  %v2028 = vadd.f32 %v1493, %v1961
  %v2029 = vadd.f32 %v1494, %v1964
  %v2030 = vld [vmem:[%s1495 + $0x1] sm:$0xff]
  %v2031 = vld [vmem:[%s1495 + $0x9] sm:$0xff]
  %v2032 = vld [vmem:[%s1495 + $0x19] sm:$0xff]
  %v2033 = vld [vmem:[%s1495 + $0x21] sm:$0xff]
  %v2034 = vld [vmem:[%s1495 + $0x31] sm:$0xff]
  %v2035 = vld [vmem:[%s1495 + $0x39] sm:$0xff]
  %v2036 = vld [vmem:[%s1495 + $0x49] sm:$0xff]
  %v2037 = vld [vmem:[%s1495 + $0x51] sm:$0xff]
  %v2038 = vld [vmem:[%s1495 + $0x61] sm:$0xff]
  %v2039 = vld [vmem:[%s1495 + $0x69] sm:$0xff]
  %v2040 = vld [vmem:[%s1495 + $0x79] sm:$0xff]
  %v2041 = vld [vmem:[%s1495 + $0x81] sm:$0xff]
  %v2042 = vld [vmem:[%s1495 + $0x91] sm:$0xff]
  %v2043 = vld [vmem:[%s1495 + $0x99] sm:$0xff]
  %v2044 = vld [vmem:[%s1495 + $0xa9] sm:$0xff]
  %v2045 = vld [vmem:[%s1495 + $0xb1] sm:$0xff]
  %v2046 = vld [vmem:[%s1495 + $0xc1] sm:$0xff]
  %v2047 = vld [vmem:[%s1495 + $0xc9] sm:$0xff]
  %v2048 = vld [vmem:[%s1495 + $0xd9] sm:$0xff]
  %v2049 = vld [vmem:[%s1495 + $0xe1] sm:$0xff]
  %v2050 = vld [vmem:[%s1495 + $0xf1] sm:$0xff]
  %v2051 = vld [vmem:[%s1495 + $0xf9] sm:$0xff]
  %v2052 = vld [vmem:[%s1495 + $0x109] sm:$0xff]
  %v2053 = vld [vmem:[%s1495 + $0x111] sm:$0xff]
  %v2054 = vld [vmem:[%s1495 + $0x121] sm:$0xff]
  %v2055 = vld [vmem:[%s1495 + $0x129] sm:$0xff]
  %v2056 = vld [vmem:[%s1495 + $0x139] sm:$0xff]
  %v2057 = vld [vmem:[%s1495 + $0x141] sm:$0xff]
  %v2058 = vld [vmem:[%s1495 + $0x151] sm:$0xff]
  %v2059 = vld [vmem:[%s1495 + $0x159] sm:$0xff]
  %v2060 = vld [vmem:[%s1495 + $0x169] sm:$0xff]
  %v2061 = vld [vmem:[%s1495 + $0x171] sm:$0xff]
  %v2062 = vld [vmem:[%s1495 + $0x1b1] sm:$0xff]
  %v2063 = vld [vmem:[%s1495 + $0x1b9] sm:$0xff]
  %v2064 = vld [vmem:[%s1495 + $0x1c9] sm:$0xff]
  %v2065 = vld [vmem:[%s1495 + $0x1d1] sm:$0xff]
  %v2066 = vld [vmem:[%s1495 + $0x1e1] sm:$0xff]
  %v2067 = vld [vmem:[%s1495 + $0x1e9] sm:$0xff]
  %v2068 = vld [vmem:[%s1495 + $0x1f9] sm:$0xff]
  %v2069 = vld [vmem:[%s1495 + $0x201] sm:$0xff]
  %v2070 = vld [vmem:[%s1495 + $0x211] sm:$0xff]
  %v2071 = vld [vmem:[%s1495 + $0x219] sm:$0xff]
  %v2072 = vld [vmem:[%s1495 + $0x229] sm:$0xff]
  %v2073 = vld [vmem:[%s1495 + $0x231] sm:$0xff]
  %v2074 = vld [vmem:[%s1495 + $0x241] sm:$0xff]
  %v2075 = vld [vmem:[%s1495 + $0x249] sm:$0xff]
  %v2076 = vld [vmem:[%s1495 + $0x259] sm:$0xff]
  %v2077 = vld [vmem:[%s1495 + $0x261] sm:$0xff]
  %v2078 = vld [vmem:[%s1495 + $0x271] sm:$0xff]
  %v2079 = vld [vmem:[%s1495 + $0x279] sm:$0xff]
  %v2080 = vld [vmem:[%s1495 + $0x289] sm:$0xff]
  %v2081 = vld [vmem:[%s1495 + $0x291] sm:$0xff]
  %v2082 = vld [vmem:[%s1495 + $0x2a1] sm:$0xff]
  %v2083 = vld [vmem:[%s1495 + $0x2a9] sm:$0xff]
  %v2084 = vld [vmem:[%s1495 + $0x2b9] sm:$0xff]
  %v2085 = vld [vmem:[%s1495 + $0x2c1] sm:$0xff]
  %v2086 = vld [vmem:[%s1495 + $0x2d1] sm:$0xff]
  %v2087 = vld [vmem:[%s1495 + $0x2d9] sm:$0xff]
  %v2088 = vld [vmem:[%s1495 + $0x2e9] sm:$0xff]
  %v2089 = vld [vmem:[%s1495 + $0x2f1] sm:$0xff]
  %v2090 = vld [vmem:[%s1495 + $0x301] sm:$0xff]
  %v2091 = vld [vmem:[%s1495 + $0x309] sm:$0xff]
  %v2092 = vld [vmem:[%s1495 + $0x319] sm:$0xff]
  %v2093 = vld [vmem:[%s1495 + $0x321] sm:$0xff]
  %s2094 = scalar_lea.vmem %s1, 16
  %v2095 = vld [vmem:[%s2094] sm:$0xf]
  %v2097 = vsel %vm151, %v2030, 0
  %v2100 = vsel %vm151, %v2031, 0
  %v2103 = vsel %vm151, %v2032, 0
  %v2106 = vsel %vm151, %v2033, 0
  %v2109 = vsel %vm151, %v2034, 0
  %v2112 = vsel %vm151, %v2035, 0
  %v2115 = vsel %vm151, %v2036, 0
  %v2118 = vsel %vm151, %v2037, 0
  %v2121 = vsel %vm151, %v2038, 0
  %v2124 = vsel %vm151, %v2039, 0
  %v2127 = vsel %vm151, %v2040, 0
  %v2130 = vsel %vm151, %v2041, 0
  %v2133 = vsel %vm151, %v2042, 0
  %v2136 = vsel %vm151, %v2043, 0
  %v2139 = vsel %vm151, %v2044, 0
  %v2142 = vsel %vm151, %v2045, 0
  %v2145 = vsel %vm151, %v2046, 0
  %v2148 = vsel %vm151, %v2047, 0
  %v2151 = vsel %vm151, %v2048, 0
  %v2154 = vsel %vm151, %v2049, 0
  %v2157 = vsel %vm151, %v2050, 0
  %v2160 = vsel %vm151, %v2051, 0
  %v2163 = vsel %vm151, %v2052, 0
  %v2166 = vsel %vm151, %v2053, 0
  %v2169 = vsel %vm151, %v2054, 0
  %v2172 = vsel %vm151, %v2055, 0
  %v2175 = vsel %vm151, %v2056, 0
  %v2178 = vsel %vm151, %v2057, 0
  %v2181 = vsel %vm151, %v2058, 0
  %v2184 = vsel %vm151, %v2059, 0
  %v2187 = vsel %vm151, %v2060, 0
  %v2190 = vsel %vm151, %v2061, 0
  %v2193 = vsel %vm151, %v2062, 0
  %v2196 = vsel %vm151, %v2063, 0
  %v2199 = vsel %vm151, %v2064, 0
  %v2202 = vsel %vm151, %v2065, 0
  %v2205 = vsel %vm151, %v2066, 0
  %v2208 = vsel %vm151, %v2067, 0
  %v2211 = vsel %vm151, %v2068, 0
  %v2214 = vsel %vm151, %v2069, 0
  %v2217 = vsel %vm151, %v2070, 0
  %v2220 = vsel %vm151, %v2071, 0
  %v2223 = vsel %vm151, %v2072, 0
  %v2226 = vsel %vm151, %v2073, 0
  %v2229 = vsel %vm151, %v2074, 0
  %v2232 = vsel %vm151, %v2075, 0
  %v2235 = vsel %vm151, %v2076, 0
  %v2238 = vsel %vm151, %v2077, 0
  %v2241 = vsel %vm151, %v2078, 0
  %v2244 = vsel %vm151, %v2079, 0
  %v2247 = vsel %vm151, %v2080, 0
  %v2250 = vsel %vm151, %v2081, 0
  %v2253 = vsel %vm151, %v2082, 0
  %v2256 = vsel %vm151, %v2083, 0
  %v2259 = vsel %vm151, %v2084, 0
  %v2262 = vsel %vm151, %v2085, 0
  %v2265 = vsel %vm151, %v2086, 0
  %v2268 = vsel %vm151, %v2087, 0
  %v2271 = vsel %vm151, %v2088, 0
  %v2274 = vsel %vm151, %v2089, 0
  %v2277 = vsel %vm151, %v2090, 0
  %v2280 = vsel %vm151, %v2091, 0
  %v2283 = vsel %vm151, %v2092, 0
  %v2286 = vsel %vm151, %v2093, 0
  %v2289 = vsel %vm344, %v2095, 0
  %2291 = vmatpush.msra.mxu0 0.0
  %2292 = vmatpush.msra.mxu0 0.0
  %2293 = vmatpush.msra.mxu0 0.0
  %2294 = vmatpush.msra.mxu0 0.0
  %2295 = vmatpush.msra.mxu0 0.0
  %2296 = vmatpush.msra.mxu0 0.0
  %2297 = vmatpush.msra.mxu0 0.0
  %2298 = vmatpush.msra.mxu0 0.0
  %2299 = vmatpush.msra.mxu0 0.0
  %2300 = vmatpush.msra.mxu0 0.0
  %2301 = vmatpush.msra.mxu0 0.0
  %2302 = vmatpush.msra.mxu0 0.0
  %2303 = vmatpush.msra.mxu0 0.0
  %2304 = vmatpush.msra.mxu0 0.0
  %2305 = vmatpush.msra.mxu0 0.0
  %2306 = vmatpush.msra.mxu0 %v2289
  %2307 = vmatmul.f32.gmra.mxu0 %v2097
  %v2308 = vpop.f32.mrf.mxu0
  %v2309 = vadd.f32 0.0, %v2308
  %2310 = vmatmul.f32.gmra.mxu0 %v2100
  %v2311 = vpop.f32.mrf.mxu0
  %v2312 = vadd.f32 0.0, %v2311
  %2313 = vmatmul.f32.gmra.mxu0 %v2103
  %v2314 = vpop.f32.mrf.mxu0
  %v2315 = vadd.f32 0.0, %v2314
  %2316 = vmatmul.f32.gmra.mxu0 %v2106
  %v2317 = vpop.f32.mrf.mxu0
  %v2318 = vadd.f32 0.0, %v2317
  %2319 = vmatmul.f32.gmra.mxu0 %v2109
  %v2320 = vpop.f32.mrf.mxu0
  %v2321 = vadd.f32 0.0, %v2320
  %2322 = vmatmul.f32.gmra.mxu0 %v2112
  %v2323 = vpop.f32.mrf.mxu0
  %v2324 = vadd.f32 0.0, %v2323
  %2325 = vmatmul.f32.gmra.mxu0 %v2115
  %v2326 = vpop.f32.mrf.mxu0
  %v2327 = vadd.f32 0.0, %v2326
  %2328 = vmatmul.f32.gmra.mxu0 %v2118
  %v2329 = vpop.f32.mrf.mxu0
  %v2330 = vadd.f32 0.0, %v2329
  %2331 = vmatmul.f32.gmra.mxu0 %v2121
  %v2332 = vpop.f32.mrf.mxu0
  %v2333 = vadd.f32 0.0, %v2332
  %2334 = vmatmul.f32.gmra.mxu0 %v2124
  %v2335 = vpop.f32.mrf.mxu0
  %v2336 = vadd.f32 0.0, %v2335
  %2337 = vmatmul.f32.gmra.mxu0 %v2127
  %v2338 = vpop.f32.mrf.mxu0
  %v2339 = vadd.f32 0.0, %v2338
  %2340 = vmatmul.f32.gmra.mxu0 %v2130
  %v2341 = vpop.f32.mrf.mxu0
  %v2342 = vadd.f32 0.0, %v2341
  %2343 = vmatmul.f32.gmra.mxu0 %v2133
  %v2344 = vpop.f32.mrf.mxu0
  %v2345 = vadd.f32 0.0, %v2344
  %2346 = vmatmul.f32.gmra.mxu0 %v2136
  %v2347 = vpop.f32.mrf.mxu0
  %v2348 = vadd.f32 0.0, %v2347
  %2349 = vmatmul.f32.gmra.mxu0 %v2139
  %v2350 = vpop.f32.mrf.mxu0
  %v2351 = vadd.f32 0.0, %v2350
  %2352 = vmatmul.f32.gmra.mxu0 %v2142
  %v2353 = vpop.f32.mrf.mxu0
  %v2354 = vadd.f32 0.0, %v2353
  %2355 = vmatmul.f32.gmra.mxu0 %v2145
  %v2356 = vpop.f32.mrf.mxu0
  %v2357 = vadd.f32 0.0, %v2356
  %2358 = vmatmul.f32.gmra.mxu0 %v2148
  %v2359 = vpop.f32.mrf.mxu0
  %v2360 = vadd.f32 0.0, %v2359
  %2361 = vmatmul.f32.gmra.mxu0 %v2151
  %v2362 = vpop.f32.mrf.mxu0
  %v2363 = vadd.f32 0.0, %v2362
  %2364 = vmatmul.f32.gmra.mxu0 %v2154
  %v2365 = vpop.f32.mrf.mxu0
  %v2366 = vadd.f32 0.0, %v2365
  %2367 = vmatmul.f32.gmra.mxu0 %v2157
  %v2368 = vpop.f32.mrf.mxu0
  %v2369 = vadd.f32 0.0, %v2368
  %2370 = vmatmul.f32.gmra.mxu0 %v2160
  %v2371 = vpop.f32.mrf.mxu0
  %v2372 = vadd.f32 0.0, %v2371
  %2373 = vmatmul.f32.gmra.mxu0 %v2163
  %v2374 = vpop.f32.mrf.mxu0
  %v2375 = vadd.f32 0.0, %v2374
  %2376 = vmatmul.f32.gmra.mxu0 %v2166
  %v2377 = vpop.f32.mrf.mxu0
  %v2378 = vadd.f32 0.0, %v2377
  %2379 = vmatmul.f32.gmra.mxu0 %v2169
  %v2380 = vpop.f32.mrf.mxu0
  %v2381 = vadd.f32 0.0, %v2380
  %2382 = vmatmul.f32.gmra.mxu0 %v2172
  %v2383 = vpop.f32.mrf.mxu0
  %v2384 = vadd.f32 0.0, %v2383
  %2385 = vmatmul.f32.gmra.mxu0 %v2175
  %v2386 = vpop.f32.mrf.mxu0
  %v2387 = vadd.f32 0.0, %v2386
  %2388 = vmatmul.f32.gmra.mxu0 %v2178
  %v2389 = vpop.f32.mrf.mxu0
  %v2390 = vadd.f32 0.0, %v2389
  %2391 = vmatmul.f32.gmra.mxu0 %v2181
  %v2392 = vpop.f32.mrf.mxu0
  %v2393 = vadd.f32 0.0, %v2392
  %2394 = vmatmul.f32.gmra.mxu0 %v2184
  %v2395 = vpop.f32.mrf.mxu0
  %v2396 = vadd.f32 0.0, %v2395
  %2397 = vmatmul.f32.gmra.mxu0 %v2187
  %v2398 = vpop.f32.mrf.mxu0
  %v2399 = vadd.f32 0.0, %v2398
  %2400 = vmatmul.f32.gmra.mxu0 %v2190
  %v2401 = vpop.f32.mrf.mxu0
  %v2402 = vadd.f32 0.0, %v2401
  %2403 = vmatmul.f32.gmra.mxu0 %v2193
  %v2404 = vpop.f32.mrf.mxu0
  %v2405 = vadd.f32 0.0, %v2404
  %2406 = vmatmul.f32.gmra.mxu0 %v2196
  %v2407 = vpop.f32.mrf.mxu0
  %v2408 = vadd.f32 0.0, %v2407
  %2409 = vmatmul.f32.gmra.mxu0 %v2199
  %v2410 = vpop.f32.mrf.mxu0
  %v2411 = vadd.f32 0.0, %v2410
  %2412 = vmatmul.f32.gmra.mxu0 %v2202
  %v2413 = vpop.f32.mrf.mxu0
  %v2414 = vadd.f32 0.0, %v2413
  %2415 = vmatmul.f32.gmra.mxu0 %v2205
  %v2416 = vpop.f32.mrf.mxu0
  %v2417 = vadd.f32 0.0, %v2416
  %2418 = vmatmul.f32.gmra.mxu0 %v2208
  %v2419 = vpop.f32.mrf.mxu0
  %v2420 = vadd.f32 0.0, %v2419
  %2421 = vmatmul.f32.gmra.mxu0 %v2211
  %v2422 = vpop.f32.mrf.mxu0
  %v2423 = vadd.f32 0.0, %v2422
  %2424 = vmatmul.f32.gmra.mxu0 %v2214
  %v2425 = vpop.f32.mrf.mxu0
  %v2426 = vadd.f32 0.0, %v2425
  %2427 = vmatmul.f32.gmra.mxu0 %v2217
  %v2428 = vpop.f32.mrf.mxu0
  %v2429 = vadd.f32 0.0, %v2428
  %2430 = vmatmul.f32.gmra.mxu0 %v2220
  %v2431 = vpop.f32.mrf.mxu0
  %v2432 = vadd.f32 0.0, %v2431
  %2433 = vmatmul.f32.gmra.mxu0 %v2223
  %v2434 = vpop.f32.mrf.mxu0
  %v2435 = vadd.f32 0.0, %v2434
  %2436 = vmatmul.f32.gmra.mxu0 %v2226
  %v2437 = vpop.f32.mrf.mxu0
  %v2438 = vadd.f32 0.0, %v2437
  %2439 = vmatmul.f32.gmra.mxu0 %v2229
  %v2440 = vpop.f32.mrf.mxu0
  %v2441 = vadd.f32 0.0, %v2440
  %2442 = vmatmul.f32.gmra.mxu0 %v2232
  %v2443 = vpop.f32.mrf.mxu0
  %v2444 = vadd.f32 0.0, %v2443
  %2445 = vmatmul.f32.gmra.mxu0 %v2235
  %v2446 = vpop.f32.mrf.mxu0
  %v2447 = vadd.f32 0.0, %v2446
  %2448 = vmatmul.f32.gmra.mxu0 %v2238
  %v2449 = vpop.f32.mrf.mxu0
  %v2450 = vadd.f32 0.0, %v2449
  %2451 = vmatmul.f32.gmra.mxu0 %v2241
  %v2452 = vpop.f32.mrf.mxu0
  %v2453 = vadd.f32 0.0, %v2452
  %2454 = vmatmul.f32.gmra.mxu0 %v2244
  %v2455 = vpop.f32.mrf.mxu0
  %v2456 = vadd.f32 0.0, %v2455
  %2457 = vmatmul.f32.gmra.mxu0 %v2247
  %v2458 = vpop.f32.mrf.mxu0
  %v2459 = vadd.f32 0.0, %v2458
  %2460 = vmatmul.f32.gmra.mxu0 %v2250
  %v2461 = vpop.f32.mrf.mxu0
  %v2462 = vadd.f32 0.0, %v2461
  %2463 = vmatmul.f32.gmra.mxu0 %v2253
  %v2464 = vpop.f32.mrf.mxu0
  %v2465 = vadd.f32 0.0, %v2464
  %2466 = vmatmul.f32.gmra.mxu0 %v2256
  %v2467 = vpop.f32.mrf.mxu0
  %v2468 = vadd.f32 0.0, %v2467
  %2469 = vmatmul.f32.gmra.mxu0 %v2259
  %v2470 = vpop.f32.mrf.mxu0
  %v2471 = vadd.f32 0.0, %v2470
  %2472 = vmatmul.f32.gmra.mxu0 %v2262
  %v2473 = vpop.f32.mrf.mxu0
  %v2474 = vadd.f32 0.0, %v2473
  %2475 = vmatmul.f32.gmra.mxu0 %v2265
  %v2476 = vpop.f32.mrf.mxu0
  %v2477 = vadd.f32 0.0, %v2476
  %2478 = vmatmul.f32.gmra.mxu0 %v2268
  %v2479 = vpop.f32.mrf.mxu0
  %v2480 = vadd.f32 0.0, %v2479
  %2481 = vmatmul.f32.gmra.mxu0 %v2271
  %v2482 = vpop.f32.mrf.mxu0
  %v2483 = vadd.f32 0.0, %v2482
  %2484 = vmatmul.f32.gmra.mxu0 %v2274
  %v2485 = vpop.f32.mrf.mxu0
  %v2486 = vadd.f32 0.0, %v2485
  %2487 = vmatmul.f32.gmra.mxu0 %v2277
  %v2488 = vpop.f32.mrf.mxu0
  %v2489 = vadd.f32 0.0, %v2488
  %2490 = vmatmul.f32.gmra.mxu0 %v2280
  %v2491 = vpop.f32.mrf.mxu0
  %v2492 = vadd.f32 0.0, %v2491
  %2493 = vmatmul.f32.gmra.mxu0 %v2283
  %v2494 = vpop.f32.mrf.mxu0
  %v2495 = vadd.f32 0.0, %v2494
  %2496 = vmatmul.f32.gmra.mxu0 %v2286
  %v2497 = vpop.f32.mrf.mxu0
  %v2498 = vadd.f32 0.0, %v2497
  %2499 = vdwg.mxu0
  %v2500 = vadd.f32 %v1966, %v2309
  %v2501 = vadd.f32 %v1967, %v2312
  %v2502 = vadd.f32 %v1968, %v2315
  %v2503 = vadd.f32 %v1969, %v2318
  %v2504 = vadd.f32 %v1970, %v2321
  %v2505 = vadd.f32 %v1971, %v2324
  %v2506 = vadd.f32 %v1972, %v2327
  %v2507 = vadd.f32 %v1973, %v2330
  %v2508 = vadd.f32 %v1974, %v2333
  %v2509 = vadd.f32 %v1975, %v2336
  %v2510 = vadd.f32 %v1976, %v2339
  %v2511 = vadd.f32 %v1977, %v2342
  %v2512 = vadd.f32 %v1978, %v2345
  %v2513 = vadd.f32 %v1979, %v2348
  %v2514 = vadd.f32 %v1980, %v2351
  %v2515 = vadd.f32 %v1981, %v2354
  %v2516 = vadd.f32 %v1982, %v2357
  %v2517 = vadd.f32 %v1983, %v2360
  %v2518 = vadd.f32 %v1984, %v2363
  %v2519 = vadd.f32 %v1985, %v2366
  %v2520 = vadd.f32 %v1986, %v2369
  %v2521 = vadd.f32 %v1987, %v2372
  %v2522 = vadd.f32 %v1988, %v2375
  %v2523 = vadd.f32 %v1989, %v2378
  %v2524 = vadd.f32 %v1990, %v2381
  %v2525 = vadd.f32 %v1991, %v2384
  %v2526 = vadd.f32 %v1992, %v2387
  %v2527 = vadd.f32 %v1993, %v2390
  %v2528 = vadd.f32 %v1994, %v2393
  %v2529 = vadd.f32 %v1995, %v2396
  %v2530 = vadd.f32 %v1996, %v2399
  %v2531 = vadd.f32 %v1997, %v2402
  %v2532 = vadd.f32 %v1998, %v2405
  %v2533 = vadd.f32 %v1999, %v2408
  %v2534 = vadd.f32 %v2000, %v2411
  %v2535 = vadd.f32 %v2001, %v2414
  %v2536 = vadd.f32 %v2002, %v2417
  %v2537 = vadd.f32 %v2003, %v2420
  %v2538 = vadd.f32 %v2004, %v2423
  %v2539 = vadd.f32 %v2005, %v2426
  %v2540 = vadd.f32 %v2006, %v2429
  %v2541 = vadd.f32 %v2007, %v2432
  %v2542 = vadd.f32 %v2008, %v2435
  %v2543 = vadd.f32 %v2009, %v2438
  %v2544 = vadd.f32 %v2010, %v2441
  %v2545 = vadd.f32 %v2011, %v2444
  %v2546 = vadd.f32 %v2012, %v2447
  %v2547 = vadd.f32 %v2013, %v2450
  %v2548 = vadd.f32 %v2014, %v2453
  %v2549 = vadd.f32 %v2015, %v2456
  %v2550 = vadd.f32 %v2016, %v2459
  %v2551 = vadd.f32 %v2017, %v2462
  %v2552 = vadd.f32 %v2018, %v2465
  %v2553 = vadd.f32 %v2019, %v2468
  %v2554 = vadd.f32 %v2020, %v2471
  %v2555 = vadd.f32 %v2021, %v2474
  %v2556 = vadd.f32 %v2022, %v2477
  %v2557 = vadd.f32 %v2023, %v2480
  %v2558 = vadd.f32 %v2024, %v2483
  %v2559 = vadd.f32 %v2025, %v2486
  %v2560 = vadd.f32 %v2026, %v2489
  %v2561 = vadd.f32 %v2027, %v2492
  %v2562 = vadd.f32 %v2028, %v2495
  %v2563 = vadd.f32 %v2029, %v2498
  %v2564 = vld [vmem:[%s1495 + $0x2] sm:$0xff]
  %v2565 = vld [vmem:[%s1495 + $0xa] sm:$0xff]
  %v2566 = vld [vmem:[%s1495 + $0x1a] sm:$0xff]
  %v2567 = vld [vmem:[%s1495 + $0x22] sm:$0xff]
  %v2568 = vld [vmem:[%s1495 + $0x32] sm:$0xff]
  %v2569 = vld [vmem:[%s1495 + $0x3a] sm:$0xff]
  %v2570 = vld [vmem:[%s1495 + $0x4a] sm:$0xff]
  %v2571 = vld [vmem:[%s1495 + $0x52] sm:$0xff]
  %v2572 = vld [vmem:[%s1495 + $0x62] sm:$0xff]
  %v2573 = vld [vmem:[%s1495 + $0x6a] sm:$0xff]
  %v2574 = vld [vmem:[%s1495 + $0x7a] sm:$0xff]
  %v2575 = vld [vmem:[%s1495 + $0x82] sm:$0xff]
  %v2576 = vld [vmem:[%s1495 + $0x92] sm:$0xff]
  %v2577 = vld [vmem:[%s1495 + $0x9a] sm:$0xff]
  %v2578 = vld [vmem:[%s1495 + $0xaa] sm:$0xff]
  %v2579 = vld [vmem:[%s1495 + $0xb2] sm:$0xff]
  %v2580 = vld [vmem:[%s1495 + $0xc2] sm:$0xff]
  %v2581 = vld [vmem:[%s1495 + $0xca] sm:$0xff]
  %v2582 = vld [vmem:[%s1495 + $0xda] sm:$0xff]
  %v2583 = vld [vmem:[%s1495 + $0xe2] sm:$0xff]
  %v2584 = vld [vmem:[%s1495 + $0xf2] sm:$0xff]
  %v2585 = vld [vmem:[%s1495 + $0xfa] sm:$0xff]
  %v2586 = vld [vmem:[%s1495 + $0x10a] sm:$0xff]
  %v2587 = vld [vmem:[%s1495 + $0x112] sm:$0xff]
  %v2588 = vld [vmem:[%s1495 + $0x122] sm:$0xff]
  %v2589 = vld [vmem:[%s1495 + $0x12a] sm:$0xff]
  %v2590 = vld [vmem:[%s1495 + $0x13a] sm:$0xff]
  %v2591 = vld [vmem:[%s1495 + $0x142] sm:$0xff]
  %v2592 = vld [vmem:[%s1495 + $0x152] sm:$0xff]
  %v2593 = vld [vmem:[%s1495 + $0x15a] sm:$0xff]
  %v2594 = vld [vmem:[%s1495 + $0x16a] sm:$0xff]
  %v2595 = vld [vmem:[%s1495 + $0x172] sm:$0xff]
  %v2596 = vld [vmem:[%s1495 + $0x1b2] sm:$0xff]
  %v2597 = vld [vmem:[%s1495 + $0x1ba] sm:$0xff]
  %v2598 = vld [vmem:[%s1495 + $0x1ca] sm:$0xff]
  %v2599 = vld [vmem:[%s1495 + $0x1d2] sm:$0xff]
  %v2600 = vld [vmem:[%s1495 + $0x1e2] sm:$0xff]
  %v2601 = vld [vmem:[%s1495 + $0x1ea] sm:$0xff]
  %v2602 = vld [vmem:[%s1495 + $0x1fa] sm:$0xff]
  %v2603 = vld [vmem:[%s1495 + $0x202] sm:$0xff]
  %v2604 = vld [vmem:[%s1495 + $0x212] sm:$0xff]
  %v2605 = vld [vmem:[%s1495 + $0x21a] sm:$0xff]
  %v2606 = vld [vmem:[%s1495 + $0x22a] sm:$0xff]
  %v2607 = vld [vmem:[%s1495 + $0x232] sm:$0xff]
  %v2608 = vld [vmem:[%s1495 + $0x242] sm:$0xff]
  %v2609 = vld [vmem:[%s1495 + $0x24a] sm:$0xff]
  %v2610 = vld [vmem:[%s1495 + $0x25a] sm:$0xff]
  %v2611 = vld [vmem:[%s1495 + $0x262] sm:$0xff]
  %v2612 = vld [vmem:[%s1495 + $0x272] sm:$0xff]
  %v2613 = vld [vmem:[%s1495 + $0x27a] sm:$0xff]
  %v2614 = vld [vmem:[%s1495 + $0x28a] sm:$0xff]
  %v2615 = vld [vmem:[%s1495 + $0x292] sm:$0xff]
  %v2616 = vld [vmem:[%s1495 + $0x2a2] sm:$0xff]
  %v2617 = vld [vmem:[%s1495 + $0x2aa] sm:$0xff]
  %v2618 = vld [vmem:[%s1495 + $0x2ba] sm:$0xff]
  %v2619 = vld [vmem:[%s1495 + $0x2c2] sm:$0xff]
  %v2620 = vld [vmem:[%s1495 + $0x2d2] sm:$0xff]
  %v2621 = vld [vmem:[%s1495 + $0x2da] sm:$0xff]
  %v2622 = vld [vmem:[%s1495 + $0x2ea] sm:$0xff]
  %v2623 = vld [vmem:[%s1495 + $0x2f2] sm:$0xff]
  %v2624 = vld [vmem:[%s1495 + $0x302] sm:$0xff]
  %v2625 = vld [vmem:[%s1495 + $0x30a] sm:$0xff]
  %v2626 = vld [vmem:[%s1495 + $0x31a] sm:$0xff]
  %v2627 = vld [vmem:[%s1495 + $0x322] sm:$0xff]
  %s2628 = scalar_lea.vmem %s1, 20
  %v2629 = vld [vmem:[%s2628] sm:$0xf]
  %v2631 = vsel %vm151, %v2564, 0
  %v2634 = vsel %vm151, %v2565, 0
  %v2637 = vsel %vm151, %v2566, 0
  %v2640 = vsel %vm151, %v2567, 0
  %v2643 = vsel %vm151, %v2568, 0
  %v2646 = vsel %vm151, %v2569, 0
  %v2649 = vsel %vm151, %v2570, 0
  %v2652 = vsel %vm151, %v2571, 0
  %v2655 = vsel %vm151, %v2572, 0
  %v2658 = vsel %vm151, %v2573, 0
  %v2661 = vsel %vm151, %v2574, 0
  %v2664 = vsel %vm151, %v2575, 0
  %v2667 = vsel %vm151, %v2576, 0
  %v2670 = vsel %vm151, %v2577, 0
  %v2673 = vsel %vm151, %v2578, 0
  %v2676 = vsel %vm151, %v2579, 0
  %v2679 = vsel %vm151, %v2580, 0
  %v2682 = vsel %vm151, %v2581, 0
  %v2685 = vsel %vm151, %v2582, 0
  %v2688 = vsel %vm151, %v2583, 0
  %v2691 = vsel %vm151, %v2584, 0
  %v2694 = vsel %vm151, %v2585, 0
  %v2697 = vsel %vm151, %v2586, 0
  %v2700 = vsel %vm151, %v2587, 0
  %v2703 = vsel %vm151, %v2588, 0
  %v2706 = vsel %vm151, %v2589, 0
  %v2709 = vsel %vm151, %v2590, 0
  %v2712 = vsel %vm151, %v2591, 0
  %v2715 = vsel %vm151, %v2592, 0
  %v2718 = vsel %vm151, %v2593, 0
  %v2721 = vsel %vm151, %v2594, 0
  %v2724 = vsel %vm151, %v2595, 0
  %v2727 = vsel %vm151, %v2596, 0
  %v2730 = vsel %vm151, %v2597, 0
  %v2733 = vsel %vm151, %v2598, 0
  %v2736 = vsel %vm151, %v2599, 0
  %v2739 = vsel %vm151, %v2600, 0
  %v2742 = vsel %vm151, %v2601, 0
  %v2745 = vsel %vm151, %v2602, 0
  %v2748 = vsel %vm151, %v2603, 0
  %v2751 = vsel %vm151, %v2604, 0
  %v2754 = vsel %vm151, %v2605, 0
  %v2757 = vsel %vm151, %v2606, 0
  %v2760 = vsel %vm151, %v2607, 0
  %v2763 = vsel %vm151, %v2608, 0
  %v2766 = vsel %vm151, %v2609, 0
  %v2769 = vsel %vm151, %v2610, 0
  %v2772 = vsel %vm151, %v2611, 0
  %v2775 = vsel %vm151, %v2612, 0
  %v2778 = vsel %vm151, %v2613, 0
  %v2781 = vsel %vm151, %v2614, 0
  %v2784 = vsel %vm151, %v2615, 0
  %v2787 = vsel %vm151, %v2616, 0
  %v2790 = vsel %vm151, %v2617, 0
  %v2793 = vsel %vm151, %v2618, 0
  %v2796 = vsel %vm151, %v2619, 0
  %v2799 = vsel %vm151, %v2620, 0
  %v2802 = vsel %vm151, %v2621, 0
  %v2805 = vsel %vm151, %v2622, 0
  %v2808 = vsel %vm151, %v2623, 0
  %v2811 = vsel %vm151, %v2624, 0
  %v2814 = vsel %vm151, %v2625, 0
  %v2817 = vsel %vm151, %v2626, 0
  %v2820 = vsel %vm151, %v2627, 0
  %v2823 = vsel %vm344, %v2629, 0
  %2825 = vmatpush.msra.mxu0 0.0
  %2826 = vmatpush.msra.mxu0 0.0
  %2827 = vmatpush.msra.mxu0 0.0
  %2828 = vmatpush.msra.mxu0 0.0
  %2829 = vmatpush.msra.mxu0 0.0
  %2830 = vmatpush.msra.mxu0 0.0
  %2831 = vmatpush.msra.mxu0 0.0
  %2832 = vmatpush.msra.mxu0 0.0
  %2833 = vmatpush.msra.mxu0 0.0
  %2834 = vmatpush.msra.mxu0 0.0
  %2835 = vmatpush.msra.mxu0 0.0
  %2836 = vmatpush.msra.mxu0 0.0
  %2837 = vmatpush.msra.mxu0 0.0
  %2838 = vmatpush.msra.mxu0 0.0
  %2839 = vmatpush.msra.mxu0 0.0
  %2840 = vmatpush.msra.mxu0 %v2823
  %2841 = vmatmul.f32.gmra.mxu0 %v2631
  %v2842 = vpop.f32.mrf.mxu0
  %v2843 = vadd.f32 0.0, %v2842
  %2844 = vmatmul.f32.gmra.mxu0 %v2634
  %v2845 = vpop.f32.mrf.mxu0
  %v2846 = vadd.f32 0.0, %v2845
  %2847 = vmatmul.f32.gmra.mxu0 %v2637
  %v2848 = vpop.f32.mrf.mxu0
  %v2849 = vadd.f32 0.0, %v2848
  %2850 = vmatmul.f32.gmra.mxu0 %v2640
  %v2851 = vpop.f32.mrf.mxu0
  %v2852 = vadd.f32 0.0, %v2851
  %2853 = vmatmul.f32.gmra.mxu0 %v2643
  %v2854 = vpop.f32.mrf.mxu0
  %v2855 = vadd.f32 0.0, %v2854
  %2856 = vmatmul.f32.gmra.mxu0 %v2646
  %v2857 = vpop.f32.mrf.mxu0
  %v2858 = vadd.f32 0.0, %v2857
  %2859 = vmatmul.f32.gmra.mxu0 %v2649
  %v2860 = vpop.f32.mrf.mxu0
  %v2861 = vadd.f32 0.0, %v2860
  %2862 = vmatmul.f32.gmra.mxu0 %v2652
  %v2863 = vpop.f32.mrf.mxu0
  %v2864 = vadd.f32 0.0, %v2863
  %2865 = vmatmul.f32.gmra.mxu0 %v2655
  %v2866 = vpop.f32.mrf.mxu0
  %v2867 = vadd.f32 0.0, %v2866
  %2868 = vmatmul.f32.gmra.mxu0 %v2658
  %v2869 = vpop.f32.mrf.mxu0
  %v2870 = vadd.f32 0.0, %v2869
  %2871 = vmatmul.f32.gmra.mxu0 %v2661
  %v2872 = vpop.f32.mrf.mxu0
  %v2873 = vadd.f32 0.0, %v2872
  %2874 = vmatmul.f32.gmra.mxu0 %v2664
  %v2875 = vpop.f32.mrf.mxu0
  %v2876 = vadd.f32 0.0, %v2875
  %2877 = vmatmul.f32.gmra.mxu0 %v2667
  %v2878 = vpop.f32.mrf.mxu0
  %v2879 = vadd.f32 0.0, %v2878
  %2880 = vmatmul.f32.gmra.mxu0 %v2670
  %v2881 = vpop.f32.mrf.mxu0
  %v2882 = vadd.f32 0.0, %v2881
  %2883 = vmatmul.f32.gmra.mxu0 %v2673
  %v2884 = vpop.f32.mrf.mxu0
  %v2885 = vadd.f32 0.0, %v2884
  %2886 = vmatmul.f32.gmra.mxu0 %v2676
  %v2887 = vpop.f32.mrf.mxu0
  %v2888 = vadd.f32 0.0, %v2887
  %2889 = vmatmul.f32.gmra.mxu0 %v2679
  %v2890 = vpop.f32.mrf.mxu0
  %v2891 = vadd.f32 0.0, %v2890
  %2892 = vmatmul.f32.gmra.mxu0 %v2682
  %v2893 = vpop.f32.mrf.mxu0
  %v2894 = vadd.f32 0.0, %v2893
  %2895 = vmatmul.f32.gmra.mxu0 %v2685
  %v2896 = vpop.f32.mrf.mxu0
  %v2897 = vadd.f32 0.0, %v2896
  %2898 = vmatmul.f32.gmra.mxu0 %v2688
  %v2899 = vpop.f32.mrf.mxu0
  %v2900 = vadd.f32 0.0, %v2899
  %2901 = vmatmul.f32.gmra.mxu0 %v2691
  %v2902 = vpop.f32.mrf.mxu0
  %v2903 = vadd.f32 0.0, %v2902
  %2904 = vmatmul.f32.gmra.mxu0 %v2694
  %v2905 = vpop.f32.mrf.mxu0
  %v2906 = vadd.f32 0.0, %v2905
  %2907 = vmatmul.f32.gmra.mxu0 %v2697
  %v2908 = vpop.f32.mrf.mxu0
  %v2909 = vadd.f32 0.0, %v2908
  %2910 = vmatmul.f32.gmra.mxu0 %v2700
  %v2911 = vpop.f32.mrf.mxu0
  %v2912 = vadd.f32 0.0, %v2911
  %2913 = vmatmul.f32.gmra.mxu0 %v2703
  %v2914 = vpop.f32.mrf.mxu0
  %v2915 = vadd.f32 0.0, %v2914
  %2916 = vmatmul.f32.gmra.mxu0 %v2706
  %v2917 = vpop.f32.mrf.mxu0
  %v2918 = vadd.f32 0.0, %v2917
  %2919 = vmatmul.f32.gmra.mxu0 %v2709
  %v2920 = vpop.f32.mrf.mxu0
  %v2921 = vadd.f32 0.0, %v2920
  %2922 = vmatmul.f32.gmra.mxu0 %v2712
  %v2923 = vpop.f32.mrf.mxu0
  %v2924 = vadd.f32 0.0, %v2923
  %2925 = vmatmul.f32.gmra.mxu0 %v2715
  %v2926 = vpop.f32.mrf.mxu0
  %v2927 = vadd.f32 0.0, %v2926
  %2928 = vmatmul.f32.gmra.mxu0 %v2718
  %v2929 = vpop.f32.mrf.mxu0
  %v2930 = vadd.f32 0.0, %v2929
  %2931 = vmatmul.f32.gmra.mxu0 %v2721
  %v2932 = vpop.f32.mrf.mxu0
  %v2933 = vadd.f32 0.0, %v2932
  %2934 = vmatmul.f32.gmra.mxu0 %v2724
  %v2935 = vpop.f32.mrf.mxu0
  %v2936 = vadd.f32 0.0, %v2935
  %2937 = vmatmul.f32.gmra.mxu0 %v2727
  %v2938 = vpop.f32.mrf.mxu0
  %v2939 = vadd.f32 0.0, %v2938
  %2940 = vmatmul.f32.gmra.mxu0 %v2730
  %v2941 = vpop.f32.mrf.mxu0
  %v2942 = vadd.f32 0.0, %v2941
  %2943 = vmatmul.f32.gmra.mxu0 %v2733
  %v2944 = vpop.f32.mrf.mxu0
  %v2945 = vadd.f32 0.0, %v2944
  %2946 = vmatmul.f32.gmra.mxu0 %v2736
  %v2947 = vpop.f32.mrf.mxu0
  %v2948 = vadd.f32 0.0, %v2947
  %2949 = vmatmul.f32.gmra.mxu0 %v2739
  %v2950 = vpop.f32.mrf.mxu0
  %v2951 = vadd.f32 0.0, %v2950
  %2952 = vmatmul.f32.gmra.mxu0 %v2742
  %v2953 = vpop.f32.mrf.mxu0
  %v2954 = vadd.f32 0.0, %v2953
  %2955 = vmatmul.f32.gmra.mxu0 %v2745
  %v2956 = vpop.f32.mrf.mxu0
  %v2957 = vadd.f32 0.0, %v2956
  %2958 = vmatmul.f32.gmra.mxu0 %v2748
  %v2959 = vpop.f32.mrf.mxu0
  %v2960 = vadd.f32 0.0, %v2959
  %2961 = vmatmul.f32.gmra.mxu0 %v2751
  %v2962 = vpop.f32.mrf.mxu0
  %v2963 = vadd.f32 0.0, %v2962
  %2964 = vmatmul.f32.gmra.mxu0 %v2754
  %v2965 = vpop.f32.mrf.mxu0
  %v2966 = vadd.f32 0.0, %v2965
  %2967 = vmatmul.f32.gmra.mxu0 %v2757
  %v2968 = vpop.f32.mrf.mxu0
  %v2969 = vadd.f32 0.0, %v2968
  %2970 = vmatmul.f32.gmra.mxu0 %v2760
  %v2971 = vpop.f32.mrf.mxu0
  %v2972 = vadd.f32 0.0, %v2971
  %2973 = vmatmul.f32.gmra.mxu0 %v2763
  %v2974 = vpop.f32.mrf.mxu0
  %v2975 = vadd.f32 0.0, %v2974
  %2976 = vmatmul.f32.gmra.mxu0 %v2766
  %v2977 = vpop.f32.mrf.mxu0
  %v2978 = vadd.f32 0.0, %v2977
  %2979 = vmatmul.f32.gmra.mxu0 %v2769
  %v2980 = vpop.f32.mrf.mxu0
  %v2981 = vadd.f32 0.0, %v2980
  %2982 = vmatmul.f32.gmra.mxu0 %v2772
  %v2983 = vpop.f32.mrf.mxu0
  %v2984 = vadd.f32 0.0, %v2983
  %2985 = vmatmul.f32.gmra.mxu0 %v2775
  %v2986 = vpop.f32.mrf.mxu0
  %v2987 = vadd.f32 0.0, %v2986
  %2988 = vmatmul.f32.gmra.mxu0 %v2778
  %v2989 = vpop.f32.mrf.mxu0
  %v2990 = vadd.f32 0.0, %v2989
  %2991 = vmatmul.f32.gmra.mxu0 %v2781
  %v2992 = vpop.f32.mrf.mxu0
  %v2993 = vadd.f32 0.0, %v2992
  %2994 = vmatmul.f32.gmra.mxu0 %v2784
  %v2995 = vpop.f32.mrf.mxu0
  %v2996 = vadd.f32 0.0, %v2995
  %2997 = vmatmul.f32.gmra.mxu0 %v2787
  %v2998 = vpop.f32.mrf.mxu0
  %v2999 = vadd.f32 0.0, %v2998
  %3000 = vmatmul.f32.gmra.mxu0 %v2790
  %v3001 = vpop.f32.mrf.mxu0
  %v3002 = vadd.f32 0.0, %v3001
  %3003 = vmatmul.f32.gmra.mxu0 %v2793
  %v3004 = vpop.f32.mrf.mxu0
  %v3005 = vadd.f32 0.0, %v3004
  %3006 = vmatmul.f32.gmra.mxu0 %v2796
  %v3007 = vpop.f32.mrf.mxu0
  %v3008 = vadd.f32 0.0, %v3007
  %3009 = vmatmul.f32.gmra.mxu0 %v2799
  %v3010 = vpop.f32.mrf.mxu0
  %v3011 = vadd.f32 0.0, %v3010
  %3012 = vmatmul.f32.gmra.mxu0 %v2802
  %v3013 = vpop.f32.mrf.mxu0
  %v3014 = vadd.f32 0.0, %v3013
  %3015 = vmatmul.f32.gmra.mxu0 %v2805
  %v3016 = vpop.f32.mrf.mxu0
  %v3017 = vadd.f32 0.0, %v3016
  %3018 = vmatmul.f32.gmra.mxu0 %v2808
  %v3019 = vpop.f32.mrf.mxu0
  %v3020 = vadd.f32 0.0, %v3019
  %3021 = vmatmul.f32.gmra.mxu0 %v2811
  %v3022 = vpop.f32.mrf.mxu0
  %v3023 = vadd.f32 0.0, %v3022
  %3024 = vmatmul.f32.gmra.mxu0 %v2814
  %v3025 = vpop.f32.mrf.mxu0
  %v3026 = vadd.f32 0.0, %v3025
  %3027 = vmatmul.f32.gmra.mxu0 %v2817
  %v3028 = vpop.f32.mrf.mxu0
  %v3029 = vadd.f32 0.0, %v3028
  %3030 = vmatmul.f32.gmra.mxu0 %v2820
  %v3031 = vpop.f32.mrf.mxu0
  %v3032 = vadd.f32 0.0, %v3031
  %3033 = vdwg.mxu0
  %v3034 = vadd.f32 %v2500, %v2843
  %v3035 = vadd.f32 %v2501, %v2846
  %v3036 = vadd.f32 %v2502, %v2849
  %v3037 = vadd.f32 %v2503, %v2852
  %v3038 = vadd.f32 %v2504, %v2855
  %v3039 = vadd.f32 %v2505, %v2858
  %v3040 = vadd.f32 %v2506, %v2861
  %v3041 = vadd.f32 %v2507, %v2864
  %v3042 = vadd.f32 %v2508, %v2867
  %v3043 = vadd.f32 %v2509, %v2870
  %v3044 = vadd.f32 %v2510, %v2873
  %v3045 = vadd.f32 %v2511, %v2876
  %v3046 = vadd.f32 %v2512, %v2879
  %v3047 = vadd.f32 %v2513, %v2882
  %v3048 = vadd.f32 %v2514, %v2885
  %v3049 = vadd.f32 %v2515, %v2888
  %v3050 = vadd.f32 %v2516, %v2891
  %v3051 = vadd.f32 %v2517, %v2894
  %v3052 = vadd.f32 %v2518, %v2897
  %v3053 = vadd.f32 %v2519, %v2900
  %v3054 = vadd.f32 %v2520, %v2903
  %v3055 = vadd.f32 %v2521, %v2906
  %v3056 = vadd.f32 %v2522, %v2909
  %v3057 = vadd.f32 %v2523, %v2912
  %v3058 = vadd.f32 %v2524, %v2915
  %v3059 = vadd.f32 %v2525, %v2918
  %v3060 = vadd.f32 %v2526, %v2921
  %v3061 = vadd.f32 %v2527, %v2924
  %v3062 = vadd.f32 %v2528, %v2927
  %v3063 = vadd.f32 %v2529, %v2930
  %v3064 = vadd.f32 %v2530, %v2933
  %v3065 = vadd.f32 %v2531, %v2936
  %v3066 = vadd.f32 %v2532, %v2939
  %v3067 = vadd.f32 %v2533, %v2942
  %v3068 = vadd.f32 %v2534, %v2945
  %v3069 = vadd.f32 %v2535, %v2948
  %v3070 = vadd.f32 %v2536, %v2951
  %v3071 = vadd.f32 %v2537, %v2954
  %v3072 = vadd.f32 %v2538, %v2957
  %v3073 = vadd.f32 %v2539, %v2960
  %v3074 = vadd.f32 %v2540, %v2963
  %v3075 = vadd.f32 %v2541, %v2966
  %v3076 = vadd.f32 %v2542, %v2969
  %v3077 = vadd.f32 %v2543, %v2972
  %v3078 = vadd.f32 %v2544, %v2975
  %v3079 = vadd.f32 %v2545, %v2978
  %v3080 = vadd.f32 %v2546, %v2981
  %v3081 = vadd.f32 %v2547, %v2984
  %v3082 = vadd.f32 %v2548, %v2987
  %v3083 = vadd.f32 %v2549, %v2990
  %v3084 = vadd.f32 %v2550, %v2993
  %v3085 = vadd.f32 %v2551, %v2996
  %v3086 = vadd.f32 %v2552, %v2999
  %v3087 = vadd.f32 %v2553, %v3002
  %v3088 = vadd.f32 %v2554, %v3005
  %v3089 = vadd.f32 %v2555, %v3008
  %v3090 = vadd.f32 %v2556, %v3011
  %v3091 = vadd.f32 %v2557, %v3014
  %v3092 = vadd.f32 %v2558, %v3017
  %v3093 = vadd.f32 %v2559, %v3020
  %v3094 = vadd.f32 %v2560, %v3023
  %v3095 = vadd.f32 %v2561, %v3026
  %v3096 = vadd.f32 %v2562, %v3029
  %v3097 = vadd.f32 %v2563, %v3032
  %s3098 = scalar_lea.vmem %s0, 48
  %v3099 = vld [vmem:[%s3098] sm:$0xff]
  %v3100 = vld [vmem:[%s3098 + $0x8] sm:$0xff]
  %v3101 = vld [vmem:[%s3098 + $0x18] sm:$0xff]
  %v3102 = vld [vmem:[%s3098 + $0x20] sm:$0xff]
  %v3103 = vld [vmem:[%s3098 + $0x30] sm:$0xff]
  %v3104 = vld [vmem:[%s3098 + $0x38] sm:$0xff]
  %v3105 = vld [vmem:[%s3098 + $0x48] sm:$0xff]
  %v3106 = vld [vmem:[%s3098 + $0x50] sm:$0xff]
  %v3107 = vld [vmem:[%s3098 + $0x60] sm:$0xff]
  %v3108 = vld [vmem:[%s3098 + $0x68] sm:$0xff]
  %v3109 = vld [vmem:[%s3098 + $0x78] sm:$0xff]
  %v3110 = vld [vmem:[%s3098 + $0x80] sm:$0xff]
  %v3111 = vld [vmem:[%s3098 + $0x90] sm:$0xff]
  %v3112 = vld [vmem:[%s3098 + $0x98] sm:$0xff]
  %v3113 = vld [vmem:[%s3098 + $0xa8] sm:$0xff]
  %v3114 = vld [vmem:[%s3098 + $0xb0] sm:$0xff]
  %v3115 = vld [vmem:[%s3098 + $0xc0] sm:$0xff]
  %v3116 = vld [vmem:[%s3098 + $0xc8] sm:$0xff]
  %v3117 = vld [vmem:[%s3098 + $0xd8] sm:$0xff]
  %v3118 = vld [vmem:[%s3098 + $0xe0] sm:$0xff]
  %v3119 = vld [vmem:[%s3098 + $0xf0] sm:$0xff]
  %v3120 = vld [vmem:[%s3098 + $0xf8] sm:$0xff]
  %v3121 = vld [vmem:[%s3098 + $0x108] sm:$0xff]
  %v3122 = vld [vmem:[%s3098 + $0x110] sm:$0xff]
  %v3123 = vld [vmem:[%s3098 + $0x120] sm:$0xff]
  %v3124 = vld [vmem:[%s3098 + $0x128] sm:$0xff]
  %v3125 = vld [vmem:[%s3098 + $0x138] sm:$0xff]
  %v3126 = vld [vmem:[%s3098 + $0x140] sm:$0xff]
  %v3127 = vld [vmem:[%s3098 + $0x150] sm:$0xff]
  %v3128 = vld [vmem:[%s3098 + $0x158] sm:$0xff]
  %v3129 = vld [vmem:[%s3098 + $0x168] sm:$0xff]
  %v3130 = vld [vmem:[%s3098 + $0x170] sm:$0xff]
  %v3131 = vld [vmem:[%s3098 + $0x1b0] sm:$0xff]
  %v3132 = vld [vmem:[%s3098 + $0x1b8] sm:$0xff]
  %v3133 = vld [vmem:[%s3098 + $0x1c8] sm:$0xff]
  %v3134 = vld [vmem:[%s3098 + $0x1d0] sm:$0xff]
  %v3135 = vld [vmem:[%s3098 + $0x1e0] sm:$0xff]
  %v3136 = vld [vmem:[%s3098 + $0x1e8] sm:$0xff]
  %v3137 = vld [vmem:[%s3098 + $0x1f8] sm:$0xff]
  %v3138 = vld [vmem:[%s3098 + $0x200] sm:$0xff]
  %v3139 = vld [vmem:[%s3098 + $0x210] sm:$0xff]
  %v3140 = vld [vmem:[%s3098 + $0x218] sm:$0xff]
  %v3141 = vld [vmem:[%s3098 + $0x228] sm:$0xff]
  %v3142 = vld [vmem:[%s3098 + $0x230] sm:$0xff]
  %v3143 = vld [vmem:[%s3098 + $0x240] sm:$0xff]
  %v3144 = vld [vmem:[%s3098 + $0x248] sm:$0xff]
  %v3145 = vld [vmem:[%s3098 + $0x258] sm:$0xff]
  %v3146 = vld [vmem:[%s3098 + $0x260] sm:$0xff]
  %v3147 = vld [vmem:[%s3098 + $0x270] sm:$0xff]
  %v3148 = vld [vmem:[%s3098 + $0x278] sm:$0xff]
  %v3149 = vld [vmem:[%s3098 + $0x288] sm:$0xff]
  %v3150 = vld [vmem:[%s3098 + $0x290] sm:$0xff]
  %v3151 = vld [vmem:[%s3098 + $0x2a0] sm:$0xff]
  %v3152 = vld [vmem:[%s3098 + $0x2a8] sm:$0xff]
  %v3153 = vld [vmem:[%s3098 + $0x2b8] sm:$0xff]
  %v3154 = vld [vmem:[%s3098 + $0x2c0] sm:$0xff]
  %v3155 = vld [vmem:[%s3098 + $0x2d0] sm:$0xff]
  %v3156 = vld [vmem:[%s3098 + $0x2d8] sm:$0xff]
  %v3157 = vld [vmem:[%s3098 + $0x2e8] sm:$0xff]
  %v3158 = vld [vmem:[%s3098 + $0x2f0] sm:$0xff]
  %v3159 = vld [vmem:[%s3098 + $0x300] sm:$0xff]
  %v3160 = vld [vmem:[%s3098 + $0x308] sm:$0xff]
  %v3161 = vld [vmem:[%s3098 + $0x318] sm:$0xff]
  %v3162 = vld [vmem:[%s3098 + $0x320] sm:$0xff]
  %s3163 = scalar_lea.vmem %s1, 24
  %v3164 = vld [vmem:[%s3163] sm:$0xf]
  %v3166 = vsel %vm151, %v3099, 0
  %v3169 = vsel %vm151, %v3100, 0
  %v3172 = vsel %vm151, %v3101, 0
  %v3175 = vsel %vm151, %v3102, 0
  %v3178 = vsel %vm151, %v3103, 0
  %v3181 = vsel %vm151, %v3104, 0
  %v3184 = vsel %vm151, %v3105, 0
  %v3187 = vsel %vm151, %v3106, 0
  %v3190 = vsel %vm151, %v3107, 0
  %v3193 = vsel %vm151, %v3108, 0
  %v3196 = vsel %vm151, %v3109, 0
  %v3199 = vsel %vm151, %v3110, 0
  %v3202 = vsel %vm151, %v3111, 0
  %v3205 = vsel %vm151, %v3112, 0
  %v3208 = vsel %vm151, %v3113, 0
  %v3211 = vsel %vm151, %v3114, 0
  %v3214 = vsel %vm151, %v3115, 0
  %v3217 = vsel %vm151, %v3116, 0
  %v3220 = vsel %vm151, %v3117, 0
  %v3223 = vsel %vm151, %v3118, 0
  %v3226 = vsel %vm151, %v3119, 0
  %v3229 = vsel %vm151, %v3120, 0
  %v3232 = vsel %vm151, %v3121, 0
  %v3235 = vsel %vm151, %v3122, 0
  %v3238 = vsel %vm151, %v3123, 0
  %v3241 = vsel %vm151, %v3124, 0
  %v3244 = vsel %vm151, %v3125, 0
  %v3247 = vsel %vm151, %v3126, 0
  %v3250 = vsel %vm151, %v3127, 0
  %v3253 = vsel %vm151, %v3128, 0
  %v3256 = vsel %vm151, %v3129, 0
  %v3259 = vsel %vm151, %v3130, 0
  %v3262 = vsel %vm151, %v3131, 0
  %v3265 = vsel %vm151, %v3132, 0
  %v3268 = vsel %vm151, %v3133, 0
  %v3271 = vsel %vm151, %v3134, 0
  %v3274 = vsel %vm151, %v3135, 0
  %v3277 = vsel %vm151, %v3136, 0
  %v3280 = vsel %vm151, %v3137, 0
  %v3283 = vsel %vm151, %v3138, 0
  %v3286 = vsel %vm151, %v3139, 0
  %v3289 = vsel %vm151, %v3140, 0
  %v3292 = vsel %vm151, %v3141, 0
  %v3295 = vsel %vm151, %v3142, 0
  %v3298 = vsel %vm151, %v3143, 0
  %v3301 = vsel %vm151, %v3144, 0
  %v3304 = vsel %vm151, %v3145, 0
  %v3307 = vsel %vm151, %v3146, 0
  %v3310 = vsel %vm151, %v3147, 0
  %v3313 = vsel %vm151, %v3148, 0
  %v3316 = vsel %vm151, %v3149, 0
  %v3319 = vsel %vm151, %v3150, 0
  %v3322 = vsel %vm151, %v3151, 0
  %v3325 = vsel %vm151, %v3152, 0
  %v3328 = vsel %vm151, %v3153, 0
  %v3331 = vsel %vm151, %v3154, 0
  %v3334 = vsel %vm151, %v3155, 0
  %v3337 = vsel %vm151, %v3156, 0
  %v3340 = vsel %vm151, %v3157, 0
  %v3343 = vsel %vm151, %v3158, 0
  %v3346 = vsel %vm151, %v3159, 0
  %v3349 = vsel %vm151, %v3160, 0
  %v3352 = vsel %vm151, %v3161, 0
  %v3355 = vsel %vm151, %v3162, 0
  %v3358 = vsel %vm344, %v3164, 0
  %3360 = vmatpush.msra.mxu0 0.0
  %3361 = vmatpush.msra.mxu0 0.0
  %3362 = vmatpush.msra.mxu0 0.0
  %3363 = vmatpush.msra.mxu0 0.0
  %3364 = vmatpush.msra.mxu0 0.0
  %3365 = vmatpush.msra.mxu0 0.0
  %3366 = vmatpush.msra.mxu0 0.0
  %3367 = vmatpush.msra.mxu0 0.0
  %3368 = vmatpush.msra.mxu0 0.0
  %3369 = vmatpush.msra.mxu0 0.0
  %3370 = vmatpush.msra.mxu0 0.0
  %3371 = vmatpush.msra.mxu0 0.0
  %3372 = vmatpush.msra.mxu0 0.0
  %3373 = vmatpush.msra.mxu0 0.0
  %3374 = vmatpush.msra.mxu0 0.0
  %3375 = vmatpush.msra.mxu0 %v3358
  %3376 = vmatmul.f32.gmra.mxu0 %v3166
  %v3377 = vpop.f32.mrf.mxu0
  %v3378 = vadd.f32 0.0, %v3377
  %3379 = vmatmul.f32.gmra.mxu0 %v3169
  %v3380 = vpop.f32.mrf.mxu0
  %v3381 = vadd.f32 0.0, %v3380
  %3382 = vmatmul.f32.gmra.mxu0 %v3172
  %v3383 = vpop.f32.mrf.mxu0
  %v3384 = vadd.f32 0.0, %v3383
  %3385 = vmatmul.f32.gmra.mxu0 %v3175
  %v3386 = vpop.f32.mrf.mxu0
  %v3387 = vadd.f32 0.0, %v3386
  %3388 = vmatmul.f32.gmra.mxu0 %v3178
  %v3389 = vpop.f32.mrf.mxu0
  %v3390 = vadd.f32 0.0, %v3389
  %3391 = vmatmul.f32.gmra.mxu0 %v3181
  %v3392 = vpop.f32.mrf.mxu0
  %v3393 = vadd.f32 0.0, %v3392
  %3394 = vmatmul.f32.gmra.mxu0 %v3184
  %v3395 = vpop.f32.mrf.mxu0
  %v3396 = vadd.f32 0.0, %v3395
  %3397 = vmatmul.f32.gmra.mxu0 %v3187
  %v3398 = vpop.f32.mrf.mxu0
  %v3399 = vadd.f32 0.0, %v3398
  %3400 = vmatmul.f32.gmra.mxu0 %v3190
  %v3401 = vpop.f32.mrf.mxu0
  %v3402 = vadd.f32 0.0, %v3401
  %3403 = vmatmul.f32.gmra.mxu0 %v3193
  %v3404 = vpop.f32.mrf.mxu0
  %v3405 = vadd.f32 0.0, %v3404
  %3406 = vmatmul.f32.gmra.mxu0 %v3196
  %v3407 = vpop.f32.mrf.mxu0
  %v3408 = vadd.f32 0.0, %v3407
  %3409 = vmatmul.f32.gmra.mxu0 %v3199
  %v3410 = vpop.f32.mrf.mxu0
  %v3411 = vadd.f32 0.0, %v3410
  %3412 = vmatmul.f32.gmra.mxu0 %v3202
  %v3413 = vpop.f32.mrf.mxu0
  %v3414 = vadd.f32 0.0, %v3413
  %3415 = vmatmul.f32.gmra.mxu0 %v3205
  %v3416 = vpop.f32.mrf.mxu0
  %v3417 = vadd.f32 0.0, %v3416
  %3418 = vmatmul.f32.gmra.mxu0 %v3208
  %v3419 = vpop.f32.mrf.mxu0
  %v3420 = vadd.f32 0.0, %v3419
  %3421 = vmatmul.f32.gmra.mxu0 %v3211
  %v3422 = vpop.f32.mrf.mxu0
  %v3423 = vadd.f32 0.0, %v3422
  %3424 = vmatmul.f32.gmra.mxu0 %v3214
  %v3425 = vpop.f32.mrf.mxu0
  %v3426 = vadd.f32 0.0, %v3425
  %3427 = vmatmul.f32.gmra.mxu0 %v3217
  %v3428 = vpop.f32.mrf.mxu0
  %v3429 = vadd.f32 0.0, %v3428
  %3430 = vmatmul.f32.gmra.mxu0 %v3220
  %v3431 = vpop.f32.mrf.mxu0
  %v3432 = vadd.f32 0.0, %v3431
  %3433 = vmatmul.f32.gmra.mxu0 %v3223
  %v3434 = vpop.f32.mrf.mxu0
  %v3435 = vadd.f32 0.0, %v3434
  %3436 = vmatmul.f32.gmra.mxu0 %v3226
  %v3437 = vpop.f32.mrf.mxu0
  %v3438 = vadd.f32 0.0, %v3437
  %3439 = vmatmul.f32.gmra.mxu0 %v3229
  %v3440 = vpop.f32.mrf.mxu0
  %v3441 = vadd.f32 0.0, %v3440
  %3442 = vmatmul.f32.gmra.mxu0 %v3232
  %v3443 = vpop.f32.mrf.mxu0
  %v3444 = vadd.f32 0.0, %v3443
  %3445 = vmatmul.f32.gmra.mxu0 %v3235
  %v3446 = vpop.f32.mrf.mxu0
  %v3447 = vadd.f32 0.0, %v3446
  %3448 = vmatmul.f32.gmra.mxu0 %v3238
  %v3449 = vpop.f32.mrf.mxu0
  %v3450 = vadd.f32 0.0, %v3449
  %3451 = vmatmul.f32.gmra.mxu0 %v3241
  %v3452 = vpop.f32.mrf.mxu0
  %v3453 = vadd.f32 0.0, %v3452
  %3454 = vmatmul.f32.gmra.mxu0 %v3244
  %v3455 = vpop.f32.mrf.mxu0
  %v3456 = vadd.f32 0.0, %v3455
  %3457 = vmatmul.f32.gmra.mxu0 %v3247
  %v3458 = vpop.f32.mrf.mxu0
  %v3459 = vadd.f32 0.0, %v3458
  %3460 = vmatmul.f32.gmra.mxu0 %v3250
  %v3461 = vpop.f32.mrf.mxu0
  %v3462 = vadd.f32 0.0, %v3461
  %3463 = vmatmul.f32.gmra.mxu0 %v3253
  %v3464 = vpop.f32.mrf.mxu0
  %v3465 = vadd.f32 0.0, %v3464
  %3466 = vmatmul.f32.gmra.mxu0 %v3256
  %v3467 = vpop.f32.mrf.mxu0
  %v3468 = vadd.f32 0.0, %v3467
  %3469 = vmatmul.f32.gmra.mxu0 %v3259
  %v3470 = vpop.f32.mrf.mxu0
  %v3471 = vadd.f32 0.0, %v3470
  %3472 = vmatmul.f32.gmra.mxu0 %v3262
  %v3473 = vpop.f32.mrf.mxu0
  %v3474 = vadd.f32 0.0, %v3473
  %3475 = vmatmul.f32.gmra.mxu0 %v3265
  %v3476 = vpop.f32.mrf.mxu0
  %v3477 = vadd.f32 0.0, %v3476
  %3478 = vmatmul.f32.gmra.mxu0 %v3268
  %v3479 = vpop.f32.mrf.mxu0
  %v3480 = vadd.f32 0.0, %v3479
  %3481 = vmatmul.f32.gmra.mxu0 %v3271
  %v3482 = vpop.f32.mrf.mxu0
  %v3483 = vadd.f32 0.0, %v3482
  %3484 = vmatmul.f32.gmra.mxu0 %v3274
  %v3485 = vpop.f32.mrf.mxu0
  %v3486 = vadd.f32 0.0, %v3485
  %3487 = vmatmul.f32.gmra.mxu0 %v3277
  %v3488 = vpop.f32.mrf.mxu0
  %v3489 = vadd.f32 0.0, %v3488
  %3490 = vmatmul.f32.gmra.mxu0 %v3280
  %v3491 = vpop.f32.mrf.mxu0
  %v3492 = vadd.f32 0.0, %v3491
  %3493 = vmatmul.f32.gmra.mxu0 %v3283
  %v3494 = vpop.f32.mrf.mxu0
  %v3495 = vadd.f32 0.0, %v3494
  %3496 = vmatmul.f32.gmra.mxu0 %v3286
  %v3497 = vpop.f32.mrf.mxu0
  %v3498 = vadd.f32 0.0, %v3497
  %3499 = vmatmul.f32.gmra.mxu0 %v3289
  %v3500 = vpop.f32.mrf.mxu0
  %v3501 = vadd.f32 0.0, %v3500
  %3502 = vmatmul.f32.gmra.mxu0 %v3292
  %v3503 = vpop.f32.mrf.mxu0
  %v3504 = vadd.f32 0.0, %v3503
  %3505 = vmatmul.f32.gmra.mxu0 %v3295
  %v3506 = vpop.f32.mrf.mxu0
  %v3507 = vadd.f32 0.0, %v3506
  %3508 = vmatmul.f32.gmra.mxu0 %v3298
  %v3509 = vpop.f32.mrf.mxu0
  %v3510 = vadd.f32 0.0, %v3509
  %3511 = vmatmul.f32.gmra.mxu0 %v3301
  %v3512 = vpop.f32.mrf.mxu0
  %v3513 = vadd.f32 0.0, %v3512
  %3514 = vmatmul.f32.gmra.mxu0 %v3304
  %v3515 = vpop.f32.mrf.mxu0
  %v3516 = vadd.f32 0.0, %v3515
  %3517 = vmatmul.f32.gmra.mxu0 %v3307
  %v3518 = vpop.f32.mrf.mxu0
  %v3519 = vadd.f32 0.0, %v3518
  %3520 = vmatmul.f32.gmra.mxu0 %v3310
  %v3521 = vpop.f32.mrf.mxu0
  %v3522 = vadd.f32 0.0, %v3521
  %3523 = vmatmul.f32.gmra.mxu0 %v3313
  %v3524 = vpop.f32.mrf.mxu0
  %v3525 = vadd.f32 0.0, %v3524
  %3526 = vmatmul.f32.gmra.mxu0 %v3316
  %v3527 = vpop.f32.mrf.mxu0
  %v3528 = vadd.f32 0.0, %v3527
  %3529 = vmatmul.f32.gmra.mxu0 %v3319
  %v3530 = vpop.f32.mrf.mxu0
  %v3531 = vadd.f32 0.0, %v3530
  %3532 = vmatmul.f32.gmra.mxu0 %v3322
  %v3533 = vpop.f32.mrf.mxu0
  %v3534 = vadd.f32 0.0, %v3533
  %3535 = vmatmul.f32.gmra.mxu0 %v3325
  %v3536 = vpop.f32.mrf.mxu0
  %v3537 = vadd.f32 0.0, %v3536
  %3538 = vmatmul.f32.gmra.mxu0 %v3328
  %v3539 = vpop.f32.mrf.mxu0
  %v3540 = vadd.f32 0.0, %v3539
  %3541 = vmatmul.f32.gmra.mxu0 %v3331
  %v3542 = vpop.f32.mrf.mxu0
  %v3543 = vadd.f32 0.0, %v3542
  %3544 = vmatmul.f32.gmra.mxu0 %v3334
  %v3545 = vpop.f32.mrf.mxu0
  %v3546 = vadd.f32 0.0, %v3545
  %3547 = vmatmul.f32.gmra.mxu0 %v3337
  %v3548 = vpop.f32.mrf.mxu0
  %v3549 = vadd.f32 0.0, %v3548
  %3550 = vmatmul.f32.gmra.mxu0 %v3340
  %v3551 = vpop.f32.mrf.mxu0
  %v3552 = vadd.f32 0.0, %v3551
  %3553 = vmatmul.f32.gmra.mxu0 %v3343
  %v3554 = vpop.f32.mrf.mxu0
  %v3555 = vadd.f32 0.0, %v3554
  %3556 = vmatmul.f32.gmra.mxu0 %v3346
  %v3557 = vpop.f32.mrf.mxu0
  %v3558 = vadd.f32 0.0, %v3557
  %3559 = vmatmul.f32.gmra.mxu0 %v3349
  %v3560 = vpop.f32.mrf.mxu0
  %v3561 = vadd.f32 0.0, %v3560
  %3562 = vmatmul.f32.gmra.mxu0 %v3352
  %v3563 = vpop.f32.mrf.mxu0
  %v3564 = vadd.f32 0.0, %v3563
  %3565 = vmatmul.f32.gmra.mxu0 %v3355
  %v3566 = vpop.f32.mrf.mxu0
  %v3567 = vadd.f32 0.0, %v3566
  %3568 = vdwg.mxu0
  %v3569 = vadd.f32 %v3034, %v3378
  %v3570 = vadd.f32 %v3035, %v3381
  %v3571 = vadd.f32 %v3036, %v3384
  %v3572 = vadd.f32 %v3037, %v3387
  %v3573 = vadd.f32 %v3038, %v3390
  %v3574 = vadd.f32 %v3039, %v3393
  %v3575 = vadd.f32 %v3040, %v3396
  %v3576 = vadd.f32 %v3041, %v3399
  %v3577 = vadd.f32 %v3042, %v3402
  %v3578 = vadd.f32 %v3043, %v3405
  %v3579 = vadd.f32 %v3044, %v3408
  %v3580 = vadd.f32 %v3045, %v3411
  %v3581 = vadd.f32 %v3046, %v3414
  %v3582 = vadd.f32 %v3047, %v3417
  %v3583 = vadd.f32 %v3048, %v3420
  %v3584 = vadd.f32 %v3049, %v3423
  %v3585 = vadd.f32 %v3050, %v3426
  %v3586 = vadd.f32 %v3051, %v3429
  %v3587 = vadd.f32 %v3052, %v3432
  %v3588 = vadd.f32 %v3053, %v3435
  %v3589 = vadd.f32 %v3054, %v3438
  %v3590 = vadd.f32 %v3055, %v3441
  %v3591 = vadd.f32 %v3056, %v3444
  %v3592 = vadd.f32 %v3057, %v3447
  %v3593 = vadd.f32 %v3058, %v3450
  %v3594 = vadd.f32 %v3059, %v3453
  %v3595 = vadd.f32 %v3060, %v3456
  %v3596 = vadd.f32 %v3061, %v3459
  %v3597 = vadd.f32 %v3062, %v3462
  %v3598 = vadd.f32 %v3063, %v3465
  %v3599 = vadd.f32 %v3064, %v3468
  %v3600 = vadd.f32 %v3065, %v3471
  %v3601 = vadd.f32 %v3066, %v3474
  %v3602 = vadd.f32 %v3067, %v3477
  %v3603 = vadd.f32 %v3068, %v3480
  %v3604 = vadd.f32 %v3069, %v3483
  %v3605 = vadd.f32 %v3070, %v3486
  %v3606 = vadd.f32 %v3071, %v3489
  %v3607 = vadd.f32 %v3072, %v3492
  %v3608 = vadd.f32 %v3073, %v3495
  %v3609 = vadd.f32 %v3074, %v3498
  %v3610 = vadd.f32 %v3075, %v3501
  %v3611 = vadd.f32 %v3076, %v3504
  %v3612 = vadd.f32 %v3077, %v3507
  %v3613 = vadd.f32 %v3078, %v3510
  %v3614 = vadd.f32 %v3079, %v3513
  %v3615 = vadd.f32 %v3080, %v3516
  %v3616 = vadd.f32 %v3081, %v3519
  %v3617 = vadd.f32 %v3082, %v3522
  %v3618 = vadd.f32 %v3083, %v3525
  %v3619 = vadd.f32 %v3084, %v3528
  %v3620 = vadd.f32 %v3085, %v3531
  %v3621 = vadd.f32 %v3086, %v3534
  %v3622 = vadd.f32 %v3087, %v3537
  %v3623 = vadd.f32 %v3088, %v3540
  %v3624 = vadd.f32 %v3089, %v3543
  %v3625 = vadd.f32 %v3090, %v3546
  %v3626 = vadd.f32 %v3091, %v3549
  %v3627 = vadd.f32 %v3092, %v3552
  %v3628 = vadd.f32 %v3093, %v3555
  %v3629 = vadd.f32 %v3094, %v3558
  %v3630 = vadd.f32 %v3095, %v3561
  %v3631 = vadd.f32 %v3096, %v3564
  %v3632 = vadd.f32 %v3097, %v3567
  %v3633 = vld [vmem:[%s3098 + $0x1] sm:$0xff]
  %v3634 = vld [vmem:[%s3098 + $0x9] sm:$0xff]
  %v3635 = vld [vmem:[%s3098 + $0x19] sm:$0xff]
  %v3636 = vld [vmem:[%s3098 + $0x21] sm:$0xff]
  %v3637 = vld [vmem:[%s3098 + $0x31] sm:$0xff]
  %v3638 = vld [vmem:[%s3098 + $0x39] sm:$0xff]
  %v3639 = vld [vmem:[%s3098 + $0x49] sm:$0xff]
  %v3640 = vld [vmem:[%s3098 + $0x51] sm:$0xff]
  %v3641 = vld [vmem:[%s3098 + $0x61] sm:$0xff]
  %v3642 = vld [vmem:[%s3098 + $0x69] sm:$0xff]
  %v3643 = vld [vmem:[%s3098 + $0x79] sm:$0xff]
  %v3644 = vld [vmem:[%s3098 + $0x81] sm:$0xff]
  %v3645 = vld [vmem:[%s3098 + $0x91] sm:$0xff]
  %v3646 = vld [vmem:[%s3098 + $0x99] sm:$0xff]
  %v3647 = vld [vmem:[%s3098 + $0xa9] sm:$0xff]
  %v3648 = vld [vmem:[%s3098 + $0xb1] sm:$0xff]
  %v3649 = vld [vmem:[%s3098 + $0xc1] sm:$0xff]
  %v3650 = vld [vmem:[%s3098 + $0xc9] sm:$0xff]
  %v3651 = vld [vmem:[%s3098 + $0xd9] sm:$0xff]
  %v3652 = vld [vmem:[%s3098 + $0xe1] sm:$0xff]
  %v3653 = vld [vmem:[%s3098 + $0xf1] sm:$0xff]
  %v3654 = vld [vmem:[%s3098 + $0xf9] sm:$0xff]
  %v3655 = vld [vmem:[%s3098 + $0x109] sm:$0xff]
  %v3656 = vld [vmem:[%s3098 + $0x111] sm:$0xff]
  %v3657 = vld [vmem:[%s3098 + $0x121] sm:$0xff]
  %v3658 = vld [vmem:[%s3098 + $0x129] sm:$0xff]
  %v3659 = vld [vmem:[%s3098 + $0x139] sm:$0xff]
  %v3660 = vld [vmem:[%s3098 + $0x141] sm:$0xff]
  %v3661 = vld [vmem:[%s3098 + $0x151] sm:$0xff]
  %v3662 = vld [vmem:[%s3098 + $0x159] sm:$0xff]
  %v3663 = vld [vmem:[%s3098 + $0x169] sm:$0xff]
  %v3664 = vld [vmem:[%s3098 + $0x171] sm:$0xff]
  %v3665 = vld [vmem:[%s3098 + $0x1b1] sm:$0xff]
  %v3666 = vld [vmem:[%s3098 + $0x1b9] sm:$0xff]
  %v3667 = vld [vmem:[%s3098 + $0x1c9] sm:$0xff]
  %v3668 = vld [vmem:[%s3098 + $0x1d1] sm:$0xff]
  %v3669 = vld [vmem:[%s3098 + $0x1e1] sm:$0xff]
  %v3670 = vld [vmem:[%s3098 + $0x1e9] sm:$0xff]
  %v3671 = vld [vmem:[%s3098 + $0x1f9] sm:$0xff]
  %v3672 = vld [vmem:[%s3098 + $0x201] sm:$0xff]
  %v3673 = vld [vmem:[%s3098 + $0x211] sm:$0xff]
  %v3674 = vld [vmem:[%s3098 + $0x219] sm:$0xff]
  %v3675 = vld [vmem:[%s3098 + $0x229] sm:$0xff]
  %v3676 = vld [vmem:[%s3098 + $0x231] sm:$0xff]
  %v3677 = vld [vmem:[%s3098 + $0x241] sm:$0xff]
  %v3678 = vld [vmem:[%s3098 + $0x249] sm:$0xff]
  %v3679 = vld [vmem:[%s3098 + $0x259] sm:$0xff]
  %v3680 = vld [vmem:[%s3098 + $0x261] sm:$0xff]
  %v3681 = vld [vmem:[%s3098 + $0x271] sm:$0xff]
  %v3682 = vld [vmem:[%s3098 + $0x279] sm:$0xff]
  %v3683 = vld [vmem:[%s3098 + $0x289] sm:$0xff]
  %v3684 = vld [vmem:[%s3098 + $0x291] sm:$0xff]
  %v3685 = vld [vmem:[%s3098 + $0x2a1] sm:$0xff]
  %v3686 = vld [vmem:[%s3098 + $0x2a9] sm:$0xff]
  %v3687 = vld [vmem:[%s3098 + $0x2b9] sm:$0xff]
  %v3688 = vld [vmem:[%s3098 + $0x2c1] sm:$0xff]
  %v3689 = vld [vmem:[%s3098 + $0x2d1] sm:$0xff]
  %v3690 = vld [vmem:[%s3098 + $0x2d9] sm:$0xff]
  %v3691 = vld [vmem:[%s3098 + $0x2e9] sm:$0xff]
  %v3692 = vld [vmem:[%s3098 + $0x2f1] sm:$0xff]
  %v3693 = vld [vmem:[%s3098 + $0x301] sm:$0xff]
  %v3694 = vld [vmem:[%s3098 + $0x309] sm:$0xff]
  %v3695 = vld [vmem:[%s3098 + $0x319] sm:$0xff]
  %v3696 = vld [vmem:[%s3098 + $0x321] sm:$0xff]
  %s3697 = scalar_lea.vmem %s1, 28
  %v3698 = vld [vmem:[%s3697] sm:$0xf]
  %v3700 = vsel %vm151, %v3633, 0
  %v3703 = vsel %vm151, %v3634, 0
  %v3706 = vsel %vm151, %v3635, 0
  %v3709 = vsel %vm151, %v3636, 0
  %v3712 = vsel %vm151, %v3637, 0
  %v3715 = vsel %vm151, %v3638, 0
  %v3718 = vsel %vm151, %v3639, 0
  %v3721 = vsel %vm151, %v3640, 0
  %v3724 = vsel %vm151, %v3641, 0
  %v3727 = vsel %vm151, %v3642, 0
  %v3730 = vsel %vm151, %v3643, 0
  %v3733 = vsel %vm151, %v3644, 0
  %v3736 = vsel %vm151, %v3645, 0
  %v3739 = vsel %vm151, %v3646, 0
  %v3742 = vsel %vm151, %v3647, 0
  %v3745 = vsel %vm151, %v3648, 0
  %v3748 = vsel %vm151, %v3649, 0
  %v3751 = vsel %vm151, %v3650, 0
  %v3754 = vsel %vm151, %v3651, 0
  %v3757 = vsel %vm151, %v3652, 0
  %v3760 = vsel %vm151, %v3653, 0
  %v3763 = vsel %vm151, %v3654, 0
  %v3766 = vsel %vm151, %v3655, 0
  %v3769 = vsel %vm151, %v3656, 0
  %v3772 = vsel %vm151, %v3657, 0
  %v3775 = vsel %vm151, %v3658, 0
  %v3778 = vsel %vm151, %v3659, 0
  %v3781 = vsel %vm151, %v3660, 0
  %v3784 = vsel %vm151, %v3661, 0
  %v3787 = vsel %vm151, %v3662, 0
  %v3790 = vsel %vm151, %v3663, 0
  %v3793 = vsel %vm151, %v3664, 0
  %v3796 = vsel %vm151, %v3665, 0
  %v3799 = vsel %vm151, %v3666, 0
  %v3802 = vsel %vm151, %v3667, 0
  %v3805 = vsel %vm151, %v3668, 0
  %v3808 = vsel %vm151, %v3669, 0
  %v3811 = vsel %vm151, %v3670, 0
  %v3814 = vsel %vm151, %v3671, 0
  %v3817 = vsel %vm151, %v3672, 0
  %v3820 = vsel %vm151, %v3673, 0
  %v3823 = vsel %vm151, %v3674, 0
  %v3826 = vsel %vm151, %v3675, 0
  %v3829 = vsel %vm151, %v3676, 0
  %v3832 = vsel %vm151, %v3677, 0
  %v3835 = vsel %vm151, %v3678, 0
  %v3838 = vsel %vm151, %v3679, 0
  %v3841 = vsel %vm151, %v3680, 0
  %v3844 = vsel %vm151, %v3681, 0
  %v3847 = vsel %vm151, %v3682, 0
  %v3850 = vsel %vm151, %v3683, 0
  %v3853 = vsel %vm151, %v3684, 0
  %v3856 = vsel %vm151, %v3685, 0
  %v3859 = vsel %vm151, %v3686, 0
  %v3862 = vsel %vm151, %v3687, 0
  %v3865 = vsel %vm151, %v3688, 0
  %v3868 = vsel %vm151, %v3689, 0
  %v3871 = vsel %vm151, %v3690, 0
  %v3874 = vsel %vm151, %v3691, 0
  %v3877 = vsel %vm151, %v3692, 0
  %v3880 = vsel %vm151, %v3693, 0
  %v3883 = vsel %vm151, %v3694, 0
  %v3886 = vsel %vm151, %v3695, 0
  %v3889 = vsel %vm151, %v3696, 0
  %v3892 = vsel %vm344, %v3698, 0
  %3894 = vmatpush.msra.mxu0 0.0
  %3895 = vmatpush.msra.mxu0 0.0
  %3896 = vmatpush.msra.mxu0 0.0
  %3897 = vmatpush.msra.mxu0 0.0
  %3898 = vmatpush.msra.mxu0 0.0
  %3899 = vmatpush.msra.mxu0 0.0
  %3900 = vmatpush.msra.mxu0 0.0
  %3901 = vmatpush.msra.mxu0 0.0
  %3902 = vmatpush.msra.mxu0 0.0
  %3903 = vmatpush.msra.mxu0 0.0
  %3904 = vmatpush.msra.mxu0 0.0
  %3905 = vmatpush.msra.mxu0 0.0
  %3906 = vmatpush.msra.mxu0 0.0
  %3907 = vmatpush.msra.mxu0 0.0
  %3908 = vmatpush.msra.mxu0 0.0
  %3909 = vmatpush.msra.mxu0 %v3892
  %3910 = vmatmul.f32.gmra.mxu0 %v3700
  %v3911 = vpop.f32.mrf.mxu0
  %v3912 = vadd.f32 0.0, %v3911
  %3913 = vmatmul.f32.gmra.mxu0 %v3703
  %v3914 = vpop.f32.mrf.mxu0
  %v3915 = vadd.f32 0.0, %v3914
  %3916 = vmatmul.f32.gmra.mxu0 %v3706
  %v3917 = vpop.f32.mrf.mxu0
  %v3918 = vadd.f32 0.0, %v3917
  %3919 = vmatmul.f32.gmra.mxu0 %v3709
  %v3920 = vpop.f32.mrf.mxu0
  %v3921 = vadd.f32 0.0, %v3920
  %3922 = vmatmul.f32.gmra.mxu0 %v3712
  %v3923 = vpop.f32.mrf.mxu0
  %v3924 = vadd.f32 0.0, %v3923
  %3925 = vmatmul.f32.gmra.mxu0 %v3715
  %v3926 = vpop.f32.mrf.mxu0
  %v3927 = vadd.f32 0.0, %v3926
  %3928 = vmatmul.f32.gmra.mxu0 %v3718
  %v3929 = vpop.f32.mrf.mxu0
  %v3930 = vadd.f32 0.0, %v3929
  %3931 = vmatmul.f32.gmra.mxu0 %v3721
  %v3932 = vpop.f32.mrf.mxu0
  %v3933 = vadd.f32 0.0, %v3932
  %3934 = vmatmul.f32.gmra.mxu0 %v3724
  %v3935 = vpop.f32.mrf.mxu0
  %v3936 = vadd.f32 0.0, %v3935
  %3937 = vmatmul.f32.gmra.mxu0 %v3727
  %v3938 = vpop.f32.mrf.mxu0
  %v3939 = vadd.f32 0.0, %v3938
  %3940 = vmatmul.f32.gmra.mxu0 %v3730
  %v3941 = vpop.f32.mrf.mxu0
  %v3942 = vadd.f32 0.0, %v3941
  %3943 = vmatmul.f32.gmra.mxu0 %v3733
  %v3944 = vpop.f32.mrf.mxu0
  %v3945 = vadd.f32 0.0, %v3944
  %3946 = vmatmul.f32.gmra.mxu0 %v3736
  %v3947 = vpop.f32.mrf.mxu0
  %v3948 = vadd.f32 0.0, %v3947
  %3949 = vmatmul.f32.gmra.mxu0 %v3739
  %v3950 = vpop.f32.mrf.mxu0
  %v3951 = vadd.f32 0.0, %v3950
  %3952 = vmatmul.f32.gmra.mxu0 %v3742
  %v3953 = vpop.f32.mrf.mxu0
  %v3954 = vadd.f32 0.0, %v3953
  %3955 = vmatmul.f32.gmra.mxu0 %v3745
  %v3956 = vpop.f32.mrf.mxu0
  %v3957 = vadd.f32 0.0, %v3956
  %3958 = vmatmul.f32.gmra.mxu0 %v3748
  %v3959 = vpop.f32.mrf.mxu0
  %v3960 = vadd.f32 0.0, %v3959
  %3961 = vmatmul.f32.gmra.mxu0 %v3751
  %v3962 = vpop.f32.mrf.mxu0
  %v3963 = vadd.f32 0.0, %v3962
  %3964 = vmatmul.f32.gmra.mxu0 %v3754
  %v3965 = vpop.f32.mrf.mxu0
  %v3966 = vadd.f32 0.0, %v3965
  %3967 = vmatmul.f32.gmra.mxu0 %v3757
  %v3968 = vpop.f32.mrf.mxu0
  %v3969 = vadd.f32 0.0, %v3968
  %3970 = vmatmul.f32.gmra.mxu0 %v3760
  %v3971 = vpop.f32.mrf.mxu0
  %v3972 = vadd.f32 0.0, %v3971
  %3973 = vmatmul.f32.gmra.mxu0 %v3763
  %v3974 = vpop.f32.mrf.mxu0
  %v3975 = vadd.f32 0.0, %v3974
  %3976 = vmatmul.f32.gmra.mxu0 %v3766
  %v3977 = vpop.f32.mrf.mxu0
  %v3978 = vadd.f32 0.0, %v3977
  %3979 = vmatmul.f32.gmra.mxu0 %v3769
  %v3980 = vpop.f32.mrf.mxu0
  %v3981 = vadd.f32 0.0, %v3980
  %3982 = vmatmul.f32.gmra.mxu0 %v3772
  %v3983 = vpop.f32.mrf.mxu0
  %v3984 = vadd.f32 0.0, %v3983
  %3985 = vmatmul.f32.gmra.mxu0 %v3775
  %v3986 = vpop.f32.mrf.mxu0
  %v3987 = vadd.f32 0.0, %v3986
  %3988 = vmatmul.f32.gmra.mxu0 %v3778
  %v3989 = vpop.f32.mrf.mxu0
  %v3990 = vadd.f32 0.0, %v3989
  %3991 = vmatmul.f32.gmra.mxu0 %v3781
  %v3992 = vpop.f32.mrf.mxu0
  %v3993 = vadd.f32 0.0, %v3992
  %3994 = vmatmul.f32.gmra.mxu0 %v3784
  %v3995 = vpop.f32.mrf.mxu0
  %v3996 = vadd.f32 0.0, %v3995
  %3997 = vmatmul.f32.gmra.mxu0 %v3787
  %v3998 = vpop.f32.mrf.mxu0
  %v3999 = vadd.f32 0.0, %v3998
  %4000 = vmatmul.f32.gmra.mxu0 %v3790
  %v4001 = vpop.f32.mrf.mxu0
  %v4002 = vadd.f32 0.0, %v4001
  %4003 = vmatmul.f32.gmra.mxu0 %v3793
  %v4004 = vpop.f32.mrf.mxu0
  %v4005 = vadd.f32 0.0, %v4004
  %4006 = vmatmul.f32.gmra.mxu0 %v3796
  %v4007 = vpop.f32.mrf.mxu0
  %v4008 = vadd.f32 0.0, %v4007
  %4009 = vmatmul.f32.gmra.mxu0 %v3799
  %v4010 = vpop.f32.mrf.mxu0
  %v4011 = vadd.f32 0.0, %v4010
  %4012 = vmatmul.f32.gmra.mxu0 %v3802
  %v4013 = vpop.f32.mrf.mxu0
  %v4014 = vadd.f32 0.0, %v4013
  %4015 = vmatmul.f32.gmra.mxu0 %v3805
  %v4016 = vpop.f32.mrf.mxu0
  %v4017 = vadd.f32 0.0, %v4016
  %4018 = vmatmul.f32.gmra.mxu0 %v3808
  %v4019 = vpop.f32.mrf.mxu0
  %v4020 = vadd.f32 0.0, %v4019
  %4021 = vmatmul.f32.gmra.mxu0 %v3811
  %v4022 = vpop.f32.mrf.mxu0
  %v4023 = vadd.f32 0.0, %v4022
  %4024 = vmatmul.f32.gmra.mxu0 %v3814
  %v4025 = vpop.f32.mrf.mxu0
  %v4026 = vadd.f32 0.0, %v4025
  %4027 = vmatmul.f32.gmra.mxu0 %v3817
  %v4028 = vpop.f32.mrf.mxu0
  %v4029 = vadd.f32 0.0, %v4028
  %4030 = vmatmul.f32.gmra.mxu0 %v3820
  %v4031 = vpop.f32.mrf.mxu0
  %v4032 = vadd.f32 0.0, %v4031
  %4033 = vmatmul.f32.gmra.mxu0 %v3823
  %v4034 = vpop.f32.mrf.mxu0
  %v4035 = vadd.f32 0.0, %v4034
  %4036 = vmatmul.f32.gmra.mxu0 %v3826
  %v4037 = vpop.f32.mrf.mxu0
  %v4038 = vadd.f32 0.0, %v4037
  %4039 = vmatmul.f32.gmra.mxu0 %v3829
  %v4040 = vpop.f32.mrf.mxu0
  %v4041 = vadd.f32 0.0, %v4040
  %4042 = vmatmul.f32.gmra.mxu0 %v3832
  %v4043 = vpop.f32.mrf.mxu0
  %v4044 = vadd.f32 0.0, %v4043
  %4045 = vmatmul.f32.gmra.mxu0 %v3835
  %v4046 = vpop.f32.mrf.mxu0
  %v4047 = vadd.f32 0.0, %v4046
  %4048 = vmatmul.f32.gmra.mxu0 %v3838
  %v4049 = vpop.f32.mrf.mxu0
  %v4050 = vadd.f32 0.0, %v4049
  %4051 = vmatmul.f32.gmra.mxu0 %v3841
  %v4052 = vpop.f32.mrf.mxu0
  %v4053 = vadd.f32 0.0, %v4052
  %4054 = vmatmul.f32.gmra.mxu0 %v3844
  %v4055 = vpop.f32.mrf.mxu0
  %v4056 = vadd.f32 0.0, %v4055
  %4057 = vmatmul.f32.gmra.mxu0 %v3847
  %v4058 = vpop.f32.mrf.mxu0
  %v4059 = vadd.f32 0.0, %v4058
  %4060 = vmatmul.f32.gmra.mxu0 %v3850
  %v4061 = vpop.f32.mrf.mxu0
  %v4062 = vadd.f32 0.0, %v4061
  %4063 = vmatmul.f32.gmra.mxu0 %v3853
  %v4064 = vpop.f32.mrf.mxu0
  %v4065 = vadd.f32 0.0, %v4064
  %4066 = vmatmul.f32.gmra.mxu0 %v3856
  %v4067 = vpop.f32.mrf.mxu0
  %v4068 = vadd.f32 0.0, %v4067
  %4069 = vmatmul.f32.gmra.mxu0 %v3859
  %v4070 = vpop.f32.mrf.mxu0
  %v4071 = vadd.f32 0.0, %v4070
  %4072 = vmatmul.f32.gmra.mxu0 %v3862
  %v4073 = vpop.f32.mrf.mxu0
  %v4074 = vadd.f32 0.0, %v4073
  %4075 = vmatmul.f32.gmra.mxu0 %v3865
  %v4076 = vpop.f32.mrf.mxu0
  %v4077 = vadd.f32 0.0, %v4076
  %4078 = vmatmul.f32.gmra.mxu0 %v3868
  %v4079 = vpop.f32.mrf.mxu0
  %v4080 = vadd.f32 0.0, %v4079
  %4081 = vmatmul.f32.gmra.mxu0 %v3871
  %v4082 = vpop.f32.mrf.mxu0
  %v4083 = vadd.f32 0.0, %v4082
  %4084 = vmatmul.f32.gmra.mxu0 %v3874
  %v4085 = vpop.f32.mrf.mxu0
  %v4086 = vadd.f32 0.0, %v4085
  %4087 = vmatmul.f32.gmra.mxu0 %v3877
  %v4088 = vpop.f32.mrf.mxu0
  %v4089 = vadd.f32 0.0, %v4088
  %4090 = vmatmul.f32.gmra.mxu0 %v3880
  %v4091 = vpop.f32.mrf.mxu0
  %v4092 = vadd.f32 0.0, %v4091
  %4093 = vmatmul.f32.gmra.mxu0 %v3883
  %v4094 = vpop.f32.mrf.mxu0
  %v4095 = vadd.f32 0.0, %v4094
  %4096 = vmatmul.f32.gmra.mxu0 %v3886
  %v4097 = vpop.f32.mrf.mxu0
  %v4098 = vadd.f32 0.0, %v4097
  %4099 = vmatmul.f32.gmra.mxu0 %v3889
  %v4100 = vpop.f32.mrf.mxu0
  %v4101 = vadd.f32 0.0, %v4100
  %4102 = vdwg.mxu0
  %v4103 = vadd.f32 %v3569, %v3912
  %v4104 = vadd.f32 %v3570, %v3915
  %v4105 = vadd.f32 %v3571, %v3918
  %v4106 = vadd.f32 %v3572, %v3921
  %v4107 = vadd.f32 %v3573, %v3924
  %v4108 = vadd.f32 %v3574, %v3927
  %v4109 = vadd.f32 %v3575, %v3930
  %v4110 = vadd.f32 %v3576, %v3933
  %v4111 = vadd.f32 %v3577, %v3936
  %v4112 = vadd.f32 %v3578, %v3939
  %v4113 = vadd.f32 %v3579, %v3942
  %v4114 = vadd.f32 %v3580, %v3945
  %v4115 = vadd.f32 %v3581, %v3948
  %v4116 = vadd.f32 %v3582, %v3951
  %v4117 = vadd.f32 %v3583, %v3954
  %v4118 = vadd.f32 %v3584, %v3957
  %v4119 = vadd.f32 %v3585, %v3960
  %v4120 = vadd.f32 %v3586, %v3963
  %v4121 = vadd.f32 %v3587, %v3966
  %v4122 = vadd.f32 %v3588, %v3969
  %v4123 = vadd.f32 %v3589, %v3972
  %v4124 = vadd.f32 %v3590, %v3975
  %v4125 = vadd.f32 %v3591, %v3978
  %v4126 = vadd.f32 %v3592, %v3981
  %v4127 = vadd.f32 %v3593, %v3984
  %v4128 = vadd.f32 %v3594, %v3987
  %v4129 = vadd.f32 %v3595, %v3990
  %v4130 = vadd.f32 %v3596, %v3993
  %v4131 = vadd.f32 %v3597, %v3996
  %v4132 = vadd.f32 %v3598, %v3999
  %v4133 = vadd.f32 %v3599, %v4002
  %v4134 = vadd.f32 %v3600, %v4005
  %v4135 = vadd.f32 %v3601, %v4008
  %v4136 = vadd.f32 %v3602, %v4011
  %v4137 = vadd.f32 %v3603, %v4014
  %v4138 = vadd.f32 %v3604, %v4017
  %v4139 = vadd.f32 %v3605, %v4020
  %v4140 = vadd.f32 %v3606, %v4023
  %v4141 = vadd.f32 %v3607, %v4026
  %v4142 = vadd.f32 %v3608, %v4029
  %v4143 = vadd.f32 %v3609, %v4032
  %v4144 = vadd.f32 %v3610, %v4035
  %v4145 = vadd.f32 %v3611, %v4038
  %v4146 = vadd.f32 %v3612, %v4041
  %v4147 = vadd.f32 %v3613, %v4044
  %v4148 = vadd.f32 %v3614, %v4047
  %v4149 = vadd.f32 %v3615, %v4050
  %v4150 = vadd.f32 %v3616, %v4053
  %v4151 = vadd.f32 %v3617, %v4056
  %v4152 = vadd.f32 %v3618, %v4059
  %v4153 = vadd.f32 %v3619, %v4062
  %v4154 = vadd.f32 %v3620, %v4065
  %v4155 = vadd.f32 %v3621, %v4068
  %v4156 = vadd.f32 %v3622, %v4071
  %v4157 = vadd.f32 %v3623, %v4074
  %v4158 = vadd.f32 %v3624, %v4077
  %v4159 = vadd.f32 %v3625, %v4080
  %v4160 = vadd.f32 %v3626, %v4083
  %v4161 = vadd.f32 %v3627, %v4086
  %v4162 = vadd.f32 %v3628, %v4089
  %v4163 = vadd.f32 %v3629, %v4092
  %v4164 = vadd.f32 %v3630, %v4095
  %v4165 = vadd.f32 %v3631, %v4098
  %v4166 = vadd.f32 %v3632, %v4101
  %v4167 = vld [vmem:[%s3098 + $0x2] sm:$0xff]
  %v4168 = vld [vmem:[%s3098 + $0xa] sm:$0xff]
  %v4169 = vld [vmem:[%s3098 + $0x1a] sm:$0xff]
  %v4170 = vld [vmem:[%s3098 + $0x22] sm:$0xff]
  %v4171 = vld [vmem:[%s3098 + $0x32] sm:$0xff]
  %v4172 = vld [vmem:[%s3098 + $0x3a] sm:$0xff]
  %v4173 = vld [vmem:[%s3098 + $0x4a] sm:$0xff]
  %v4174 = vld [vmem:[%s3098 + $0x52] sm:$0xff]
  %v4175 = vld [vmem:[%s3098 + $0x62] sm:$0xff]
  %v4176 = vld [vmem:[%s3098 + $0x6a] sm:$0xff]
  %v4177 = vld [vmem:[%s3098 + $0x7a] sm:$0xff]
  %v4178 = vld [vmem:[%s3098 + $0x82] sm:$0xff]
  %v4179 = vld [vmem:[%s3098 + $0x92] sm:$0xff]
  %v4180 = vld [vmem:[%s3098 + $0x9a] sm:$0xff]
  %v4181 = vld [vmem:[%s3098 + $0xaa] sm:$0xff]
  %v4182 = vld [vmem:[%s3098 + $0xb2] sm:$0xff]
  %v4183 = vld [vmem:[%s3098 + $0xc2] sm:$0xff]
  %v4184 = vld [vmem:[%s3098 + $0xca] sm:$0xff]
  %v4185 = vld [vmem:[%s3098 + $0xda] sm:$0xff]
  %v4186 = vld [vmem:[%s3098 + $0xe2] sm:$0xff]
  %v4187 = vld [vmem:[%s3098 + $0xf2] sm:$0xff]
  %v4188 = vld [vmem:[%s3098 + $0xfa] sm:$0xff]
  %v4189 = vld [vmem:[%s3098 + $0x10a] sm:$0xff]
  %v4190 = vld [vmem:[%s3098 + $0x112] sm:$0xff]
  %v4191 = vld [vmem:[%s3098 + $0x122] sm:$0xff]
  %v4192 = vld [vmem:[%s3098 + $0x12a] sm:$0xff]
  %v4193 = vld [vmem:[%s3098 + $0x13a] sm:$0xff]
  %v4194 = vld [vmem:[%s3098 + $0x142] sm:$0xff]
  %v4195 = vld [vmem:[%s3098 + $0x152] sm:$0xff]
  %v4196 = vld [vmem:[%s3098 + $0x15a] sm:$0xff]
  %v4197 = vld [vmem:[%s3098 + $0x16a] sm:$0xff]
  %v4198 = vld [vmem:[%s3098 + $0x172] sm:$0xff]
  %v4199 = vld [vmem:[%s3098 + $0x1b2] sm:$0xff]
  %v4200 = vld [vmem:[%s3098 + $0x1ba] sm:$0xff]
  %v4201 = vld [vmem:[%s3098 + $0x1ca] sm:$0xff]
  %v4202 = vld [vmem:[%s3098 + $0x1d2] sm:$0xff]
  %v4203 = vld [vmem:[%s3098 + $0x1e2] sm:$0xff]
  %v4204 = vld [vmem:[%s3098 + $0x1ea] sm:$0xff]
  %v4205 = vld [vmem:[%s3098 + $0x1fa] sm:$0xff]
  %v4206 = vld [vmem:[%s3098 + $0x202] sm:$0xff]
  %v4207 = vld [vmem:[%s3098 + $0x212] sm:$0xff]
  %v4208 = vld [vmem:[%s3098 + $0x21a] sm:$0xff]
  %v4209 = vld [vmem:[%s3098 + $0x22a] sm:$0xff]
  %v4210 = vld [vmem:[%s3098 + $0x232] sm:$0xff]
  %v4211 = vld [vmem:[%s3098 + $0x242] sm:$0xff]
  %v4212 = vld [vmem:[%s3098 + $0x24a] sm:$0xff]
  %v4213 = vld [vmem:[%s3098 + $0x25a] sm:$0xff]
  %v4214 = vld [vmem:[%s3098 + $0x262] sm:$0xff]
  %v4215 = vld [vmem:[%s3098 + $0x272] sm:$0xff]
  %v4216 = vld [vmem:[%s3098 + $0x27a] sm:$0xff]
  %v4217 = vld [vmem:[%s3098 + $0x28a] sm:$0xff]
  %v4218 = vld [vmem:[%s3098 + $0x292] sm:$0xff]
  %v4219 = vld [vmem:[%s3098 + $0x2a2] sm:$0xff]
  %v4220 = vld [vmem:[%s3098 + $0x2aa] sm:$0xff]
  %v4221 = vld [vmem:[%s3098 + $0x2ba] sm:$0xff]
  %v4222 = vld [vmem:[%s3098 + $0x2c2] sm:$0xff]
  %v4223 = vld [vmem:[%s3098 + $0x2d2] sm:$0xff]
  %v4224 = vld [vmem:[%s3098 + $0x2da] sm:$0xff]
  %v4225 = vld [vmem:[%s3098 + $0x2ea] sm:$0xff]
  %v4226 = vld [vmem:[%s3098 + $0x2f2] sm:$0xff]
  %v4227 = vld [vmem:[%s3098 + $0x302] sm:$0xff]
  %v4228 = vld [vmem:[%s3098 + $0x30a] sm:$0xff]
  %v4229 = vld [vmem:[%s3098 + $0x31a] sm:$0xff]
  %v4230 = vld [vmem:[%s3098 + $0x322] sm:$0xff]
  %s4231 = scalar_lea.vmem %s1, 32
  %v4232 = vld [vmem:[%s4231] sm:$0xf]
  %v4234 = vsel %vm151, %v4167, 0
  %v4237 = vsel %vm151, %v4168, 0
  %v4240 = vsel %vm151, %v4169, 0
  %v4243 = vsel %vm151, %v4170, 0
  %v4246 = vsel %vm151, %v4171, 0
  %v4249 = vsel %vm151, %v4172, 0
  %v4252 = vsel %vm151, %v4173, 0
  %v4255 = vsel %vm151, %v4174, 0
  %v4258 = vsel %vm151, %v4175, 0
  %v4261 = vsel %vm151, %v4176, 0
  %v4264 = vsel %vm151, %v4177, 0
  %v4267 = vsel %vm151, %v4178, 0
  %v4270 = vsel %vm151, %v4179, 0
  %v4273 = vsel %vm151, %v4180, 0
  %v4276 = vsel %vm151, %v4181, 0
  %v4279 = vsel %vm151, %v4182, 0
  %v4282 = vsel %vm151, %v4183, 0
  %v4285 = vsel %vm151, %v4184, 0
  %v4288 = vsel %vm151, %v4185, 0
  %v4291 = vsel %vm151, %v4186, 0
  %v4294 = vsel %vm151, %v4187, 0
  %v4297 = vsel %vm151, %v4188, 0
  %v4300 = vsel %vm151, %v4189, 0
  %v4303 = vsel %vm151, %v4190, 0
  %v4306 = vsel %vm151, %v4191, 0
  %v4309 = vsel %vm151, %v4192, 0
  %v4312 = vsel %vm151, %v4193, 0
  %v4315 = vsel %vm151, %v4194, 0
  %v4318 = vsel %vm151, %v4195, 0
  %v4321 = vsel %vm151, %v4196, 0
  %v4324 = vsel %vm151, %v4197, 0
  %v4327 = vsel %vm151, %v4198, 0
  %v4330 = vsel %vm151, %v4199, 0
  %v4333 = vsel %vm151, %v4200, 0
  %v4336 = vsel %vm151, %v4201, 0
  %v4339 = vsel %vm151, %v4202, 0
  %v4342 = vsel %vm151, %v4203, 0
  %v4345 = vsel %vm151, %v4204, 0
  %v4348 = vsel %vm151, %v4205, 0
  %v4351 = vsel %vm151, %v4206, 0
  %v4354 = vsel %vm151, %v4207, 0
  %v4357 = vsel %vm151, %v4208, 0
  %v4360 = vsel %vm151, %v4209, 0
  %v4363 = vsel %vm151, %v4210, 0
  %v4366 = vsel %vm151, %v4211, 0
  %v4369 = vsel %vm151, %v4212, 0
  %v4372 = vsel %vm151, %v4213, 0
  %v4375 = vsel %vm151, %v4214, 0
  %v4378 = vsel %vm151, %v4215, 0
  %v4381 = vsel %vm151, %v4216, 0
  %v4384 = vsel %vm151, %v4217, 0
  %v4387 = vsel %vm151, %v4218, 0
  %v4390 = vsel %vm151, %v4219, 0
  %v4393 = vsel %vm151, %v4220, 0
  %v4396 = vsel %vm151, %v4221, 0
  %v4399 = vsel %vm151, %v4222, 0
  %v4402 = vsel %vm151, %v4223, 0
  %v4405 = vsel %vm151, %v4224, 0
  %v4408 = vsel %vm151, %v4225, 0
  %v4411 = vsel %vm151, %v4226, 0
  %v4414 = vsel %vm151, %v4227, 0
  %v4417 = vsel %vm151, %v4228, 0
  %v4420 = vsel %vm151, %v4229, 0
  %v4423 = vsel %vm151, %v4230, 0
  %v4426 = vsel %vm344, %v4232, 0
  %4428 = vmatpush.msra.mxu0 0.0
  %4429 = vmatpush.msra.mxu0 0.0
  %4430 = vmatpush.msra.mxu0 0.0
  %4431 = vmatpush.msra.mxu0 0.0
  %4432 = vmatpush.msra.mxu0 0.0
  %4433 = vmatpush.msra.mxu0 0.0
  %4434 = vmatpush.msra.mxu0 0.0
  %4435 = vmatpush.msra.mxu0 0.0
  %4436 = vmatpush.msra.mxu0 0.0
  %4437 = vmatpush.msra.mxu0 0.0
  %4438 = vmatpush.msra.mxu0 0.0
  %4439 = vmatpush.msra.mxu0 0.0
  %4440 = vmatpush.msra.mxu0 0.0
  %4441 = vmatpush.msra.mxu0 0.0
  %4442 = vmatpush.msra.mxu0 0.0
  %4443 = vmatpush.msra.mxu0 %v4426
  %4444 = vmatmul.f32.gmra.mxu0 %v4234
  %v4445 = vpop.f32.mrf.mxu0
  %v4446 = vadd.f32 0.0, %v4445
  %4447 = vmatmul.f32.gmra.mxu0 %v4237
  %v4448 = vpop.f32.mrf.mxu0
  %v4449 = vadd.f32 0.0, %v4448
  %4450 = vmatmul.f32.gmra.mxu0 %v4240
  %v4451 = vpop.f32.mrf.mxu0
  %v4452 = vadd.f32 0.0, %v4451
  %4453 = vmatmul.f32.gmra.mxu0 %v4243
  %v4454 = vpop.f32.mrf.mxu0
  %v4455 = vadd.f32 0.0, %v4454
  %4456 = vmatmul.f32.gmra.mxu0 %v4246
  %v4457 = vpop.f32.mrf.mxu0
  %v4458 = vadd.f32 0.0, %v4457
  %4459 = vmatmul.f32.gmra.mxu0 %v4249
  %v4460 = vpop.f32.mrf.mxu0
  %v4461 = vadd.f32 0.0, %v4460
  %4462 = vmatmul.f32.gmra.mxu0 %v4252
  %v4463 = vpop.f32.mrf.mxu0
  %v4464 = vadd.f32 0.0, %v4463
  %4465 = vmatmul.f32.gmra.mxu0 %v4255
  %v4466 = vpop.f32.mrf.mxu0
  %v4467 = vadd.f32 0.0, %v4466
  %4468 = vmatmul.f32.gmra.mxu0 %v4258
  %v4469 = vpop.f32.mrf.mxu0
  %v4470 = vadd.f32 0.0, %v4469
  %4471 = vmatmul.f32.gmra.mxu0 %v4261
  %v4472 = vpop.f32.mrf.mxu0
  %v4473 = vadd.f32 0.0, %v4472
  %4474 = vmatmul.f32.gmra.mxu0 %v4264
  %v4475 = vpop.f32.mrf.mxu0
  %v4476 = vadd.f32 0.0, %v4475
  %4477 = vmatmul.f32.gmra.mxu0 %v4267
  %v4478 = vpop.f32.mrf.mxu0
  %v4479 = vadd.f32 0.0, %v4478
  %4480 = vmatmul.f32.gmra.mxu0 %v4270
  %v4481 = vpop.f32.mrf.mxu0
  %v4482 = vadd.f32 0.0, %v4481
  %4483 = vmatmul.f32.gmra.mxu0 %v4273
  %v4484 = vpop.f32.mrf.mxu0
  %v4485 = vadd.f32 0.0, %v4484
  %4486 = vmatmul.f32.gmra.mxu0 %v4276
  %v4487 = vpop.f32.mrf.mxu0
  %v4488 = vadd.f32 0.0, %v4487
  %4489 = vmatmul.f32.gmra.mxu0 %v4279
  %v4490 = vpop.f32.mrf.mxu0
  %v4491 = vadd.f32 0.0, %v4490
  %4492 = vmatmul.f32.gmra.mxu0 %v4282
  %v4493 = vpop.f32.mrf.mxu0
  %v4494 = vadd.f32 0.0, %v4493
  %4495 = vmatmul.f32.gmra.mxu0 %v4285
  %v4496 = vpop.f32.mrf.mxu0
  %v4497 = vadd.f32 0.0, %v4496
  %4498 = vmatmul.f32.gmra.mxu0 %v4288
  %v4499 = vpop.f32.mrf.mxu0
  %v4500 = vadd.f32 0.0, %v4499
  %4501 = vmatmul.f32.gmra.mxu0 %v4291
  %v4502 = vpop.f32.mrf.mxu0
  %v4503 = vadd.f32 0.0, %v4502
  %4504 = vmatmul.f32.gmra.mxu0 %v4294
  %v4505 = vpop.f32.mrf.mxu0
  %v4506 = vadd.f32 0.0, %v4505
  %4507 = vmatmul.f32.gmra.mxu0 %v4297
  %v4508 = vpop.f32.mrf.mxu0
  %v4509 = vadd.f32 0.0, %v4508
  %4510 = vmatmul.f32.gmra.mxu0 %v4300
  %v4511 = vpop.f32.mrf.mxu0
  %v4512 = vadd.f32 0.0, %v4511
  %4513 = vmatmul.f32.gmra.mxu0 %v4303
  %v4514 = vpop.f32.mrf.mxu0
  %v4515 = vadd.f32 0.0, %v4514
  %4516 = vmatmul.f32.gmra.mxu0 %v4306
  %v4517 = vpop.f32.mrf.mxu0
  %v4518 = vadd.f32 0.0, %v4517
  %4519 = vmatmul.f32.gmra.mxu0 %v4309
  %v4520 = vpop.f32.mrf.mxu0
  %v4521 = vadd.f32 0.0, %v4520
  %4522 = vmatmul.f32.gmra.mxu0 %v4312
  %v4523 = vpop.f32.mrf.mxu0
  %v4524 = vadd.f32 0.0, %v4523
  %4525 = vmatmul.f32.gmra.mxu0 %v4315
  %v4526 = vpop.f32.mrf.mxu0
  %v4527 = vadd.f32 0.0, %v4526
  %4528 = vmatmul.f32.gmra.mxu0 %v4318
  %v4529 = vpop.f32.mrf.mxu0
  %v4530 = vadd.f32 0.0, %v4529
  %4531 = vmatmul.f32.gmra.mxu0 %v4321
  %v4532 = vpop.f32.mrf.mxu0
  %v4533 = vadd.f32 0.0, %v4532
  %4534 = vmatmul.f32.gmra.mxu0 %v4324
  %v4535 = vpop.f32.mrf.mxu0
  %v4536 = vadd.f32 0.0, %v4535
  %4537 = vmatmul.f32.gmra.mxu0 %v4327
  %v4538 = vpop.f32.mrf.mxu0
  %v4539 = vadd.f32 0.0, %v4538
  %4540 = vmatmul.f32.gmra.mxu0 %v4330
  %v4541 = vpop.f32.mrf.mxu0
  %v4542 = vadd.f32 0.0, %v4541
  %4543 = vmatmul.f32.gmra.mxu0 %v4333
  %v4544 = vpop.f32.mrf.mxu0
  %v4545 = vadd.f32 0.0, %v4544
  %4546 = vmatmul.f32.gmra.mxu0 %v4336
  %v4547 = vpop.f32.mrf.mxu0
  %v4548 = vadd.f32 0.0, %v4547
  %4549 = vmatmul.f32.gmra.mxu0 %v4339
  %v4550 = vpop.f32.mrf.mxu0
  %v4551 = vadd.f32 0.0, %v4550
  %4552 = vmatmul.f32.gmra.mxu0 %v4342
  %v4553 = vpop.f32.mrf.mxu0
  %v4554 = vadd.f32 0.0, %v4553
  %4555 = vmatmul.f32.gmra.mxu0 %v4345
  %v4556 = vpop.f32.mrf.mxu0
  %v4557 = vadd.f32 0.0, %v4556
  %4558 = vmatmul.f32.gmra.mxu0 %v4348
  %v4559 = vpop.f32.mrf.mxu0
  %v4560 = vadd.f32 0.0, %v4559
  %4561 = vmatmul.f32.gmra.mxu0 %v4351
  %v4562 = vpop.f32.mrf.mxu0
  %v4563 = vadd.f32 0.0, %v4562
  %4564 = vmatmul.f32.gmra.mxu0 %v4354
  %v4565 = vpop.f32.mrf.mxu0
  %v4566 = vadd.f32 0.0, %v4565
  %4567 = vmatmul.f32.gmra.mxu0 %v4357
  %v4568 = vpop.f32.mrf.mxu0
  %v4569 = vadd.f32 0.0, %v4568
  %4570 = vmatmul.f32.gmra.mxu0 %v4360
  %v4571 = vpop.f32.mrf.mxu0
  %v4572 = vadd.f32 0.0, %v4571
  %4573 = vmatmul.f32.gmra.mxu0 %v4363
  %v4574 = vpop.f32.mrf.mxu0
  %v4575 = vadd.f32 0.0, %v4574
  %4576 = vmatmul.f32.gmra.mxu0 %v4366
  %v4577 = vpop.f32.mrf.mxu0
  %v4578 = vadd.f32 0.0, %v4577
  %4579 = vmatmul.f32.gmra.mxu0 %v4369
  %v4580 = vpop.f32.mrf.mxu0
  %v4581 = vadd.f32 0.0, %v4580
  %4582 = vmatmul.f32.gmra.mxu0 %v4372
  %v4583 = vpop.f32.mrf.mxu0
  %v4584 = vadd.f32 0.0, %v4583
  %4585 = vmatmul.f32.gmra.mxu0 %v4375
  %v4586 = vpop.f32.mrf.mxu0
  %v4587 = vadd.f32 0.0, %v4586
  %4588 = vmatmul.f32.gmra.mxu0 %v4378
  %v4589 = vpop.f32.mrf.mxu0
  %v4590 = vadd.f32 0.0, %v4589
  %4591 = vmatmul.f32.gmra.mxu0 %v4381
  %v4592 = vpop.f32.mrf.mxu0
  %v4593 = vadd.f32 0.0, %v4592
  %4594 = vmatmul.f32.gmra.mxu0 %v4384
  %v4595 = vpop.f32.mrf.mxu0
  %v4596 = vadd.f32 0.0, %v4595
  %4597 = vmatmul.f32.gmra.mxu0 %v4387
  %v4598 = vpop.f32.mrf.mxu0
  %v4599 = vadd.f32 0.0, %v4598
  %4600 = vmatmul.f32.gmra.mxu0 %v4390
  %v4601 = vpop.f32.mrf.mxu0
  %v4602 = vadd.f32 0.0, %v4601
  %4603 = vmatmul.f32.gmra.mxu0 %v4393
  %v4604 = vpop.f32.mrf.mxu0
  %v4605 = vadd.f32 0.0, %v4604
  %4606 = vmatmul.f32.gmra.mxu0 %v4396
  %v4607 = vpop.f32.mrf.mxu0
  %v4608 = vadd.f32 0.0, %v4607
  %4609 = vmatmul.f32.gmra.mxu0 %v4399
  %v4610 = vpop.f32.mrf.mxu0
  %v4611 = vadd.f32 0.0, %v4610
  %4612 = vmatmul.f32.gmra.mxu0 %v4402
  %v4613 = vpop.f32.mrf.mxu0
  %v4614 = vadd.f32 0.0, %v4613
  %4615 = vmatmul.f32.gmra.mxu0 %v4405
  %v4616 = vpop.f32.mrf.mxu0
  %v4617 = vadd.f32 0.0, %v4616
  %4618 = vmatmul.f32.gmra.mxu0 %v4408
  %v4619 = vpop.f32.mrf.mxu0
  %v4620 = vadd.f32 0.0, %v4619
  %4621 = vmatmul.f32.gmra.mxu0 %v4411
  %v4622 = vpop.f32.mrf.mxu0
  %v4623 = vadd.f32 0.0, %v4622
  %4624 = vmatmul.f32.gmra.mxu0 %v4414
  %v4625 = vpop.f32.mrf.mxu0
  %v4626 = vadd.f32 0.0, %v4625
  %4627 = vmatmul.f32.gmra.mxu0 %v4417
  %v4628 = vpop.f32.mrf.mxu0
  %v4629 = vadd.f32 0.0, %v4628
  %4630 = vmatmul.f32.gmra.mxu0 %v4420
  %v4631 = vpop.f32.mrf.mxu0
  %v4632 = vadd.f32 0.0, %v4631
  %4633 = vmatmul.f32.gmra.mxu0 %v4423
  %v4634 = vpop.f32.mrf.mxu0
  %v4635 = vadd.f32 0.0, %v4634
  %4636 = vdwg.mxu0
  %v4637 = vadd.f32 %v4103, %v4446
  %v4638 = vadd.f32 %v4104, %v4449
  %v4639 = vadd.f32 %v4105, %v4452
  %v4640 = vadd.f32 %v4106, %v4455
  %v4641 = vadd.f32 %v4107, %v4458
  %v4642 = vadd.f32 %v4108, %v4461
  %v4643 = vadd.f32 %v4109, %v4464
  %v4644 = vadd.f32 %v4110, %v4467
  %v4645 = vadd.f32 %v4111, %v4470
  %v4646 = vadd.f32 %v4112, %v4473
  %v4647 = vadd.f32 %v4113, %v4476
  %v4648 = vadd.f32 %v4114, %v4479
  %v4649 = vadd.f32 %v4115, %v4482
  %v4650 = vadd.f32 %v4116, %v4485
  %v4651 = vadd.f32 %v4117, %v4488
  %v4652 = vadd.f32 %v4118, %v4491
  %v4653 = vadd.f32 %v4119, %v4494
  %v4654 = vadd.f32 %v4120, %v4497
  %v4655 = vadd.f32 %v4121, %v4500
  %v4656 = vadd.f32 %v4122, %v4503
  %v4657 = vadd.f32 %v4123, %v4506
  %v4658 = vadd.f32 %v4124, %v4509
  %v4659 = vadd.f32 %v4125, %v4512
  %v4660 = vadd.f32 %v4126, %v4515
  %v4661 = vadd.f32 %v4127, %v4518
  %v4662 = vadd.f32 %v4128, %v4521
  %v4663 = vadd.f32 %v4129, %v4524
  %v4664 = vadd.f32 %v4130, %v4527
  %v4665 = vadd.f32 %v4131, %v4530
  %v4666 = vadd.f32 %v4132, %v4533
  %v4667 = vadd.f32 %v4133, %v4536
  %v4668 = vadd.f32 %v4134, %v4539
  %v4669 = vadd.f32 %v4135, %v4542
  %v4670 = vadd.f32 %v4136, %v4545
  %v4671 = vadd.f32 %v4137, %v4548
  %v4672 = vadd.f32 %v4138, %v4551
  %v4673 = vadd.f32 %v4139, %v4554
  %v4674 = vadd.f32 %v4140, %v4557
  %v4675 = vadd.f32 %v4141, %v4560
  %v4676 = vadd.f32 %v4142, %v4563
  %v4677 = vadd.f32 %v4143, %v4566
  %v4678 = vadd.f32 %v4144, %v4569
  %v4679 = vadd.f32 %v4145, %v4572
  %v4680 = vadd.f32 %v4146, %v4575
  %v4681 = vadd.f32 %v4147, %v4578
  %v4682 = vadd.f32 %v4148, %v4581
  %v4683 = vadd.f32 %v4149, %v4584
  %v4684 = vadd.f32 %v4150, %v4587
  %v4685 = vadd.f32 %v4151, %v4590
  %v4686 = vadd.f32 %v4152, %v4593
  %v4687 = vadd.f32 %v4153, %v4596
  %v4688 = vadd.f32 %v4154, %v4599
  %v4689 = vadd.f32 %v4155, %v4602
  %v4690 = vadd.f32 %v4156, %v4605
  %v4691 = vadd.f32 %v4157, %v4608
  %v4692 = vadd.f32 %v4158, %v4611
  %v4693 = vadd.f32 %v4159, %v4614
  %v4694 = vadd.f32 %v4160, %v4617
  %v4695 = vadd.f32 %v4161, %v4620
  %v4696 = vadd.f32 %v4162, %v4623
  %v4697 = vadd.f32 %v4163, %v4626
  %v4698 = vadd.f32 %v4164, %v4629
  %v4699 = vadd.f32 %v4165, %v4632
  %v4700 = vadd.f32 %v4166, %v4635
  %v4701 = vld [vmem:[%s2] sm:$0x1]
  %v4703 = vperm.slane %v4701, 0
  %v4705 = vadd.f32 %v4637, %v4703
  %v4706 = vadd.f32 %v4638, %v4703
  %v4707 = vadd.f32 %v4639, %v4703
  %v4708 = vadd.f32 %v4640, %v4703
  %v4709 = vadd.f32 %v4641, %v4703
  %v4710 = vadd.f32 %v4642, %v4703
  %v4711 = vadd.f32 %v4643, %v4703
  %v4712 = vadd.f32 %v4644, %v4703
  %v4713 = vadd.f32 %v4645, %v4703
  %v4714 = vadd.f32 %v4646, %v4703
  %v4715 = vadd.f32 %v4647, %v4703
  %v4716 = vadd.f32 %v4648, %v4703
  %v4717 = vadd.f32 %v4649, %v4703
  %v4718 = vadd.f32 %v4650, %v4703
  %v4719 = vadd.f32 %v4651, %v4703
  %v4720 = vadd.f32 %v4652, %v4703
  %v4721 = vadd.f32 %v4653, %v4703
  %v4722 = vadd.f32 %v4654, %v4703
  %v4723 = vadd.f32 %v4655, %v4703
  %v4724 = vadd.f32 %v4656, %v4703
  %v4725 = vadd.f32 %v4657, %v4703
  %v4726 = vadd.f32 %v4658, %v4703
  %v4727 = vadd.f32 %v4659, %v4703
  %v4728 = vadd.f32 %v4660, %v4703
  %v4729 = vadd.f32 %v4661, %v4703
  %v4730 = vadd.f32 %v4662, %v4703
  %v4731 = vadd.f32 %v4663, %v4703
  %v4732 = vadd.f32 %v4664, %v4703
  %v4733 = vadd.f32 %v4665, %v4703
  %v4734 = vadd.f32 %v4666, %v4703
  %v4735 = vadd.f32 %v4667, %v4703
  %v4736 = vadd.f32 %v4668, %v4703
  %v4737 = vadd.f32 %v4669, %v4703
  %v4738 = vadd.f32 %v4670, %v4703
  %v4739 = vadd.f32 %v4671, %v4703
  %v4740 = vadd.f32 %v4672, %v4703
  %v4741 = vadd.f32 %v4673, %v4703
  %v4742 = vadd.f32 %v4674, %v4703
  %v4743 = vadd.f32 %v4675, %v4703
  %v4744 = vadd.f32 %v4676, %v4703
  %v4745 = vadd.f32 %v4677, %v4703
  %v4746 = vadd.f32 %v4678, %v4703
  %v4747 = vadd.f32 %v4679, %v4703
  %v4748 = vadd.f32 %v4680, %v4703
  %v4749 = vadd.f32 %v4681, %v4703
  %v4750 = vadd.f32 %v4682, %v4703
  %v4751 = vadd.f32 %v4683, %v4703
  %v4752 = vadd.f32 %v4684, %v4703
  %v4753 = vadd.f32 %v4685, %v4703
  %v4754 = vadd.f32 %v4686, %v4703
  %v4755 = vadd.f32 %v4687, %v4703
  %v4756 = vadd.f32 %v4688, %v4703
  %v4757 = vadd.f32 %v4689, %v4703
  %v4758 = vadd.f32 %v4690, %v4703
  %v4759 = vadd.f32 %v4691, %v4703
  %v4760 = vadd.f32 %v4692, %v4703
  %v4761 = vadd.f32 %v4693, %v4703
  %v4762 = vadd.f32 %v4694, %v4703
  %v4763 = vadd.f32 %v4695, %v4703
  %v4764 = vadd.f32 %v4696, %v4703
  %v4765 = vadd.f32 %v4697, %v4703
  %v4766 = vadd.f32 %v4698, %v4703
  %v4767 = vadd.f32 %v4699, %v4703
  %v4768 = vadd.f32 %v4700, %v4703
  %v4769 = vmax.f32 %v4705, 0.0
  %v4770 = vmax.f32 %v4706, 0.0
  %v4771 = vmax.f32 %v4707, 0.0
  %v4772 = vmax.f32 %v4708, 0.0
  %v4773 = vmax.f32 %v4709, 0.0
  %v4774 = vmax.f32 %v4710, 0.0
  %v4775 = vmax.f32 %v4711, 0.0
  %v4776 = vmax.f32 %v4712, 0.0
  %v4777 = vmax.f32 %v4713, 0.0
  %v4778 = vmax.f32 %v4714, 0.0
  %v4779 = vmax.f32 %v4715, 0.0
  %v4780 = vmax.f32 %v4716, 0.0
  %v4781 = vmax.f32 %v4717, 0.0
  %v4782 = vmax.f32 %v4718, 0.0
  %v4783 = vmax.f32 %v4719, 0.0
  %v4784 = vmax.f32 %v4720, 0.0
  %v4785 = vmax.f32 %v4721, 0.0
  %v4786 = vmax.f32 %v4722, 0.0
  %v4787 = vmax.f32 %v4723, 0.0
  %v4788 = vmax.f32 %v4724, 0.0
  %v4789 = vmax.f32 %v4725, 0.0
  %v4790 = vmax.f32 %v4726, 0.0
  %v4791 = vmax.f32 %v4727, 0.0
  %v4792 = vmax.f32 %v4728, 0.0
  %v4793 = vmax.f32 %v4729, 0.0
  %v4794 = vmax.f32 %v4730, 0.0
  %v4795 = vmax.f32 %v4731, 0.0
  %v4796 = vmax.f32 %v4732, 0.0
  %v4797 = vmax.f32 %v4733, 0.0
  %v4798 = vmax.f32 %v4734, 0.0
  %v4799 = vmax.f32 %v4735, 0.0
  %v4800 = vmax.f32 %v4736, 0.0
  %v4801 = vmax.f32 %v4737, 0.0
  %v4802 = vmax.f32 %v4738, 0.0
  %v4803 = vmax.f32 %v4739, 0.0
  %v4804 = vmax.f32 %v4740, 0.0
  %v4805 = vmax.f32 %v4741, 0.0
  %v4806 = vmax.f32 %v4742, 0.0
  %v4807 = vmax.f32 %v4743, 0.0
  %v4808 = vmax.f32 %v4744, 0.0
  %v4809 = vmax.f32 %v4745, 0.0
  %v4810 = vmax.f32 %v4746, 0.0
  %v4811 = vmax.f32 %v4747, 0.0
  %v4812 = vmax.f32 %v4748, 0.0
  %v4813 = vmax.f32 %v4749, 0.0
  %v4814 = vmax.f32 %v4750, 0.0
  %v4815 = vmax.f32 %v4751, 0.0
  %v4816 = vmax.f32 %v4752, 0.0
  %v4817 = vmax.f32 %v4753, 0.0
  %v4818 = vmax.f32 %v4754, 0.0
  %v4819 = vmax.f32 %v4755, 0.0
  %v4820 = vmax.f32 %v4756, 0.0
  %v4821 = vmax.f32 %v4757, 0.0
  %v4822 = vmax.f32 %v4758, 0.0
  %v4823 = vmax.f32 %v4759, 0.0
  %v4824 = vmax.f32 %v4760, 0.0
  %v4825 = vmax.f32 %v4761, 0.0
  %v4826 = vmax.f32 %v4762, 0.0
  %v4827 = vmax.f32 %v4763, 0.0
  %v4828 = vmax.f32 %v4764, 0.0
  %v4829 = vmax.f32 %v4765, 0.0
  %v4830 = vmax.f32 %v4766, 0.0
  %v4831 = vmax.f32 %v4767, 0.0
  %v4832 = vmax.f32 %v4768, 0.0
  %4833 = vst.msk [vmem:[#allocation2] sm:$0xff] %vm151, 0.0
  %4834 = vst.msk [vmem:[#allocation2 + $0x8] sm:$0xff] %vm151, 0.0
  %vm4835 = vcmask 25600
  %4836 = vst.msk [vmem:[#allocation2 + $0x10] sm:$0x3] %vm4835, 0.0
  %4837 = vst.msk [vmem:[#allocation2 + $0x18] sm:$0xff] %vm151, 0.0
  %4838 = vst.msk [vmem:[#allocation2 + $0x20] sm:$0xff] %vm151, 0.0
  %4839 = vst.msk [vmem:[#allocation2 + $0x28] sm:$0x3] %vm4835, 0.0
  %4840 = vst.msk [vmem:[#allocation2 + $0x30] sm:$0xff] %vm151, 0.0
  %4841 = vst.msk [vmem:[#allocation2 + $0x38] sm:$0xff] %vm151, 0.0
  %4842 = vst.msk [vmem:[#allocation2 + $0x40] sm:$0x3] %vm4835, 0.0
  %4843 = vst.msk [vmem:[#allocation2 + $0x48] sm:$0xff] %vm151, 0.0
  %4844 = vst.msk [vmem:[#allocation2 + $0x50] sm:$0xff] %vm151, 0.0
  %4845 = vst.msk [vmem:[#allocation2 + $0x58] sm:$0x3] %vm4835, 0.0
  %4846 = vst.msk [vmem:[#allocation2 + $0x60] sm:$0xff] %vm151, 0.0
  %4847 = vst.msk [vmem:[#allocation2 + $0x68] sm:$0xff] %vm151, 0.0
  %4848 = vst.msk [vmem:[#allocation2 + $0x70] sm:$0x3] %vm4835, 0.0
  %4849 = vst.msk [vmem:[#allocation2 + $0x78] sm:$0xff] %vm151, 0.0
  %4850 = vst.msk [vmem:[#allocation2 + $0x80] sm:$0xff] %vm151, 0.0
  %4851 = vst.msk [vmem:[#allocation2 + $0x88] sm:$0x3] %vm4835, 0.0
  %4852 = vst.msk [vmem:[#allocation2 + $0x90] sm:$0xff] %vm151, 0.0
  %4853 = vst.msk [vmem:[#allocation2 + $0x98] sm:$0xff] %vm151, 0.0
  %4854 = vst.msk [vmem:[#allocation2 + $0xa0] sm:$0x3] %vm4835, 0.0
  %4855 = vst.msk [vmem:[#allocation2 + $0xa8] sm:$0xff] %vm151, 0.0
  %4856 = vst.msk [vmem:[#allocation2 + $0xb0] sm:$0xff] %vm151, 0.0
  %4857 = vst.msk [vmem:[#allocation2 + $0xb8] sm:$0x3] %vm4835, 0.0
  %4858 = vst.msk [vmem:[#allocation2 + $0xc0] sm:$0xff] %vm151, 0.0
  %4859 = vst.msk [vmem:[#allocation2 + $0xc8] sm:$0xff] %vm151, 0.0
  %4860 = vst.msk [vmem:[#allocation2 + $0xd0] sm:$0x3] %vm4835, 0.0
  %4861 = vst.msk [vmem:[#allocation2 + $0xd8] sm:$0xff] %vm151, 0.0
  %4862 = vst.msk [vmem:[#allocation2 + $0xe0] sm:$0xff] %vm151, 0.0
  %4863 = vst.msk [vmem:[#allocation2 + $0xe8] sm:$0x3] %vm4835, 0.0
  %4864 = vst.msk [vmem:[#allocation2 + $0xf0] sm:$0xff] %vm151, 0.0
  %4865 = vst.msk [vmem:[#allocation2 + $0xf8] sm:$0xff] %vm151, 0.0
  %4866 = vst.msk [vmem:[#allocation2 + $0x100] sm:$0x3] %vm4835, 0.0
  %4867 = vst.msk [vmem:[#allocation2 + $0x108] sm:$0xff] %vm151, 0.0
  %4868 = vst.msk [vmem:[#allocation2 + $0x110] sm:$0xff] %vm151, 0.0
  %4869 = vst.msk [vmem:[#allocation2 + $0x118] sm:$0x3] %vm4835, 0.0
  %4870 = vst.msk [vmem:[#allocation2 + $0x120] sm:$0xff] %vm151, 0.0
  %4871 = vst.msk [vmem:[#allocation2 + $0x128] sm:$0xff] %vm151, 0.0
  %4872 = vst.msk [vmem:[#allocation2 + $0x130] sm:$0x3] %vm4835, 0.0
  %4873 = vst.msk [vmem:[#allocation2 + $0x138] sm:$0xff] %vm151, 0.0
  %4874 = vst.msk [vmem:[#allocation2 + $0x140] sm:$0xff] %vm151, 0.0
  %4875 = vst.msk [vmem:[#allocation2 + $0x148] sm:$0x3] %vm4835, 0.0
  %4876 = vst.msk [vmem:[#allocation2 + $0x150] sm:$0xff] %vm151, 0.0
  %4877 = vst.msk [vmem:[#allocation2 + $0x158] sm:$0xff] %vm151, 0.0
  %4878 = vst.msk [vmem:[#allocation2 + $0x160] sm:$0x3] %vm4835, 0.0
  %4879 = vst.msk [vmem:[#allocation2 + $0x168] sm:$0xff] %vm151, 0.0
  %4880 = vst.msk [vmem:[#allocation2 + $0x170] sm:$0xff] %vm151, 0.0
  %4881 = vst.msk [vmem:[#allocation2 + $0x178] sm:$0x3] %vm4835, 0.0
  %4882 = vst.msk [vmem:[#allocation2 + $0x180] sm:$0xff] %vm151, 0.0
  %4883 = vst.msk [vmem:[#allocation2 + $0x188] sm:$0xff] %vm151, 0.0
  %4884 = vst.msk [vmem:[#allocation2 + $0x190] sm:$0x3] %vm4835, 0.0
  %4885 = vst.msk [vmem:[#allocation2 + $0x198] sm:$0xff] %vm151, 0.0
  %4886 = vst.msk [vmem:[#allocation2 + $0x1a0] sm:$0xff] %vm151, 0.0
  %4887 = vst.msk [vmem:[#allocation2 + $0x1a8] sm:$0x3] %vm4835, 0.0
  %4888 = vst.msk [vmem:[#allocation2 + $0x1b0] sm:$0xff] %vm151, 0.0
  %4889 = vst.msk [vmem:[#allocation2 + $0x1b8] sm:$0xff] %vm151, 0.0
  %4890 = vst.msk [vmem:[#allocation2 + $0x1c0] sm:$0x3] %vm4835, 0.0
  %4891 = vst.msk [vmem:[#allocation2 + $0x1c8] sm:$0xff] %vm151, 0.0
  %4892 = vst.msk [vmem:[#allocation2 + $0x1d0] sm:$0xff] %vm151, 0.0
  %4893 = vst.msk [vmem:[#allocation2 + $0x1d8] sm:$0x3] %vm4835, 0.0
  %4894 = vst.msk [vmem:[#allocation2 + $0x1e0] sm:$0xff] %vm151, 0.0
  %4895 = vst.msk [vmem:[#allocation2 + $0x1e8] sm:$0xff] %vm151, 0.0
  %4896 = vst.msk [vmem:[#allocation2 + $0x1f0] sm:$0x3] %vm4835, 0.0
  %4897 = vst.msk [vmem:[#allocation2 + $0x1f8] sm:$0xff] %vm151, 0.0
  %4898 = vst.msk [vmem:[#allocation2 + $0x200] sm:$0xff] %vm151, 0.0
  %4899 = vst.msk [vmem:[#allocation2 + $0x208] sm:$0x3] %vm4835, 0.0
  %4900 = vst.msk [vmem:[#allocation2 + $0x210] sm:$0xff] %vm151, 0.0
  %4901 = vst.msk [vmem:[#allocation2 + $0x218] sm:$0xff] %vm151, 0.0
  %4902 = vst.msk [vmem:[#allocation2 + $0x220] sm:$0x3] %vm4835, 0.0
  %4903 = vst.msk [vmem:[#allocation2 + $0x228] sm:$0xff] %vm151, 0.0
  %4904 = vst.msk [vmem:[#allocation2 + $0x230] sm:$0xff] %vm151, 0.0
  %4905 = vst.msk [vmem:[#allocation2 + $0x238] sm:$0x3] %vm4835, 0.0
  %4906 = vst.msk [vmem:[#allocation2 + $0x240] sm:$0xff] %vm151, 0.0
  %4907 = vst.msk [vmem:[#allocation2 + $0x248] sm:$0xff] %vm151, 0.0
  %4908 = vst.msk [vmem:[#allocation2 + $0x250] sm:$0x3] %vm4835, 0.0
  %4909 = vst.msk [vmem:[#allocation2 + $0x258] sm:$0xff] %vm151, 0.0
  %4910 = vst.msk [vmem:[#allocation2 + $0x260] sm:$0xff] %vm151, 0.0
  %4911 = vst.msk [vmem:[#allocation2 + $0x268] sm:$0x3] %vm4835, 0.0
  %4912 = vst.msk [vmem:[#allocation2 + $0x270] sm:$0xff] %vm151, 0.0
  %4913 = vst.msk [vmem:[#allocation2 + $0x278] sm:$0xff] %vm151, 0.0
  %4914 = vst.msk [vmem:[#allocation2 + $0x280] sm:$0x3] %vm4835, 0.0
  %4915 = vst.msk [vmem:[#allocation2 + $0x288] sm:$0xff] %vm151, 0.0
  %4916 = vst.msk [vmem:[#allocation2 + $0x290] sm:$0xff] %vm151, 0.0
  %4917 = vst.msk [vmem:[#allocation2 + $0x298] sm:$0x3] %vm4835, 0.0
  %4918 = vst.msk [vmem:[#allocation2 + $0x2a0] sm:$0xff] %vm151, 0.0
  %4919 = vst.msk [vmem:[#allocation2 + $0x2a8] sm:$0xff] %vm151, 0.0
  %4920 = vst.msk [vmem:[#allocation2 + $0x2b0] sm:$0x3] %vm4835, 0.0
  %4921 = vst.msk [vmem:[#allocation2 + $0x2b8] sm:$0xff] %vm151, 0.0
  %4922 = vst.msk [vmem:[#allocation2 + $0x2c0] sm:$0xff] %vm151, 0.0
  %4923 = vst.msk [vmem:[#allocation2 + $0x2c8] sm:$0x3] %vm4835, 0.0
  %4924 = vst.msk [vmem:[#allocation2 + $0x2d0] sm:$0xff] %vm151, 0.0
  %4925 = vst.msk [vmem:[#allocation2 + $0x2d8] sm:$0xff] %vm151, 0.0
  %4926 = vst.msk [vmem:[#allocation2 + $0x2e0] sm:$0x3] %vm4835, 0.0
  %4927 = vst.msk [vmem:[#allocation2 + $0x2e8] sm:$0xff] %vm151, 0.0
  %4928 = vst.msk [vmem:[#allocation2 + $0x2f0] sm:$0xff] %vm151, 0.0
  %4929 = vst.msk [vmem:[#allocation2 + $0x2f8] sm:$0x3] %vm4835, 0.0
  %4930 = vst.msk [vmem:[#allocation2 + $0x300] sm:$0xff] %vm151, 0.0
  %4931 = vst.msk [vmem:[#allocation2 + $0x308] sm:$0xff] %vm151, 0.0
  %4932 = vst.msk [vmem:[#allocation2 + $0x310] sm:$0x3] %vm4835, 0.0
  %4933 = vst.msk [vmem:[#allocation2 + $0x318] sm:$0xff] %vm151, 0.0
  %4934 = vst.msk [vmem:[#allocation2 + $0x320] sm:$0xff] %vm151, 0.0
  %4935 = vst.msk [vmem:[#allocation2 + $0x328] sm:$0x3] %vm4835, 0.0
  %4936 = vst.msk [vmem:[#allocation2 + $0x330] sm:$0xff] %vm151, 0.0
  %4937 = vst.msk [vmem:[#allocation2 + $0x338] sm:$0xff] %vm151, 0.0
  %4938 = vst.msk [vmem:[#allocation2 + $0x340] sm:$0x3] %vm4835, 0.0
  %4939 = vst.msk [vmem:[#allocation2 + $0x348] sm:$0xff] %vm151, 0.0
  %4940 = vst.msk [vmem:[#allocation2 + $0x350] sm:$0xff] %vm151, 0.0
  %4941 = vst.msk [vmem:[#allocation2 + $0x358] sm:$0x3] %vm4835, 0.0
  %s4942 = scalar_lea.vmem [#allocation2], 24
  %4943 = vst.msk [vmem:[%s4942 + $0x1] sm:$0xff] %vm151, %v4769
  %4944 = vst.msk [vmem:[%s4942 + $0x9] sm:$0xff] %vm151, %v4770
  %4945 = vst.msk [vmem:[%s4942 + $0x19] sm:$0xff] %vm151, %v4771
  %4946 = vst.msk [vmem:[%s4942 + $0x21] sm:$0xff] %vm151, %v4772
  %4947 = vst.msk [vmem:[%s4942 + $0x31] sm:$0xff] %vm151, %v4773
  %4948 = vst.msk [vmem:[%s4942 + $0x39] sm:$0xff] %vm151, %v4774
  %4949 = vst.msk [vmem:[%s4942 + $0x49] sm:$0xff] %vm151, %v4775
  %4950 = vst.msk [vmem:[%s4942 + $0x51] sm:$0xff] %vm151, %v4776
  %4951 = vst.msk [vmem:[%s4942 + $0x61] sm:$0xff] %vm151, %v4777
  %4952 = vst.msk [vmem:[%s4942 + $0x69] sm:$0xff] %vm151, %v4778
  %4953 = vst.msk [vmem:[%s4942 + $0x79] sm:$0xff] %vm151, %v4779
  %4954 = vst.msk [vmem:[%s4942 + $0x81] sm:$0xff] %vm151, %v4780
  %4955 = vst.msk [vmem:[%s4942 + $0x91] sm:$0xff] %vm151, %v4781
  %4956 = vst.msk [vmem:[%s4942 + $0x99] sm:$0xff] %vm151, %v4782
  %4957 = vst.msk [vmem:[%s4942 + $0xa9] sm:$0xff] %vm151, %v4783
  %4958 = vst.msk [vmem:[%s4942 + $0xb1] sm:$0xff] %vm151, %v4784
  %4959 = vst.msk [vmem:[%s4942 + $0xc1] sm:$0xff] %vm151, %v4785
  %4960 = vst.msk [vmem:[%s4942 + $0xc9] sm:$0xff] %vm151, %v4786
  %4961 = vst.msk [vmem:[%s4942 + $0xd9] sm:$0xff] %vm151, %v4787
  %4962 = vst.msk [vmem:[%s4942 + $0xe1] sm:$0xff] %vm151, %v4788
  %4963 = vst.msk [vmem:[%s4942 + $0xf1] sm:$0xff] %vm151, %v4789
  %4964 = vst.msk [vmem:[%s4942 + $0xf9] sm:$0xff] %vm151, %v4790
  %4965 = vst.msk [vmem:[%s4942 + $0x109] sm:$0xff] %vm151, %v4791
  %4966 = vst.msk [vmem:[%s4942 + $0x111] sm:$0xff] %vm151, %v4792
  %4967 = vst.msk [vmem:[%s4942 + $0x121] sm:$0xff] %vm151, %v4793
  %4968 = vst.msk [vmem:[%s4942 + $0x129] sm:$0xff] %vm151, %v4794
  %4969 = vst.msk [vmem:[%s4942 + $0x139] sm:$0xff] %vm151, %v4795
  %4970 = vst.msk [vmem:[%s4942 + $0x141] sm:$0xff] %vm151, %v4796
  %4971 = vst.msk [vmem:[%s4942 + $0x151] sm:$0xff] %vm151, %v4797
  %4972 = vst.msk [vmem:[%s4942 + $0x159] sm:$0xff] %vm151, %v4798
  %4973 = vst.msk [vmem:[%s4942 + $0x169] sm:$0xff] %vm151, %v4799
  %4974 = vst.msk [vmem:[%s4942 + $0x171] sm:$0xff] %vm151, %v4800
  %4975 = vst.msk [vmem:[%s4942 + $0x1b1] sm:$0xff] %vm151, %v4801
  %4976 = vst.msk [vmem:[%s4942 + $0x1b9] sm:$0xff] %vm151, %v4802
  %4977 = vst.msk [vmem:[%s4942 + $0x1c9] sm:$0xff] %vm151, %v4803
  %4978 = vst.msk [vmem:[%s4942 + $0x1d1] sm:$0xff] %vm151, %v4804
  %4979 = vst.msk [vmem:[%s4942 + $0x1e1] sm:$0xff] %vm151, %v4805
  %4980 = vst.msk [vmem:[%s4942 + $0x1e9] sm:$0xff] %vm151, %v4806
  %4981 = vst.msk [vmem:[%s4942 + $0x1f9] sm:$0xff] %vm151, %v4807
  %4982 = vst.msk [vmem:[%s4942 + $0x201] sm:$0xff] %vm151, %v4808
  %4983 = vst.msk [vmem:[%s4942 + $0x211] sm:$0xff] %vm151, %v4809
  %4984 = vst.msk [vmem:[%s4942 + $0x219] sm:$0xff] %vm151, %v4810
  %4985 = vst.msk [vmem:[%s4942 + $0x229] sm:$0xff] %vm151, %v4811
  %4986 = vst.msk [vmem:[%s4942 + $0x231] sm:$0xff] %vm151, %v4812
  %4987 = vst.msk [vmem:[%s4942 + $0x241] sm:$0xff] %vm151, %v4813
  %4988 = vst.msk [vmem:[%s4942 + $0x249] sm:$0xff] %vm151, %v4814
  %4989 = vst.msk [vmem:[%s4942 + $0x259] sm:$0xff] %vm151, %v4815
  %4990 = vst.msk [vmem:[%s4942 + $0x261] sm:$0xff] %vm151, %v4816
  %4991 = vst.msk [vmem:[%s4942 + $0x271] sm:$0xff] %vm151, %v4817
  %4992 = vst.msk [vmem:[%s4942 + $0x279] sm:$0xff] %vm151, %v4818
  %4993 = vst.msk [vmem:[%s4942 + $0x289] sm:$0xff] %vm151, %v4819
  %4994 = vst.msk [vmem:[%s4942 + $0x291] sm:$0xff] %vm151, %v4820
  %4995 = vst.msk [vmem:[%s4942 + $0x2a1] sm:$0xff] %vm151, %v4821
  %4996 = vst.msk [vmem:[%s4942 + $0x2a9] sm:$0xff] %vm151, %v4822
  %4997 = vst.msk [vmem:[%s4942 + $0x2b9] sm:$0xff] %vm151, %v4823
  %4998 = vst.msk [vmem:[%s4942 + $0x2c1] sm:$0xff] %vm151, %v4824
  %4999 = vst.msk [vmem:[%s4942 + $0x2d1] sm:$0xff] %vm151, %v4825
  %5000 = vst.msk [vmem:[%s4942 + $0x2d9] sm:$0xff] %vm151, %v4826
  %5001 = vst.msk [vmem:[%s4942 + $0x2e9] sm:$0xff] %vm151, %v4827
  %5002 = vst.msk [vmem:[%s4942 + $0x2f1] sm:$0xff] %vm151, %v4828
  %5003 = vst.msk [vmem:[%s4942 + $0x301] sm:$0xff] %vm151, %v4829
  %5004 = vst.msk [vmem:[%s4942 + $0x309] sm:$0xff] %vm151, %v4830
  %5005 = vst.msk [vmem:[%s4942 + $0x319] sm:$0xff] %vm151, %v4831
  %5006 = vst.msk [vmem:[%s4942 + $0x321] sm:$0xff] %vm151, %v4832
  %v5007 = vld [vmem:[#allocation2] sm:$0xff]
  %v5008 = vld [vmem:[#allocation2 + $0x8] sm:$0xff]
  %v5009 = vld [vmem:[#allocation2 + $0x18] sm:$0xff]
  %v5010 = vld [vmem:[#allocation2 + $0x20] sm:$0xff]
  %v5011 = vld [vmem:[#allocation2 + $0x30] sm:$0xff]
  %v5012 = vld [vmem:[#allocation2 + $0x38] sm:$0xff]
  %v5013 = vld [vmem:[#allocation2 + $0x48] sm:$0xff]
  %v5014 = vld [vmem:[#allocation2 + $0x50] sm:$0xff]
  %v5015 = vld [vmem:[#allocation2 + $0x60] sm:$0xff]
  %v5016 = vld [vmem:[#allocation2 + $0x68] sm:$0xff]
  %v5017 = vld [vmem:[#allocation2 + $0x78] sm:$0xff]
  %v5018 = vld [vmem:[#allocation2 + $0x80] sm:$0xff]
  %v5019 = vld [vmem:[#allocation2 + $0x90] sm:$0xff]
  %v5020 = vld [vmem:[#allocation2 + $0x98] sm:$0xff]
  %v5021 = vld [vmem:[#allocation2 + $0xa8] sm:$0xff]
  %v5022 = vld [vmem:[#allocation2 + $0xb0] sm:$0xff]
  %v5023 = vld [vmem:[#allocation2 + $0xc0] sm:$0xff]
  %v5024 = vld [vmem:[#allocation2 + $0xc8] sm:$0xff]
  %v5025 = vld [vmem:[#allocation2 + $0xd8] sm:$0xff]
  %v5026 = vld [vmem:[#allocation2 + $0xe0] sm:$0xff]
  %v5027 = vld [vmem:[#allocation2 + $0xf0] sm:$0xff]
  %v5028 = vld [vmem:[#allocation2 + $0xf8] sm:$0xff]
  %v5029 = vld [vmem:[#allocation2 + $0x108] sm:$0xff]
  %v5030 = vld [vmem:[#allocation2 + $0x110] sm:$0xff]
  %v5031 = vld [vmem:[#allocation2 + $0x120] sm:$0xff]
  %v5032 = vld [vmem:[#allocation2 + $0x128] sm:$0xff]
  %v5033 = vld [vmem:[#allocation2 + $0x138] sm:$0xff]
  %v5034 = vld [vmem:[#allocation2 + $0x140] sm:$0xff]
  %v5035 = vld [vmem:[#allocation2 + $0x150] sm:$0xff]
  %v5036 = vld [vmem:[#allocation2 + $0x158] sm:$0xff]
  %v5037 = vld [vmem:[#allocation2 + $0x168] sm:$0xff]
  %v5038 = vld [vmem:[#allocation2 + $0x170] sm:$0xff]
  %v5039 = vld [vmem:[#allocation2 + $0x1b0] sm:$0xff]
  %v5040 = vld [vmem:[#allocation2 + $0x1b8] sm:$0xff]
  %v5041 = vld [vmem:[#allocation2 + $0x1c8] sm:$0xff]
  %v5042 = vld [vmem:[#allocation2 + $0x1d0] sm:$0xff]
  %v5043 = vld [vmem:[#allocation2 + $0x1e0] sm:$0xff]
  %v5044 = vld [vmem:[#allocation2 + $0x1e8] sm:$0xff]
  %v5045 = vld [vmem:[#allocation2 + $0x1f8] sm:$0xff]
  %v5046 = vld [vmem:[#allocation2 + $0x200] sm:$0xff]
  %v5047 = vld [vmem:[#allocation2 + $0x210] sm:$0xff]
  %v5048 = vld [vmem:[#allocation2 + $0x218] sm:$0xff]
  %v5049 = vld [vmem:[#allocation2 + $0x228] sm:$0xff]
  %v5050 = vld [vmem:[#allocation2 + $0x230] sm:$0xff]
  %v5051 = vld [vmem:[#allocation2 + $0x240] sm:$0xff]
  %v5052 = vld [vmem:[#allocation2 + $0x248] sm:$0xff]
  %v5053 = vld [vmem:[#allocation2 + $0x258] sm:$0xff]
  %v5054 = vld [vmem:[#allocation2 + $0x260] sm:$0xff]
  %v5055 = vld [vmem:[#allocation2 + $0x270] sm:$0xff]
  %v5056 = vld [vmem:[#allocation2 + $0x278] sm:$0xff]
  %v5057 = vld [vmem:[#allocation2 + $0x288] sm:$0xff]
  %v5058 = vld [vmem:[#allocation2 + $0x290] sm:$0xff]
  %v5059 = vld [vmem:[#allocation2 + $0x2a0] sm:$0xff]
  %v5060 = vld [vmem:[#allocation2 + $0x2a8] sm:$0xff]
  %v5061 = vld [vmem:[#allocation2 + $0x2b8] sm:$0xff]
  %v5062 = vld [vmem:[#allocation2 + $0x2c0] sm:$0xff]
  %v5063 = vld [vmem:[#allocation2 + $0x2d0] sm:$0xff]
  %v5064 = vld [vmem:[#allocation2 + $0x2d8] sm:$0xff]
  %v5065 = vld [vmem:[#allocation2 + $0x2e8] sm:$0xff]
  %v5066 = vld [vmem:[#allocation2 + $0x2f0] sm:$0xff]
  %v5067 = vld [vmem:[#allocation2 + $0x300] sm:$0xff]
  %v5068 = vld [vmem:[#allocation2 + $0x308] sm:$0xff]
  %v5069 = vld [vmem:[#allocation2 + $0x318] sm:$0xff]
  %v5070 = vld [vmem:[#allocation2 + $0x320] sm:$0xff]
  %v5071 = vld [vmem:[%s3] sm:$0xf]
  %v5072 = vld [vmem:[#allocation2 + $0x1] sm:$0xff]
  %v5073 = vld [vmem:[#allocation2 + $0x9] sm:$0xff]
  %v5074 = vld [vmem:[#allocation2 + $0x19] sm:$0xff]
  %v5075 = vld [vmem:[#allocation2 + $0x21] sm:$0xff]
  %v5076 = vld [vmem:[#allocation2 + $0x31] sm:$0xff]
  %v5077 = vld [vmem:[#allocation2 + $0x39] sm:$0xff]
  %v5078 = vld [vmem:[#allocation2 + $0x49] sm:$0xff]
  %v5079 = vld [vmem:[#allocation2 + $0x51] sm:$0xff]
  %v5080 = vld [vmem:[#allocation2 + $0x61] sm:$0xff]
  %v5081 = vld [vmem:[#allocation2 + $0x69] sm:$0xff]
  %v5082 = vld [vmem:[#allocation2 + $0x79] sm:$0xff]
  %v5083 = vld [vmem:[#allocation2 + $0x81] sm:$0xff]
  %v5084 = vld [vmem:[#allocation2 + $0x91] sm:$0xff]
  %v5085 = vld [vmem:[#allocation2 + $0x99] sm:$0xff]
  %v5086 = vld [vmem:[#allocation2 + $0xa9] sm:$0xff]
  %v5087 = vld [vmem:[#allocation2 + $0xb1] sm:$0xff]
  %v5088 = vld [vmem:[#allocation2 + $0xc1] sm:$0xff]
  %v5089 = vld [vmem:[#allocation2 + $0xc9] sm:$0xff]
  %v5090 = vld [vmem:[#allocation2 + $0xd9] sm:$0xff]
  %v5091 = vld [vmem:[#allocation2 + $0xe1] sm:$0xff]
  %v5092 = vld [vmem:[#allocation2 + $0xf1] sm:$0xff]
  %v5093 = vld [vmem:[#allocation2 + $0xf9] sm:$0xff]
  %v5094 = vld [vmem:[#allocation2 + $0x109] sm:$0xff]
  %v5095 = vld [vmem:[#allocation2 + $0x111] sm:$0xff]
  %v5096 = vld [vmem:[#allocation2 + $0x121] sm:$0xff]
  %v5097 = vld [vmem:[#allocation2 + $0x129] sm:$0xff]
  %v5098 = vld [vmem:[#allocation2 + $0x139] sm:$0xff]
  %v5099 = vld [vmem:[#allocation2 + $0x141] sm:$0xff]
  %v5100 = vld [vmem:[#allocation2 + $0x151] sm:$0xff]
  %v5101 = vld [vmem:[#allocation2 + $0x159] sm:$0xff]
  %v5102 = vld [vmem:[#allocation2 + $0x169] sm:$0xff]
  %v5103 = vld [vmem:[#allocation2 + $0x171] sm:$0xff]
  %v5104 = vld [vmem:[#allocation2 + $0x1b1] sm:$0xff]
  %v5105 = vld [vmem:[#allocation2 + $0x1b9] sm:$0xff]
  %v5106 = vld [vmem:[#allocation2 + $0x1c9] sm:$0xff]
  %v5107 = vld [vmem:[#allocation2 + $0x1d1] sm:$0xff]
  %v5108 = vld [vmem:[#allocation2 + $0x1e1] sm:$0xff]
  %v5109 = vld [vmem:[#allocation2 + $0x1e9] sm:$0xff]
  %v5110 = vld [vmem:[#allocation2 + $0x1f9] sm:$0xff]
  %v5111 = vld [vmem:[#allocation2 + $0x201] sm:$0xff]
  %v5112 = vld [vmem:[#allocation2 + $0x211] sm:$0xff]
  %v5113 = vld [vmem:[#allocation2 + $0x219] sm:$0xff]
  %v5114 = vld [vmem:[#allocation2 + $0x229] sm:$0xff]
  %v5115 = vld [vmem:[#allocation2 + $0x231] sm:$0xff]
  %v5116 = vld [vmem:[#allocation2 + $0x241] sm:$0xff]
  %v5117 = vld [vmem:[#allocation2 + $0x249] sm:$0xff]
  %v5118 = vld [vmem:[#allocation2 + $0x259] sm:$0xff]
  %v5119 = vld [vmem:[#allocation2 + $0x261] sm:$0xff]
  %v5120 = vld [vmem:[#allocation2 + $0x271] sm:$0xff]
  %v5121 = vld [vmem:[#allocation2 + $0x279] sm:$0xff]
  %v5122 = vld [vmem:[#allocation2 + $0x289] sm:$0xff]
  %v5123 = vld [vmem:[#allocation2 + $0x291] sm:$0xff]
  %v5124 = vld [vmem:[#allocation2 + $0x2a1] sm:$0xff]
  %v5125 = vld [vmem:[#allocation2 + $0x2a9] sm:$0xff]
  %v5126 = vld [vmem:[#allocation2 + $0x2b9] sm:$0xff]
  %v5127 = vld [vmem:[#allocation2 + $0x2c1] sm:$0xff]
  %v5128 = vld [vmem:[#allocation2 + $0x2d1] sm:$0xff]
  %v5129 = vld [vmem:[#allocation2 + $0x2d9] sm:$0xff]
  %v5130 = vld [vmem:[#allocation2 + $0x2e9] sm:$0xff]
  %v5131 = vld [vmem:[#allocation2 + $0x2f1] sm:$0xff]
  %v5132 = vld [vmem:[#allocation2 + $0x301] sm:$0xff]
  %v5133 = vld [vmem:[#allocation2 + $0x309] sm:$0xff]
  %v5134 = vld [vmem:[#allocation2 + $0x319] sm:$0xff]
  %v5135 = vld [vmem:[#allocation2 + $0x321] sm:$0xff]
  %s5136 = scalar_lea.vmem %s3, 4
  %v5137 = vld [vmem:[%s5136] sm:$0xf]
  %v5139 = vsel %vm151, %v5072, 0
  %v5142 = vsel %vm151, %v5073, 0
  %v5145 = vsel %vm151, %v5074, 0
  %v5148 = vsel %vm151, %v5075, 0
  %v5151 = vsel %vm151, %v5076, 0
  %v5154 = vsel %vm151, %v5077, 0
  %v5157 = vsel %vm151, %v5078, 0
  %v5160 = vsel %vm151, %v5079, 0
  %v5163 = vsel %vm151, %v5080, 0
  %v5166 = vsel %vm151, %v5081, 0
  %v5169 = vsel %vm151, %v5082, 0
  %v5172 = vsel %vm151, %v5083, 0
  %v5175 = vsel %vm151, %v5084, 0
  %v5178 = vsel %vm151, %v5085, 0
  %v5181 = vsel %vm151, %v5086, 0
  %v5184 = vsel %vm151, %v5087, 0
  %v5187 = vsel %vm151, %v5088, 0
  %v5190 = vsel %vm151, %v5089, 0
  %v5193 = vsel %vm151, %v5090, 0
  %v5196 = vsel %vm151, %v5091, 0
  %v5199 = vsel %vm151, %v5092, 0
  %v5202 = vsel %vm151, %v5093, 0
  %v5205 = vsel %vm151, %v5094, 0
  %v5208 = vsel %vm151, %v5095, 0
  %v5211 = vsel %vm151, %v5096, 0
  %v5214 = vsel %vm151, %v5097, 0
  %v5217 = vsel %vm151, %v5098, 0
  %v5220 = vsel %vm151, %v5099, 0
  %v5223 = vsel %vm151, %v5100, 0
  %v5226 = vsel %vm151, %v5101, 0
  %v5229 = vsel %vm151, %v5102, 0
  %v5232 = vsel %vm151, %v5103, 0
  %v5235 = vsel %vm151, %v5104, 0
  %v5238 = vsel %vm151, %v5105, 0
  %v5241 = vsel %vm151, %v5106, 0
  %v5244 = vsel %vm151, %v5107, 0
  %v5247 = vsel %vm151, %v5108, 0
  %v5250 = vsel %vm151, %v5109, 0
  %v5253 = vsel %vm151, %v5110, 0
  %v5256 = vsel %vm151, %v5111, 0
  %v5259 = vsel %vm151, %v5112, 0
  %v5262 = vsel %vm151, %v5113, 0
  %v5265 = vsel %vm151, %v5114, 0
  %v5268 = vsel %vm151, %v5115, 0
  %v5271 = vsel %vm151, %v5116, 0
  %v5274 = vsel %vm151, %v5117, 0
  %v5277 = vsel %vm151, %v5118, 0
  %v5280 = vsel %vm151, %v5119, 0
  %v5283 = vsel %vm151, %v5120, 0
  %v5286 = vsel %vm151, %v5121, 0
  %v5289 = vsel %vm151, %v5122, 0
  %v5292 = vsel %vm151, %v5123, 0
  %v5295 = vsel %vm151, %v5124, 0
  %v5298 = vsel %vm151, %v5125, 0
  %v5301 = vsel %vm151, %v5126, 0
  %v5304 = vsel %vm151, %v5127, 0
  %v5307 = vsel %vm151, %v5128, 0
  %v5310 = vsel %vm151, %v5129, 0
  %v5313 = vsel %vm151, %v5130, 0
  %v5316 = vsel %vm151, %v5131, 0
  %v5319 = vsel %vm151, %v5132, 0
  %v5322 = vsel %vm151, %v5133, 0
  %v5325 = vsel %vm151, %v5134, 0
  %v5328 = vsel %vm151, %v5135, 0
  %v5331 = vsel %vm344, %v5137, 0
  %5333 = vmatpush.msra.mxu0 0.0
  %5334 = vmatpush.msra.mxu0 0.0
  %5335 = vmatpush.msra.mxu0 0.0
  %5336 = vmatpush.msra.mxu0 0.0
  %5337 = vmatpush.msra.mxu0 0.0
  %5338 = vmatpush.msra.mxu0 0.0
  %5339 = vmatpush.msra.mxu0 0.0
  %5340 = vmatpush.msra.mxu0 0.0
  %5341 = vmatpush.msra.mxu0 0.0
  %5342 = vmatpush.msra.mxu0 0.0
  %5343 = vmatpush.msra.mxu0 0.0
  %5344 = vmatpush.msra.mxu0 0.0
  %5345 = vmatpush.msra.mxu0 0.0
  %5346 = vmatpush.msra.mxu0 0.0
  %5347 = vmatpush.msra.mxu0 0.0
  %5348 = vmatpush.msra.mxu0 %v5331
  %5349 = vmatmul.f32.gmra.mxu0 %v5139
  %v5350 = vpop.f32.mrf.mxu0
  %v5351 = vadd.f32 0.0, %v5350
  %5352 = vmatmul.f32.gmra.mxu0 %v5142
  %v5353 = vpop.f32.mrf.mxu0
  %v5354 = vadd.f32 0.0, %v5353
  %5355 = vmatmul.f32.gmra.mxu0 %v5145
  %v5356 = vpop.f32.mrf.mxu0
  %v5357 = vadd.f32 0.0, %v5356
  %5358 = vmatmul.f32.gmra.mxu0 %v5148
  %v5359 = vpop.f32.mrf.mxu0
  %v5360 = vadd.f32 0.0, %v5359
  %5361 = vmatmul.f32.gmra.mxu0 %v5151
  %v5362 = vpop.f32.mrf.mxu0
  %v5363 = vadd.f32 0.0, %v5362
  %5364 = vmatmul.f32.gmra.mxu0 %v5154
  %v5365 = vpop.f32.mrf.mxu0
  %v5366 = vadd.f32 0.0, %v5365
  %5367 = vmatmul.f32.gmra.mxu0 %v5157
  %v5368 = vpop.f32.mrf.mxu0
  %v5369 = vadd.f32 0.0, %v5368
  %5370 = vmatmul.f32.gmra.mxu0 %v5160
  %v5371 = vpop.f32.mrf.mxu0
  %v5372 = vadd.f32 0.0, %v5371
  %5373 = vmatmul.f32.gmra.mxu0 %v5163
  %v5374 = vpop.f32.mrf.mxu0
  %v5375 = vadd.f32 0.0, %v5374
  %5376 = vmatmul.f32.gmra.mxu0 %v5166
  %v5377 = vpop.f32.mrf.mxu0
  %v5378 = vadd.f32 0.0, %v5377
  %5379 = vmatmul.f32.gmra.mxu0 %v5169
  %v5380 = vpop.f32.mrf.mxu0
  %v5381 = vadd.f32 0.0, %v5380
  %5382 = vmatmul.f32.gmra.mxu0 %v5172
  %v5383 = vpop.f32.mrf.mxu0
  %v5384 = vadd.f32 0.0, %v5383
  %5385 = vmatmul.f32.gmra.mxu0 %v5175
  %v5386 = vpop.f32.mrf.mxu0
  %v5387 = vadd.f32 0.0, %v5386
  %5388 = vmatmul.f32.gmra.mxu0 %v5178
  %v5389 = vpop.f32.mrf.mxu0
  %v5390 = vadd.f32 0.0, %v5389
  %5391 = vmatmul.f32.gmra.mxu0 %v5181
  %v5392 = vpop.f32.mrf.mxu0
  %v5393 = vadd.f32 0.0, %v5392
  %5394 = vmatmul.f32.gmra.mxu0 %v5184
  %v5395 = vpop.f32.mrf.mxu0
  %v5396 = vadd.f32 0.0, %v5395
  %5397 = vmatmul.f32.gmra.mxu0 %v5187
  %v5398 = vpop.f32.mrf.mxu0
  %v5399 = vadd.f32 0.0, %v5398
  %5400 = vmatmul.f32.gmra.mxu0 %v5190
  %v5401 = vpop.f32.mrf.mxu0
  %v5402 = vadd.f32 0.0, %v5401
  %5403 = vmatmul.f32.gmra.mxu0 %v5193
  %v5404 = vpop.f32.mrf.mxu0
  %v5405 = vadd.f32 0.0, %v5404
  %5406 = vmatmul.f32.gmra.mxu0 %v5196
  %v5407 = vpop.f32.mrf.mxu0
  %v5408 = vadd.f32 0.0, %v5407
  %5409 = vmatmul.f32.gmra.mxu0 %v5199
  %v5410 = vpop.f32.mrf.mxu0
  %v5411 = vadd.f32 0.0, %v5410
  %5412 = vmatmul.f32.gmra.mxu0 %v5202
  %v5413 = vpop.f32.mrf.mxu0
  %v5414 = vadd.f32 0.0, %v5413
  %5415 = vmatmul.f32.gmra.mxu0 %v5205
  %v5416 = vpop.f32.mrf.mxu0
  %v5417 = vadd.f32 0.0, %v5416
  %5418 = vmatmul.f32.gmra.mxu0 %v5208
  %v5419 = vpop.f32.mrf.mxu0
  %v5420 = vadd.f32 0.0, %v5419
  %5421 = vmatmul.f32.gmra.mxu0 %v5211
  %v5422 = vpop.f32.mrf.mxu0
  %v5423 = vadd.f32 0.0, %v5422
  %5424 = vmatmul.f32.gmra.mxu0 %v5214
  %v5425 = vpop.f32.mrf.mxu0
  %v5426 = vadd.f32 0.0, %v5425
  %5427 = vmatmul.f32.gmra.mxu0 %v5217
  %v5428 = vpop.f32.mrf.mxu0
  %v5429 = vadd.f32 0.0, %v5428
  %5430 = vmatmul.f32.gmra.mxu0 %v5220
  %v5431 = vpop.f32.mrf.mxu0
  %v5432 = vadd.f32 0.0, %v5431
  %5433 = vmatmul.f32.gmra.mxu0 %v5223
  %v5434 = vpop.f32.mrf.mxu0
  %v5435 = vadd.f32 0.0, %v5434
  %5436 = vmatmul.f32.gmra.mxu0 %v5226
  %v5437 = vpop.f32.mrf.mxu0
  %v5438 = vadd.f32 0.0, %v5437
  %5439 = vmatmul.f32.gmra.mxu0 %v5229
  %v5440 = vpop.f32.mrf.mxu0
  %v5441 = vadd.f32 0.0, %v5440
  %5442 = vmatmul.f32.gmra.mxu0 %v5232
  %v5443 = vpop.f32.mrf.mxu0
  %v5444 = vadd.f32 0.0, %v5443
  %5445 = vmatmul.f32.gmra.mxu0 %v5235
  %v5446 = vpop.f32.mrf.mxu0
  %v5447 = vadd.f32 0.0, %v5446
  %5448 = vmatmul.f32.gmra.mxu0 %v5238
  %v5449 = vpop.f32.mrf.mxu0
  %v5450 = vadd.f32 0.0, %v5449
  %5451 = vmatmul.f32.gmra.mxu0 %v5241
  %v5452 = vpop.f32.mrf.mxu0
  %v5453 = vadd.f32 0.0, %v5452
  %5454 = vmatmul.f32.gmra.mxu0 %v5244
  %v5455 = vpop.f32.mrf.mxu0
  %v5456 = vadd.f32 0.0, %v5455
  %5457 = vmatmul.f32.gmra.mxu0 %v5247
  %v5458 = vpop.f32.mrf.mxu0
  %v5459 = vadd.f32 0.0, %v5458
  %5460 = vmatmul.f32.gmra.mxu0 %v5250
  %v5461 = vpop.f32.mrf.mxu0
  %v5462 = vadd.f32 0.0, %v5461
  %5463 = vmatmul.f32.gmra.mxu0 %v5253
  %v5464 = vpop.f32.mrf.mxu0
  %v5465 = vadd.f32 0.0, %v5464
  %5466 = vmatmul.f32.gmra.mxu0 %v5256
  %v5467 = vpop.f32.mrf.mxu0
  %v5468 = vadd.f32 0.0, %v5467
  %5469 = vmatmul.f32.gmra.mxu0 %v5259
  %v5470 = vpop.f32.mrf.mxu0
  %v5471 = vadd.f32 0.0, %v5470
  %5472 = vmatmul.f32.gmra.mxu0 %v5262
  %v5473 = vpop.f32.mrf.mxu0
  %v5474 = vadd.f32 0.0, %v5473
  %5475 = vmatmul.f32.gmra.mxu0 %v5265
  %v5476 = vpop.f32.mrf.mxu0
  %v5477 = vadd.f32 0.0, %v5476
  %5478 = vmatmul.f32.gmra.mxu0 %v5268
  %v5479 = vpop.f32.mrf.mxu0
  %v5480 = vadd.f32 0.0, %v5479
  %5481 = vmatmul.f32.gmra.mxu0 %v5271
  %v5482 = vpop.f32.mrf.mxu0
  %v5483 = vadd.f32 0.0, %v5482
  %5484 = vmatmul.f32.gmra.mxu0 %v5274
  %v5485 = vpop.f32.mrf.mxu0
  %v5486 = vadd.f32 0.0, %v5485
  %5487 = vmatmul.f32.gmra.mxu0 %v5277
  %v5488 = vpop.f32.mrf.mxu0
  %v5489 = vadd.f32 0.0, %v5488
  %5490 = vmatmul.f32.gmra.mxu0 %v5280
  %v5491 = vpop.f32.mrf.mxu0
  %v5492 = vadd.f32 0.0, %v5491
  %5493 = vmatmul.f32.gmra.mxu0 %v5283
  %v5494 = vpop.f32.mrf.mxu0
  %v5495 = vadd.f32 0.0, %v5494
  %5496 = vmatmul.f32.gmra.mxu0 %v5286
  %v5497 = vpop.f32.mrf.mxu0
  %v5498 = vadd.f32 0.0, %v5497
  %5499 = vmatmul.f32.gmra.mxu0 %v5289
  %v5500 = vpop.f32.mrf.mxu0
  %v5501 = vadd.f32 0.0, %v5500
  %5502 = vmatmul.f32.gmra.mxu0 %v5292
  %v5503 = vpop.f32.mrf.mxu0
  %v5504 = vadd.f32 0.0, %v5503
  %5505 = vmatmul.f32.gmra.mxu0 %v5295
  %v5506 = vpop.f32.mrf.mxu0
  %v5507 = vadd.f32 0.0, %v5506
  %5508 = vmatmul.f32.gmra.mxu0 %v5298
  %v5509 = vpop.f32.mrf.mxu0
  %v5510 = vadd.f32 0.0, %v5509
  %5511 = vmatmul.f32.gmra.mxu0 %v5301
  %v5512 = vpop.f32.mrf.mxu0
  %v5513 = vadd.f32 0.0, %v5512
  %5514 = vmatmul.f32.gmra.mxu0 %v5304
  %v5515 = vpop.f32.mrf.mxu0
  %v5516 = vadd.f32 0.0, %v5515
  %5517 = vmatmul.f32.gmra.mxu0 %v5307
  %v5518 = vpop.f32.mrf.mxu0
  %v5519 = vadd.f32 0.0, %v5518
  %5520 = vmatmul.f32.gmra.mxu0 %v5310
  %v5521 = vpop.f32.mrf.mxu0
  %v5522 = vadd.f32 0.0, %v5521
  %5523 = vmatmul.f32.gmra.mxu0 %v5313
  %v5524 = vpop.f32.mrf.mxu0
  %v5525 = vadd.f32 0.0, %v5524
  %5526 = vmatmul.f32.gmra.mxu0 %v5316
  %v5527 = vpop.f32.mrf.mxu0
  %v5528 = vadd.f32 0.0, %v5527
  %5529 = vmatmul.f32.gmra.mxu0 %v5319
  %v5530 = vpop.f32.mrf.mxu0
  %v5531 = vadd.f32 0.0, %v5530
  %5532 = vmatmul.f32.gmra.mxu0 %v5322
  %v5533 = vpop.f32.mrf.mxu0
  %v5534 = vadd.f32 0.0, %v5533
  %5535 = vmatmul.f32.gmra.mxu0 %v5325
  %v5536 = vpop.f32.mrf.mxu0
  %v5537 = vadd.f32 0.0, %v5536
  %5538 = vmatmul.f32.gmra.mxu0 %v5328
  %v5539 = vpop.f32.mrf.mxu0
  %v5540 = vadd.f32 0.0, %v5539
  %5541 = vdwg.mxu0
  %v5543 = vsel %vm151, %v5007, 0
  %v5546 = vsel %vm151, %v5008, 0
  %v5549 = vsel %vm151, %v5009, 0
  %v5552 = vsel %vm151, %v5010, 0
  %v5555 = vsel %vm151, %v5011, 0
  %v5558 = vsel %vm151, %v5012, 0
  %v5561 = vsel %vm151, %v5013, 0
  %v5564 = vsel %vm151, %v5014, 0
  %v5567 = vsel %vm151, %v5015, 0
  %v5570 = vsel %vm151, %v5016, 0
  %v5573 = vsel %vm151, %v5017, 0
  %v5576 = vsel %vm151, %v5018, 0
  %v5579 = vsel %vm151, %v5019, 0
  %v5582 = vsel %vm151, %v5020, 0
  %v5585 = vsel %vm151, %v5021, 0
  %v5588 = vsel %vm151, %v5022, 0
  %v5591 = vsel %vm151, %v5023, 0
  %v5594 = vsel %vm151, %v5024, 0
  %v5597 = vsel %vm151, %v5025, 0
  %v5600 = vsel %vm151, %v5026, 0
  %v5603 = vsel %vm151, %v5027, 0
  %v5606 = vsel %vm151, %v5028, 0
  %v5609 = vsel %vm151, %v5029, 0
  %v5612 = vsel %vm151, %v5030, 0
  %v5615 = vsel %vm151, %v5031, 0
  %v5618 = vsel %vm151, %v5032, 0
  %v5621 = vsel %vm151, %v5033, 0
  %v5624 = vsel %vm151, %v5034, 0
  %v5627 = vsel %vm151, %v5035, 0
  %v5630 = vsel %vm151, %v5036, 0
  %v5633 = vsel %vm151, %v5037, 0
  %v5636 = vsel %vm151, %v5038, 0
  %v5639 = vsel %vm151, %v5039, 0
  %v5642 = vsel %vm151, %v5040, 0
  %v5645 = vsel %vm151, %v5041, 0
  %v5648 = vsel %vm151, %v5042, 0
  %v5651 = vsel %vm151, %v5043, 0
  %v5654 = vsel %vm151, %v5044, 0
  %v5657 = vsel %vm151, %v5045, 0
  %v5660 = vsel %vm151, %v5046, 0
  %v5663 = vsel %vm151, %v5047, 0
  %v5666 = vsel %vm151, %v5048, 0
  %v5669 = vsel %vm151, %v5049, 0
  %v5672 = vsel %vm151, %v5050, 0
  %v5675 = vsel %vm151, %v5051, 0
  %v5678 = vsel %vm151, %v5052, 0
  %v5681 = vsel %vm151, %v5053, 0
  %v5684 = vsel %vm151, %v5054, 0
  %v5687 = vsel %vm151, %v5055, 0
  %v5690 = vsel %vm151, %v5056, 0
  %v5693 = vsel %vm151, %v5057, 0
  %v5696 = vsel %vm151, %v5058, 0
  %v5699 = vsel %vm151, %v5059, 0
  %v5702 = vsel %vm151, %v5060, 0
  %v5705 = vsel %vm151, %v5061, 0
  %v5708 = vsel %vm151, %v5062, 0
  %v5711 = vsel %vm151, %v5063, 0
  %v5714 = vsel %vm151, %v5064, 0
  %v5717 = vsel %vm151, %v5065, 0
  %v5720 = vsel %vm151, %v5066, 0
  %v5723 = vsel %vm151, %v5067, 0
  %v5726 = vsel %vm151, %v5068, 0
  %v5729 = vsel %vm151, %v5069, 0
  %v5732 = vsel %vm151, %v5070, 0
  %v5735 = vsel %vm344, %v5071, 0
  %5737 = vmatpush.msra.mxu0 0.0
  %5738 = vmatpush.msra.mxu0 0.0
  %5739 = vmatpush.msra.mxu0 0.0
  %5740 = vmatpush.msra.mxu0 0.0
  %5741 = vmatpush.msra.mxu0 0.0
  %5742 = vmatpush.msra.mxu0 0.0
  %5743 = vmatpush.msra.mxu0 0.0
  %5744 = vmatpush.msra.mxu0 0.0
  %5745 = vmatpush.msra.mxu0 0.0
  %5746 = vmatpush.msra.mxu0 0.0
  %5747 = vmatpush.msra.mxu0 0.0
  %5748 = vmatpush.msra.mxu0 0.0
  %5749 = vmatpush.msra.mxu0 0.0
  %5750 = vmatpush.msra.mxu0 0.0
  %5751 = vmatpush.msra.mxu0 0.0
  %5752 = vmatpush.msra.mxu0 %v5735
  %5753 = vmatmul.f32.gmra.mxu0 %v5543
  %v5754 = vpop.f32.mrf.mxu0
  %v5755 = vadd.f32 %v5351, %v5754
  %5756 = vmatmul.f32.gmra.mxu0 %v5546
  %v5757 = vpop.f32.mrf.mxu0
  %v5758 = vadd.f32 %v5354, %v5757
  %5759 = vmatmul.f32.gmra.mxu0 %v5549
  %v5760 = vpop.f32.mrf.mxu0
  %v5761 = vadd.f32 %v5357, %v5760
  %5762 = vmatmul.f32.gmra.mxu0 %v5552
  %v5763 = vpop.f32.mrf.mxu0
  %v5764 = vadd.f32 %v5360, %v5763
  %5765 = vmatmul.f32.gmra.mxu0 %v5555
  %v5766 = vpop.f32.mrf.mxu0
  %v5767 = vadd.f32 %v5363, %v5766
  %5768 = vmatmul.f32.gmra.mxu0 %v5558
  %v5769 = vpop.f32.mrf.mxu0
  %v5770 = vadd.f32 %v5366, %v5769
  %5771 = vmatmul.f32.gmra.mxu0 %v5561
  %v5772 = vpop.f32.mrf.mxu0
  %v5773 = vadd.f32 %v5369, %v5772
  %5774 = vmatmul.f32.gmra.mxu0 %v5564
  %v5775 = vpop.f32.mrf.mxu0
  %v5776 = vadd.f32 %v5372, %v5775
  %5777 = vmatmul.f32.gmra.mxu0 %v5567
  %v5778 = vpop.f32.mrf.mxu0
  %v5779 = vadd.f32 %v5375, %v5778
  %5780 = vmatmul.f32.gmra.mxu0 %v5570
  %v5781 = vpop.f32.mrf.mxu0
  %v5782 = vadd.f32 %v5378, %v5781
  %5783 = vmatmul.f32.gmra.mxu0 %v5573
  %v5784 = vpop.f32.mrf.mxu0
  %v5785 = vadd.f32 %v5381, %v5784
  %5786 = vmatmul.f32.gmra.mxu0 %v5576
  %v5787 = vpop.f32.mrf.mxu0
  %v5788 = vadd.f32 %v5384, %v5787
  %5789 = vmatmul.f32.gmra.mxu0 %v5579
  %v5790 = vpop.f32.mrf.mxu0
  %v5791 = vadd.f32 %v5387, %v5790
  %5792 = vmatmul.f32.gmra.mxu0 %v5582
  %v5793 = vpop.f32.mrf.mxu0
  %v5794 = vadd.f32 %v5390, %v5793
  %5795 = vmatmul.f32.gmra.mxu0 %v5585
  %v5796 = vpop.f32.mrf.mxu0
  %v5797 = vadd.f32 %v5393, %v5796
  %5798 = vmatmul.f32.gmra.mxu0 %v5588
  %v5799 = vpop.f32.mrf.mxu0
  %v5800 = vadd.f32 %v5396, %v5799
  %5801 = vmatmul.f32.gmra.mxu0 %v5591
  %v5802 = vpop.f32.mrf.mxu0
  %v5803 = vadd.f32 %v5399, %v5802
  %5804 = vmatmul.f32.gmra.mxu0 %v5594
  %v5805 = vpop.f32.mrf.mxu0
  %v5806 = vadd.f32 %v5402, %v5805
  %5807 = vmatmul.f32.gmra.mxu0 %v5597
  %v5808 = vpop.f32.mrf.mxu0
  %v5809 = vadd.f32 %v5405, %v5808
  %5810 = vmatmul.f32.gmra.mxu0 %v5600
  %v5811 = vpop.f32.mrf.mxu0
  %v5812 = vadd.f32 %v5408, %v5811
  %5813 = vmatmul.f32.gmra.mxu0 %v5603
  %v5814 = vpop.f32.mrf.mxu0
  %v5815 = vadd.f32 %v5411, %v5814
  %5816 = vmatmul.f32.gmra.mxu0 %v5606
  %v5817 = vpop.f32.mrf.mxu0
  %v5818 = vadd.f32 %v5414, %v5817
  %5819 = vmatmul.f32.gmra.mxu0 %v5609
  %v5820 = vpop.f32.mrf.mxu0
  %v5821 = vadd.f32 %v5417, %v5820
  %5822 = vmatmul.f32.gmra.mxu0 %v5612
  %v5823 = vpop.f32.mrf.mxu0
  %v5824 = vadd.f32 %v5420, %v5823
  %5825 = vmatmul.f32.gmra.mxu0 %v5615
  %v5826 = vpop.f32.mrf.mxu0
  %v5827 = vadd.f32 %v5423, %v5826
  %5828 = vmatmul.f32.gmra.mxu0 %v5618
  %v5829 = vpop.f32.mrf.mxu0
  %v5830 = vadd.f32 %v5426, %v5829
  %5831 = vmatmul.f32.gmra.mxu0 %v5621
  %v5832 = vpop.f32.mrf.mxu0
  %v5833 = vadd.f32 %v5429, %v5832
  %5834 = vmatmul.f32.gmra.mxu0 %v5624
  %v5835 = vpop.f32.mrf.mxu0
  %v5836 = vadd.f32 %v5432, %v5835
  %5837 = vmatmul.f32.gmra.mxu0 %v5627
  %v5838 = vpop.f32.mrf.mxu0
  %v5839 = vadd.f32 %v5435, %v5838
  %5840 = vmatmul.f32.gmra.mxu0 %v5630
  %v5841 = vpop.f32.mrf.mxu0
  %v5842 = vadd.f32 %v5438, %v5841
  %5843 = vmatmul.f32.gmra.mxu0 %v5633
  %v5844 = vpop.f32.mrf.mxu0
  %v5845 = vadd.f32 %v5441, %v5844
  %5846 = vmatmul.f32.gmra.mxu0 %v5636
  %v5847 = vpop.f32.mrf.mxu0
  %v5848 = vadd.f32 %v5444, %v5847
  %5849 = vmatmul.f32.gmra.mxu0 %v5639
  %v5850 = vpop.f32.mrf.mxu0
  %v5851 = vadd.f32 %v5447, %v5850
  %5852 = vmatmul.f32.gmra.mxu0 %v5642
  %v5853 = vpop.f32.mrf.mxu0
  %v5854 = vadd.f32 %v5450, %v5853
  %5855 = vmatmul.f32.gmra.mxu0 %v5645
  %v5856 = vpop.f32.mrf.mxu0
  %v5857 = vadd.f32 %v5453, %v5856
  %5858 = vmatmul.f32.gmra.mxu0 %v5648
  %v5859 = vpop.f32.mrf.mxu0
  %v5860 = vadd.f32 %v5456, %v5859
  %5861 = vmatmul.f32.gmra.mxu0 %v5651
  %v5862 = vpop.f32.mrf.mxu0
  %v5863 = vadd.f32 %v5459, %v5862
  %5864 = vmatmul.f32.gmra.mxu0 %v5654
  %v5865 = vpop.f32.mrf.mxu0
  %v5866 = vadd.f32 %v5462, %v5865
  %5867 = vmatmul.f32.gmra.mxu0 %v5657
  %v5868 = vpop.f32.mrf.mxu0
  %v5869 = vadd.f32 %v5465, %v5868
  %5870 = vmatmul.f32.gmra.mxu0 %v5660
  %v5871 = vpop.f32.mrf.mxu0
  %v5872 = vadd.f32 %v5468, %v5871
  %5873 = vmatmul.f32.gmra.mxu0 %v5663
  %v5874 = vpop.f32.mrf.mxu0
  %v5875 = vadd.f32 %v5471, %v5874
  %5876 = vmatmul.f32.gmra.mxu0 %v5666
  %v5877 = vpop.f32.mrf.mxu0
  %v5878 = vadd.f32 %v5474, %v5877
  %5879 = vmatmul.f32.gmra.mxu0 %v5669
  %v5880 = vpop.f32.mrf.mxu0
  %v5881 = vadd.f32 %v5477, %v5880
  %5882 = vmatmul.f32.gmra.mxu0 %v5672
  %v5883 = vpop.f32.mrf.mxu0
  %v5884 = vadd.f32 %v5480, %v5883
  %5885 = vmatmul.f32.gmra.mxu0 %v5675
  %v5886 = vpop.f32.mrf.mxu0
  %v5887 = vadd.f32 %v5483, %v5886
  %5888 = vmatmul.f32.gmra.mxu0 %v5678
  %v5889 = vpop.f32.mrf.mxu0
  %v5890 = vadd.f32 %v5486, %v5889
  %5891 = vmatmul.f32.gmra.mxu0 %v5681
  %v5892 = vpop.f32.mrf.mxu0
  %v5893 = vadd.f32 %v5489, %v5892
  %5894 = vmatmul.f32.gmra.mxu0 %v5684
  %v5895 = vpop.f32.mrf.mxu0
  %v5896 = vadd.f32 %v5492, %v5895
  %5897 = vmatmul.f32.gmra.mxu0 %v5687
  %v5898 = vpop.f32.mrf.mxu0
  %v5899 = vadd.f32 %v5495, %v5898
  %5900 = vmatmul.f32.gmra.mxu0 %v5690
  %v5901 = vpop.f32.mrf.mxu0
  %v5902 = vadd.f32 %v5498, %v5901
  %5903 = vmatmul.f32.gmra.mxu0 %v5693
  %v5904 = vpop.f32.mrf.mxu0
  %v5905 = vadd.f32 %v5501, %v5904
  %5906 = vmatmul.f32.gmra.mxu0 %v5696
  %v5907 = vpop.f32.mrf.mxu0
  %v5908 = vadd.f32 %v5504, %v5907
  %5909 = vmatmul.f32.gmra.mxu0 %v5699
  %v5910 = vpop.f32.mrf.mxu0
  %v5911 = vadd.f32 %v5507, %v5910
  %5912 = vmatmul.f32.gmra.mxu0 %v5702
  %v5913 = vpop.f32.mrf.mxu0
  %v5914 = vadd.f32 %v5510, %v5913
  %5915 = vmatmul.f32.gmra.mxu0 %v5705
  %v5916 = vpop.f32.mrf.mxu0
  %v5917 = vadd.f32 %v5513, %v5916
  %5918 = vmatmul.f32.gmra.mxu0 %v5708
  %v5919 = vpop.f32.mrf.mxu0
  %v5920 = vadd.f32 %v5516, %v5919
  %5921 = vmatmul.f32.gmra.mxu0 %v5711
  %v5922 = vpop.f32.mrf.mxu0
  %v5923 = vadd.f32 %v5519, %v5922
  %5924 = vmatmul.f32.gmra.mxu0 %v5714
  %v5925 = vpop.f32.mrf.mxu0
  %v5926 = vadd.f32 %v5522, %v5925
  %5927 = vmatmul.f32.gmra.mxu0 %v5717
  %v5928 = vpop.f32.mrf.mxu0
  %v5929 = vadd.f32 %v5525, %v5928
  %5930 = vmatmul.f32.gmra.mxu0 %v5720
  %v5931 = vpop.f32.mrf.mxu0
  %v5932 = vadd.f32 %v5528, %v5931
  %5933 = vmatmul.f32.gmra.mxu0 %v5723
  %v5934 = vpop.f32.mrf.mxu0
  %v5935 = vadd.f32 %v5531, %v5934
  %5936 = vmatmul.f32.gmra.mxu0 %v5726
  %v5937 = vpop.f32.mrf.mxu0
  %v5938 = vadd.f32 %v5534, %v5937
  %5939 = vmatmul.f32.gmra.mxu0 %v5729
  %v5940 = vpop.f32.mrf.mxu0
  %v5941 = vadd.f32 %v5537, %v5940
  %5942 = vmatmul.f32.gmra.mxu0 %v5732
  %v5943 = vpop.f32.mrf.mxu0
  %v5944 = vadd.f32 %v5540, %v5943
  %5945 = vdwg.mxu0
  %v5946 = vld [vmem:[#allocation2 + $0x2] sm:$0xff]
  %v5947 = vld [vmem:[#allocation2 + $0xa] sm:$0xff]
  %v5948 = vld [vmem:[#allocation2 + $0x1a] sm:$0xff]
  %v5949 = vld [vmem:[#allocation2 + $0x22] sm:$0xff]
  %v5950 = vld [vmem:[#allocation2 + $0x32] sm:$0xff]
  %v5951 = vld [vmem:[#allocation2 + $0x3a] sm:$0xff]
  %v5952 = vld [vmem:[#allocation2 + $0x4a] sm:$0xff]
  %v5953 = vld [vmem:[#allocation2 + $0x52] sm:$0xff]
  %v5954 = vld [vmem:[#allocation2 + $0x62] sm:$0xff]
  %v5955 = vld [vmem:[#allocation2 + $0x6a] sm:$0xff]
  %v5956 = vld [vmem:[#allocation2 + $0x7a] sm:$0xff]
  %v5957 = vld [vmem:[#allocation2 + $0x82] sm:$0xff]
  %v5958 = vld [vmem:[#allocation2 + $0x92] sm:$0xff]
  %v5959 = vld [vmem:[#allocation2 + $0x9a] sm:$0xff]
  %v5960 = vld [vmem:[#allocation2 + $0xaa] sm:$0xff]
  %v5961 = vld [vmem:[#allocation2 + $0xb2] sm:$0xff]
  %v5962 = vld [vmem:[#allocation2 + $0xc2] sm:$0xff]
  %v5963 = vld [vmem:[#allocation2 + $0xca] sm:$0xff]
  %v5964 = vld [vmem:[#allocation2 + $0xda] sm:$0xff]
  %v5965 = vld [vmem:[#allocation2 + $0xe2] sm:$0xff]
  %v5966 = vld [vmem:[#allocation2 + $0xf2] sm:$0xff]
  %v5967 = vld [vmem:[#allocation2 + $0xfa] sm:$0xff]
  %v5968 = vld [vmem:[#allocation2 + $0x10a] sm:$0xff]
  %v5969 = vld [vmem:[#allocation2 + $0x112] sm:$0xff]
  %v5970 = vld [vmem:[#allocation2 + $0x122] sm:$0xff]
  %v5971 = vld [vmem:[#allocation2 + $0x12a] sm:$0xff]
  %v5972 = vld [vmem:[#allocation2 + $0x13a] sm:$0xff]
  %v5973 = vld [vmem:[#allocation2 + $0x142] sm:$0xff]
  %v5974 = vld [vmem:[#allocation2 + $0x152] sm:$0xff]
  %v5975 = vld [vmem:[#allocation2 + $0x15a] sm:$0xff]
  %v5976 = vld [vmem:[#allocation2 + $0x16a] sm:$0xff]
  %v5977 = vld [vmem:[#allocation2 + $0x172] sm:$0xff]
  %v5978 = vld [vmem:[#allocation2 + $0x1b2] sm:$0xff]
  %v5979 = vld [vmem:[#allocation2 + $0x1ba] sm:$0xff]
  %v5980 = vld [vmem:[#allocation2 + $0x1ca] sm:$0xff]
  %v5981 = vld [vmem:[#allocation2 + $0x1d2] sm:$0xff]
  %v5982 = vld [vmem:[#allocation2 + $0x1e2] sm:$0xff]
  %v5983 = vld [vmem:[#allocation2 + $0x1ea] sm:$0xff]
  %v5984 = vld [vmem:[#allocation2 + $0x1fa] sm:$0xff]
  %v5985 = vld [vmem:[#allocation2 + $0x202] sm:$0xff]
  %v5986 = vld [vmem:[#allocation2 + $0x212] sm:$0xff]
  %v5987 = vld [vmem:[#allocation2 + $0x21a] sm:$0xff]
  %v5988 = vld [vmem:[#allocation2 + $0x22a] sm:$0xff]
  %v5989 = vld [vmem:[#allocation2 + $0x232] sm:$0xff]
  %v5990 = vld [vmem:[#allocation2 + $0x242] sm:$0xff]
  %v5991 = vld [vmem:[#allocation2 + $0x24a] sm:$0xff]
  %v5992 = vld [vmem:[#allocation2 + $0x25a] sm:$0xff]
  %v5993 = vld [vmem:[#allocation2 + $0x262] sm:$0xff]
  %v5994 = vld [vmem:[#allocation2 + $0x272] sm:$0xff]
  %v5995 = vld [vmem:[#allocation2 + $0x27a] sm:$0xff]
  %v5996 = vld [vmem:[#allocation2 + $0x28a] sm:$0xff]
  %v5997 = vld [vmem:[#allocation2 + $0x292] sm:$0xff]
  %v5998 = vld [vmem:[#allocation2 + $0x2a2] sm:$0xff]
  %v5999 = vld [vmem:[#allocation2 + $0x2aa] sm:$0xff]
  %v6000 = vld [vmem:[#allocation2 + $0x2ba] sm:$0xff]
  %v6001 = vld [vmem:[#allocation2 + $0x2c2] sm:$0xff]
  %v6002 = vld [vmem:[#allocation2 + $0x2d2] sm:$0xff]
  %v6003 = vld [vmem:[#allocation2 + $0x2da] sm:$0xff]
  %v6004 = vld [vmem:[#allocation2 + $0x2ea] sm:$0xff]
  %v6005 = vld [vmem:[#allocation2 + $0x2f2] sm:$0xff]
  %v6006 = vld [vmem:[#allocation2 + $0x302] sm:$0xff]
  %v6007 = vld [vmem:[#allocation2 + $0x30a] sm:$0xff]
  %v6008 = vld [vmem:[#allocation2 + $0x31a] sm:$0xff]
  %v6009 = vld [vmem:[#allocation2 + $0x322] sm:$0xff]
  %s6010 = scalar_lea.vmem %s3, 8
  %v6011 = vld [vmem:[%s6010] sm:$0xf]
  %v6013 = vsel %vm151, %v5946, 0
  %v6016 = vsel %vm151, %v5947, 0
  %v6019 = vsel %vm151, %v5948, 0
  %v6022 = vsel %vm151, %v5949, 0
  %v6025 = vsel %vm151, %v5950, 0
  %v6028 = vsel %vm151, %v5951, 0
  %v6031 = vsel %vm151, %v5952, 0
  %v6034 = vsel %vm151, %v5953, 0
  %v6037 = vsel %vm151, %v5954, 0
  %v6040 = vsel %vm151, %v5955, 0
  %v6043 = vsel %vm151, %v5956, 0
  %v6046 = vsel %vm151, %v5957, 0
  %v6049 = vsel %vm151, %v5958, 0
  %v6052 = vsel %vm151, %v5959, 0
  %v6055 = vsel %vm151, %v5960, 0
  %v6058 = vsel %vm151, %v5961, 0
  %v6061 = vsel %vm151, %v5962, 0
  %v6064 = vsel %vm151, %v5963, 0
  %v6067 = vsel %vm151, %v5964, 0
  %v6070 = vsel %vm151, %v5965, 0
  %v6073 = vsel %vm151, %v5966, 0
  %v6076 = vsel %vm151, %v5967, 0
  %v6079 = vsel %vm151, %v5968, 0
  %v6082 = vsel %vm151, %v5969, 0
  %v6085 = vsel %vm151, %v5970, 0
  %v6088 = vsel %vm151, %v5971, 0
  %v6091 = vsel %vm151, %v5972, 0
  %v6094 = vsel %vm151, %v5973, 0
  %v6097 = vsel %vm151, %v5974, 0
  %v6100 = vsel %vm151, %v5975, 0
  %v6103 = vsel %vm151, %v5976, 0
  %v6106 = vsel %vm151, %v5977, 0
  %v6109 = vsel %vm151, %v5978, 0
  %v6112 = vsel %vm151, %v5979, 0
  %v6115 = vsel %vm151, %v5980, 0
  %v6118 = vsel %vm151, %v5981, 0
  %v6121 = vsel %vm151, %v5982, 0
  %v6124 = vsel %vm151, %v5983, 0
  %v6127 = vsel %vm151, %v5984, 0
  %v6130 = vsel %vm151, %v5985, 0
  %v6133 = vsel %vm151, %v5986, 0
  %v6136 = vsel %vm151, %v5987, 0
  %v6139 = vsel %vm151, %v5988, 0
  %v6142 = vsel %vm151, %v5989, 0
  %v6145 = vsel %vm151, %v5990, 0
  %v6148 = vsel %vm151, %v5991, 0
  %v6151 = vsel %vm151, %v5992, 0
  %v6154 = vsel %vm151, %v5993, 0
  %v6157 = vsel %vm151, %v5994, 0
  %v6160 = vsel %vm151, %v5995, 0
  %v6163 = vsel %vm151, %v5996, 0
  %v6166 = vsel %vm151, %v5997, 0
  %v6169 = vsel %vm151, %v5998, 0
  %v6172 = vsel %vm151, %v5999, 0
  %v6175 = vsel %vm151, %v6000, 0
  %v6178 = vsel %vm151, %v6001, 0
  %v6181 = vsel %vm151, %v6002, 0
  %v6184 = vsel %vm151, %v6003, 0
  %v6187 = vsel %vm151, %v6004, 0
  %v6190 = vsel %vm151, %v6005, 0
  %v6193 = vsel %vm151, %v6006, 0
  %v6196 = vsel %vm151, %v6007, 0
  %v6199 = vsel %vm151, %v6008, 0
  %v6202 = vsel %vm151, %v6009, 0
  %v6205 = vsel %vm344, %v6011, 0
  %6207 = vmatpush.msra.mxu0 0.0
  %6208 = vmatpush.msra.mxu0 0.0
  %6209 = vmatpush.msra.mxu0 0.0
  %6210 = vmatpush.msra.mxu0 0.0
  %6211 = vmatpush.msra.mxu0 0.0
  %6212 = vmatpush.msra.mxu0 0.0
  %6213 = vmatpush.msra.mxu0 0.0
  %6214 = vmatpush.msra.mxu0 0.0
  %6215 = vmatpush.msra.mxu0 0.0
  %6216 = vmatpush.msra.mxu0 0.0
  %6217 = vmatpush.msra.mxu0 0.0
  %6218 = vmatpush.msra.mxu0 0.0
  %6219 = vmatpush.msra.mxu0 0.0
  %6220 = vmatpush.msra.mxu0 0.0
  %6221 = vmatpush.msra.mxu0 0.0
  %6222 = vmatpush.msra.mxu0 %v6205
  %6223 = vmatmul.f32.gmra.mxu0 %v6013
  %v6224 = vpop.f32.mrf.mxu0
  %v6225 = vadd.f32 0.0, %v6224
  %6226 = vmatmul.f32.gmra.mxu0 %v6016
  %v6227 = vpop.f32.mrf.mxu0
  %v6228 = vadd.f32 0.0, %v6227
  %6229 = vmatmul.f32.gmra.mxu0 %v6019
  %v6230 = vpop.f32.mrf.mxu0
  %v6231 = vadd.f32 0.0, %v6230
  %6232 = vmatmul.f32.gmra.mxu0 %v6022
  %v6233 = vpop.f32.mrf.mxu0
  %v6234 = vadd.f32 0.0, %v6233
  %6235 = vmatmul.f32.gmra.mxu0 %v6025
  %v6236 = vpop.f32.mrf.mxu0
  %v6237 = vadd.f32 0.0, %v6236
  %6238 = vmatmul.f32.gmra.mxu0 %v6028
  %v6239 = vpop.f32.mrf.mxu0
  %v6240 = vadd.f32 0.0, %v6239
  %6241 = vmatmul.f32.gmra.mxu0 %v6031
  %v6242 = vpop.f32.mrf.mxu0
  %v6243 = vadd.f32 0.0, %v6242
  %6244 = vmatmul.f32.gmra.mxu0 %v6034
  %v6245 = vpop.f32.mrf.mxu0
  %v6246 = vadd.f32 0.0, %v6245
  %6247 = vmatmul.f32.gmra.mxu0 %v6037
  %v6248 = vpop.f32.mrf.mxu0
  %v6249 = vadd.f32 0.0, %v6248
  %6250 = vmatmul.f32.gmra.mxu0 %v6040
  %v6251 = vpop.f32.mrf.mxu0
  %v6252 = vadd.f32 0.0, %v6251
  %6253 = vmatmul.f32.gmra.mxu0 %v6043
  %v6254 = vpop.f32.mrf.mxu0
  %v6255 = vadd.f32 0.0, %v6254
  %6256 = vmatmul.f32.gmra.mxu0 %v6046
  %v6257 = vpop.f32.mrf.mxu0
  %v6258 = vadd.f32 0.0, %v6257
  %6259 = vmatmul.f32.gmra.mxu0 %v6049
  %v6260 = vpop.f32.mrf.mxu0
  %v6261 = vadd.f32 0.0, %v6260
  %6262 = vmatmul.f32.gmra.mxu0 %v6052
  %v6263 = vpop.f32.mrf.mxu0
  %v6264 = vadd.f32 0.0, %v6263
  %6265 = vmatmul.f32.gmra.mxu0 %v6055
  %v6266 = vpop.f32.mrf.mxu0
  %v6267 = vadd.f32 0.0, %v6266
  %6268 = vmatmul.f32.gmra.mxu0 %v6058
  %v6269 = vpop.f32.mrf.mxu0
  %v6270 = vadd.f32 0.0, %v6269
  %6271 = vmatmul.f32.gmra.mxu0 %v6061
  %v6272 = vpop.f32.mrf.mxu0
  %v6273 = vadd.f32 0.0, %v6272
  %6274 = vmatmul.f32.gmra.mxu0 %v6064
  %v6275 = vpop.f32.mrf.mxu0
  %v6276 = vadd.f32 0.0, %v6275
  %6277 = vmatmul.f32.gmra.mxu0 %v6067
  %v6278 = vpop.f32.mrf.mxu0
  %v6279 = vadd.f32 0.0, %v6278
  %6280 = vmatmul.f32.gmra.mxu0 %v6070
  %v6281 = vpop.f32.mrf.mxu0
  %v6282 = vadd.f32 0.0, %v6281
  %6283 = vmatmul.f32.gmra.mxu0 %v6073
  %v6284 = vpop.f32.mrf.mxu0
  %v6285 = vadd.f32 0.0, %v6284
  %6286 = vmatmul.f32.gmra.mxu0 %v6076
  %v6287 = vpop.f32.mrf.mxu0
  %v6288 = vadd.f32 0.0, %v6287
  %6289 = vmatmul.f32.gmra.mxu0 %v6079
  %v6290 = vpop.f32.mrf.mxu0
  %v6291 = vadd.f32 0.0, %v6290
  %6292 = vmatmul.f32.gmra.mxu0 %v6082
  %v6293 = vpop.f32.mrf.mxu0
  %v6294 = vadd.f32 0.0, %v6293
  %6295 = vmatmul.f32.gmra.mxu0 %v6085
  %v6296 = vpop.f32.mrf.mxu0
  %v6297 = vadd.f32 0.0, %v6296
  %6298 = vmatmul.f32.gmra.mxu0 %v6088
  %v6299 = vpop.f32.mrf.mxu0
  %v6300 = vadd.f32 0.0, %v6299
  %6301 = vmatmul.f32.gmra.mxu0 %v6091
  %v6302 = vpop.f32.mrf.mxu0
  %v6303 = vadd.f32 0.0, %v6302
  %6304 = vmatmul.f32.gmra.mxu0 %v6094
  %v6305 = vpop.f32.mrf.mxu0
  %v6306 = vadd.f32 0.0, %v6305
  %6307 = vmatmul.f32.gmra.mxu0 %v6097
  %v6308 = vpop.f32.mrf.mxu0
  %v6309 = vadd.f32 0.0, %v6308
  %6310 = vmatmul.f32.gmra.mxu0 %v6100
  %v6311 = vpop.f32.mrf.mxu0
  %v6312 = vadd.f32 0.0, %v6311
  %6313 = vmatmul.f32.gmra.mxu0 %v6103
  %v6314 = vpop.f32.mrf.mxu0
  %v6315 = vadd.f32 0.0, %v6314
  %6316 = vmatmul.f32.gmra.mxu0 %v6106
  %v6317 = vpop.f32.mrf.mxu0
  %v6318 = vadd.f32 0.0, %v6317
  %6319 = vmatmul.f32.gmra.mxu0 %v6109
  %v6320 = vpop.f32.mrf.mxu0
  %v6321 = vadd.f32 0.0, %v6320
  %6322 = vmatmul.f32.gmra.mxu0 %v6112
  %v6323 = vpop.f32.mrf.mxu0
  %v6324 = vadd.f32 0.0, %v6323
  %6325 = vmatmul.f32.gmra.mxu0 %v6115
  %v6326 = vpop.f32.mrf.mxu0
  %v6327 = vadd.f32 0.0, %v6326
  %6328 = vmatmul.f32.gmra.mxu0 %v6118
  %v6329 = vpop.f32.mrf.mxu0
  %v6330 = vadd.f32 0.0, %v6329
  %6331 = vmatmul.f32.gmra.mxu0 %v6121
  %v6332 = vpop.f32.mrf.mxu0
  %v6333 = vadd.f32 0.0, %v6332
  %6334 = vmatmul.f32.gmra.mxu0 %v6124
  %v6335 = vpop.f32.mrf.mxu0
  %v6336 = vadd.f32 0.0, %v6335
  %6337 = vmatmul.f32.gmra.mxu0 %v6127
  %v6338 = vpop.f32.mrf.mxu0
  %v6339 = vadd.f32 0.0, %v6338
  %6340 = vmatmul.f32.gmra.mxu0 %v6130
  %v6341 = vpop.f32.mrf.mxu0
  %v6342 = vadd.f32 0.0, %v6341
  %6343 = vmatmul.f32.gmra.mxu0 %v6133
  %v6344 = vpop.f32.mrf.mxu0
  %v6345 = vadd.f32 0.0, %v6344
  %6346 = vmatmul.f32.gmra.mxu0 %v6136
  %v6347 = vpop.f32.mrf.mxu0
  %v6348 = vadd.f32 0.0, %v6347
  %6349 = vmatmul.f32.gmra.mxu0 %v6139
  %v6350 = vpop.f32.mrf.mxu0
  %v6351 = vadd.f32 0.0, %v6350
  %6352 = vmatmul.f32.gmra.mxu0 %v6142
  %v6353 = vpop.f32.mrf.mxu0
  %v6354 = vadd.f32 0.0, %v6353
  %6355 = vmatmul.f32.gmra.mxu0 %v6145
  %v6356 = vpop.f32.mrf.mxu0
  %v6357 = vadd.f32 0.0, %v6356
  %6358 = vmatmul.f32.gmra.mxu0 %v6148
  %v6359 = vpop.f32.mrf.mxu0
  %v6360 = vadd.f32 0.0, %v6359
  %6361 = vmatmul.f32.gmra.mxu0 %v6151
  %v6362 = vpop.f32.mrf.mxu0
  %v6363 = vadd.f32 0.0, %v6362
  %6364 = vmatmul.f32.gmra.mxu0 %v6154
  %v6365 = vpop.f32.mrf.mxu0
  %v6366 = vadd.f32 0.0, %v6365
  %6367 = vmatmul.f32.gmra.mxu0 %v6157
  %v6368 = vpop.f32.mrf.mxu0
  %v6369 = vadd.f32 0.0, %v6368
  %6370 = vmatmul.f32.gmra.mxu0 %v6160
  %v6371 = vpop.f32.mrf.mxu0
  %v6372 = vadd.f32 0.0, %v6371
  %6373 = vmatmul.f32.gmra.mxu0 %v6163
  %v6374 = vpop.f32.mrf.mxu0
  %v6375 = vadd.f32 0.0, %v6374
  %6376 = vmatmul.f32.gmra.mxu0 %v6166
  %v6377 = vpop.f32.mrf.mxu0
  %v6378 = vadd.f32 0.0, %v6377
  %6379 = vmatmul.f32.gmra.mxu0 %v6169
  %v6380 = vpop.f32.mrf.mxu0
  %v6381 = vadd.f32 0.0, %v6380
  %6382 = vmatmul.f32.gmra.mxu0 %v6172
  %v6383 = vpop.f32.mrf.mxu0
  %v6384 = vadd.f32 0.0, %v6383
  %6385 = vmatmul.f32.gmra.mxu0 %v6175
  %v6386 = vpop.f32.mrf.mxu0
  %v6387 = vadd.f32 0.0, %v6386
  %6388 = vmatmul.f32.gmra.mxu0 %v6178
  %v6389 = vpop.f32.mrf.mxu0
  %v6390 = vadd.f32 0.0, %v6389
  %6391 = vmatmul.f32.gmra.mxu0 %v6181
  %v6392 = vpop.f32.mrf.mxu0
  %v6393 = vadd.f32 0.0, %v6392
  %6394 = vmatmul.f32.gmra.mxu0 %v6184
  %v6395 = vpop.f32.mrf.mxu0
  %v6396 = vadd.f32 0.0, %v6395
  %6397 = vmatmul.f32.gmra.mxu0 %v6187
  %v6398 = vpop.f32.mrf.mxu0
  %v6399 = vadd.f32 0.0, %v6398
  %6400 = vmatmul.f32.gmra.mxu0 %v6190
  %v6401 = vpop.f32.mrf.mxu0
  %v6402 = vadd.f32 0.0, %v6401
  %6403 = vmatmul.f32.gmra.mxu0 %v6193
  %v6404 = vpop.f32.mrf.mxu0
  %v6405 = vadd.f32 0.0, %v6404
  %6406 = vmatmul.f32.gmra.mxu0 %v6196
  %v6407 = vpop.f32.mrf.mxu0
  %v6408 = vadd.f32 0.0, %v6407
  %6409 = vmatmul.f32.gmra.mxu0 %v6199
  %v6410 = vpop.f32.mrf.mxu0
  %v6411 = vadd.f32 0.0, %v6410
  %6412 = vmatmul.f32.gmra.mxu0 %v6202
  %v6413 = vpop.f32.mrf.mxu0
  %v6414 = vadd.f32 0.0, %v6413
  %6415 = vdwg.mxu0
  %v6416 = vadd.f32 %v5755, %v6225
  %v6417 = vadd.f32 %v5758, %v6228
  %v6418 = vadd.f32 %v5761, %v6231
  %v6419 = vadd.f32 %v5764, %v6234
  %v6420 = vadd.f32 %v5767, %v6237
  %v6421 = vadd.f32 %v5770, %v6240
  %v6422 = vadd.f32 %v5773, %v6243
  %v6423 = vadd.f32 %v5776, %v6246
  %v6424 = vadd.f32 %v5779, %v6249
  %v6425 = vadd.f32 %v5782, %v6252
  %v6426 = vadd.f32 %v5785, %v6255
  %v6427 = vadd.f32 %v5788, %v6258
  %v6428 = vadd.f32 %v5791, %v6261
  %v6429 = vadd.f32 %v5794, %v6264
  %v6430 = vadd.f32 %v5797, %v6267
  %v6431 = vadd.f32 %v5800, %v6270
  %v6432 = vadd.f32 %v5803, %v6273
  %v6433 = vadd.f32 %v5806, %v6276
  %v6434 = vadd.f32 %v5809, %v6279
  %v6435 = vadd.f32 %v5812, %v6282
  %v6436 = vadd.f32 %v5815, %v6285
  %v6437 = vadd.f32 %v5818, %v6288
  %v6438 = vadd.f32 %v5821, %v6291
  %v6439 = vadd.f32 %v5824, %v6294
  %v6440 = vadd.f32 %v5827, %v6297
  %v6441 = vadd.f32 %v5830, %v6300
  %v6442 = vadd.f32 %v5833, %v6303
  %v6443 = vadd.f32 %v5836, %v6306
  %v6444 = vadd.f32 %v5839, %v6309
  %v6445 = vadd.f32 %v5842, %v6312
  %v6446 = vadd.f32 %v5845, %v6315
  %v6447 = vadd.f32 %v5848, %v6318
  %v6448 = vadd.f32 %v5851, %v6321
  %v6449 = vadd.f32 %v5854, %v6324
  %v6450 = vadd.f32 %v5857, %v6327
  %v6451 = vadd.f32 %v5860, %v6330
  %v6452 = vadd.f32 %v5863, %v6333
  %v6453 = vadd.f32 %v5866, %v6336
  %v6454 = vadd.f32 %v5869, %v6339
  %v6455 = vadd.f32 %v5872, %v6342
  %v6456 = vadd.f32 %v5875, %v6345
  %v6457 = vadd.f32 %v5878, %v6348
  %v6458 = vadd.f32 %v5881, %v6351
  %v6459 = vadd.f32 %v5884, %v6354
  %v6460 = vadd.f32 %v5887, %v6357
  %v6461 = vadd.f32 %v5890, %v6360
  %v6462 = vadd.f32 %v5893, %v6363
  %v6463 = vadd.f32 %v5896, %v6366
  %v6464 = vadd.f32 %v5899, %v6369
  %v6465 = vadd.f32 %v5902, %v6372
  %v6466 = vadd.f32 %v5905, %v6375
  %v6467 = vadd.f32 %v5908, %v6378
  %v6468 = vadd.f32 %v5911, %v6381
  %v6469 = vadd.f32 %v5914, %v6384
  %v6470 = vadd.f32 %v5917, %v6387
  %v6471 = vadd.f32 %v5920, %v6390
  %v6472 = vadd.f32 %v5923, %v6393
  %v6473 = vadd.f32 %v5926, %v6396
  %v6474 = vadd.f32 %v5929, %v6399
  %v6475 = vadd.f32 %v5932, %v6402
  %v6476 = vadd.f32 %v5935, %v6405
  %v6477 = vadd.f32 %v5938, %v6408
  %v6478 = vadd.f32 %v5941, %v6411
  %v6479 = vadd.f32 %v5944, %v6414
  %v6480 = vld [vmem:[%s4942] sm:$0xff]
  %v6481 = vld [vmem:[%s4942 + $0x8] sm:$0xff]
  %v6482 = vld [vmem:[%s4942 + $0x18] sm:$0xff]
  %v6483 = vld [vmem:[%s4942 + $0x20] sm:$0xff]
  %v6484 = vld [vmem:[%s4942 + $0x30] sm:$0xff]
  %v6485 = vld [vmem:[%s4942 + $0x38] sm:$0xff]
  %v6486 = vld [vmem:[%s4942 + $0x48] sm:$0xff]
  %v6487 = vld [vmem:[%s4942 + $0x50] sm:$0xff]
  %v6488 = vld [vmem:[%s4942 + $0x60] sm:$0xff]
  %v6489 = vld [vmem:[%s4942 + $0x68] sm:$0xff]
  %v6490 = vld [vmem:[%s4942 + $0x78] sm:$0xff]
  %v6491 = vld [vmem:[%s4942 + $0x80] sm:$0xff]
  %v6492 = vld [vmem:[%s4942 + $0x90] sm:$0xff]
  %v6493 = vld [vmem:[%s4942 + $0x98] sm:$0xff]
  %v6494 = vld [vmem:[%s4942 + $0xa8] sm:$0xff]
  %v6495 = vld [vmem:[%s4942 + $0xb0] sm:$0xff]
  %v6496 = vld [vmem:[%s4942 + $0xc0] sm:$0xff]
  %v6497 = vld [vmem:[%s4942 + $0xc8] sm:$0xff]
  %v6498 = vld [vmem:[%s4942 + $0xd8] sm:$0xff]
  %v6499 = vld [vmem:[%s4942 + $0xe0] sm:$0xff]
  %v6500 = vld [vmem:[%s4942 + $0xf0] sm:$0xff]
  %v6501 = vld [vmem:[%s4942 + $0xf8] sm:$0xff]
  %v6502 = vld [vmem:[%s4942 + $0x108] sm:$0xff]
  %v6503 = vld [vmem:[%s4942 + $0x110] sm:$0xff]
  %v6504 = vld [vmem:[%s4942 + $0x120] sm:$0xff]
  %v6505 = vld [vmem:[%s4942 + $0x128] sm:$0xff]
  %v6506 = vld [vmem:[%s4942 + $0x138] sm:$0xff]
  %v6507 = vld [vmem:[%s4942 + $0x140] sm:$0xff]
  %v6508 = vld [vmem:[%s4942 + $0x150] sm:$0xff]
  %v6509 = vld [vmem:[%s4942 + $0x158] sm:$0xff]
  %v6510 = vld [vmem:[%s4942 + $0x168] sm:$0xff]
  %v6511 = vld [vmem:[%s4942 + $0x170] sm:$0xff]
  %v6512 = vld [vmem:[%s4942 + $0x1b0] sm:$0xff]
  %v6513 = vld [vmem:[%s4942 + $0x1b8] sm:$0xff]
  %v6514 = vld [vmem:[%s4942 + $0x1c8] sm:$0xff]
  %v6515 = vld [vmem:[%s4942 + $0x1d0] sm:$0xff]
  %v6516 = vld [vmem:[%s4942 + $0x1e0] sm:$0xff]
  %v6517 = vld [vmem:[%s4942 + $0x1e8] sm:$0xff]
  %v6518 = vld [vmem:[%s4942 + $0x1f8] sm:$0xff]
  %v6519 = vld [vmem:[%s4942 + $0x200] sm:$0xff]
  %v6520 = vld [vmem:[%s4942 + $0x210] sm:$0xff]
  %v6521 = vld [vmem:[%s4942 + $0x218] sm:$0xff]
  %v6522 = vld [vmem:[%s4942 + $0x228] sm:$0xff]
  %v6523 = vld [vmem:[%s4942 + $0x230] sm:$0xff]
  %v6524 = vld [vmem:[%s4942 + $0x240] sm:$0xff]
  %v6525 = vld [vmem:[%s4942 + $0x248] sm:$0xff]
  %v6526 = vld [vmem:[%s4942 + $0x258] sm:$0xff]
  %v6527 = vld [vmem:[%s4942 + $0x260] sm:$0xff]
  %v6528 = vld [vmem:[%s4942 + $0x270] sm:$0xff]
  %v6529 = vld [vmem:[%s4942 + $0x278] sm:$0xff]
  %v6530 = vld [vmem:[%s4942 + $0x288] sm:$0xff]
  %v6531 = vld [vmem:[%s4942 + $0x290] sm:$0xff]
  %v6532 = vld [vmem:[%s4942 + $0x2a0] sm:$0xff]
  %v6533 = vld [vmem:[%s4942 + $0x2a8] sm:$0xff]
  %v6534 = vld [vmem:[%s4942 + $0x2b8] sm:$0xff]
  %v6535 = vld [vmem:[%s4942 + $0x2c0] sm:$0xff]
  %v6536 = vld [vmem:[%s4942 + $0x2d0] sm:$0xff]
  %v6537 = vld [vmem:[%s4942 + $0x2d8] sm:$0xff]
  %v6538 = vld [vmem:[%s4942 + $0x2e8] sm:$0xff]
  %v6539 = vld [vmem:[%s4942 + $0x2f0] sm:$0xff]
  %v6540 = vld [vmem:[%s4942 + $0x300] sm:$0xff]
  %v6541 = vld [vmem:[%s4942 + $0x308] sm:$0xff]
  %v6542 = vld [vmem:[%s4942 + $0x318] sm:$0xff]
  %v6543 = vld [vmem:[%s4942 + $0x320] sm:$0xff]
  %s6544 = scalar_lea.vmem %s3, 12
  %v6545 = vld [vmem:[%s6544] sm:$0xf]
  %v6547 = vsel %vm151, %v6480, 0
  %v6550 = vsel %vm151, %v6481, 0
  %v6553 = vsel %vm151, %v6482, 0
  %v6556 = vsel %vm151, %v6483, 0
  %v6559 = vsel %vm151, %v6484, 0
  %v6562 = vsel %vm151, %v6485, 0
  %v6565 = vsel %vm151, %v6486, 0
  %v6568 = vsel %vm151, %v6487, 0
  %v6571 = vsel %vm151, %v6488, 0
  %v6574 = vsel %vm151, %v6489, 0
  %v6577 = vsel %vm151, %v6490, 0
  %v6580 = vsel %vm151, %v6491, 0
  %v6583 = vsel %vm151, %v6492, 0
  %v6586 = vsel %vm151, %v6493, 0
  %v6589 = vsel %vm151, %v6494, 0
  %v6592 = vsel %vm151, %v6495, 0
  %v6595 = vsel %vm151, %v6496, 0
  %v6598 = vsel %vm151, %v6497, 0
  %v6601 = vsel %vm151, %v6498, 0
  %v6604 = vsel %vm151, %v6499, 0
  %v6607 = vsel %vm151, %v6500, 0
  %v6610 = vsel %vm151, %v6501, 0
  %v6613 = vsel %vm151, %v6502, 0
  %v6616 = vsel %vm151, %v6503, 0
  %v6619 = vsel %vm151, %v6504, 0
  %v6622 = vsel %vm151, %v6505, 0
  %v6625 = vsel %vm151, %v6506, 0
  %v6628 = vsel %vm151, %v6507, 0
  %v6631 = vsel %vm151, %v6508, 0
  %v6634 = vsel %vm151, %v6509, 0
  %v6637 = vsel %vm151, %v6510, 0
  %v6640 = vsel %vm151, %v6511, 0
  %v6643 = vsel %vm151, %v6512, 0
  %v6646 = vsel %vm151, %v6513, 0
  %v6649 = vsel %vm151, %v6514, 0
  %v6652 = vsel %vm151, %v6515, 0
  %v6655 = vsel %vm151, %v6516, 0
  %v6658 = vsel %vm151, %v6517, 0
  %v6661 = vsel %vm151, %v6518, 0
  %v6664 = vsel %vm151, %v6519, 0
  %v6667 = vsel %vm151, %v6520, 0
  %v6670 = vsel %vm151, %v6521, 0
  %v6673 = vsel %vm151, %v6522, 0
  %v6676 = vsel %vm151, %v6523, 0
  %v6679 = vsel %vm151, %v6524, 0
  %v6682 = vsel %vm151, %v6525, 0
  %v6685 = vsel %vm151, %v6526, 0
  %v6688 = vsel %vm151, %v6527, 0
  %v6691 = vsel %vm151, %v6528, 0
  %v6694 = vsel %vm151, %v6529, 0
  %v6697 = vsel %vm151, %v6530, 0
  %v6700 = vsel %vm151, %v6531, 0
  %v6703 = vsel %vm151, %v6532, 0
  %v6706 = vsel %vm151, %v6533, 0
  %v6709 = vsel %vm151, %v6534, 0
  %v6712 = vsel %vm151, %v6535, 0
  %v6715 = vsel %vm151, %v6536, 0
  %v6718 = vsel %vm151, %v6537, 0
  %v6721 = vsel %vm151, %v6538, 0
  %v6724 = vsel %vm151, %v6539, 0
  %v6727 = vsel %vm151, %v6540, 0
  %v6730 = vsel %vm151, %v6541, 0
  %v6733 = vsel %vm151, %v6542, 0
  %v6736 = vsel %vm151, %v6543, 0
  %v6739 = vsel %vm344, %v6545, 0
  %6741 = vmatpush.msra.mxu0 0.0
  %6742 = vmatpush.msra.mxu0 0.0
  %6743 = vmatpush.msra.mxu0 0.0
  %6744 = vmatpush.msra.mxu0 0.0
  %6745 = vmatpush.msra.mxu0 0.0
  %6746 = vmatpush.msra.mxu0 0.0
  %6747 = vmatpush.msra.mxu0 0.0
  %6748 = vmatpush.msra.mxu0 0.0
  %6749 = vmatpush.msra.mxu0 0.0
  %6750 = vmatpush.msra.mxu0 0.0
  %6751 = vmatpush.msra.mxu0 0.0
  %6752 = vmatpush.msra.mxu0 0.0
  %6753 = vmatpush.msra.mxu0 0.0
  %6754 = vmatpush.msra.mxu0 0.0
  %6755 = vmatpush.msra.mxu0 0.0
  %6756 = vmatpush.msra.mxu0 %v6739
  %6757 = vmatmul.f32.gmra.mxu0 %v6547
  %v6758 = vpop.f32.mrf.mxu0
  %v6759 = vadd.f32 0.0, %v6758
  %6760 = vmatmul.f32.gmra.mxu0 %v6550
  %v6761 = vpop.f32.mrf.mxu0
  %v6762 = vadd.f32 0.0, %v6761
  %6763 = vmatmul.f32.gmra.mxu0 %v6553
  %v6764 = vpop.f32.mrf.mxu0
  %v6765 = vadd.f32 0.0, %v6764
  %6766 = vmatmul.f32.gmra.mxu0 %v6556
  %v6767 = vpop.f32.mrf.mxu0
  %v6768 = vadd.f32 0.0, %v6767
  %6769 = vmatmul.f32.gmra.mxu0 %v6559
  %v6770 = vpop.f32.mrf.mxu0
  %v6771 = vadd.f32 0.0, %v6770
  %6772 = vmatmul.f32.gmra.mxu0 %v6562
  %v6773 = vpop.f32.mrf.mxu0
  %v6774 = vadd.f32 0.0, %v6773
  %6775 = vmatmul.f32.gmra.mxu0 %v6565
  %v6776 = vpop.f32.mrf.mxu0
  %v6777 = vadd.f32 0.0, %v6776
  %6778 = vmatmul.f32.gmra.mxu0 %v6568
  %v6779 = vpop.f32.mrf.mxu0
  %v6780 = vadd.f32 0.0, %v6779
  %6781 = vmatmul.f32.gmra.mxu0 %v6571
  %v6782 = vpop.f32.mrf.mxu0
  %v6783 = vadd.f32 0.0, %v6782
  %6784 = vmatmul.f32.gmra.mxu0 %v6574
  %v6785 = vpop.f32.mrf.mxu0
  %v6786 = vadd.f32 0.0, %v6785
  %6787 = vmatmul.f32.gmra.mxu0 %v6577
  %v6788 = vpop.f32.mrf.mxu0
  %v6789 = vadd.f32 0.0, %v6788
  %6790 = vmatmul.f32.gmra.mxu0 %v6580
  %v6791 = vpop.f32.mrf.mxu0
  %v6792 = vadd.f32 0.0, %v6791
  %6793 = vmatmul.f32.gmra.mxu0 %v6583
  %v6794 = vpop.f32.mrf.mxu0
  %v6795 = vadd.f32 0.0, %v6794
  %6796 = vmatmul.f32.gmra.mxu0 %v6586
  %v6797 = vpop.f32.mrf.mxu0
  %v6798 = vadd.f32 0.0, %v6797
  %6799 = vmatmul.f32.gmra.mxu0 %v6589
  %v6800 = vpop.f32.mrf.mxu0
  %v6801 = vadd.f32 0.0, %v6800
  %6802 = vmatmul.f32.gmra.mxu0 %v6592
  %v6803 = vpop.f32.mrf.mxu0
  %v6804 = vadd.f32 0.0, %v6803
  %6805 = vmatmul.f32.gmra.mxu0 %v6595
  %v6806 = vpop.f32.mrf.mxu0
  %v6807 = vadd.f32 0.0, %v6806
  %6808 = vmatmul.f32.gmra.mxu0 %v6598
  %v6809 = vpop.f32.mrf.mxu0
  %v6810 = vadd.f32 0.0, %v6809
  %6811 = vmatmul.f32.gmra.mxu0 %v6601
  %v6812 = vpop.f32.mrf.mxu0
  %v6813 = vadd.f32 0.0, %v6812
  %6814 = vmatmul.f32.gmra.mxu0 %v6604
  %v6815 = vpop.f32.mrf.mxu0
  %v6816 = vadd.f32 0.0, %v6815
  %6817 = vmatmul.f32.gmra.mxu0 %v6607
  %v6818 = vpop.f32.mrf.mxu0
  %v6819 = vadd.f32 0.0, %v6818
  %6820 = vmatmul.f32.gmra.mxu0 %v6610
  %v6821 = vpop.f32.mrf.mxu0
  %v6822 = vadd.f32 0.0, %v6821
  %6823 = vmatmul.f32.gmra.mxu0 %v6613
  %v6824 = vpop.f32.mrf.mxu0
  %v6825 = vadd.f32 0.0, %v6824
  %6826 = vmatmul.f32.gmra.mxu0 %v6616
  %v6827 = vpop.f32.mrf.mxu0
  %v6828 = vadd.f32 0.0, %v6827
  %6829 = vmatmul.f32.gmra.mxu0 %v6619
  %v6830 = vpop.f32.mrf.mxu0
  %v6831 = vadd.f32 0.0, %v6830
  %6832 = vmatmul.f32.gmra.mxu0 %v6622
  %v6833 = vpop.f32.mrf.mxu0
  %v6834 = vadd.f32 0.0, %v6833
  %6835 = vmatmul.f32.gmra.mxu0 %v6625
  %v6836 = vpop.f32.mrf.mxu0
  %v6837 = vadd.f32 0.0, %v6836
  %6838 = vmatmul.f32.gmra.mxu0 %v6628
  %v6839 = vpop.f32.mrf.mxu0
  %v6840 = vadd.f32 0.0, %v6839
  %6841 = vmatmul.f32.gmra.mxu0 %v6631
  %v6842 = vpop.f32.mrf.mxu0
  %v6843 = vadd.f32 0.0, %v6842
  %6844 = vmatmul.f32.gmra.mxu0 %v6634
  %v6845 = vpop.f32.mrf.mxu0
  %v6846 = vadd.f32 0.0, %v6845
  %6847 = vmatmul.f32.gmra.mxu0 %v6637
  %v6848 = vpop.f32.mrf.mxu0
  %v6849 = vadd.f32 0.0, %v6848
  %6850 = vmatmul.f32.gmra.mxu0 %v6640
  %v6851 = vpop.f32.mrf.mxu0
  %v6852 = vadd.f32 0.0, %v6851
  %6853 = vmatmul.f32.gmra.mxu0 %v6643
  %v6854 = vpop.f32.mrf.mxu0
  %v6855 = vadd.f32 0.0, %v6854
  %6856 = vmatmul.f32.gmra.mxu0 %v6646
  %v6857 = vpop.f32.mrf.mxu0
  %v6858 = vadd.f32 0.0, %v6857
  %6859 = vmatmul.f32.gmra.mxu0 %v6649
  %v6860 = vpop.f32.mrf.mxu0
  %v6861 = vadd.f32 0.0, %v6860
  %6862 = vmatmul.f32.gmra.mxu0 %v6652
  %v6863 = vpop.f32.mrf.mxu0
  %v6864 = vadd.f32 0.0, %v6863
  %6865 = vmatmul.f32.gmra.mxu0 %v6655
  %v6866 = vpop.f32.mrf.mxu0
  %v6867 = vadd.f32 0.0, %v6866
  %6868 = vmatmul.f32.gmra.mxu0 %v6658
  %v6869 = vpop.f32.mrf.mxu0
  %v6870 = vadd.f32 0.0, %v6869
  %6871 = vmatmul.f32.gmra.mxu0 %v6661
  %v6872 = vpop.f32.mrf.mxu0
  %v6873 = vadd.f32 0.0, %v6872
  %6874 = vmatmul.f32.gmra.mxu0 %v6664
  %v6875 = vpop.f32.mrf.mxu0
  %v6876 = vadd.f32 0.0, %v6875
  %6877 = vmatmul.f32.gmra.mxu0 %v6667
  %v6878 = vpop.f32.mrf.mxu0
  %v6879 = vadd.f32 0.0, %v6878
  %6880 = vmatmul.f32.gmra.mxu0 %v6670
  %v6881 = vpop.f32.mrf.mxu0
  %v6882 = vadd.f32 0.0, %v6881
  %6883 = vmatmul.f32.gmra.mxu0 %v6673
  %v6884 = vpop.f32.mrf.mxu0
  %v6885 = vadd.f32 0.0, %v6884
  %6886 = vmatmul.f32.gmra.mxu0 %v6676
  %v6887 = vpop.f32.mrf.mxu0
  %v6888 = vadd.f32 0.0, %v6887
  %6889 = vmatmul.f32.gmra.mxu0 %v6679
  %v6890 = vpop.f32.mrf.mxu0
  %v6891 = vadd.f32 0.0, %v6890
  %6892 = vmatmul.f32.gmra.mxu0 %v6682
  %v6893 = vpop.f32.mrf.mxu0
  %v6894 = vadd.f32 0.0, %v6893
  %6895 = vmatmul.f32.gmra.mxu0 %v6685
  %v6896 = vpop.f32.mrf.mxu0
  %v6897 = vadd.f32 0.0, %v6896
  %6898 = vmatmul.f32.gmra.mxu0 %v6688
  %v6899 = vpop.f32.mrf.mxu0
  %v6900 = vadd.f32 0.0, %v6899
  %6901 = vmatmul.f32.gmra.mxu0 %v6691
  %v6902 = vpop.f32.mrf.mxu0
  %v6903 = vadd.f32 0.0, %v6902
  %6904 = vmatmul.f32.gmra.mxu0 %v6694
  %v6905 = vpop.f32.mrf.mxu0
  %v6906 = vadd.f32 0.0, %v6905
  %6907 = vmatmul.f32.gmra.mxu0 %v6697
  %v6908 = vpop.f32.mrf.mxu0
  %v6909 = vadd.f32 0.0, %v6908
  %6910 = vmatmul.f32.gmra.mxu0 %v6700
  %v6911 = vpop.f32.mrf.mxu0
  %v6912 = vadd.f32 0.0, %v6911
  %6913 = vmatmul.f32.gmra.mxu0 %v6703
  %v6914 = vpop.f32.mrf.mxu0
  %v6915 = vadd.f32 0.0, %v6914
  %6916 = vmatmul.f32.gmra.mxu0 %v6706
  %v6917 = vpop.f32.mrf.mxu0
  %v6918 = vadd.f32 0.0, %v6917
  %6919 = vmatmul.f32.gmra.mxu0 %v6709
  %v6920 = vpop.f32.mrf.mxu0
  %v6921 = vadd.f32 0.0, %v6920
  %6922 = vmatmul.f32.gmra.mxu0 %v6712
  %v6923 = vpop.f32.mrf.mxu0
  %v6924 = vadd.f32 0.0, %v6923
  %6925 = vmatmul.f32.gmra.mxu0 %v6715
  %v6926 = vpop.f32.mrf.mxu0
  %v6927 = vadd.f32 0.0, %v6926
  %6928 = vmatmul.f32.gmra.mxu0 %v6718
  %v6929 = vpop.f32.mrf.mxu0
  %v6930 = vadd.f32 0.0, %v6929
  %6931 = vmatmul.f32.gmra.mxu0 %v6721
  %v6932 = vpop.f32.mrf.mxu0
  %v6933 = vadd.f32 0.0, %v6932
  %6934 = vmatmul.f32.gmra.mxu0 %v6724
  %v6935 = vpop.f32.mrf.mxu0
  %v6936 = vadd.f32 0.0, %v6935
  %6937 = vmatmul.f32.gmra.mxu0 %v6727
  %v6938 = vpop.f32.mrf.mxu0
  %v6939 = vadd.f32 0.0, %v6938
  %6940 = vmatmul.f32.gmra.mxu0 %v6730
  %v6941 = vpop.f32.mrf.mxu0
  %v6942 = vadd.f32 0.0, %v6941
  %6943 = vmatmul.f32.gmra.mxu0 %v6733
  %v6944 = vpop.f32.mrf.mxu0
  %v6945 = vadd.f32 0.0, %v6944
  %6946 = vmatmul.f32.gmra.mxu0 %v6736
  %v6947 = vpop.f32.mrf.mxu0
  %v6948 = vadd.f32 0.0, %v6947
  %6949 = vdwg.mxu0
  %v6950 = vadd.f32 %v6416, %v6759
  %v6951 = vadd.f32 %v6417, %v6762
  %v6952 = vadd.f32 %v6418, %v6765
  %v6953 = vadd.f32 %v6419, %v6768
  %v6954 = vadd.f32 %v6420, %v6771
  %v6955 = vadd.f32 %v6421, %v6774
  %v6956 = vadd.f32 %v6422, %v6777
  %v6957 = vadd.f32 %v6423, %v6780
  %v6958 = vadd.f32 %v6424, %v6783
  %v6959 = vadd.f32 %v6425, %v6786
  %v6960 = vadd.f32 %v6426, %v6789
  %v6961 = vadd.f32 %v6427, %v6792
  %v6962 = vadd.f32 %v6428, %v6795
  %v6963 = vadd.f32 %v6429, %v6798
  %v6964 = vadd.f32 %v6430, %v6801
  %v6965 = vadd.f32 %v6431, %v6804
  %v6966 = vadd.f32 %v6432, %v6807
  %v6967 = vadd.f32 %v6433, %v6810
  %v6968 = vadd.f32 %v6434, %v6813
  %v6969 = vadd.f32 %v6435, %v6816
  %v6970 = vadd.f32 %v6436, %v6819
  %v6971 = vadd.f32 %v6437, %v6822
  %v6972 = vadd.f32 %v6438, %v6825
  %v6973 = vadd.f32 %v6439, %v6828
  %v6974 = vadd.f32 %v6440, %v6831
  %v6975 = vadd.f32 %v6441, %v6834
  %v6976 = vadd.f32 %v6442, %v6837
  %v6977 = vadd.f32 %v6443, %v6840
  %v6978 = vadd.f32 %v6444, %v6843
  %v6979 = vadd.f32 %v6445, %v6846
  %v6980 = vadd.f32 %v6446, %v6849
  %v6981 = vadd.f32 %v6447, %v6852
  %v6982 = vadd.f32 %v6448, %v6855
  %v6983 = vadd.f32 %v6449, %v6858
  %v6984 = vadd.f32 %v6450, %v6861
  %v6985 = vadd.f32 %v6451, %v6864
  %v6986 = vadd.f32 %v6452, %v6867
  %v6987 = vadd.f32 %v6453, %v6870
  %v6988 = vadd.f32 %v6454, %v6873
  %v6989 = vadd.f32 %v6455, %v6876
  %v6990 = vadd.f32 %v6456, %v6879
  %v6991 = vadd.f32 %v6457, %v6882
  %v6992 = vadd.f32 %v6458, %v6885
  %v6993 = vadd.f32 %v6459, %v6888
  %v6994 = vadd.f32 %v6460, %v6891
  %v6995 = vadd.f32 %v6461, %v6894
  %v6996 = vadd.f32 %v6462, %v6897
  %v6997 = vadd.f32 %v6463, %v6900
  %v6998 = vadd.f32 %v6464, %v6903
  %v6999 = vadd.f32 %v6465, %v6906
  %v7000 = vadd.f32 %v6466, %v6909
  %v7001 = vadd.f32 %v6467, %v6912
  %v7002 = vadd.f32 %v6468, %v6915
  %v7003 = vadd.f32 %v6469, %v6918
  %v7004 = vadd.f32 %v6470, %v6921
  %v7005 = vadd.f32 %v6471, %v6924
  %v7006 = vadd.f32 %v6472, %v6927
  %v7007 = vadd.f32 %v6473, %v6930
  %v7008 = vadd.f32 %v6474, %v6933
  %v7009 = vadd.f32 %v6475, %v6936
  %v7010 = vadd.f32 %v6476, %v6939
  %v7011 = vadd.f32 %v6477, %v6942
  %v7012 = vadd.f32 %v6478, %v6945
  %v7013 = vadd.f32 %v6479, %v6948
  %v7014 = vld [vmem:[%s4942 + $0x1] sm:$0xff]
  %v7015 = vld [vmem:[%s4942 + $0x9] sm:$0xff]
  %v7016 = vld [vmem:[%s4942 + $0x19] sm:$0xff]
  %v7017 = vld [vmem:[%s4942 + $0x21] sm:$0xff]
  %v7018 = vld [vmem:[%s4942 + $0x31] sm:$0xff]
  %v7019 = vld [vmem:[%s4942 + $0x39] sm:$0xff]
  %v7020 = vld [vmem:[%s4942 + $0x49] sm:$0xff]
  %v7021 = vld [vmem:[%s4942 + $0x51] sm:$0xff]
  %v7022 = vld [vmem:[%s4942 + $0x61] sm:$0xff]
  %v7023 = vld [vmem:[%s4942 + $0x69] sm:$0xff]
  %v7024 = vld [vmem:[%s4942 + $0x79] sm:$0xff]
  %v7025 = vld [vmem:[%s4942 + $0x81] sm:$0xff]
  %v7026 = vld [vmem:[%s4942 + $0x91] sm:$0xff]
  %v7027 = vld [vmem:[%s4942 + $0x99] sm:$0xff]
  %v7028 = vld [vmem:[%s4942 + $0xa9] sm:$0xff]
  %v7029 = vld [vmem:[%s4942 + $0xb1] sm:$0xff]
  %v7030 = vld [vmem:[%s4942 + $0xc1] sm:$0xff]
  %v7031 = vld [vmem:[%s4942 + $0xc9] sm:$0xff]
  %v7032 = vld [vmem:[%s4942 + $0xd9] sm:$0xff]
  %v7033 = vld [vmem:[%s4942 + $0xe1] sm:$0xff]
  %v7034 = vld [vmem:[%s4942 + $0xf1] sm:$0xff]
  %v7035 = vld [vmem:[%s4942 + $0xf9] sm:$0xff]
  %v7036 = vld [vmem:[%s4942 + $0x109] sm:$0xff]
  %v7037 = vld [vmem:[%s4942 + $0x111] sm:$0xff]
  %v7038 = vld [vmem:[%s4942 + $0x121] sm:$0xff]
  %v7039 = vld [vmem:[%s4942 + $0x129] sm:$0xff]
  %v7040 = vld [vmem:[%s4942 + $0x139] sm:$0xff]
  %v7041 = vld [vmem:[%s4942 + $0x141] sm:$0xff]
  %v7042 = vld [vmem:[%s4942 + $0x151] sm:$0xff]
  %v7043 = vld [vmem:[%s4942 + $0x159] sm:$0xff]
  %v7044 = vld [vmem:[%s4942 + $0x169] sm:$0xff]
  %v7045 = vld [vmem:[%s4942 + $0x171] sm:$0xff]
  %v7046 = vld [vmem:[%s4942 + $0x1b1] sm:$0xff]
  %v7047 = vld [vmem:[%s4942 + $0x1b9] sm:$0xff]
  %v7048 = vld [vmem:[%s4942 + $0x1c9] sm:$0xff]
  %v7049 = vld [vmem:[%s4942 + $0x1d1] sm:$0xff]
  %v7050 = vld [vmem:[%s4942 + $0x1e1] sm:$0xff]
  %v7051 = vld [vmem:[%s4942 + $0x1e9] sm:$0xff]
  %v7052 = vld [vmem:[%s4942 + $0x1f9] sm:$0xff]
  %v7053 = vld [vmem:[%s4942 + $0x201] sm:$0xff]
  %v7054 = vld [vmem:[%s4942 + $0x211] sm:$0xff]
  %v7055 = vld [vmem:[%s4942 + $0x219] sm:$0xff]
  %v7056 = vld [vmem:[%s4942 + $0x229] sm:$0xff]
  %v7057 = vld [vmem:[%s4942 + $0x231] sm:$0xff]
  %v7058 = vld [vmem:[%s4942 + $0x241] sm:$0xff]
  %v7059 = vld [vmem:[%s4942 + $0x249] sm:$0xff]
  %v7060 = vld [vmem:[%s4942 + $0x259] sm:$0xff]
  %v7061 = vld [vmem:[%s4942 + $0x261] sm:$0xff]
  %v7062 = vld [vmem:[%s4942 + $0x271] sm:$0xff]
  %v7063 = vld [vmem:[%s4942 + $0x279] sm:$0xff]
  %v7064 = vld [vmem:[%s4942 + $0x289] sm:$0xff]
  %v7065 = vld [vmem:[%s4942 + $0x291] sm:$0xff]
  %v7066 = vld [vmem:[%s4942 + $0x2a1] sm:$0xff]
  %v7067 = vld [vmem:[%s4942 + $0x2a9] sm:$0xff]
  %v7068 = vld [vmem:[%s4942 + $0x2b9] sm:$0xff]
  %v7069 = vld [vmem:[%s4942 + $0x2c1] sm:$0xff]
  %v7070 = vld [vmem:[%s4942 + $0x2d1] sm:$0xff]
  %v7071 = vld [vmem:[%s4942 + $0x2d9] sm:$0xff]
  %v7072 = vld [vmem:[%s4942 + $0x2e9] sm:$0xff]
  %v7073 = vld [vmem:[%s4942 + $0x2f1] sm:$0xff]
  %v7074 = vld [vmem:[%s4942 + $0x301] sm:$0xff]
  %v7075 = vld [vmem:[%s4942 + $0x309] sm:$0xff]
  %v7076 = vld [vmem:[%s4942 + $0x319] sm:$0xff]
  %v7077 = vld [vmem:[%s4942 + $0x321] sm:$0xff]
  %s7078 = scalar_lea.vmem %s3, 16
  %v7079 = vld [vmem:[%s7078] sm:$0xf]
  %v7081 = vsel %vm151, %v7014, 0
  %v7084 = vsel %vm151, %v7015, 0
  %v7087 = vsel %vm151, %v7016, 0
  %v7090 = vsel %vm151, %v7017, 0
  %v7093 = vsel %vm151, %v7018, 0
  %v7096 = vsel %vm151, %v7019, 0
  %v7099 = vsel %vm151, %v7020, 0
  %v7102 = vsel %vm151, %v7021, 0
  %v7105 = vsel %vm151, %v7022, 0
  %v7108 = vsel %vm151, %v7023, 0
  %v7111 = vsel %vm151, %v7024, 0
  %v7114 = vsel %vm151, %v7025, 0
  %v7117 = vsel %vm151, %v7026, 0
  %v7120 = vsel %vm151, %v7027, 0
  %v7123 = vsel %vm151, %v7028, 0
  %v7126 = vsel %vm151, %v7029, 0
  %v7129 = vsel %vm151, %v7030, 0
  %v7132 = vsel %vm151, %v7031, 0
  %v7135 = vsel %vm151, %v7032, 0
  %v7138 = vsel %vm151, %v7033, 0
  %v7141 = vsel %vm151, %v7034, 0
  %v7144 = vsel %vm151, %v7035, 0
  %v7147 = vsel %vm151, %v7036, 0
  %v7150 = vsel %vm151, %v7037, 0
  %v7153 = vsel %vm151, %v7038, 0
  %v7156 = vsel %vm151, %v7039, 0
  %v7159 = vsel %vm151, %v7040, 0
  %v7162 = vsel %vm151, %v7041, 0
  %v7165 = vsel %vm151, %v7042, 0
  %v7168 = vsel %vm151, %v7043, 0
  %v7171 = vsel %vm151, %v7044, 0
  %v7174 = vsel %vm151, %v7045, 0
  %v7177 = vsel %vm151, %v7046, 0
  %v7180 = vsel %vm151, %v7047, 0
  %v7183 = vsel %vm151, %v7048, 0
  %v7186 = vsel %vm151, %v7049, 0
  %v7189 = vsel %vm151, %v7050, 0
  %v7192 = vsel %vm151, %v7051, 0
  %v7195 = vsel %vm151, %v7052, 0
  %v7198 = vsel %vm151, %v7053, 0
  %v7201 = vsel %vm151, %v7054, 0
  %v7204 = vsel %vm151, %v7055, 0
  %v7207 = vsel %vm151, %v7056, 0
  %v7210 = vsel %vm151, %v7057, 0
  %v7213 = vsel %vm151, %v7058, 0
  %v7216 = vsel %vm151, %v7059, 0
  %v7219 = vsel %vm151, %v7060, 0
  %v7222 = vsel %vm151, %v7061, 0
  %v7225 = vsel %vm151, %v7062, 0
  %v7228 = vsel %vm151, %v7063, 0
  %v7231 = vsel %vm151, %v7064, 0
  %v7234 = vsel %vm151, %v7065, 0
  %v7237 = vsel %vm151, %v7066, 0
  %v7240 = vsel %vm151, %v7067, 0
  %v7243 = vsel %vm151, %v7068, 0
  %v7246 = vsel %vm151, %v7069, 0
  %v7249 = vsel %vm151, %v7070, 0
  %v7252 = vsel %vm151, %v7071, 0
  %v7255 = vsel %vm151, %v7072, 0
  %v7258 = vsel %vm151, %v7073, 0
  %v7261 = vsel %vm151, %v7074, 0
  %v7264 = vsel %vm151, %v7075, 0
  %v7267 = vsel %vm151, %v7076, 0
  %v7270 = vsel %vm151, %v7077, 0
  %v7273 = vsel %vm344, %v7079, 0
  %7275 = vmatpush.msra.mxu0 0.0
  %7276 = vmatpush.msra.mxu0 0.0
  %7277 = vmatpush.msra.mxu0 0.0
  %7278 = vmatpush.msra.mxu0 0.0
  %7279 = vmatpush.msra.mxu0 0.0
  %7280 = vmatpush.msra.mxu0 0.0
  %7281 = vmatpush.msra.mxu0 0.0
  %7282 = vmatpush.msra.mxu0 0.0
  %7283 = vmatpush.msra.mxu0 0.0
  %7284 = vmatpush.msra.mxu0 0.0
  %7285 = vmatpush.msra.mxu0 0.0
  %7286 = vmatpush.msra.mxu0 0.0
  %7287 = vmatpush.msra.mxu0 0.0
  %7288 = vmatpush.msra.mxu0 0.0
  %7289 = vmatpush.msra.mxu0 0.0
  %7290 = vmatpush.msra.mxu0 %v7273
  %7291 = vmatmul.f32.gmra.mxu0 %v7081
  %v7292 = vpop.f32.mrf.mxu0
  %v7293 = vadd.f32 0.0, %v7292
  %7294 = vmatmul.f32.gmra.mxu0 %v7084
  %v7295 = vpop.f32.mrf.mxu0
  %v7296 = vadd.f32 0.0, %v7295
  %7297 = vmatmul.f32.gmra.mxu0 %v7087
  %v7298 = vpop.f32.mrf.mxu0
  %v7299 = vadd.f32 0.0, %v7298
  %7300 = vmatmul.f32.gmra.mxu0 %v7090
  %v7301 = vpop.f32.mrf.mxu0
  %v7302 = vadd.f32 0.0, %v7301
  %7303 = vmatmul.f32.gmra.mxu0 %v7093
  %v7304 = vpop.f32.mrf.mxu0
  %v7305 = vadd.f32 0.0, %v7304
  %7306 = vmatmul.f32.gmra.mxu0 %v7096
  %v7307 = vpop.f32.mrf.mxu0
  %v7308 = vadd.f32 0.0, %v7307
  %7309 = vmatmul.f32.gmra.mxu0 %v7099
  %v7310 = vpop.f32.mrf.mxu0
  %v7311 = vadd.f32 0.0, %v7310
  %7312 = vmatmul.f32.gmra.mxu0 %v7102
  %v7313 = vpop.f32.mrf.mxu0
  %v7314 = vadd.f32 0.0, %v7313
  %7315 = vmatmul.f32.gmra.mxu0 %v7105
  %v7316 = vpop.f32.mrf.mxu0
  %v7317 = vadd.f32 0.0, %v7316
  %7318 = vmatmul.f32.gmra.mxu0 %v7108
  %v7319 = vpop.f32.mrf.mxu0
  %v7320 = vadd.f32 0.0, %v7319
  %7321 = vmatmul.f32.gmra.mxu0 %v7111
  %v7322 = vpop.f32.mrf.mxu0
  %v7323 = vadd.f32 0.0, %v7322
  %7324 = vmatmul.f32.gmra.mxu0 %v7114
  %v7325 = vpop.f32.mrf.mxu0
  %v7326 = vadd.f32 0.0, %v7325
  %7327 = vmatmul.f32.gmra.mxu0 %v7117
  %v7328 = vpop.f32.mrf.mxu0
  %v7329 = vadd.f32 0.0, %v7328
  %7330 = vmatmul.f32.gmra.mxu0 %v7120
  %v7331 = vpop.f32.mrf.mxu0
  %v7332 = vadd.f32 0.0, %v7331
  %7333 = vmatmul.f32.gmra.mxu0 %v7123
  %v7334 = vpop.f32.mrf.mxu0
  %v7335 = vadd.f32 0.0, %v7334
  %7336 = vmatmul.f32.gmra.mxu0 %v7126
  %v7337 = vpop.f32.mrf.mxu0
  %v7338 = vadd.f32 0.0, %v7337
  %7339 = vmatmul.f32.gmra.mxu0 %v7129
  %v7340 = vpop.f32.mrf.mxu0
  %v7341 = vadd.f32 0.0, %v7340
  %7342 = vmatmul.f32.gmra.mxu0 %v7132
  %v7343 = vpop.f32.mrf.mxu0
  %v7344 = vadd.f32 0.0, %v7343
  %7345 = vmatmul.f32.gmra.mxu0 %v7135
  %v7346 = vpop.f32.mrf.mxu0
  %v7347 = vadd.f32 0.0, %v7346
  %7348 = vmatmul.f32.gmra.mxu0 %v7138
  %v7349 = vpop.f32.mrf.mxu0
  %v7350 = vadd.f32 0.0, %v7349
  %7351 = vmatmul.f32.gmra.mxu0 %v7141
  %v7352 = vpop.f32.mrf.mxu0
  %v7353 = vadd.f32 0.0, %v7352
  %7354 = vmatmul.f32.gmra.mxu0 %v7144
  %v7355 = vpop.f32.mrf.mxu0
  %v7356 = vadd.f32 0.0, %v7355
  %7357 = vmatmul.f32.gmra.mxu0 %v7147
  %v7358 = vpop.f32.mrf.mxu0
  %v7359 = vadd.f32 0.0, %v7358
  %7360 = vmatmul.f32.gmra.mxu0 %v7150
  %v7361 = vpop.f32.mrf.mxu0
  %v7362 = vadd.f32 0.0, %v7361
  %7363 = vmatmul.f32.gmra.mxu0 %v7153
  %v7364 = vpop.f32.mrf.mxu0
  %v7365 = vadd.f32 0.0, %v7364
  %7366 = vmatmul.f32.gmra.mxu0 %v7156
  %v7367 = vpop.f32.mrf.mxu0
  %v7368 = vadd.f32 0.0, %v7367
  %7369 = vmatmul.f32.gmra.mxu0 %v7159
  %v7370 = vpop.f32.mrf.mxu0
  %v7371 = vadd.f32 0.0, %v7370
  %7372 = vmatmul.f32.gmra.mxu0 %v7162
  %v7373 = vpop.f32.mrf.mxu0
  %v7374 = vadd.f32 0.0, %v7373
  %7375 = vmatmul.f32.gmra.mxu0 %v7165
  %v7376 = vpop.f32.mrf.mxu0
  %v7377 = vadd.f32 0.0, %v7376
  %7378 = vmatmul.f32.gmra.mxu0 %v7168
  %v7379 = vpop.f32.mrf.mxu0
  %v7380 = vadd.f32 0.0, %v7379
  %7381 = vmatmul.f32.gmra.mxu0 %v7171
  %v7382 = vpop.f32.mrf.mxu0
  %v7383 = vadd.f32 0.0, %v7382
  %7384 = vmatmul.f32.gmra.mxu0 %v7174
  %v7385 = vpop.f32.mrf.mxu0
  %v7386 = vadd.f32 0.0, %v7385
  %7387 = vmatmul.f32.gmra.mxu0 %v7177
  %v7388 = vpop.f32.mrf.mxu0
  %v7389 = vadd.f32 0.0, %v7388
  %7390 = vmatmul.f32.gmra.mxu0 %v7180
  %v7391 = vpop.f32.mrf.mxu0
  %v7392 = vadd.f32 0.0, %v7391
  %7393 = vmatmul.f32.gmra.mxu0 %v7183
  %v7394 = vpop.f32.mrf.mxu0
  %v7395 = vadd.f32 0.0, %v7394
  %7396 = vmatmul.f32.gmra.mxu0 %v7186
  %v7397 = vpop.f32.mrf.mxu0
  %v7398 = vadd.f32 0.0, %v7397
  %7399 = vmatmul.f32.gmra.mxu0 %v7189
  %v7400 = vpop.f32.mrf.mxu0
  %v7401 = vadd.f32 0.0, %v7400
  %7402 = vmatmul.f32.gmra.mxu0 %v7192
  %v7403 = vpop.f32.mrf.mxu0
  %v7404 = vadd.f32 0.0, %v7403
  %7405 = vmatmul.f32.gmra.mxu0 %v7195
  %v7406 = vpop.f32.mrf.mxu0
  %v7407 = vadd.f32 0.0, %v7406
  %7408 = vmatmul.f32.gmra.mxu0 %v7198
  %v7409 = vpop.f32.mrf.mxu0
  %v7410 = vadd.f32 0.0, %v7409
  %7411 = vmatmul.f32.gmra.mxu0 %v7201
  %v7412 = vpop.f32.mrf.mxu0
  %v7413 = vadd.f32 0.0, %v7412
  %7414 = vmatmul.f32.gmra.mxu0 %v7204
  %v7415 = vpop.f32.mrf.mxu0
  %v7416 = vadd.f32 0.0, %v7415
  %7417 = vmatmul.f32.gmra.mxu0 %v7207
  %v7418 = vpop.f32.mrf.mxu0
  %v7419 = vadd.f32 0.0, %v7418
  %7420 = vmatmul.f32.gmra.mxu0 %v7210
  %v7421 = vpop.f32.mrf.mxu0
  %v7422 = vadd.f32 0.0, %v7421
  %7423 = vmatmul.f32.gmra.mxu0 %v7213
  %v7424 = vpop.f32.mrf.mxu0
  %v7425 = vadd.f32 0.0, %v7424
  %7426 = vmatmul.f32.gmra.mxu0 %v7216
  %v7427 = vpop.f32.mrf.mxu0
  %v7428 = vadd.f32 0.0, %v7427
  %7429 = vmatmul.f32.gmra.mxu0 %v7219
  %v7430 = vpop.f32.mrf.mxu0
  %v7431 = vadd.f32 0.0, %v7430
  %7432 = vmatmul.f32.gmra.mxu0 %v7222
  %v7433 = vpop.f32.mrf.mxu0
  %v7434 = vadd.f32 0.0, %v7433
  %7435 = vmatmul.f32.gmra.mxu0 %v7225
  %v7436 = vpop.f32.mrf.mxu0
  %v7437 = vadd.f32 0.0, %v7436
  %7438 = vmatmul.f32.gmra.mxu0 %v7228
  %v7439 = vpop.f32.mrf.mxu0
  %v7440 = vadd.f32 0.0, %v7439
  %7441 = vmatmul.f32.gmra.mxu0 %v7231
  %v7442 = vpop.f32.mrf.mxu0
  %v7443 = vadd.f32 0.0, %v7442
  %7444 = vmatmul.f32.gmra.mxu0 %v7234
  %v7445 = vpop.f32.mrf.mxu0
  %v7446 = vadd.f32 0.0, %v7445
  %7447 = vmatmul.f32.gmra.mxu0 %v7237
  %v7448 = vpop.f32.mrf.mxu0
  %v7449 = vadd.f32 0.0, %v7448
  %7450 = vmatmul.f32.gmra.mxu0 %v7240
  %v7451 = vpop.f32.mrf.mxu0
  %v7452 = vadd.f32 0.0, %v7451
  %7453 = vmatmul.f32.gmra.mxu0 %v7243
  %v7454 = vpop.f32.mrf.mxu0
  %v7455 = vadd.f32 0.0, %v7454
  %7456 = vmatmul.f32.gmra.mxu0 %v7246
  %v7457 = vpop.f32.mrf.mxu0
  %v7458 = vadd.f32 0.0, %v7457
  %7459 = vmatmul.f32.gmra.mxu0 %v7249
  %v7460 = vpop.f32.mrf.mxu0
  %v7461 = vadd.f32 0.0, %v7460
  %7462 = vmatmul.f32.gmra.mxu0 %v7252
  %v7463 = vpop.f32.mrf.mxu0
  %v7464 = vadd.f32 0.0, %v7463
  %7465 = vmatmul.f32.gmra.mxu0 %v7255
  %v7466 = vpop.f32.mrf.mxu0
  %v7467 = vadd.f32 0.0, %v7466
  %7468 = vmatmul.f32.gmra.mxu0 %v7258
  %v7469 = vpop.f32.mrf.mxu0
  %v7470 = vadd.f32 0.0, %v7469
  %7471 = vmatmul.f32.gmra.mxu0 %v7261
  %v7472 = vpop.f32.mrf.mxu0
  %v7473 = vadd.f32 0.0, %v7472
  %7474 = vmatmul.f32.gmra.mxu0 %v7264
  %v7475 = vpop.f32.mrf.mxu0
  %v7476 = vadd.f32 0.0, %v7475
  %7477 = vmatmul.f32.gmra.mxu0 %v7267
  %v7478 = vpop.f32.mrf.mxu0
  %v7479 = vadd.f32 0.0, %v7478
  %7480 = vmatmul.f32.gmra.mxu0 %v7270
  %v7481 = vpop.f32.mrf.mxu0
  %v7482 = vadd.f32 0.0, %v7481
  %7483 = vdwg.mxu0
  %v7484 = vadd.f32 %v6950, %v7293
  %v7485 = vadd.f32 %v6951, %v7296
  %v7486 = vadd.f32 %v6952, %v7299
  %v7487 = vadd.f32 %v6953, %v7302
  %v7488 = vadd.f32 %v6954, %v7305
  %v7489 = vadd.f32 %v6955, %v7308
  %v7490 = vadd.f32 %v6956, %v7311
  %v7491 = vadd.f32 %v6957, %v7314
  %v7492 = vadd.f32 %v6958, %v7317
  %v7493 = vadd.f32 %v6959, %v7320
  %v7494 = vadd.f32 %v6960, %v7323
  %v7495 = vadd.f32 %v6961, %v7326
  %v7496 = vadd.f32 %v6962, %v7329
  %v7497 = vadd.f32 %v6963, %v7332
  %v7498 = vadd.f32 %v6964, %v7335
  %v7499 = vadd.f32 %v6965, %v7338
  %v7500 = vadd.f32 %v6966, %v7341
  %v7501 = vadd.f32 %v6967, %v7344
  %v7502 = vadd.f32 %v6968, %v7347
  %v7503 = vadd.f32 %v6969, %v7350
  %v7504 = vadd.f32 %v6970, %v7353
  %v7505 = vadd.f32 %v6971, %v7356
  %v7506 = vadd.f32 %v6972, %v7359
  %v7507 = vadd.f32 %v6973, %v7362
  %v7508 = vadd.f32 %v6974, %v7365
  %v7509 = vadd.f32 %v6975, %v7368
  %v7510 = vadd.f32 %v6976, %v7371
  %v7511 = vadd.f32 %v6977, %v7374
  %v7512 = vadd.f32 %v6978, %v7377
  %v7513 = vadd.f32 %v6979, %v7380
  %v7514 = vadd.f32 %v6980, %v7383
  %v7515 = vadd.f32 %v6981, %v7386
  %v7516 = vadd.f32 %v6982, %v7389
  %v7517 = vadd.f32 %v6983, %v7392
  %v7518 = vadd.f32 %v6984, %v7395
  %v7519 = vadd.f32 %v6985, %v7398
  %v7520 = vadd.f32 %v6986, %v7401
  %v7521 = vadd.f32 %v6987, %v7404
  %v7522 = vadd.f32 %v6988, %v7407
  %v7523 = vadd.f32 %v6989, %v7410
  %v7524 = vadd.f32 %v6990, %v7413
  %v7525 = vadd.f32 %v6991, %v7416
  %v7526 = vadd.f32 %v6992, %v7419
  %v7527 = vadd.f32 %v6993, %v7422
  %v7528 = vadd.f32 %v6994, %v7425
  %v7529 = vadd.f32 %v6995, %v7428
  %v7530 = vadd.f32 %v6996, %v7431
  %v7531 = vadd.f32 %v6997, %v7434
  %v7532 = vadd.f32 %v6998, %v7437
  %v7533 = vadd.f32 %v6999, %v7440
  %v7534 = vadd.f32 %v7000, %v7443
  %v7535 = vadd.f32 %v7001, %v7446
  %v7536 = vadd.f32 %v7002, %v7449
  %v7537 = vadd.f32 %v7003, %v7452
  %v7538 = vadd.f32 %v7004, %v7455
  %v7539 = vadd.f32 %v7005, %v7458
  %v7540 = vadd.f32 %v7006, %v7461
  %v7541 = vadd.f32 %v7007, %v7464
  %v7542 = vadd.f32 %v7008, %v7467
  %v7543 = vadd.f32 %v7009, %v7470
  %v7544 = vadd.f32 %v7010, %v7473
  %v7545 = vadd.f32 %v7011, %v7476
  %v7546 = vadd.f32 %v7012, %v7479
  %v7547 = vadd.f32 %v7013, %v7482
  %v7548 = vld [vmem:[%s4942 + $0x2] sm:$0xff]
  %v7549 = vld [vmem:[%s4942 + $0xa] sm:$0xff]
  %v7550 = vld [vmem:[%s4942 + $0x1a] sm:$0xff]
  %v7551 = vld [vmem:[%s4942 + $0x22] sm:$0xff]
  %v7552 = vld [vmem:[%s4942 + $0x32] sm:$0xff]
  %v7553 = vld [vmem:[%s4942 + $0x3a] sm:$0xff]
  %v7554 = vld [vmem:[%s4942 + $0x4a] sm:$0xff]
  %v7555 = vld [vmem:[%s4942 + $0x52] sm:$0xff]
  %v7556 = vld [vmem:[%s4942 + $0x62] sm:$0xff]
  %v7557 = vld [vmem:[%s4942 + $0x6a] sm:$0xff]
  %v7558 = vld [vmem:[%s4942 + $0x7a] sm:$0xff]
  %v7559 = vld [vmem:[%s4942 + $0x82] sm:$0xff]
  %v7560 = vld [vmem:[%s4942 + $0x92] sm:$0xff]
  %v7561 = vld [vmem:[%s4942 + $0x9a] sm:$0xff]
  %v7562 = vld [vmem:[%s4942 + $0xaa] sm:$0xff]
  %v7563 = vld [vmem:[%s4942 + $0xb2] sm:$0xff]
  %v7564 = vld [vmem:[%s4942 + $0xc2] sm:$0xff]
  %v7565 = vld [vmem:[%s4942 + $0xca] sm:$0xff]
  %v7566 = vld [vmem:[%s4942 + $0xda] sm:$0xff]
  %v7567 = vld [vmem:[%s4942 + $0xe2] sm:$0xff]
  %v7568 = vld [vmem:[%s4942 + $0xf2] sm:$0xff]
  %v7569 = vld [vmem:[%s4942 + $0xfa] sm:$0xff]
  %v7570 = vld [vmem:[%s4942 + $0x10a] sm:$0xff]
  %v7571 = vld [vmem:[%s4942 + $0x112] sm:$0xff]
  %v7572 = vld [vmem:[%s4942 + $0x122] sm:$0xff]
  %v7573 = vld [vmem:[%s4942 + $0x12a] sm:$0xff]
  %v7574 = vld [vmem:[%s4942 + $0x13a] sm:$0xff]
  %v7575 = vld [vmem:[%s4942 + $0x142] sm:$0xff]
  %v7576 = vld [vmem:[%s4942 + $0x152] sm:$0xff]
  %v7577 = vld [vmem:[%s4942 + $0x15a] sm:$0xff]
  %v7578 = vld [vmem:[%s4942 + $0x16a] sm:$0xff]
  %v7579 = vld [vmem:[%s4942 + $0x172] sm:$0xff]
  %v7580 = vld [vmem:[%s4942 + $0x1b2] sm:$0xff]
  %v7581 = vld [vmem:[%s4942 + $0x1ba] sm:$0xff]
  %v7582 = vld [vmem:[%s4942 + $0x1ca] sm:$0xff]
  %v7583 = vld [vmem:[%s4942 + $0x1d2] sm:$0xff]
  %v7584 = vld [vmem:[%s4942 + $0x1e2] sm:$0xff]
  %v7585 = vld [vmem:[%s4942 + $0x1ea] sm:$0xff]
  %v7586 = vld [vmem:[%s4942 + $0x1fa] sm:$0xff]
  %v7587 = vld [vmem:[%s4942 + $0x202] sm:$0xff]
  %v7588 = vld [vmem:[%s4942 + $0x212] sm:$0xff]
  %v7589 = vld [vmem:[%s4942 + $0x21a] sm:$0xff]
  %v7590 = vld [vmem:[%s4942 + $0x22a] sm:$0xff]
  %v7591 = vld [vmem:[%s4942 + $0x232] sm:$0xff]
  %v7592 = vld [vmem:[%s4942 + $0x242] sm:$0xff]
  %v7593 = vld [vmem:[%s4942 + $0x24a] sm:$0xff]
  %v7594 = vld [vmem:[%s4942 + $0x25a] sm:$0xff]
  %v7595 = vld [vmem:[%s4942 + $0x262] sm:$0xff]
  %v7596 = vld [vmem:[%s4942 + $0x272] sm:$0xff]
  %v7597 = vld [vmem:[%s4942 + $0x27a] sm:$0xff]
  %v7598 = vld [vmem:[%s4942 + $0x28a] sm:$0xff]
  %v7599 = vld [vmem:[%s4942 + $0x292] sm:$0xff]
  %v7600 = vld [vmem:[%s4942 + $0x2a2] sm:$0xff]
  %v7601 = vld [vmem:[%s4942 + $0x2aa] sm:$0xff]
  %v7602 = vld [vmem:[%s4942 + $0x2ba] sm:$0xff]
  %v7603 = vld [vmem:[%s4942 + $0x2c2] sm:$0xff]
  %v7604 = vld [vmem:[%s4942 + $0x2d2] sm:$0xff]
  %v7605 = vld [vmem:[%s4942 + $0x2da] sm:$0xff]
  %v7606 = vld [vmem:[%s4942 + $0x2ea] sm:$0xff]
  %v7607 = vld [vmem:[%s4942 + $0x2f2] sm:$0xff]
  %v7608 = vld [vmem:[%s4942 + $0x302] sm:$0xff]
  %v7609 = vld [vmem:[%s4942 + $0x30a] sm:$0xff]
  %v7610 = vld [vmem:[%s4942 + $0x31a] sm:$0xff]
  %v7611 = vld [vmem:[%s4942 + $0x322] sm:$0xff]
  %s7612 = scalar_lea.vmem %s3, 20
  %v7613 = vld [vmem:[%s7612] sm:$0xf]
  %v7615 = vsel %vm151, %v7548, 0
  %v7618 = vsel %vm151, %v7549, 0
  %v7621 = vsel %vm151, %v7550, 0
  %v7624 = vsel %vm151, %v7551, 0
  %v7627 = vsel %vm151, %v7552, 0
  %v7630 = vsel %vm151, %v7553, 0
  %v7633 = vsel %vm151, %v7554, 0
  %v7636 = vsel %vm151, %v7555, 0
  %v7639 = vsel %vm151, %v7556, 0
  %v7642 = vsel %vm151, %v7557, 0
  %v7645 = vsel %vm151, %v7558, 0
  %v7648 = vsel %vm151, %v7559, 0
  %v7651 = vsel %vm151, %v7560, 0
  %v7654 = vsel %vm151, %v7561, 0
  %v7657 = vsel %vm151, %v7562, 0
  %v7660 = vsel %vm151, %v7563, 0
  %v7663 = vsel %vm151, %v7564, 0
  %v7666 = vsel %vm151, %v7565, 0
  %v7669 = vsel %vm151, %v7566, 0
  %v7672 = vsel %vm151, %v7567, 0
  %v7675 = vsel %vm151, %v7568, 0
  %v7678 = vsel %vm151, %v7569, 0
  %v7681 = vsel %vm151, %v7570, 0
  %v7684 = vsel %vm151, %v7571, 0
  %v7687 = vsel %vm151, %v7572, 0
  %v7690 = vsel %vm151, %v7573, 0
  %v7693 = vsel %vm151, %v7574, 0
  %v7696 = vsel %vm151, %v7575, 0
  %v7699 = vsel %vm151, %v7576, 0
  %v7702 = vsel %vm151, %v7577, 0
  %v7705 = vsel %vm151, %v7578, 0
  %v7708 = vsel %vm151, %v7579, 0
  %v7711 = vsel %vm151, %v7580, 0
  %v7714 = vsel %vm151, %v7581, 0
  %v7717 = vsel %vm151, %v7582, 0
  %v7720 = vsel %vm151, %v7583, 0
  %v7723 = vsel %vm151, %v7584, 0
  %v7726 = vsel %vm151, %v7585, 0
  %v7729 = vsel %vm151, %v7586, 0
  %v7732 = vsel %vm151, %v7587, 0
  %v7735 = vsel %vm151, %v7588, 0
  %v7738 = vsel %vm151, %v7589, 0
  %v7741 = vsel %vm151, %v7590, 0
  %v7744 = vsel %vm151, %v7591, 0
  %v7747 = vsel %vm151, %v7592, 0
  %v7750 = vsel %vm151, %v7593, 0
  %v7753 = vsel %vm151, %v7594, 0
  %v7756 = vsel %vm151, %v7595, 0
  %v7759 = vsel %vm151, %v7596, 0
  %v7762 = vsel %vm151, %v7597, 0
  %v7765 = vsel %vm151, %v7598, 0
  %v7768 = vsel %vm151, %v7599, 0
  %v7771 = vsel %vm151, %v7600, 0
  %v7774 = vsel %vm151, %v7601, 0
  %v7777 = vsel %vm151, %v7602, 0
  %v7780 = vsel %vm151, %v7603, 0
  %v7783 = vsel %vm151, %v7604, 0
  %v7786 = vsel %vm151, %v7605, 0
  %v7789 = vsel %vm151, %v7606, 0
  %v7792 = vsel %vm151, %v7607, 0
  %v7795 = vsel %vm151, %v7608, 0
  %v7798 = vsel %vm151, %v7609, 0
  %v7801 = vsel %vm151, %v7610, 0
  %v7804 = vsel %vm151, %v7611, 0
  %v7807 = vsel %vm344, %v7613, 0
  %7809 = vmatpush.msra.mxu0 0.0
  %7810 = vmatpush.msra.mxu0 0.0
  %7811 = vmatpush.msra.mxu0 0.0
  %7812 = vmatpush.msra.mxu0 0.0
  %7813 = vmatpush.msra.mxu0 0.0
  %7814 = vmatpush.msra.mxu0 0.0
  %7815 = vmatpush.msra.mxu0 0.0
  %7816 = vmatpush.msra.mxu0 0.0
  %7817 = vmatpush.msra.mxu0 0.0
  %7818 = vmatpush.msra.mxu0 0.0
  %7819 = vmatpush.msra.mxu0 0.0
  %7820 = vmatpush.msra.mxu0 0.0
  %7821 = vmatpush.msra.mxu0 0.0
  %7822 = vmatpush.msra.mxu0 0.0
  %7823 = vmatpush.msra.mxu0 0.0
  %7824 = vmatpush.msra.mxu0 %v7807
  %7825 = vmatmul.f32.gmra.mxu0 %v7615
  %v7826 = vpop.f32.mrf.mxu0
  %v7827 = vadd.f32 0.0, %v7826
  %7828 = vmatmul.f32.gmra.mxu0 %v7618
  %v7829 = vpop.f32.mrf.mxu0
  %v7830 = vadd.f32 0.0, %v7829
  %7831 = vmatmul.f32.gmra.mxu0 %v7621
  %v7832 = vpop.f32.mrf.mxu0
  %v7833 = vadd.f32 0.0, %v7832
  %7834 = vmatmul.f32.gmra.mxu0 %v7624
  %v7835 = vpop.f32.mrf.mxu0
  %v7836 = vadd.f32 0.0, %v7835
  %7837 = vmatmul.f32.gmra.mxu0 %v7627
  %v7838 = vpop.f32.mrf.mxu0
  %v7839 = vadd.f32 0.0, %v7838
  %7840 = vmatmul.f32.gmra.mxu0 %v7630
  %v7841 = vpop.f32.mrf.mxu0
  %v7842 = vadd.f32 0.0, %v7841
  %7843 = vmatmul.f32.gmra.mxu0 %v7633
  %v7844 = vpop.f32.mrf.mxu0
  %v7845 = vadd.f32 0.0, %v7844
  %7846 = vmatmul.f32.gmra.mxu0 %v7636
  %v7847 = vpop.f32.mrf.mxu0
  %v7848 = vadd.f32 0.0, %v7847
  %7849 = vmatmul.f32.gmra.mxu0 %v7639
  %v7850 = vpop.f32.mrf.mxu0
  %v7851 = vadd.f32 0.0, %v7850
  %7852 = vmatmul.f32.gmra.mxu0 %v7642
  %v7853 = vpop.f32.mrf.mxu0
  %v7854 = vadd.f32 0.0, %v7853
  %7855 = vmatmul.f32.gmra.mxu0 %v7645
  %v7856 = vpop.f32.mrf.mxu0
  %v7857 = vadd.f32 0.0, %v7856
  %7858 = vmatmul.f32.gmra.mxu0 %v7648
  %v7859 = vpop.f32.mrf.mxu0
  %v7860 = vadd.f32 0.0, %v7859
  %7861 = vmatmul.f32.gmra.mxu0 %v7651
  %v7862 = vpop.f32.mrf.mxu0
  %v7863 = vadd.f32 0.0, %v7862
  %7864 = vmatmul.f32.gmra.mxu0 %v7654
  %v7865 = vpop.f32.mrf.mxu0
  %v7866 = vadd.f32 0.0, %v7865
  %7867 = vmatmul.f32.gmra.mxu0 %v7657
  %v7868 = vpop.f32.mrf.mxu0
  %v7869 = vadd.f32 0.0, %v7868
  %7870 = vmatmul.f32.gmra.mxu0 %v7660
  %v7871 = vpop.f32.mrf.mxu0
  %v7872 = vadd.f32 0.0, %v7871
  %7873 = vmatmul.f32.gmra.mxu0 %v7663
  %v7874 = vpop.f32.mrf.mxu0
  %v7875 = vadd.f32 0.0, %v7874
  %7876 = vmatmul.f32.gmra.mxu0 %v7666
  %v7877 = vpop.f32.mrf.mxu0
  %v7878 = vadd.f32 0.0, %v7877
  %7879 = vmatmul.f32.gmra.mxu0 %v7669
  %v7880 = vpop.f32.mrf.mxu0
  %v7881 = vadd.f32 0.0, %v7880
  %7882 = vmatmul.f32.gmra.mxu0 %v7672
  %v7883 = vpop.f32.mrf.mxu0
  %v7884 = vadd.f32 0.0, %v7883
  %7885 = vmatmul.f32.gmra.mxu0 %v7675
  %v7886 = vpop.f32.mrf.mxu0
  %v7887 = vadd.f32 0.0, %v7886
  %7888 = vmatmul.f32.gmra.mxu0 %v7678
  %v7889 = vpop.f32.mrf.mxu0
  %v7890 = vadd.f32 0.0, %v7889
  %7891 = vmatmul.f32.gmra.mxu0 %v7681
  %v7892 = vpop.f32.mrf.mxu0
  %v7893 = vadd.f32 0.0, %v7892
  %7894 = vmatmul.f32.gmra.mxu0 %v7684
  %v7895 = vpop.f32.mrf.mxu0
  %v7896 = vadd.f32 0.0, %v7895
  %7897 = vmatmul.f32.gmra.mxu0 %v7687
  %v7898 = vpop.f32.mrf.mxu0
  %v7899 = vadd.f32 0.0, %v7898
  %7900 = vmatmul.f32.gmra.mxu0 %v7690
  %v7901 = vpop.f32.mrf.mxu0
  %v7902 = vadd.f32 0.0, %v7901
  %7903 = vmatmul.f32.gmra.mxu0 %v7693
  %v7904 = vpop.f32.mrf.mxu0
  %v7905 = vadd.f32 0.0, %v7904
  %7906 = vmatmul.f32.gmra.mxu0 %v7696
  %v7907 = vpop.f32.mrf.mxu0
  %v7908 = vadd.f32 0.0, %v7907
  %7909 = vmatmul.f32.gmra.mxu0 %v7699
  %v7910 = vpop.f32.mrf.mxu0
  %v7911 = vadd.f32 0.0, %v7910
  %7912 = vmatmul.f32.gmra.mxu0 %v7702
  %v7913 = vpop.f32.mrf.mxu0
  %v7914 = vadd.f32 0.0, %v7913
  %7915 = vmatmul.f32.gmra.mxu0 %v7705
  %v7916 = vpop.f32.mrf.mxu0
  %v7917 = vadd.f32 0.0, %v7916
  %7918 = vmatmul.f32.gmra.mxu0 %v7708
  %v7919 = vpop.f32.mrf.mxu0
  %v7920 = vadd.f32 0.0, %v7919
  %7921 = vmatmul.f32.gmra.mxu0 %v7711
  %v7922 = vpop.f32.mrf.mxu0
  %v7923 = vadd.f32 0.0, %v7922
  %7924 = vmatmul.f32.gmra.mxu0 %v7714
  %v7925 = vpop.f32.mrf.mxu0
  %v7926 = vadd.f32 0.0, %v7925
  %7927 = vmatmul.f32.gmra.mxu0 %v7717
  %v7928 = vpop.f32.mrf.mxu0
  %v7929 = vadd.f32 0.0, %v7928
  %7930 = vmatmul.f32.gmra.mxu0 %v7720
  %v7931 = vpop.f32.mrf.mxu0
  %v7932 = vadd.f32 0.0, %v7931
  %7933 = vmatmul.f32.gmra.mxu0 %v7723
  %v7934 = vpop.f32.mrf.mxu0
  %v7935 = vadd.f32 0.0, %v7934
  %7936 = vmatmul.f32.gmra.mxu0 %v7726
  %v7937 = vpop.f32.mrf.mxu0
  %v7938 = vadd.f32 0.0, %v7937
  %7939 = vmatmul.f32.gmra.mxu0 %v7729
  %v7940 = vpop.f32.mrf.mxu0
  %v7941 = vadd.f32 0.0, %v7940
  %7942 = vmatmul.f32.gmra.mxu0 %v7732
  %v7943 = vpop.f32.mrf.mxu0
  %v7944 = vadd.f32 0.0, %v7943
  %7945 = vmatmul.f32.gmra.mxu0 %v7735
  %v7946 = vpop.f32.mrf.mxu0
  %v7947 = vadd.f32 0.0, %v7946
  %7948 = vmatmul.f32.gmra.mxu0 %v7738
  %v7949 = vpop.f32.mrf.mxu0
  %v7950 = vadd.f32 0.0, %v7949
  %7951 = vmatmul.f32.gmra.mxu0 %v7741
  %v7952 = vpop.f32.mrf.mxu0
  %v7953 = vadd.f32 0.0, %v7952
  %7954 = vmatmul.f32.gmra.mxu0 %v7744
  %v7955 = vpop.f32.mrf.mxu0
  %v7956 = vadd.f32 0.0, %v7955
  %7957 = vmatmul.f32.gmra.mxu0 %v7747
  %v7958 = vpop.f32.mrf.mxu0
  %v7959 = vadd.f32 0.0, %v7958
  %7960 = vmatmul.f32.gmra.mxu0 %v7750
  %v7961 = vpop.f32.mrf.mxu0
  %v7962 = vadd.f32 0.0, %v7961
  %7963 = vmatmul.f32.gmra.mxu0 %v7753
  %v7964 = vpop.f32.mrf.mxu0
  %v7965 = vadd.f32 0.0, %v7964
  %7966 = vmatmul.f32.gmra.mxu0 %v7756
  %v7967 = vpop.f32.mrf.mxu0
  %v7968 = vadd.f32 0.0, %v7967
  %7969 = vmatmul.f32.gmra.mxu0 %v7759
  %v7970 = vpop.f32.mrf.mxu0
  %v7971 = vadd.f32 0.0, %v7970
  %7972 = vmatmul.f32.gmra.mxu0 %v7762
  %v7973 = vpop.f32.mrf.mxu0
  %v7974 = vadd.f32 0.0, %v7973
  %7975 = vmatmul.f32.gmra.mxu0 %v7765
  %v7976 = vpop.f32.mrf.mxu0
  %v7977 = vadd.f32 0.0, %v7976
  %7978 = vmatmul.f32.gmra.mxu0 %v7768
  %v7979 = vpop.f32.mrf.mxu0
  %v7980 = vadd.f32 0.0, %v7979
  %7981 = vmatmul.f32.gmra.mxu0 %v7771
  %v7982 = vpop.f32.mrf.mxu0
  %v7983 = vadd.f32 0.0, %v7982
  %7984 = vmatmul.f32.gmra.mxu0 %v7774
  %v7985 = vpop.f32.mrf.mxu0
  %v7986 = vadd.f32 0.0, %v7985
  %7987 = vmatmul.f32.gmra.mxu0 %v7777
  %v7988 = vpop.f32.mrf.mxu0
  %v7989 = vadd.f32 0.0, %v7988
  %7990 = vmatmul.f32.gmra.mxu0 %v7780
  %v7991 = vpop.f32.mrf.mxu0
  %v7992 = vadd.f32 0.0, %v7991
  %7993 = vmatmul.f32.gmra.mxu0 %v7783
  %v7994 = vpop.f32.mrf.mxu0
  %v7995 = vadd.f32 0.0, %v7994
  %7996 = vmatmul.f32.gmra.mxu0 %v7786
  %v7997 = vpop.f32.mrf.mxu0
  %v7998 = vadd.f32 0.0, %v7997
  %7999 = vmatmul.f32.gmra.mxu0 %v7789
  %v8000 = vpop.f32.mrf.mxu0
  %v8001 = vadd.f32 0.0, %v8000
  %8002 = vmatmul.f32.gmra.mxu0 %v7792
  %v8003 = vpop.f32.mrf.mxu0
  %v8004 = vadd.f32 0.0, %v8003
  %8005 = vmatmul.f32.gmra.mxu0 %v7795
  %v8006 = vpop.f32.mrf.mxu0
  %v8007 = vadd.f32 0.0, %v8006
  %8008 = vmatmul.f32.gmra.mxu0 %v7798
  %v8009 = vpop.f32.mrf.mxu0
  %v8010 = vadd.f32 0.0, %v8009
  %8011 = vmatmul.f32.gmra.mxu0 %v7801
  %v8012 = vpop.f32.mrf.mxu0
  %v8013 = vadd.f32 0.0, %v8012
  %8014 = vmatmul.f32.gmra.mxu0 %v7804
  %v8015 = vpop.f32.mrf.mxu0
  %v8016 = vadd.f32 0.0, %v8015
  %8017 = vdwg.mxu0
  %v8018 = vadd.f32 %v7484, %v7827
  %v8019 = vadd.f32 %v7485, %v7830
  %v8020 = vadd.f32 %v7486, %v7833
  %v8021 = vadd.f32 %v7487, %v7836
  %v8022 = vadd.f32 %v7488, %v7839
  %v8023 = vadd.f32 %v7489, %v7842
  %v8024 = vadd.f32 %v7490, %v7845
  %v8025 = vadd.f32 %v7491, %v7848
  %v8026 = vadd.f32 %v7492, %v7851
  %v8027 = vadd.f32 %v7493, %v7854
  %v8028 = vadd.f32 %v7494, %v7857
  %v8029 = vadd.f32 %v7495, %v7860
  %v8030 = vadd.f32 %v7496, %v7863
  %v8031 = vadd.f32 %v7497, %v7866
  %v8032 = vadd.f32 %v7498, %v7869
  %v8033 = vadd.f32 %v7499, %v7872
  %v8034 = vadd.f32 %v7500, %v7875
  %v8035 = vadd.f32 %v7501, %v7878
  %v8036 = vadd.f32 %v7502, %v7881
  %v8037 = vadd.f32 %v7503, %v7884
  %v8038 = vadd.f32 %v7504, %v7887
  %v8039 = vadd.f32 %v7505, %v7890
  %v8040 = vadd.f32 %v7506, %v7893
  %v8041 = vadd.f32 %v7507, %v7896
  %v8042 = vadd.f32 %v7508, %v7899
  %v8043 = vadd.f32 %v7509, %v7902
  %v8044 = vadd.f32 %v7510, %v7905
  %v8045 = vadd.f32 %v7511, %v7908
  %v8046 = vadd.f32 %v7512, %v7911
  %v8047 = vadd.f32 %v7513, %v7914
  %v8048 = vadd.f32 %v7514, %v7917
  %v8049 = vadd.f32 %v7515, %v7920
  %v8050 = vadd.f32 %v7516, %v7923
  %v8051 = vadd.f32 %v7517, %v7926
  %v8052 = vadd.f32 %v7518, %v7929
  %v8053 = vadd.f32 %v7519, %v7932
  %v8054 = vadd.f32 %v7520, %v7935
  %v8055 = vadd.f32 %v7521, %v7938
  %v8056 = vadd.f32 %v7522, %v7941
  %v8057 = vadd.f32 %v7523, %v7944
  %v8058 = vadd.f32 %v7524, %v7947
  %v8059 = vadd.f32 %v7525, %v7950
  %v8060 = vadd.f32 %v7526, %v7953
  %v8061 = vadd.f32 %v7527, %v7956
  %v8062 = vadd.f32 %v7528, %v7959
  %v8063 = vadd.f32 %v7529, %v7962
  %v8064 = vadd.f32 %v7530, %v7965
  %v8065 = vadd.f32 %v7531, %v7968
  %v8066 = vadd.f32 %v7532, %v7971
  %v8067 = vadd.f32 %v7533, %v7974
  %v8068 = vadd.f32 %v7534, %v7977
  %v8069 = vadd.f32 %v7535, %v7980
  %v8070 = vadd.f32 %v7536, %v7983
  %v8071 = vadd.f32 %v7537, %v7986
  %v8072 = vadd.f32 %v7538, %v7989
  %v8073 = vadd.f32 %v7539, %v7992
  %v8074 = vadd.f32 %v7540, %v7995
  %v8075 = vadd.f32 %v7541, %v7998
  %v8076 = vadd.f32 %v7542, %v8001
  %v8077 = vadd.f32 %v7543, %v8004
  %v8078 = vadd.f32 %v7544, %v8007
  %v8079 = vadd.f32 %v7545, %v8010
  %v8080 = vadd.f32 %v7546, %v8013
  %v8081 = vadd.f32 %v7547, %v8016
  %s8082 = scalar_lea.vmem [#allocation2], 48
  %v8083 = vld [vmem:[%s8082] sm:$0xff]
  %v8084 = vld [vmem:[%s8082 + $0x8] sm:$0xff]
  %v8085 = vld [vmem:[%s8082 + $0x18] sm:$0xff]
  %v8086 = vld [vmem:[%s8082 + $0x20] sm:$0xff]
  %v8087 = vld [vmem:[%s8082 + $0x30] sm:$0xff]
  %v8088 = vld [vmem:[%s8082 + $0x38] sm:$0xff]
  %v8089 = vld [vmem:[%s8082 + $0x48] sm:$0xff]
  %v8090 = vld [vmem:[%s8082 + $0x50] sm:$0xff]
  %v8091 = vld [vmem:[%s8082 + $0x60] sm:$0xff]
  %v8092 = vld [vmem:[%s8082 + $0x68] sm:$0xff]
  %v8093 = vld [vmem:[%s8082 + $0x78] sm:$0xff]
  %v8094 = vld [vmem:[%s8082 + $0x80] sm:$0xff]
  %v8095 = vld [vmem:[%s8082 + $0x90] sm:$0xff]
  %v8096 = vld [vmem:[%s8082 + $0x98] sm:$0xff]
  %v8097 = vld [vmem:[%s8082 + $0xa8] sm:$0xff]
  %v8098 = vld [vmem:[%s8082 + $0xb0] sm:$0xff]
  %v8099 = vld [vmem:[%s8082 + $0xc0] sm:$0xff]
  %v8100 = vld [vmem:[%s8082 + $0xc8] sm:$0xff]
  %v8101 = vld [vmem:[%s8082 + $0xd8] sm:$0xff]
  %v8102 = vld [vmem:[%s8082 + $0xe0] sm:$0xff]
  %v8103 = vld [vmem:[%s8082 + $0xf0] sm:$0xff]
  %v8104 = vld [vmem:[%s8082 + $0xf8] sm:$0xff]
  %v8105 = vld [vmem:[%s8082 + $0x108] sm:$0xff]
  %v8106 = vld [vmem:[%s8082 + $0x110] sm:$0xff]
  %v8107 = vld [vmem:[%s8082 + $0x120] sm:$0xff]
  %v8108 = vld [vmem:[%s8082 + $0x128] sm:$0xff]
  %v8109 = vld [vmem:[%s8082 + $0x138] sm:$0xff]
  %v8110 = vld [vmem:[%s8082 + $0x140] sm:$0xff]
  %v8111 = vld [vmem:[%s8082 + $0x150] sm:$0xff]
  %v8112 = vld [vmem:[%s8082 + $0x158] sm:$0xff]
  %v8113 = vld [vmem:[%s8082 + $0x168] sm:$0xff]
  %v8114 = vld [vmem:[%s8082 + $0x170] sm:$0xff]
  %v8115 = vld [vmem:[%s8082 + $0x1b0] sm:$0xff]
  %v8116 = vld [vmem:[%s8082 + $0x1b8] sm:$0xff]
  %v8117 = vld [vmem:[%s8082 + $0x1c8] sm:$0xff]
  %v8118 = vld [vmem:[%s8082 + $0x1d0] sm:$0xff]
  %v8119 = vld [vmem:[%s8082 + $0x1e0] sm:$0xff]
  %v8120 = vld [vmem:[%s8082 + $0x1e8] sm:$0xff]
  %v8121 = vld [vmem:[%s8082 + $0x1f8] sm:$0xff]
  %v8122 = vld [vmem:[%s8082 + $0x200] sm:$0xff]
  %v8123 = vld [vmem:[%s8082 + $0x210] sm:$0xff]
  %v8124 = vld [vmem:[%s8082 + $0x218] sm:$0xff]
  %v8125 = vld [vmem:[%s8082 + $0x228] sm:$0xff]
  %v8126 = vld [vmem:[%s8082 + $0x230] sm:$0xff]
  %v8127 = vld [vmem:[%s8082 + $0x240] sm:$0xff]
  %v8128 = vld [vmem:[%s8082 + $0x248] sm:$0xff]
  %v8129 = vld [vmem:[%s8082 + $0x258] sm:$0xff]
  %v8130 = vld [vmem:[%s8082 + $0x260] sm:$0xff]
  %v8131 = vld [vmem:[%s8082 + $0x270] sm:$0xff]
  %v8132 = vld [vmem:[%s8082 + $0x278] sm:$0xff]
  %v8133 = vld [vmem:[%s8082 + $0x288] sm:$0xff]
  %v8134 = vld [vmem:[%s8082 + $0x290] sm:$0xff]
  %v8135 = vld [vmem:[%s8082 + $0x2a0] sm:$0xff]
  %v8136 = vld [vmem:[%s8082 + $0x2a8] sm:$0xff]
  %v8137 = vld [vmem:[%s8082 + $0x2b8] sm:$0xff]
  %v8138 = vld [vmem:[%s8082 + $0x2c0] sm:$0xff]
  %v8139 = vld [vmem:[%s8082 + $0x2d0] sm:$0xff]
  %v8140 = vld [vmem:[%s8082 + $0x2d8] sm:$0xff]
  %v8141 = vld [vmem:[%s8082 + $0x2e8] sm:$0xff]
  %v8142 = vld [vmem:[%s8082 + $0x2f0] sm:$0xff]
  %v8143 = vld [vmem:[%s8082 + $0x300] sm:$0xff]
  %v8144 = vld [vmem:[%s8082 + $0x308] sm:$0xff]
  %v8145 = vld [vmem:[%s8082 + $0x318] sm:$0xff]
  %v8146 = vld [vmem:[%s8082 + $0x320] sm:$0xff]
  %s8147 = scalar_lea.vmem %s3, 24
  %v8148 = vld [vmem:[%s8147] sm:$0xf]
  %v8150 = vsel %vm151, %v8083, 0
  %v8153 = vsel %vm151, %v8084, 0
  %v8156 = vsel %vm151, %v8085, 0
  %v8159 = vsel %vm151, %v8086, 0
  %v8162 = vsel %vm151, %v8087, 0
  %v8165 = vsel %vm151, %v8088, 0
  %v8168 = vsel %vm151, %v8089, 0
  %v8171 = vsel %vm151, %v8090, 0
  %v8174 = vsel %vm151, %v8091, 0
  %v8177 = vsel %vm151, %v8092, 0
  %v8180 = vsel %vm151, %v8093, 0
  %v8183 = vsel %vm151, %v8094, 0
  %v8186 = vsel %vm151, %v8095, 0
  %v8189 = vsel %vm151, %v8096, 0
  %v8192 = vsel %vm151, %v8097, 0
  %v8195 = vsel %vm151, %v8098, 0
  %v8198 = vsel %vm151, %v8099, 0
  %v8201 = vsel %vm151, %v8100, 0
  %v8204 = vsel %vm151, %v8101, 0
  %v8207 = vsel %vm151, %v8102, 0
  %v8210 = vsel %vm151, %v8103, 0
  %v8213 = vsel %vm151, %v8104, 0
  %v8216 = vsel %vm151, %v8105, 0
  %v8219 = vsel %vm151, %v8106, 0
  %v8222 = vsel %vm151, %v8107, 0
  %v8225 = vsel %vm151, %v8108, 0
  %v8228 = vsel %vm151, %v8109, 0
  %v8231 = vsel %vm151, %v8110, 0
  %v8234 = vsel %vm151, %v8111, 0
  %v8237 = vsel %vm151, %v8112, 0
  %v8240 = vsel %vm151, %v8113, 0
  %v8243 = vsel %vm151, %v8114, 0
  %v8246 = vsel %vm151, %v8115, 0
  %v8249 = vsel %vm151, %v8116, 0
  %v8252 = vsel %vm151, %v8117, 0
  %v8255 = vsel %vm151, %v8118, 0
  %v8258 = vsel %vm151, %v8119, 0
  %v8261 = vsel %vm151, %v8120, 0
  %v8264 = vsel %vm151, %v8121, 0
  %v8267 = vsel %vm151, %v8122, 0
  %v8270 = vsel %vm151, %v8123, 0
  %v8273 = vsel %vm151, %v8124, 0
  %v8276 = vsel %vm151, %v8125, 0
  %v8279 = vsel %vm151, %v8126, 0
  %v8282 = vsel %vm151, %v8127, 0
  %v8285 = vsel %vm151, %v8128, 0
  %v8288 = vsel %vm151, %v8129, 0
  %v8291 = vsel %vm151, %v8130, 0
  %v8294 = vsel %vm151, %v8131, 0
  %v8297 = vsel %vm151, %v8132, 0
  %v8300 = vsel %vm151, %v8133, 0
  %v8303 = vsel %vm151, %v8134, 0
  %v8306 = vsel %vm151, %v8135, 0
  %v8309 = vsel %vm151, %v8136, 0
  %v8312 = vsel %vm151, %v8137, 0
  %v8315 = vsel %vm151, %v8138, 0
  %v8318 = vsel %vm151, %v8139, 0
  %v8321 = vsel %vm151, %v8140, 0
  %v8324 = vsel %vm151, %v8141, 0
  %v8327 = vsel %vm151, %v8142, 0
  %v8330 = vsel %vm151, %v8143, 0
  %v8333 = vsel %vm151, %v8144, 0
  %v8336 = vsel %vm151, %v8145, 0
  %v8339 = vsel %vm151, %v8146, 0
  %v8342 = vsel %vm344, %v8148, 0
  %8344 = vmatpush.msra.mxu0 0.0
  %8345 = vmatpush.msra.mxu0 0.0
  %8346 = vmatpush.msra.mxu0 0.0
  %8347 = vmatpush.msra.mxu0 0.0
  %8348 = vmatpush.msra.mxu0 0.0
  %8349 = vmatpush.msra.mxu0 0.0
  %8350 = vmatpush.msra.mxu0 0.0
  %8351 = vmatpush.msra.mxu0 0.0
  %8352 = vmatpush.msra.mxu0 0.0
  %8353 = vmatpush.msra.mxu0 0.0
  %8354 = vmatpush.msra.mxu0 0.0
  %8355 = vmatpush.msra.mxu0 0.0
  %8356 = vmatpush.msra.mxu0 0.0
  %8357 = vmatpush.msra.mxu0 0.0
  %8358 = vmatpush.msra.mxu0 0.0
  %8359 = vmatpush.msra.mxu0 %v8342
  %8360 = vmatmul.f32.gmra.mxu0 %v8150
  %v8361 = vpop.f32.mrf.mxu0
  %v8362 = vadd.f32 0.0, %v8361
  %8363 = vmatmul.f32.gmra.mxu0 %v8153
  %v8364 = vpop.f32.mrf.mxu0
  %v8365 = vadd.f32 0.0, %v8364
  %8366 = vmatmul.f32.gmra.mxu0 %v8156
  %v8367 = vpop.f32.mrf.mxu0
  %v8368 = vadd.f32 0.0, %v8367
  %8369 = vmatmul.f32.gmra.mxu0 %v8159
  %v8370 = vpop.f32.mrf.mxu0
  %v8371 = vadd.f32 0.0, %v8370
  %8372 = vmatmul.f32.gmra.mxu0 %v8162
  %v8373 = vpop.f32.mrf.mxu0
  %v8374 = vadd.f32 0.0, %v8373
  %8375 = vmatmul.f32.gmra.mxu0 %v8165
  %v8376 = vpop.f32.mrf.mxu0
  %v8377 = vadd.f32 0.0, %v8376
  %8378 = vmatmul.f32.gmra.mxu0 %v8168
  %v8379 = vpop.f32.mrf.mxu0
  %v8380 = vadd.f32 0.0, %v8379
  %8381 = vmatmul.f32.gmra.mxu0 %v8171
  %v8382 = vpop.f32.mrf.mxu0
  %v8383 = vadd.f32 0.0, %v8382
  %8384 = vmatmul.f32.gmra.mxu0 %v8174
  %v8385 = vpop.f32.mrf.mxu0
  %v8386 = vadd.f32 0.0, %v8385
  %8387 = vmatmul.f32.gmra.mxu0 %v8177
  %v8388 = vpop.f32.mrf.mxu0
  %v8389 = vadd.f32 0.0, %v8388
  %8390 = vmatmul.f32.gmra.mxu0 %v8180
  %v8391 = vpop.f32.mrf.mxu0
  %v8392 = vadd.f32 0.0, %v8391
  %8393 = vmatmul.f32.gmra.mxu0 %v8183
  %v8394 = vpop.f32.mrf.mxu0
  %v8395 = vadd.f32 0.0, %v8394
  %8396 = vmatmul.f32.gmra.mxu0 %v8186
  %v8397 = vpop.f32.mrf.mxu0
  %v8398 = vadd.f32 0.0, %v8397
  %8399 = vmatmul.f32.gmra.mxu0 %v8189
  %v8400 = vpop.f32.mrf.mxu0
  %v8401 = vadd.f32 0.0, %v8400
  %8402 = vmatmul.f32.gmra.mxu0 %v8192
  %v8403 = vpop.f32.mrf.mxu0
  %v8404 = vadd.f32 0.0, %v8403
  %8405 = vmatmul.f32.gmra.mxu0 %v8195
  %v8406 = vpop.f32.mrf.mxu0
  %v8407 = vadd.f32 0.0, %v8406
  %8408 = vmatmul.f32.gmra.mxu0 %v8198
  %v8409 = vpop.f32.mrf.mxu0
  %v8410 = vadd.f32 0.0, %v8409
  %8411 = vmatmul.f32.gmra.mxu0 %v8201
  %v8412 = vpop.f32.mrf.mxu0
  %v8413 = vadd.f32 0.0, %v8412
  %8414 = vmatmul.f32.gmra.mxu0 %v8204
  %v8415 = vpop.f32.mrf.mxu0
  %v8416 = vadd.f32 0.0, %v8415
  %8417 = vmatmul.f32.gmra.mxu0 %v8207
  %v8418 = vpop.f32.mrf.mxu0
  %v8419 = vadd.f32 0.0, %v8418
  %8420 = vmatmul.f32.gmra.mxu0 %v8210
  %v8421 = vpop.f32.mrf.mxu0
  %v8422 = vadd.f32 0.0, %v8421
  %8423 = vmatmul.f32.gmra.mxu0 %v8213
  %v8424 = vpop.f32.mrf.mxu0
  %v8425 = vadd.f32 0.0, %v8424
  %8426 = vmatmul.f32.gmra.mxu0 %v8216
  %v8427 = vpop.f32.mrf.mxu0
  %v8428 = vadd.f32 0.0, %v8427
  %8429 = vmatmul.f32.gmra.mxu0 %v8219
  %v8430 = vpop.f32.mrf.mxu0
  %v8431 = vadd.f32 0.0, %v8430
  %8432 = vmatmul.f32.gmra.mxu0 %v8222
  %v8433 = vpop.f32.mrf.mxu0
  %v8434 = vadd.f32 0.0, %v8433
  %8435 = vmatmul.f32.gmra.mxu0 %v8225
  %v8436 = vpop.f32.mrf.mxu0
  %v8437 = vadd.f32 0.0, %v8436
  %8438 = vmatmul.f32.gmra.mxu0 %v8228
  %v8439 = vpop.f32.mrf.mxu0
  %v8440 = vadd.f32 0.0, %v8439
  %8441 = vmatmul.f32.gmra.mxu0 %v8231
  %v8442 = vpop.f32.mrf.mxu0
  %v8443 = vadd.f32 0.0, %v8442
  %8444 = vmatmul.f32.gmra.mxu0 %v8234
  %v8445 = vpop.f32.mrf.mxu0
  %v8446 = vadd.f32 0.0, %v8445
  %8447 = vmatmul.f32.gmra.mxu0 %v8237
  %v8448 = vpop.f32.mrf.mxu0
  %v8449 = vadd.f32 0.0, %v8448
  %8450 = vmatmul.f32.gmra.mxu0 %v8240
  %v8451 = vpop.f32.mrf.mxu0
  %v8452 = vadd.f32 0.0, %v8451
  %8453 = vmatmul.f32.gmra.mxu0 %v8243
  %v8454 = vpop.f32.mrf.mxu0
  %v8455 = vadd.f32 0.0, %v8454
  %8456 = vmatmul.f32.gmra.mxu0 %v8246
  %v8457 = vpop.f32.mrf.mxu0
  %v8458 = vadd.f32 0.0, %v8457
  %8459 = vmatmul.f32.gmra.mxu0 %v8249
  %v8460 = vpop.f32.mrf.mxu0
  %v8461 = vadd.f32 0.0, %v8460
  %8462 = vmatmul.f32.gmra.mxu0 %v8252
  %v8463 = vpop.f32.mrf.mxu0
  %v8464 = vadd.f32 0.0, %v8463
  %8465 = vmatmul.f32.gmra.mxu0 %v8255
  %v8466 = vpop.f32.mrf.mxu0
  %v8467 = vadd.f32 0.0, %v8466
  %8468 = vmatmul.f32.gmra.mxu0 %v8258
  %v8469 = vpop.f32.mrf.mxu0
  %v8470 = vadd.f32 0.0, %v8469
  %8471 = vmatmul.f32.gmra.mxu0 %v8261
  %v8472 = vpop.f32.mrf.mxu0
  %v8473 = vadd.f32 0.0, %v8472
  %8474 = vmatmul.f32.gmra.mxu0 %v8264
  %v8475 = vpop.f32.mrf.mxu0
  %v8476 = vadd.f32 0.0, %v8475
  %8477 = vmatmul.f32.gmra.mxu0 %v8267
  %v8478 = vpop.f32.mrf.mxu0
  %v8479 = vadd.f32 0.0, %v8478
  %8480 = vmatmul.f32.gmra.mxu0 %v8270
  %v8481 = vpop.f32.mrf.mxu0
  %v8482 = vadd.f32 0.0, %v8481
  %8483 = vmatmul.f32.gmra.mxu0 %v8273
  %v8484 = vpop.f32.mrf.mxu0
  %v8485 = vadd.f32 0.0, %v8484
  %8486 = vmatmul.f32.gmra.mxu0 %v8276
  %v8487 = vpop.f32.mrf.mxu0
  %v8488 = vadd.f32 0.0, %v8487
  %8489 = vmatmul.f32.gmra.mxu0 %v8279
  %v8490 = vpop.f32.mrf.mxu0
  %v8491 = vadd.f32 0.0, %v8490
  %8492 = vmatmul.f32.gmra.mxu0 %v8282
  %v8493 = vpop.f32.mrf.mxu0
  %v8494 = vadd.f32 0.0, %v8493
  %8495 = vmatmul.f32.gmra.mxu0 %v8285
  %v8496 = vpop.f32.mrf.mxu0
  %v8497 = vadd.f32 0.0, %v8496
  %8498 = vmatmul.f32.gmra.mxu0 %v8288
  %v8499 = vpop.f32.mrf.mxu0
  %v8500 = vadd.f32 0.0, %v8499
  %8501 = vmatmul.f32.gmra.mxu0 %v8291
  %v8502 = vpop.f32.mrf.mxu0
  %v8503 = vadd.f32 0.0, %v8502
  %8504 = vmatmul.f32.gmra.mxu0 %v8294
  %v8505 = vpop.f32.mrf.mxu0
  %v8506 = vadd.f32 0.0, %v8505
  %8507 = vmatmul.f32.gmra.mxu0 %v8297
  %v8508 = vpop.f32.mrf.mxu0
  %v8509 = vadd.f32 0.0, %v8508
  %8510 = vmatmul.f32.gmra.mxu0 %v8300
  %v8511 = vpop.f32.mrf.mxu0
  %v8512 = vadd.f32 0.0, %v8511
  %8513 = vmatmul.f32.gmra.mxu0 %v8303
  %v8514 = vpop.f32.mrf.mxu0
  %v8515 = vadd.f32 0.0, %v8514
  %8516 = vmatmul.f32.gmra.mxu0 %v8306
  %v8517 = vpop.f32.mrf.mxu0
  %v8518 = vadd.f32 0.0, %v8517
  %8519 = vmatmul.f32.gmra.mxu0 %v8309
  %v8520 = vpop.f32.mrf.mxu0
  %v8521 = vadd.f32 0.0, %v8520
  %8522 = vmatmul.f32.gmra.mxu0 %v8312
  %v8523 = vpop.f32.mrf.mxu0
  %v8524 = vadd.f32 0.0, %v8523
  %8525 = vmatmul.f32.gmra.mxu0 %v8315
  %v8526 = vpop.f32.mrf.mxu0
  %v8527 = vadd.f32 0.0, %v8526
  %8528 = vmatmul.f32.gmra.mxu0 %v8318
  %v8529 = vpop.f32.mrf.mxu0
  %v8530 = vadd.f32 0.0, %v8529
  %8531 = vmatmul.f32.gmra.mxu0 %v8321
  %v8532 = vpop.f32.mrf.mxu0
  %v8533 = vadd.f32 0.0, %v8532
  %8534 = vmatmul.f32.gmra.mxu0 %v8324
  %v8535 = vpop.f32.mrf.mxu0
  %v8536 = vadd.f32 0.0, %v8535
  %8537 = vmatmul.f32.gmra.mxu0 %v8327
  %v8538 = vpop.f32.mrf.mxu0
  %v8539 = vadd.f32 0.0, %v8538
  %8540 = vmatmul.f32.gmra.mxu0 %v8330
  %v8541 = vpop.f32.mrf.mxu0
  %v8542 = vadd.f32 0.0, %v8541
  %8543 = vmatmul.f32.gmra.mxu0 %v8333
  %v8544 = vpop.f32.mrf.mxu0
  %v8545 = vadd.f32 0.0, %v8544
  %8546 = vmatmul.f32.gmra.mxu0 %v8336
  %v8547 = vpop.f32.mrf.mxu0
  %v8548 = vadd.f32 0.0, %v8547
  %8549 = vmatmul.f32.gmra.mxu0 %v8339
  %v8550 = vpop.f32.mrf.mxu0
  %v8551 = vadd.f32 0.0, %v8550
  %8552 = vdwg.mxu0
  %v8553 = vadd.f32 %v8018, %v8362
  %v8554 = vadd.f32 %v8019, %v8365
  %v8555 = vadd.f32 %v8020, %v8368
  %v8556 = vadd.f32 %v8021, %v8371
  %v8557 = vadd.f32 %v8022, %v8374
  %v8558 = vadd.f32 %v8023, %v8377
  %v8559 = vadd.f32 %v8024, %v8380
  %v8560 = vadd.f32 %v8025, %v8383
  %v8561 = vadd.f32 %v8026, %v8386
  %v8562 = vadd.f32 %v8027, %v8389
  %v8563 = vadd.f32 %v8028, %v8392
  %v8564 = vadd.f32 %v8029, %v8395
  %v8565 = vadd.f32 %v8030, %v8398
  %v8566 = vadd.f32 %v8031, %v8401
  %v8567 = vadd.f32 %v8032, %v8404
  %v8568 = vadd.f32 %v8033, %v8407
  %v8569 = vadd.f32 %v8034, %v8410
  %v8570 = vadd.f32 %v8035, %v8413
  %v8571 = vadd.f32 %v8036, %v8416
  %v8572 = vadd.f32 %v8037, %v8419
  %v8573 = vadd.f32 %v8038, %v8422
  %v8574 = vadd.f32 %v8039, %v8425
  %v8575 = vadd.f32 %v8040, %v8428
  %v8576 = vadd.f32 %v8041, %v8431
  %v8577 = vadd.f32 %v8042, %v8434
  %v8578 = vadd.f32 %v8043, %v8437
  %v8579 = vadd.f32 %v8044, %v8440
  %v8580 = vadd.f32 %v8045, %v8443
  %v8581 = vadd.f32 %v8046, %v8446
  %v8582 = vadd.f32 %v8047, %v8449
  %v8583 = vadd.f32 %v8048, %v8452
  %v8584 = vadd.f32 %v8049, %v8455
  %v8585 = vadd.f32 %v8050, %v8458
  %v8586 = vadd.f32 %v8051, %v8461
  %v8587 = vadd.f32 %v8052, %v8464
  %v8588 = vadd.f32 %v8053, %v8467
  %v8589 = vadd.f32 %v8054, %v8470
  %v8590 = vadd.f32 %v8055, %v8473
  %v8591 = vadd.f32 %v8056, %v8476
  %v8592 = vadd.f32 %v8057, %v8479
  %v8593 = vadd.f32 %v8058, %v8482
  %v8594 = vadd.f32 %v8059, %v8485
  %v8595 = vadd.f32 %v8060, %v8488
  %v8596 = vadd.f32 %v8061, %v8491
  %v8597 = vadd.f32 %v8062, %v8494
  %v8598 = vadd.f32 %v8063, %v8497
  %v8599 = vadd.f32 %v8064, %v8500
  %v8600 = vadd.f32 %v8065, %v8503
  %v8601 = vadd.f32 %v8066, %v8506
  %v8602 = vadd.f32 %v8067, %v8509
  %v8603 = vadd.f32 %v8068, %v8512
  %v8604 = vadd.f32 %v8069, %v8515
  %v8605 = vadd.f32 %v8070, %v8518
  %v8606 = vadd.f32 %v8071, %v8521
  %v8607 = vadd.f32 %v8072, %v8524
  %v8608 = vadd.f32 %v8073, %v8527
  %v8609 = vadd.f32 %v8074, %v8530
  %v8610 = vadd.f32 %v8075, %v8533
  %v8611 = vadd.f32 %v8076, %v8536
  %v8612 = vadd.f32 %v8077, %v8539
  %v8613 = vadd.f32 %v8078, %v8542
  %v8614 = vadd.f32 %v8079, %v8545
  %v8615 = vadd.f32 %v8080, %v8548
  %v8616 = vadd.f32 %v8081, %v8551
  %v8617 = vld [vmem:[%s8082 + $0x1] sm:$0xff]
  %v8618 = vld [vmem:[%s8082 + $0x9] sm:$0xff]
  %v8619 = vld [vmem:[%s8082 + $0x19] sm:$0xff]
  %v8620 = vld [vmem:[%s8082 + $0x21] sm:$0xff]
  %v8621 = vld [vmem:[%s8082 + $0x31] sm:$0xff]
  %v8622 = vld [vmem:[%s8082 + $0x39] sm:$0xff]
  %v8623 = vld [vmem:[%s8082 + $0x49] sm:$0xff]
  %v8624 = vld [vmem:[%s8082 + $0x51] sm:$0xff]
  %v8625 = vld [vmem:[%s8082 + $0x61] sm:$0xff]
  %v8626 = vld [vmem:[%s8082 + $0x69] sm:$0xff]
  %v8627 = vld [vmem:[%s8082 + $0x79] sm:$0xff]
  %v8628 = vld [vmem:[%s8082 + $0x81] sm:$0xff]
  %v8629 = vld [vmem:[%s8082 + $0x91] sm:$0xff]
  %v8630 = vld [vmem:[%s8082 + $0x99] sm:$0xff]
  %v8631 = vld [vmem:[%s8082 + $0xa9] sm:$0xff]
  %v8632 = vld [vmem:[%s8082 + $0xb1] sm:$0xff]
  %v8633 = vld [vmem:[%s8082 + $0xc1] sm:$0xff]
  %v8634 = vld [vmem:[%s8082 + $0xc9] sm:$0xff]
  %v8635 = vld [vmem:[%s8082 + $0xd9] sm:$0xff]
  %v8636 = vld [vmem:[%s8082 + $0xe1] sm:$0xff]
  %v8637 = vld [vmem:[%s8082 + $0xf1] sm:$0xff]
  %v8638 = vld [vmem:[%s8082 + $0xf9] sm:$0xff]
  %v8639 = vld [vmem:[%s8082 + $0x109] sm:$0xff]
  %v8640 = vld [vmem:[%s8082 + $0x111] sm:$0xff]
  %v8641 = vld [vmem:[%s8082 + $0x121] sm:$0xff]
  %v8642 = vld [vmem:[%s8082 + $0x129] sm:$0xff]
  %v8643 = vld [vmem:[%s8082 + $0x139] sm:$0xff]
  %v8644 = vld [vmem:[%s8082 + $0x141] sm:$0xff]
  %v8645 = vld [vmem:[%s8082 + $0x151] sm:$0xff]
  %v8646 = vld [vmem:[%s8082 + $0x159] sm:$0xff]
  %v8647 = vld [vmem:[%s8082 + $0x169] sm:$0xff]
  %v8648 = vld [vmem:[%s8082 + $0x171] sm:$0xff]
  %v8649 = vld [vmem:[%s8082 + $0x1b1] sm:$0xff]
  %v8650 = vld [vmem:[%s8082 + $0x1b9] sm:$0xff]
  %v8651 = vld [vmem:[%s8082 + $0x1c9] sm:$0xff]
  %v8652 = vld [vmem:[%s8082 + $0x1d1] sm:$0xff]
  %v8653 = vld [vmem:[%s8082 + $0x1e1] sm:$0xff]
  %v8654 = vld [vmem:[%s8082 + $0x1e9] sm:$0xff]
  %v8655 = vld [vmem:[%s8082 + $0x1f9] sm:$0xff]
  %v8656 = vld [vmem:[%s8082 + $0x201] sm:$0xff]
  %v8657 = vld [vmem:[%s8082 + $0x211] sm:$0xff]
  %v8658 = vld [vmem:[%s8082 + $0x219] sm:$0xff]
  %v8659 = vld [vmem:[%s8082 + $0x229] sm:$0xff]
  %v8660 = vld [vmem:[%s8082 + $0x231] sm:$0xff]
  %v8661 = vld [vmem:[%s8082 + $0x241] sm:$0xff]
  %v8662 = vld [vmem:[%s8082 + $0x249] sm:$0xff]
  %v8663 = vld [vmem:[%s8082 + $0x259] sm:$0xff]
  %v8664 = vld [vmem:[%s8082 + $0x261] sm:$0xff]
  %v8665 = vld [vmem:[%s8082 + $0x271] sm:$0xff]
  %v8666 = vld [vmem:[%s8082 + $0x279] sm:$0xff]
  %v8667 = vld [vmem:[%s8082 + $0x289] sm:$0xff]
  %v8668 = vld [vmem:[%s8082 + $0x291] sm:$0xff]
  %v8669 = vld [vmem:[%s8082 + $0x2a1] sm:$0xff]
  %v8670 = vld [vmem:[%s8082 + $0x2a9] sm:$0xff]
  %v8671 = vld [vmem:[%s8082 + $0x2b9] sm:$0xff]
  %v8672 = vld [vmem:[%s8082 + $0x2c1] sm:$0xff]
  %v8673 = vld [vmem:[%s8082 + $0x2d1] sm:$0xff]
  %v8674 = vld [vmem:[%s8082 + $0x2d9] sm:$0xff]
  %v8675 = vld [vmem:[%s8082 + $0x2e9] sm:$0xff]
  %v8676 = vld [vmem:[%s8082 + $0x2f1] sm:$0xff]
  %v8677 = vld [vmem:[%s8082 + $0x301] sm:$0xff]
  %v8678 = vld [vmem:[%s8082 + $0x309] sm:$0xff]
  %v8679 = vld [vmem:[%s8082 + $0x319] sm:$0xff]
  %v8680 = vld [vmem:[%s8082 + $0x321] sm:$0xff]
  %s8681 = scalar_lea.vmem %s3, 28
  %v8682 = vld [vmem:[%s8681] sm:$0xf]
  %v8684 = vsel %vm151, %v8617, 0
  %v8687 = vsel %vm151, %v8618, 0
  %v8690 = vsel %vm151, %v8619, 0
  %v8693 = vsel %vm151, %v8620, 0
  %v8696 = vsel %vm151, %v8621, 0
  %v8699 = vsel %vm151, %v8622, 0
  %v8702 = vsel %vm151, %v8623, 0
  %v8705 = vsel %vm151, %v8624, 0
  %v8708 = vsel %vm151, %v8625, 0
  %v8711 = vsel %vm151, %v8626, 0
  %v8714 = vsel %vm151, %v8627, 0
  %v8717 = vsel %vm151, %v8628, 0
  %v8720 = vsel %vm151, %v8629, 0
  %v8723 = vsel %vm151, %v8630, 0
  %v8726 = vsel %vm151, %v8631, 0
  %v8729 = vsel %vm151, %v8632, 0
  %v8732 = vsel %vm151, %v8633, 0
  %v8735 = vsel %vm151, %v8634, 0
  %v8738 = vsel %vm151, %v8635, 0
  %v8741 = vsel %vm151, %v8636, 0
  %v8744 = vsel %vm151, %v8637, 0
  %v8747 = vsel %vm151, %v8638, 0
  %v8750 = vsel %vm151, %v8639, 0
  %v8753 = vsel %vm151, %v8640, 0
  %v8756 = vsel %vm151, %v8641, 0
  %v8759 = vsel %vm151, %v8642, 0
  %v8762 = vsel %vm151, %v8643, 0
  %v8765 = vsel %vm151, %v8644, 0
  %v8768 = vsel %vm151, %v8645, 0
  %v8771 = vsel %vm151, %v8646, 0
  %v8774 = vsel %vm151, %v8647, 0
  %v8777 = vsel %vm151, %v8648, 0
  %v8780 = vsel %vm151, %v8649, 0
  %v8783 = vsel %vm151, %v8650, 0
  %v8786 = vsel %vm151, %v8651, 0
  %v8789 = vsel %vm151, %v8652, 0
  %v8792 = vsel %vm151, %v8653, 0
  %v8795 = vsel %vm151, %v8654, 0
  %v8798 = vsel %vm151, %v8655, 0
  %v8801 = vsel %vm151, %v8656, 0
  %v8804 = vsel %vm151, %v8657, 0
  %v8807 = vsel %vm151, %v8658, 0
  %v8810 = vsel %vm151, %v8659, 0
  %v8813 = vsel %vm151, %v8660, 0
  %v8816 = vsel %vm151, %v8661, 0
  %v8819 = vsel %vm151, %v8662, 0
  %v8822 = vsel %vm151, %v8663, 0
  %v8825 = vsel %vm151, %v8664, 0
  %v8828 = vsel %vm151, %v8665, 0
  %v8831 = vsel %vm151, %v8666, 0
  %v8834 = vsel %vm151, %v8667, 0
  %v8837 = vsel %vm151, %v8668, 0
  %v8840 = vsel %vm151, %v8669, 0
  %v8843 = vsel %vm151, %v8670, 0
  %v8846 = vsel %vm151, %v8671, 0
  %v8849 = vsel %vm151, %v8672, 0
  %v8852 = vsel %vm151, %v8673, 0
  %v8855 = vsel %vm151, %v8674, 0
  %v8858 = vsel %vm151, %v8675, 0
  %v8861 = vsel %vm151, %v8676, 0
  %v8864 = vsel %vm151, %v8677, 0
  %v8867 = vsel %vm151, %v8678, 0
  %v8870 = vsel %vm151, %v8679, 0
  %v8873 = vsel %vm151, %v8680, 0
  %v8876 = vsel %vm344, %v8682, 0
  %8878 = vmatpush.msra.mxu0 0.0
  %8879 = vmatpush.msra.mxu0 0.0
  %8880 = vmatpush.msra.mxu0 0.0
  %8881 = vmatpush.msra.mxu0 0.0
  %8882 = vmatpush.msra.mxu0 0.0
  %8883 = vmatpush.msra.mxu0 0.0
  %8884 = vmatpush.msra.mxu0 0.0
  %8885 = vmatpush.msra.mxu0 0.0
  %8886 = vmatpush.msra.mxu0 0.0
  %8887 = vmatpush.msra.mxu0 0.0
  %8888 = vmatpush.msra.mxu0 0.0
  %8889 = vmatpush.msra.mxu0 0.0
  %8890 = vmatpush.msra.mxu0 0.0
  %8891 = vmatpush.msra.mxu0 0.0
  %8892 = vmatpush.msra.mxu0 0.0
  %8893 = vmatpush.msra.mxu0 %v8876
  %8894 = vmatmul.f32.gmra.mxu0 %v8684
  %v8895 = vpop.f32.mrf.mxu0
  %v8896 = vadd.f32 0.0, %v8895
  %8897 = vmatmul.f32.gmra.mxu0 %v8687
  %v8898 = vpop.f32.mrf.mxu0
  %v8899 = vadd.f32 0.0, %v8898
  %8900 = vmatmul.f32.gmra.mxu0 %v8690
  %v8901 = vpop.f32.mrf.mxu0
  %v8902 = vadd.f32 0.0, %v8901
  %8903 = vmatmul.f32.gmra.mxu0 %v8693
  %v8904 = vpop.f32.mrf.mxu0
  %v8905 = vadd.f32 0.0, %v8904
  %8906 = vmatmul.f32.gmra.mxu0 %v8696
  %v8907 = vpop.f32.mrf.mxu0
  %v8908 = vadd.f32 0.0, %v8907
  %8909 = vmatmul.f32.gmra.mxu0 %v8699
  %v8910 = vpop.f32.mrf.mxu0
  %v8911 = vadd.f32 0.0, %v8910
  %8912 = vmatmul.f32.gmra.mxu0 %v8702
  %v8913 = vpop.f32.mrf.mxu0
  %v8914 = vadd.f32 0.0, %v8913
  %8915 = vmatmul.f32.gmra.mxu0 %v8705
  %v8916 = vpop.f32.mrf.mxu0
  %v8917 = vadd.f32 0.0, %v8916
  %8918 = vmatmul.f32.gmra.mxu0 %v8708
  %v8919 = vpop.f32.mrf.mxu0
  %v8920 = vadd.f32 0.0, %v8919
  %8921 = vmatmul.f32.gmra.mxu0 %v8711
  %v8922 = vpop.f32.mrf.mxu0
  %v8923 = vadd.f32 0.0, %v8922
  %8924 = vmatmul.f32.gmra.mxu0 %v8714
  %v8925 = vpop.f32.mrf.mxu0
  %v8926 = vadd.f32 0.0, %v8925
  %8927 = vmatmul.f32.gmra.mxu0 %v8717
  %v8928 = vpop.f32.mrf.mxu0
  %v8929 = vadd.f32 0.0, %v8928
  %8930 = vmatmul.f32.gmra.mxu0 %v8720
  %v8931 = vpop.f32.mrf.mxu0
  %v8932 = vadd.f32 0.0, %v8931
  %8933 = vmatmul.f32.gmra.mxu0 %v8723
  %v8934 = vpop.f32.mrf.mxu0
  %v8935 = vadd.f32 0.0, %v8934
  %8936 = vmatmul.f32.gmra.mxu0 %v8726
  %v8937 = vpop.f32.mrf.mxu0
  %v8938 = vadd.f32 0.0, %v8937
  %8939 = vmatmul.f32.gmra.mxu0 %v8729
  %v8940 = vpop.f32.mrf.mxu0
  %v8941 = vadd.f32 0.0, %v8940
  %8942 = vmatmul.f32.gmra.mxu0 %v8732
  %v8943 = vpop.f32.mrf.mxu0
  %v8944 = vadd.f32 0.0, %v8943
  %8945 = vmatmul.f32.gmra.mxu0 %v8735
  %v8946 = vpop.f32.mrf.mxu0
  %v8947 = vadd.f32 0.0, %v8946
  %8948 = vmatmul.f32.gmra.mxu0 %v8738
  %v8949 = vpop.f32.mrf.mxu0
  %v8950 = vadd.f32 0.0, %v8949
  %8951 = vmatmul.f32.gmra.mxu0 %v8741
  %v8952 = vpop.f32.mrf.mxu0
  %v8953 = vadd.f32 0.0, %v8952
  %8954 = vmatmul.f32.gmra.mxu0 %v8744
  %v8955 = vpop.f32.mrf.mxu0
  %v8956 = vadd.f32 0.0, %v8955
  %8957 = vmatmul.f32.gmra.mxu0 %v8747
  %v8958 = vpop.f32.mrf.mxu0
  %v8959 = vadd.f32 0.0, %v8958
  %8960 = vmatmul.f32.gmra.mxu0 %v8750
  %v8961 = vpop.f32.mrf.mxu0
  %v8962 = vadd.f32 0.0, %v8961
  %8963 = vmatmul.f32.gmra.mxu0 %v8753
  %v8964 = vpop.f32.mrf.mxu0
  %v8965 = vadd.f32 0.0, %v8964
  %8966 = vmatmul.f32.gmra.mxu0 %v8756
  %v8967 = vpop.f32.mrf.mxu0
  %v8968 = vadd.f32 0.0, %v8967
  %8969 = vmatmul.f32.gmra.mxu0 %v8759
  %v8970 = vpop.f32.mrf.mxu0
  %v8971 = vadd.f32 0.0, %v8970
  %8972 = vmatmul.f32.gmra.mxu0 %v8762
  %v8973 = vpop.f32.mrf.mxu0
  %v8974 = vadd.f32 0.0, %v8973
  %8975 = vmatmul.f32.gmra.mxu0 %v8765
  %v8976 = vpop.f32.mrf.mxu0
  %v8977 = vadd.f32 0.0, %v8976
  %8978 = vmatmul.f32.gmra.mxu0 %v8768
  %v8979 = vpop.f32.mrf.mxu0
  %v8980 = vadd.f32 0.0, %v8979
  %8981 = vmatmul.f32.gmra.mxu0 %v8771
  %v8982 = vpop.f32.mrf.mxu0
  %v8983 = vadd.f32 0.0, %v8982
  %8984 = vmatmul.f32.gmra.mxu0 %v8774
  %v8985 = vpop.f32.mrf.mxu0
  %v8986 = vadd.f32 0.0, %v8985
  %8987 = vmatmul.f32.gmra.mxu0 %v8777
  %v8988 = vpop.f32.mrf.mxu0
  %v8989 = vadd.f32 0.0, %v8988
  %8990 = vmatmul.f32.gmra.mxu0 %v8780
  %v8991 = vpop.f32.mrf.mxu0
  %v8992 = vadd.f32 0.0, %v8991
  %8993 = vmatmul.f32.gmra.mxu0 %v8783
  %v8994 = vpop.f32.mrf.mxu0
  %v8995 = vadd.f32 0.0, %v8994
  %8996 = vmatmul.f32.gmra.mxu0 %v8786
  %v8997 = vpop.f32.mrf.mxu0
  %v8998 = vadd.f32 0.0, %v8997
  %8999 = vmatmul.f32.gmra.mxu0 %v8789
  %v9000 = vpop.f32.mrf.mxu0
  %v9001 = vadd.f32 0.0, %v9000
  %9002 = vmatmul.f32.gmra.mxu0 %v8792
  %v9003 = vpop.f32.mrf.mxu0
  %v9004 = vadd.f32 0.0, %v9003
  %9005 = vmatmul.f32.gmra.mxu0 %v8795
  %v9006 = vpop.f32.mrf.mxu0
  %v9007 = vadd.f32 0.0, %v9006
  %9008 = vmatmul.f32.gmra.mxu0 %v8798
  %v9009 = vpop.f32.mrf.mxu0
  %v9010 = vadd.f32 0.0, %v9009
  %9011 = vmatmul.f32.gmra.mxu0 %v8801
  %v9012 = vpop.f32.mrf.mxu0
  %v9013 = vadd.f32 0.0, %v9012
  %9014 = vmatmul.f32.gmra.mxu0 %v8804
  %v9015 = vpop.f32.mrf.mxu0
  %v9016 = vadd.f32 0.0, %v9015
  %9017 = vmatmul.f32.gmra.mxu0 %v8807
  %v9018 = vpop.f32.mrf.mxu0
  %v9019 = vadd.f32 0.0, %v9018
  %9020 = vmatmul.f32.gmra.mxu0 %v8810
  %v9021 = vpop.f32.mrf.mxu0
  %v9022 = vadd.f32 0.0, %v9021
  %9023 = vmatmul.f32.gmra.mxu0 %v8813
  %v9024 = vpop.f32.mrf.mxu0
  %v9025 = vadd.f32 0.0, %v9024
  %9026 = vmatmul.f32.gmra.mxu0 %v8816
  %v9027 = vpop.f32.mrf.mxu0
  %v9028 = vadd.f32 0.0, %v9027
  %9029 = vmatmul.f32.gmra.mxu0 %v8819
  %v9030 = vpop.f32.mrf.mxu0
  %v9031 = vadd.f32 0.0, %v9030
  %9032 = vmatmul.f32.gmra.mxu0 %v8822
  %v9033 = vpop.f32.mrf.mxu0
  %v9034 = vadd.f32 0.0, %v9033
  %9035 = vmatmul.f32.gmra.mxu0 %v8825
  %v9036 = vpop.f32.mrf.mxu0
  %v9037 = vadd.f32 0.0, %v9036
  %9038 = vmatmul.f32.gmra.mxu0 %v8828
  %v9039 = vpop.f32.mrf.mxu0
  %v9040 = vadd.f32 0.0, %v9039
  %9041 = vmatmul.f32.gmra.mxu0 %v8831
  %v9042 = vpop.f32.mrf.mxu0
  %v9043 = vadd.f32 0.0, %v9042
  %9044 = vmatmul.f32.gmra.mxu0 %v8834
  %v9045 = vpop.f32.mrf.mxu0
  %v9046 = vadd.f32 0.0, %v9045
  %9047 = vmatmul.f32.gmra.mxu0 %v8837
  %v9048 = vpop.f32.mrf.mxu0
  %v9049 = vadd.f32 0.0, %v9048
  %9050 = vmatmul.f32.gmra.mxu0 %v8840
  %v9051 = vpop.f32.mrf.mxu0
  %v9052 = vadd.f32 0.0, %v9051
  %9053 = vmatmul.f32.gmra.mxu0 %v8843
  %v9054 = vpop.f32.mrf.mxu0
  %v9055 = vadd.f32 0.0, %v9054
  %9056 = vmatmul.f32.gmra.mxu0 %v8846
  %v9057 = vpop.f32.mrf.mxu0
  %v9058 = vadd.f32 0.0, %v9057
  %9059 = vmatmul.f32.gmra.mxu0 %v8849
  %v9060 = vpop.f32.mrf.mxu0
  %v9061 = vadd.f32 0.0, %v9060
  %9062 = vmatmul.f32.gmra.mxu0 %v8852
  %v9063 = vpop.f32.mrf.mxu0
  %v9064 = vadd.f32 0.0, %v9063
  %9065 = vmatmul.f32.gmra.mxu0 %v8855
  %v9066 = vpop.f32.mrf.mxu0
  %v9067 = vadd.f32 0.0, %v9066
  %9068 = vmatmul.f32.gmra.mxu0 %v8858
  %v9069 = vpop.f32.mrf.mxu0
  %v9070 = vadd.f32 0.0, %v9069
  %9071 = vmatmul.f32.gmra.mxu0 %v8861
  %v9072 = vpop.f32.mrf.mxu0
  %v9073 = vadd.f32 0.0, %v9072
  %9074 = vmatmul.f32.gmra.mxu0 %v8864
  %v9075 = vpop.f32.mrf.mxu0
  %v9076 = vadd.f32 0.0, %v9075
  %9077 = vmatmul.f32.gmra.mxu0 %v8867
  %v9078 = vpop.f32.mrf.mxu0
  %v9079 = vadd.f32 0.0, %v9078
  %9080 = vmatmul.f32.gmra.mxu0 %v8870
  %v9081 = vpop.f32.mrf.mxu0
  %v9082 = vadd.f32 0.0, %v9081
  %9083 = vmatmul.f32.gmra.mxu0 %v8873
  %v9084 = vpop.f32.mrf.mxu0
  %v9085 = vadd.f32 0.0, %v9084
  %9086 = vdwg.mxu0
  %v9087 = vadd.f32 %v8553, %v8896
  %v9088 = vadd.f32 %v8554, %v8899
  %v9089 = vadd.f32 %v8555, %v8902
  %v9090 = vadd.f32 %v8556, %v8905
  %v9091 = vadd.f32 %v8557, %v8908
  %v9092 = vadd.f32 %v8558, %v8911
  %v9093 = vadd.f32 %v8559, %v8914
  %v9094 = vadd.f32 %v8560, %v8917
  %v9095 = vadd.f32 %v8561, %v8920
  %v9096 = vadd.f32 %v8562, %v8923
  %v9097 = vadd.f32 %v8563, %v8926
  %v9098 = vadd.f32 %v8564, %v8929
  %v9099 = vadd.f32 %v8565, %v8932
  %v9100 = vadd.f32 %v8566, %v8935
  %v9101 = vadd.f32 %v8567, %v8938
  %v9102 = vadd.f32 %v8568, %v8941
  %v9103 = vadd.f32 %v8569, %v8944
  %v9104 = vadd.f32 %v8570, %v8947
  %v9105 = vadd.f32 %v8571, %v8950
  %v9106 = vadd.f32 %v8572, %v8953
  %v9107 = vadd.f32 %v8573, %v8956
  %v9108 = vadd.f32 %v8574, %v8959
  %v9109 = vadd.f32 %v8575, %v8962
  %v9110 = vadd.f32 %v8576, %v8965
  %v9111 = vadd.f32 %v8577, %v8968
  %v9112 = vadd.f32 %v8578, %v8971
  %v9113 = vadd.f32 %v8579, %v8974
  %v9114 = vadd.f32 %v8580, %v8977
  %v9115 = vadd.f32 %v8581, %v8980
  %v9116 = vadd.f32 %v8582, %v8983
  %v9117 = vadd.f32 %v8583, %v8986
  %v9118 = vadd.f32 %v8584, %v8989
  %v9119 = vadd.f32 %v8585, %v8992
  %v9120 = vadd.f32 %v8586, %v8995
  %v9121 = vadd.f32 %v8587, %v8998
  %v9122 = vadd.f32 %v8588, %v9001
  %v9123 = vadd.f32 %v8589, %v9004
  %v9124 = vadd.f32 %v8590, %v9007
  %v9125 = vadd.f32 %v8591, %v9010
  %v9126 = vadd.f32 %v8592, %v9013
  %v9127 = vadd.f32 %v8593, %v9016
  %v9128 = vadd.f32 %v8594, %v9019
  %v9129 = vadd.f32 %v8595, %v9022
  %v9130 = vadd.f32 %v8596, %v9025
  %v9131 = vadd.f32 %v8597, %v9028
  %v9132 = vadd.f32 %v8598, %v9031
  %v9133 = vadd.f32 %v8599, %v9034
  %v9134 = vadd.f32 %v8600, %v9037
  %v9135 = vadd.f32 %v8601, %v9040
  %v9136 = vadd.f32 %v8602, %v9043
  %v9137 = vadd.f32 %v8603, %v9046
  %v9138 = vadd.f32 %v8604, %v9049
  %v9139 = vadd.f32 %v8605, %v9052
  %v9140 = vadd.f32 %v8606, %v9055
  %v9141 = vadd.f32 %v8607, %v9058
  %v9142 = vadd.f32 %v8608, %v9061
  %v9143 = vadd.f32 %v8609, %v9064
  %v9144 = vadd.f32 %v8610, %v9067
  %v9145 = vadd.f32 %v8611, %v9070
  %v9146 = vadd.f32 %v8612, %v9073
  %v9147 = vadd.f32 %v8613, %v9076
  %v9148 = vadd.f32 %v8614, %v9079
  %v9149 = vadd.f32 %v8615, %v9082
  %v9150 = vadd.f32 %v8616, %v9085
  %v9151 = vld [vmem:[%s8082 + $0x2] sm:$0xff]
  %v9152 = vld [vmem:[%s8082 + $0xa] sm:$0xff]
  %v9153 = vld [vmem:[%s8082 + $0x1a] sm:$0xff]
  %v9154 = vld [vmem:[%s8082 + $0x22] sm:$0xff]
  %v9155 = vld [vmem:[%s8082 + $0x32] sm:$0xff]
  %v9156 = vld [vmem:[%s8082 + $0x3a] sm:$0xff]
  %v9157 = vld [vmem:[%s8082 + $0x4a] sm:$0xff]
  %v9158 = vld [vmem:[%s8082 + $0x52] sm:$0xff]
  %v9159 = vld [vmem:[%s8082 + $0x62] sm:$0xff]
  %v9160 = vld [vmem:[%s8082 + $0x6a] sm:$0xff]
  %v9161 = vld [vmem:[%s8082 + $0x7a] sm:$0xff]
  %v9162 = vld [vmem:[%s8082 + $0x82] sm:$0xff]
  %v9163 = vld [vmem:[%s8082 + $0x92] sm:$0xff]
  %v9164 = vld [vmem:[%s8082 + $0x9a] sm:$0xff]
  %v9165 = vld [vmem:[%s8082 + $0xaa] sm:$0xff]
  %v9166 = vld [vmem:[%s8082 + $0xb2] sm:$0xff]
  %v9167 = vld [vmem:[%s8082 + $0xc2] sm:$0xff]
  %v9168 = vld [vmem:[%s8082 + $0xca] sm:$0xff]
  %v9169 = vld [vmem:[%s8082 + $0xda] sm:$0xff]
  %v9170 = vld [vmem:[%s8082 + $0xe2] sm:$0xff]
  %v9171 = vld [vmem:[%s8082 + $0xf2] sm:$0xff]
  %v9172 = vld [vmem:[%s8082 + $0xfa] sm:$0xff]
  %v9173 = vld [vmem:[%s8082 + $0x10a] sm:$0xff]
  %v9174 = vld [vmem:[%s8082 + $0x112] sm:$0xff]
  %v9175 = vld [vmem:[%s8082 + $0x122] sm:$0xff]
  %v9176 = vld [vmem:[%s8082 + $0x12a] sm:$0xff]
  %v9177 = vld [vmem:[%s8082 + $0x13a] sm:$0xff]
  %v9178 = vld [vmem:[%s8082 + $0x142] sm:$0xff]
  %v9179 = vld [vmem:[%s8082 + $0x152] sm:$0xff]
  %v9180 = vld [vmem:[%s8082 + $0x15a] sm:$0xff]
  %v9181 = vld [vmem:[%s8082 + $0x16a] sm:$0xff]
  %v9182 = vld [vmem:[%s8082 + $0x172] sm:$0xff]
  %v9183 = vld [vmem:[%s8082 + $0x1b2] sm:$0xff]
  %v9184 = vld [vmem:[%s8082 + $0x1ba] sm:$0xff]
  %v9185 = vld [vmem:[%s8082 + $0x1ca] sm:$0xff]
  %v9186 = vld [vmem:[%s8082 + $0x1d2] sm:$0xff]
  %v9187 = vld [vmem:[%s8082 + $0x1e2] sm:$0xff]
  %v9188 = vld [vmem:[%s8082 + $0x1ea] sm:$0xff]
  %v9189 = vld [vmem:[%s8082 + $0x1fa] sm:$0xff]
  %v9190 = vld [vmem:[%s8082 + $0x202] sm:$0xff]
  %v9191 = vld [vmem:[%s8082 + $0x212] sm:$0xff]
  %v9192 = vld [vmem:[%s8082 + $0x21a] sm:$0xff]
  %v9193 = vld [vmem:[%s8082 + $0x22a] sm:$0xff]
  %v9194 = vld [vmem:[%s8082 + $0x232] sm:$0xff]
  %v9195 = vld [vmem:[%s8082 + $0x242] sm:$0xff]
  %v9196 = vld [vmem:[%s8082 + $0x24a] sm:$0xff]
  %v9197 = vld [vmem:[%s8082 + $0x25a] sm:$0xff]
  %v9198 = vld [vmem:[%s8082 + $0x262] sm:$0xff]
  %v9199 = vld [vmem:[%s8082 + $0x272] sm:$0xff]
  %v9200 = vld [vmem:[%s8082 + $0x27a] sm:$0xff]
  %v9201 = vld [vmem:[%s8082 + $0x28a] sm:$0xff]
  %v9202 = vld [vmem:[%s8082 + $0x292] sm:$0xff]
  %v9203 = vld [vmem:[%s8082 + $0x2a2] sm:$0xff]
  %v9204 = vld [vmem:[%s8082 + $0x2aa] sm:$0xff]
  %v9205 = vld [vmem:[%s8082 + $0x2ba] sm:$0xff]
  %v9206 = vld [vmem:[%s8082 + $0x2c2] sm:$0xff]
  %v9207 = vld [vmem:[%s8082 + $0x2d2] sm:$0xff]
  %v9208 = vld [vmem:[%s8082 + $0x2da] sm:$0xff]
  %v9209 = vld [vmem:[%s8082 + $0x2ea] sm:$0xff]
  %v9210 = vld [vmem:[%s8082 + $0x2f2] sm:$0xff]
  %v9211 = vld [vmem:[%s8082 + $0x302] sm:$0xff]
  %v9212 = vld [vmem:[%s8082 + $0x30a] sm:$0xff]
  %v9213 = vld [vmem:[%s8082 + $0x31a] sm:$0xff]
  %v9214 = vld [vmem:[%s8082 + $0x322] sm:$0xff]
  %s9215 = scalar_lea.vmem %s3, 32
  %v9216 = vld [vmem:[%s9215] sm:$0xf]
  %v9218 = vsel %vm151, %v9151, 0
  %v9221 = vsel %vm151, %v9152, 0
  %v9224 = vsel %vm151, %v9153, 0
  %v9227 = vsel %vm151, %v9154, 0
  %v9230 = vsel %vm151, %v9155, 0
  %v9233 = vsel %vm151, %v9156, 0
  %v9236 = vsel %vm151, %v9157, 0
  %v9239 = vsel %vm151, %v9158, 0
  %v9242 = vsel %vm151, %v9159, 0
  %v9245 = vsel %vm151, %v9160, 0
  %v9248 = vsel %vm151, %v9161, 0
  %v9251 = vsel %vm151, %v9162, 0
  %v9254 = vsel %vm151, %v9163, 0
  %v9257 = vsel %vm151, %v9164, 0
  %v9260 = vsel %vm151, %v9165, 0
  %v9263 = vsel %vm151, %v9166, 0
  %v9266 = vsel %vm151, %v9167, 0
  %v9269 = vsel %vm151, %v9168, 0
  %v9272 = vsel %vm151, %v9169, 0
  %v9275 = vsel %vm151, %v9170, 0
  %v9278 = vsel %vm151, %v9171, 0
  %v9281 = vsel %vm151, %v9172, 0
  %v9284 = vsel %vm151, %v9173, 0
  %v9287 = vsel %vm151, %v9174, 0
  %v9290 = vsel %vm151, %v9175, 0
  %v9293 = vsel %vm151, %v9176, 0
  %v9296 = vsel %vm151, %v9177, 0
  %v9299 = vsel %vm151, %v9178, 0
  %v9302 = vsel %vm151, %v9179, 0
  %v9305 = vsel %vm151, %v9180, 0
  %v9308 = vsel %vm151, %v9181, 0
  %v9311 = vsel %vm151, %v9182, 0
  %v9314 = vsel %vm151, %v9183, 0
  %v9317 = vsel %vm151, %v9184, 0
  %v9320 = vsel %vm151, %v9185, 0
  %v9323 = vsel %vm151, %v9186, 0
  %v9326 = vsel %vm151, %v9187, 0
  %v9329 = vsel %vm151, %v9188, 0
  %v9332 = vsel %vm151, %v9189, 0
  %v9335 = vsel %vm151, %v9190, 0
  %v9338 = vsel %vm151, %v9191, 0
  %v9341 = vsel %vm151, %v9192, 0
  %v9344 = vsel %vm151, %v9193, 0
  %v9347 = vsel %vm151, %v9194, 0
  %v9350 = vsel %vm151, %v9195, 0
  %v9353 = vsel %vm151, %v9196, 0
  %v9356 = vsel %vm151, %v9197, 0
  %v9359 = vsel %vm151, %v9198, 0
  %v9362 = vsel %vm151, %v9199, 0
  %v9365 = vsel %vm151, %v9200, 0
  %v9368 = vsel %vm151, %v9201, 0
  %v9371 = vsel %vm151, %v9202, 0
  %v9374 = vsel %vm151, %v9203, 0
  %v9377 = vsel %vm151, %v9204, 0
  %v9380 = vsel %vm151, %v9205, 0
  %v9383 = vsel %vm151, %v9206, 0
  %v9386 = vsel %vm151, %v9207, 0
  %v9389 = vsel %vm151, %v9208, 0
  %v9392 = vsel %vm151, %v9209, 0
  %v9395 = vsel %vm151, %v9210, 0
  %v9398 = vsel %vm151, %v9211, 0
  %v9401 = vsel %vm151, %v9212, 0
  %v9404 = vsel %vm151, %v9213, 0
  %v9407 = vsel %vm151, %v9214, 0
  %v9410 = vsel %vm344, %v9216, 0
  %9412 = vmatpush.msra.mxu0 0.0
  %9413 = vmatpush.msra.mxu0 0.0
  %9414 = vmatpush.msra.mxu0 0.0
  %9415 = vmatpush.msra.mxu0 0.0
  %9416 = vmatpush.msra.mxu0 0.0
  %9417 = vmatpush.msra.mxu0 0.0
  %9418 = vmatpush.msra.mxu0 0.0
  %9419 = vmatpush.msra.mxu0 0.0
  %9420 = vmatpush.msra.mxu0 0.0
  %9421 = vmatpush.msra.mxu0 0.0
  %9422 = vmatpush.msra.mxu0 0.0
  %9423 = vmatpush.msra.mxu0 0.0
  %9424 = vmatpush.msra.mxu0 0.0
  %9425 = vmatpush.msra.mxu0 0.0
  %9426 = vmatpush.msra.mxu0 0.0
  %9427 = vmatpush.msra.mxu0 %v9410
  %9428 = vmatmul.f32.gmra.mxu0 %v9218
  %v9429 = vpop.f32.mrf.mxu0
  %v9430 = vadd.f32 0.0, %v9429
  %9431 = vmatmul.f32.gmra.mxu0 %v9221
  %v9432 = vpop.f32.mrf.mxu0
  %v9433 = vadd.f32 0.0, %v9432
  %9434 = vmatmul.f32.gmra.mxu0 %v9224
  %v9435 = vpop.f32.mrf.mxu0
  %v9436 = vadd.f32 0.0, %v9435
  %9437 = vmatmul.f32.gmra.mxu0 %v9227
  %v9438 = vpop.f32.mrf.mxu0
  %v9439 = vadd.f32 0.0, %v9438
  %9440 = vmatmul.f32.gmra.mxu0 %v9230
  %v9441 = vpop.f32.mrf.mxu0
  %v9442 = vadd.f32 0.0, %v9441
  %9443 = vmatmul.f32.gmra.mxu0 %v9233
  %v9444 = vpop.f32.mrf.mxu0
  %v9445 = vadd.f32 0.0, %v9444
  %9446 = vmatmul.f32.gmra.mxu0 %v9236
  %v9447 = vpop.f32.mrf.mxu0
  %v9448 = vadd.f32 0.0, %v9447
  %9449 = vmatmul.f32.gmra.mxu0 %v9239
  %v9450 = vpop.f32.mrf.mxu0
  %v9451 = vadd.f32 0.0, %v9450
  %9452 = vmatmul.f32.gmra.mxu0 %v9242
  %v9453 = vpop.f32.mrf.mxu0
  %v9454 = vadd.f32 0.0, %v9453
  %9455 = vmatmul.f32.gmra.mxu0 %v9245
  %v9456 = vpop.f32.mrf.mxu0
  %v9457 = vadd.f32 0.0, %v9456
  %9458 = vmatmul.f32.gmra.mxu0 %v9248
  %v9459 = vpop.f32.mrf.mxu0
  %v9460 = vadd.f32 0.0, %v9459
  %9461 = vmatmul.f32.gmra.mxu0 %v9251
  %v9462 = vpop.f32.mrf.mxu0
  %v9463 = vadd.f32 0.0, %v9462
  %9464 = vmatmul.f32.gmra.mxu0 %v9254
  %v9465 = vpop.f32.mrf.mxu0
  %v9466 = vadd.f32 0.0, %v9465
  %9467 = vmatmul.f32.gmra.mxu0 %v9257
  %v9468 = vpop.f32.mrf.mxu0
  %v9469 = vadd.f32 0.0, %v9468
  %9470 = vmatmul.f32.gmra.mxu0 %v9260
  %v9471 = vpop.f32.mrf.mxu0
  %v9472 = vadd.f32 0.0, %v9471
  %9473 = vmatmul.f32.gmra.mxu0 %v9263
  %v9474 = vpop.f32.mrf.mxu0
  %v9475 = vadd.f32 0.0, %v9474
  %9476 = vmatmul.f32.gmra.mxu0 %v9266
  %v9477 = vpop.f32.mrf.mxu0
  %v9478 = vadd.f32 0.0, %v9477
  %9479 = vmatmul.f32.gmra.mxu0 %v9269
  %v9480 = vpop.f32.mrf.mxu0
  %v9481 = vadd.f32 0.0, %v9480
  %9482 = vmatmul.f32.gmra.mxu0 %v9272
  %v9483 = vpop.f32.mrf.mxu0
  %v9484 = vadd.f32 0.0, %v9483
  %9485 = vmatmul.f32.gmra.mxu0 %v9275
  %v9486 = vpop.f32.mrf.mxu0
  %v9487 = vadd.f32 0.0, %v9486
  %9488 = vmatmul.f32.gmra.mxu0 %v9278
  %v9489 = vpop.f32.mrf.mxu0
  %v9490 = vadd.f32 0.0, %v9489
  %9491 = vmatmul.f32.gmra.mxu0 %v9281
  %v9492 = vpop.f32.mrf.mxu0
  %v9493 = vadd.f32 0.0, %v9492
  %9494 = vmatmul.f32.gmra.mxu0 %v9284
  %v9495 = vpop.f32.mrf.mxu0
  %v9496 = vadd.f32 0.0, %v9495
  %9497 = vmatmul.f32.gmra.mxu0 %v9287
  %v9498 = vpop.f32.mrf.mxu0
  %v9499 = vadd.f32 0.0, %v9498
  %9500 = vmatmul.f32.gmra.mxu0 %v9290
  %v9501 = vpop.f32.mrf.mxu0
  %v9502 = vadd.f32 0.0, %v9501
  %9503 = vmatmul.f32.gmra.mxu0 %v9293
  %v9504 = vpop.f32.mrf.mxu0
  %v9505 = vadd.f32 0.0, %v9504
  %9506 = vmatmul.f32.gmra.mxu0 %v9296
  %v9507 = vpop.f32.mrf.mxu0
  %v9508 = vadd.f32 0.0, %v9507
  %9509 = vmatmul.f32.gmra.mxu0 %v9299
  %v9510 = vpop.f32.mrf.mxu0
  %v9511 = vadd.f32 0.0, %v9510
  %9512 = vmatmul.f32.gmra.mxu0 %v9302
  %v9513 = vpop.f32.mrf.mxu0
  %v9514 = vadd.f32 0.0, %v9513
  %9515 = vmatmul.f32.gmra.mxu0 %v9305
  %v9516 = vpop.f32.mrf.mxu0
  %v9517 = vadd.f32 0.0, %v9516
  %9518 = vmatmul.f32.gmra.mxu0 %v9308
  %v9519 = vpop.f32.mrf.mxu0
  %v9520 = vadd.f32 0.0, %v9519
  %9521 = vmatmul.f32.gmra.mxu0 %v9311
  %v9522 = vpop.f32.mrf.mxu0
  %v9523 = vadd.f32 0.0, %v9522
  %9524 = vmatmul.f32.gmra.mxu0 %v9314
  %v9525 = vpop.f32.mrf.mxu0
  %v9526 = vadd.f32 0.0, %v9525
  %9527 = vmatmul.f32.gmra.mxu0 %v9317
  %v9528 = vpop.f32.mrf.mxu0
  %v9529 = vadd.f32 0.0, %v9528
  %9530 = vmatmul.f32.gmra.mxu0 %v9320
  %v9531 = vpop.f32.mrf.mxu0
  %v9532 = vadd.f32 0.0, %v9531
  %9533 = vmatmul.f32.gmra.mxu0 %v9323
  %v9534 = vpop.f32.mrf.mxu0
  %v9535 = vadd.f32 0.0, %v9534
  %9536 = vmatmul.f32.gmra.mxu0 %v9326
  %v9537 = vpop.f32.mrf.mxu0
  %v9538 = vadd.f32 0.0, %v9537
  %9539 = vmatmul.f32.gmra.mxu0 %v9329
  %v9540 = vpop.f32.mrf.mxu0
  %v9541 = vadd.f32 0.0, %v9540
  %9542 = vmatmul.f32.gmra.mxu0 %v9332
  %v9543 = vpop.f32.mrf.mxu0
  %v9544 = vadd.f32 0.0, %v9543
  %9545 = vmatmul.f32.gmra.mxu0 %v9335
  %v9546 = vpop.f32.mrf.mxu0
  %v9547 = vadd.f32 0.0, %v9546
  %9548 = vmatmul.f32.gmra.mxu0 %v9338
  %v9549 = vpop.f32.mrf.mxu0
  %v9550 = vadd.f32 0.0, %v9549
  %9551 = vmatmul.f32.gmra.mxu0 %v9341
  %v9552 = vpop.f32.mrf.mxu0
  %v9553 = vadd.f32 0.0, %v9552
  %9554 = vmatmul.f32.gmra.mxu0 %v9344
  %v9555 = vpop.f32.mrf.mxu0
  %v9556 = vadd.f32 0.0, %v9555
  %9557 = vmatmul.f32.gmra.mxu0 %v9347
  %v9558 = vpop.f32.mrf.mxu0
  %v9559 = vadd.f32 0.0, %v9558
  %9560 = vmatmul.f32.gmra.mxu0 %v9350
  %v9561 = vpop.f32.mrf.mxu0
  %v9562 = vadd.f32 0.0, %v9561
  %9563 = vmatmul.f32.gmra.mxu0 %v9353
  %v9564 = vpop.f32.mrf.mxu0
  %v9565 = vadd.f32 0.0, %v9564
  %9566 = vmatmul.f32.gmra.mxu0 %v9356
  %v9567 = vpop.f32.mrf.mxu0
  %v9568 = vadd.f32 0.0, %v9567
  %9569 = vmatmul.f32.gmra.mxu0 %v9359
  %v9570 = vpop.f32.mrf.mxu0
  %v9571 = vadd.f32 0.0, %v9570
  %9572 = vmatmul.f32.gmra.mxu0 %v9362
  %v9573 = vpop.f32.mrf.mxu0
  %v9574 = vadd.f32 0.0, %v9573
  %9575 = vmatmul.f32.gmra.mxu0 %v9365
  %v9576 = vpop.f32.mrf.mxu0
  %v9577 = vadd.f32 0.0, %v9576
  %9578 = vmatmul.f32.gmra.mxu0 %v9368
  %v9579 = vpop.f32.mrf.mxu0
  %v9580 = vadd.f32 0.0, %v9579
  %9581 = vmatmul.f32.gmra.mxu0 %v9371
  %v9582 = vpop.f32.mrf.mxu0
  %v9583 = vadd.f32 0.0, %v9582
  %9584 = vmatmul.f32.gmra.mxu0 %v9374
  %v9585 = vpop.f32.mrf.mxu0
  %v9586 = vadd.f32 0.0, %v9585
  %9587 = vmatmul.f32.gmra.mxu0 %v9377
  %v9588 = vpop.f32.mrf.mxu0
  %v9589 = vadd.f32 0.0, %v9588
  %9590 = vmatmul.f32.gmra.mxu0 %v9380
  %v9591 = vpop.f32.mrf.mxu0
  %v9592 = vadd.f32 0.0, %v9591
  %9593 = vmatmul.f32.gmra.mxu0 %v9383
  %v9594 = vpop.f32.mrf.mxu0
  %v9595 = vadd.f32 0.0, %v9594
  %9596 = vmatmul.f32.gmra.mxu0 %v9386
  %v9597 = vpop.f32.mrf.mxu0
  %v9598 = vadd.f32 0.0, %v9597
  %9599 = vmatmul.f32.gmra.mxu0 %v9389
  %v9600 = vpop.f32.mrf.mxu0
  %v9601 = vadd.f32 0.0, %v9600
  %9602 = vmatmul.f32.gmra.mxu0 %v9392
  %v9603 = vpop.f32.mrf.mxu0
  %v9604 = vadd.f32 0.0, %v9603
  %9605 = vmatmul.f32.gmra.mxu0 %v9395
  %v9606 = vpop.f32.mrf.mxu0
  %v9607 = vadd.f32 0.0, %v9606
  %9608 = vmatmul.f32.gmra.mxu0 %v9398
  %v9609 = vpop.f32.mrf.mxu0
  %v9610 = vadd.f32 0.0, %v9609
  %9611 = vmatmul.f32.gmra.mxu0 %v9401
  %v9612 = vpop.f32.mrf.mxu0
  %v9613 = vadd.f32 0.0, %v9612
  %9614 = vmatmul.f32.gmra.mxu0 %v9404
  %v9615 = vpop.f32.mrf.mxu0
  %v9616 = vadd.f32 0.0, %v9615
  %9617 = vmatmul.f32.gmra.mxu0 %v9407
  %v9618 = vpop.f32.mrf.mxu0
  %v9619 = vadd.f32 0.0, %v9618
  %9620 = vdwg.mxu0
  %v9621 = vadd.f32 %v9087, %v9430
  %v9622 = vadd.f32 %v9088, %v9433
  %v9623 = vadd.f32 %v9089, %v9436
  %v9624 = vadd.f32 %v9090, %v9439
  %v9625 = vadd.f32 %v9091, %v9442
  %v9626 = vadd.f32 %v9092, %v9445
  %v9627 = vadd.f32 %v9093, %v9448
  %v9628 = vadd.f32 %v9094, %v9451
  %v9629 = vadd.f32 %v9095, %v9454
  %v9630 = vadd.f32 %v9096, %v9457
  %v9631 = vadd.f32 %v9097, %v9460
  %v9632 = vadd.f32 %v9098, %v9463
  %v9633 = vadd.f32 %v9099, %v9466
  %v9634 = vadd.f32 %v9100, %v9469
  %v9635 = vadd.f32 %v9101, %v9472
  %v9636 = vadd.f32 %v9102, %v9475
  %v9637 = vadd.f32 %v9103, %v9478
  %v9638 = vadd.f32 %v9104, %v9481
  %v9639 = vadd.f32 %v9105, %v9484
  %v9640 = vadd.f32 %v9106, %v9487
  %v9641 = vadd.f32 %v9107, %v9490
  %v9642 = vadd.f32 %v9108, %v9493
  %v9643 = vadd.f32 %v9109, %v9496
  %v9644 = vadd.f32 %v9110, %v9499
  %v9645 = vadd.f32 %v9111, %v9502
  %v9646 = vadd.f32 %v9112, %v9505
  %v9647 = vadd.f32 %v9113, %v9508
  %v9648 = vadd.f32 %v9114, %v9511
  %v9649 = vadd.f32 %v9115, %v9514
  %v9650 = vadd.f32 %v9116, %v9517
  %v9651 = vadd.f32 %v9117, %v9520
  %v9652 = vadd.f32 %v9118, %v9523
  %v9653 = vadd.f32 %v9119, %v9526
  %v9654 = vadd.f32 %v9120, %v9529
  %v9655 = vadd.f32 %v9121, %v9532
  %v9656 = vadd.f32 %v9122, %v9535
  %v9657 = vadd.f32 %v9123, %v9538
  %v9658 = vadd.f32 %v9124, %v9541
  %v9659 = vadd.f32 %v9125, %v9544
  %v9660 = vadd.f32 %v9126, %v9547
  %v9661 = vadd.f32 %v9127, %v9550
  %v9662 = vadd.f32 %v9128, %v9553
  %v9663 = vadd.f32 %v9129, %v9556
  %v9664 = vadd.f32 %v9130, %v9559
  %v9665 = vadd.f32 %v9131, %v9562
  %v9666 = vadd.f32 %v9132, %v9565
  %v9667 = vadd.f32 %v9133, %v9568
  %v9668 = vadd.f32 %v9134, %v9571
  %v9669 = vadd.f32 %v9135, %v9574
  %v9670 = vadd.f32 %v9136, %v9577
  %v9671 = vadd.f32 %v9137, %v9580
  %v9672 = vadd.f32 %v9138, %v9583
  %v9673 = vadd.f32 %v9139, %v9586
  %v9674 = vadd.f32 %v9140, %v9589
  %v9675 = vadd.f32 %v9141, %v9592
  %v9676 = vadd.f32 %v9142, %v9595
  %v9677 = vadd.f32 %v9143, %v9598
  %v9678 = vadd.f32 %v9144, %v9601
  %v9679 = vadd.f32 %v9145, %v9604
  %v9680 = vadd.f32 %v9146, %v9607
  %v9681 = vadd.f32 %v9147, %v9610
  %v9682 = vadd.f32 %v9148, %v9613
  %v9683 = vadd.f32 %v9149, %v9616
  %v9684 = vadd.f32 %v9150, %v9619
  %v9685 = vld [vmem:[%s4] sm:$0x1]
  %v9687 = vperm.slane %v9685, 0
  %v9689 = vadd.f32 %v9621, %v9687
  %v9690 = vadd.f32 %v9622, %v9687
  %v9691 = vadd.f32 %v9623, %v9687
  %v9692 = vadd.f32 %v9624, %v9687
  %v9693 = vadd.f32 %v9625, %v9687
  %v9694 = vadd.f32 %v9626, %v9687
  %v9695 = vadd.f32 %v9627, %v9687
  %v9696 = vadd.f32 %v9628, %v9687
  %v9697 = vadd.f32 %v9629, %v9687
  %v9698 = vadd.f32 %v9630, %v9687
  %v9699 = vadd.f32 %v9631, %v9687
  %v9700 = vadd.f32 %v9632, %v9687
  %v9701 = vadd.f32 %v9633, %v9687
  %v9702 = vadd.f32 %v9634, %v9687
  %v9703 = vadd.f32 %v9635, %v9687
  %v9704 = vadd.f32 %v9636, %v9687
  %v9705 = vadd.f32 %v9637, %v9687
  %v9706 = vadd.f32 %v9638, %v9687
  %v9707 = vadd.f32 %v9639, %v9687
  %v9708 = vadd.f32 %v9640, %v9687
  %v9709 = vadd.f32 %v9641, %v9687
  %v9710 = vadd.f32 %v9642, %v9687
  %v9711 = vadd.f32 %v9643, %v9687
  %v9712 = vadd.f32 %v9644, %v9687
  %v9713 = vadd.f32 %v9645, %v9687
  %v9714 = vadd.f32 %v9646, %v9687
  %v9715 = vadd.f32 %v9647, %v9687
  %v9716 = vadd.f32 %v9648, %v9687
  %v9717 = vadd.f32 %v9649, %v9687
  %v9718 = vadd.f32 %v9650, %v9687
  %v9719 = vadd.f32 %v9651, %v9687
  %v9720 = vadd.f32 %v9652, %v9687
  %v9721 = vadd.f32 %v9653, %v9687
  %v9722 = vadd.f32 %v9654, %v9687
  %v9723 = vadd.f32 %v9655, %v9687
  %v9724 = vadd.f32 %v9656, %v9687
  %v9725 = vadd.f32 %v9657, %v9687
  %v9726 = vadd.f32 %v9658, %v9687
  %v9727 = vadd.f32 %v9659, %v9687
  %v9728 = vadd.f32 %v9660, %v9687
  %v9729 = vadd.f32 %v9661, %v9687
  %v9730 = vadd.f32 %v9662, %v9687
  %v9731 = vadd.f32 %v9663, %v9687
  %v9732 = vadd.f32 %v9664, %v9687
  %v9733 = vadd.f32 %v9665, %v9687
  %v9734 = vadd.f32 %v9666, %v9687
  %v9735 = vadd.f32 %v9667, %v9687
  %v9736 = vadd.f32 %v9668, %v9687
  %v9737 = vadd.f32 %v9669, %v9687
  %v9738 = vadd.f32 %v9670, %v9687
  %v9739 = vadd.f32 %v9671, %v9687
  %v9740 = vadd.f32 %v9672, %v9687
  %v9741 = vadd.f32 %v9673, %v9687
  %v9742 = vadd.f32 %v9674, %v9687
  %v9743 = vadd.f32 %v9675, %v9687
  %v9744 = vadd.f32 %v9676, %v9687
  %v9745 = vadd.f32 %v9677, %v9687
  %v9746 = vadd.f32 %v9678, %v9687
  %v9747 = vadd.f32 %v9679, %v9687
  %v9748 = vadd.f32 %v9680, %v9687
  %v9749 = vadd.f32 %v9681, %v9687
  %v9750 = vadd.f32 %v9682, %v9687
  %v9751 = vadd.f32 %v9683, %v9687
  %v9752 = vadd.f32 %v9684, %v9687
  %v9753 = vld [vmem:[%s1495 + $0x1] sm:$0xff]
  %v9754 = vld [vmem:[%s1495 + $0x9] sm:$0xff]
  %v9755 = vld [vmem:[%s1495 + $0x19] sm:$0xff]
  %v9756 = vld [vmem:[%s1495 + $0x21] sm:$0xff]
  %v9757 = vld [vmem:[%s1495 + $0x31] sm:$0xff]
  %v9758 = vld [vmem:[%s1495 + $0x39] sm:$0xff]
  %v9759 = vld [vmem:[%s1495 + $0x49] sm:$0xff]
  %v9760 = vld [vmem:[%s1495 + $0x51] sm:$0xff]
  %v9761 = vld [vmem:[%s1495 + $0x61] sm:$0xff]
  %v9762 = vld [vmem:[%s1495 + $0x69] sm:$0xff]
  %v9763 = vld [vmem:[%s1495 + $0x79] sm:$0xff]
  %v9764 = vld [vmem:[%s1495 + $0x81] sm:$0xff]
  %v9765 = vld [vmem:[%s1495 + $0x91] sm:$0xff]
  %v9766 = vld [vmem:[%s1495 + $0x99] sm:$0xff]
  %v9767 = vld [vmem:[%s1495 + $0xa9] sm:$0xff]
  %v9768 = vld [vmem:[%s1495 + $0xb1] sm:$0xff]
  %v9769 = vld [vmem:[%s1495 + $0xc1] sm:$0xff]
  %v9770 = vld [vmem:[%s1495 + $0xc9] sm:$0xff]
  %v9771 = vld [vmem:[%s1495 + $0xd9] sm:$0xff]
  %v9772 = vld [vmem:[%s1495 + $0xe1] sm:$0xff]
  %v9773 = vld [vmem:[%s1495 + $0xf1] sm:$0xff]
  %v9774 = vld [vmem:[%s1495 + $0xf9] sm:$0xff]
  %v9775 = vld [vmem:[%s1495 + $0x109] sm:$0xff]
  %v9776 = vld [vmem:[%s1495 + $0x111] sm:$0xff]
  %v9777 = vld [vmem:[%s1495 + $0x121] sm:$0xff]
  %v9778 = vld [vmem:[%s1495 + $0x129] sm:$0xff]
  %v9779 = vld [vmem:[%s1495 + $0x139] sm:$0xff]
  %v9780 = vld [vmem:[%s1495 + $0x141] sm:$0xff]
  %v9781 = vld [vmem:[%s1495 + $0x151] sm:$0xff]
  %v9782 = vld [vmem:[%s1495 + $0x159] sm:$0xff]
  %v9783 = vld [vmem:[%s1495 + $0x169] sm:$0xff]
  %v9784 = vld [vmem:[%s1495 + $0x171] sm:$0xff]
  %v9785 = vld [vmem:[%s1495 + $0x1b1] sm:$0xff]
  %v9786 = vld [vmem:[%s1495 + $0x1b9] sm:$0xff]
  %v9787 = vld [vmem:[%s1495 + $0x1c9] sm:$0xff]
  %v9788 = vld [vmem:[%s1495 + $0x1d1] sm:$0xff]
  %v9789 = vld [vmem:[%s1495 + $0x1e1] sm:$0xff]
  %v9790 = vld [vmem:[%s1495 + $0x1e9] sm:$0xff]
  %v9791 = vld [vmem:[%s1495 + $0x1f9] sm:$0xff]
  %v9792 = vld [vmem:[%s1495 + $0x201] sm:$0xff]
  %v9793 = vld [vmem:[%s1495 + $0x211] sm:$0xff]
  %v9794 = vld [vmem:[%s1495 + $0x219] sm:$0xff]
  %v9795 = vld [vmem:[%s1495 + $0x229] sm:$0xff]
  %v9796 = vld [vmem:[%s1495 + $0x231] sm:$0xff]
  %v9797 = vld [vmem:[%s1495 + $0x241] sm:$0xff]
  %v9798 = vld [vmem:[%s1495 + $0x249] sm:$0xff]
  %v9799 = vld [vmem:[%s1495 + $0x259] sm:$0xff]
  %v9800 = vld [vmem:[%s1495 + $0x261] sm:$0xff]
  %v9801 = vld [vmem:[%s1495 + $0x271] sm:$0xff]
  %v9802 = vld [vmem:[%s1495 + $0x279] sm:$0xff]
  %v9803 = vld [vmem:[%s1495 + $0x289] sm:$0xff]
  %v9804 = vld [vmem:[%s1495 + $0x291] sm:$0xff]
  %v9805 = vld [vmem:[%s1495 + $0x2a1] sm:$0xff]
  %v9806 = vld [vmem:[%s1495 + $0x2a9] sm:$0xff]
  %v9807 = vld [vmem:[%s1495 + $0x2b9] sm:$0xff]
  %v9808 = vld [vmem:[%s1495 + $0x2c1] sm:$0xff]
  %v9809 = vld [vmem:[%s1495 + $0x2d1] sm:$0xff]
  %v9810 = vld [vmem:[%s1495 + $0x2d9] sm:$0xff]
  %v9811 = vld [vmem:[%s1495 + $0x2e9] sm:$0xff]
  %v9812 = vld [vmem:[%s1495 + $0x2f1] sm:$0xff]
  %v9813 = vld [vmem:[%s1495 + $0x301] sm:$0xff]
  %v9814 = vld [vmem:[%s1495 + $0x309] sm:$0xff]
  %v9815 = vld [vmem:[%s1495 + $0x319] sm:$0xff]
  %v9816 = vld [vmem:[%s1495 + $0x321] sm:$0xff]
  %v9817 = vadd.f32 %v9753, %v9689
  %v9818 = vadd.f32 %v9754, %v9690
  %v9819 = vadd.f32 %v9755, %v9691
  %v9820 = vadd.f32 %v9756, %v9692
  %v9821 = vadd.f32 %v9757, %v9693
  %v9822 = vadd.f32 %v9758, %v9694
  %v9823 = vadd.f32 %v9759, %v9695
  %v9824 = vadd.f32 %v9760, %v9696
  %v9825 = vadd.f32 %v9761, %v9697
  %v9826 = vadd.f32 %v9762, %v9698
  %v9827 = vadd.f32 %v9763, %v9699
  %v9828 = vadd.f32 %v9764, %v9700
  %v9829 = vadd.f32 %v9765, %v9701
  %v9830 = vadd.f32 %v9766, %v9702
  %v9831 = vadd.f32 %v9767, %v9703
  %v9832 = vadd.f32 %v9768, %v9704
  %v9833 = vadd.f32 %v9769, %v9705
  %v9834 = vadd.f32 %v9770, %v9706
  %v9835 = vadd.f32 %v9771, %v9707
  %v9836 = vadd.f32 %v9772, %v9708
  %v9837 = vadd.f32 %v9773, %v9709
  %v9838 = vadd.f32 %v9774, %v9710
  %v9839 = vadd.f32 %v9775, %v9711
  %v9840 = vadd.f32 %v9776, %v9712
  %v9841 = vadd.f32 %v9777, %v9713
  %v9842 = vadd.f32 %v9778, %v9714
  %v9843 = vadd.f32 %v9779, %v9715
  %v9844 = vadd.f32 %v9780, %v9716
  %v9845 = vadd.f32 %v9781, %v9717
  %v9846 = vadd.f32 %v9782, %v9718
  %v9847 = vadd.f32 %v9783, %v9719
  %v9848 = vadd.f32 %v9784, %v9720
  %v9849 = vadd.f32 %v9785, %v9721
  %v9850 = vadd.f32 %v9786, %v9722
  %v9851 = vadd.f32 %v9787, %v9723
  %v9852 = vadd.f32 %v9788, %v9724
  %v9853 = vadd.f32 %v9789, %v9725
  %v9854 = vadd.f32 %v9790, %v9726
  %v9855 = vadd.f32 %v9791, %v9727
  %v9856 = vadd.f32 %v9792, %v9728
  %v9857 = vadd.f32 %v9793, %v9729
  %v9858 = vadd.f32 %v9794, %v9730
  %v9859 = vadd.f32 %v9795, %v9731
  %v9860 = vadd.f32 %v9796, %v9732
  %v9861 = vadd.f32 %v9797, %v9733
  %v9862 = vadd.f32 %v9798, %v9734
  %v9863 = vadd.f32 %v9799, %v9735
  %v9864 = vadd.f32 %v9800, %v9736
  %v9865 = vadd.f32 %v9801, %v9737
  %v9866 = vadd.f32 %v9802, %v9738
  %v9867 = vadd.f32 %v9803, %v9739
  %v9868 = vadd.f32 %v9804, %v9740
  %v9869 = vadd.f32 %v9805, %v9741
  %v9870 = vadd.f32 %v9806, %v9742
  %v9871 = vadd.f32 %v9807, %v9743
  %v9872 = vadd.f32 %v9808, %v9744
  %v9873 = vadd.f32 %v9809, %v9745
  %v9874 = vadd.f32 %v9810, %v9746
  %v9875 = vadd.f32 %v9811, %v9747
  %v9876 = vadd.f32 %v9812, %v9748
  %v9877 = vadd.f32 %v9813, %v9749
  %v9878 = vadd.f32 %v9814, %v9750
  %v9879 = vadd.f32 %v9815, %v9751
  %v9880 = vadd.f32 %v9816, %v9752
  %v9881 = vmax.f32 %v9817, 0.0
  %v9882 = vmax.f32 %v9818, 0.0
  %v9883 = vmax.f32 %v9819, 0.0
  %v9884 = vmax.f32 %v9820, 0.0
  %v9885 = vmax.f32 %v9821, 0.0
  %v9886 = vmax.f32 %v9822, 0.0
  %v9887 = vmax.f32 %v9823, 0.0
  %v9888 = vmax.f32 %v9824, 0.0
  %v9889 = vmax.f32 %v9825, 0.0
  %v9890 = vmax.f32 %v9826, 0.0
  %v9891 = vmax.f32 %v9827, 0.0
  %v9892 = vmax.f32 %v9828, 0.0
  %v9893 = vmax.f32 %v9829, 0.0
  %v9894 = vmax.f32 %v9830, 0.0
  %v9895 = vmax.f32 %v9831, 0.0
  %v9896 = vmax.f32 %v9832, 0.0
  %v9897 = vmax.f32 %v9833, 0.0
  %v9898 = vmax.f32 %v9834, 0.0
  %v9899 = vmax.f32 %v9835, 0.0
  %v9900 = vmax.f32 %v9836, 0.0
  %v9901 = vmax.f32 %v9837, 0.0
  %v9902 = vmax.f32 %v9838, 0.0
  %v9903 = vmax.f32 %v9839, 0.0
  %v9904 = vmax.f32 %v9840, 0.0
  %v9905 = vmax.f32 %v9841, 0.0
  %v9906 = vmax.f32 %v9842, 0.0
  %v9907 = vmax.f32 %v9843, 0.0
  %v9908 = vmax.f32 %v9844, 0.0
  %v9909 = vmax.f32 %v9845, 0.0
  %v9910 = vmax.f32 %v9846, 0.0
  %v9911 = vmax.f32 %v9847, 0.0
  %v9912 = vmax.f32 %v9848, 0.0
  %v9913 = vmax.f32 %v9849, 0.0
  %v9914 = vmax.f32 %v9850, 0.0
  %v9915 = vmax.f32 %v9851, 0.0
  %v9916 = vmax.f32 %v9852, 0.0
  %v9917 = vmax.f32 %v9853, 0.0
  %v9918 = vmax.f32 %v9854, 0.0
  %v9919 = vmax.f32 %v9855, 0.0
  %v9920 = vmax.f32 %v9856, 0.0
  %v9921 = vmax.f32 %v9857, 0.0
  %v9922 = vmax.f32 %v9858, 0.0
  %v9923 = vmax.f32 %v9859, 0.0
  %v9924 = vmax.f32 %v9860, 0.0
  %v9925 = vmax.f32 %v9861, 0.0
  %v9926 = vmax.f32 %v9862, 0.0
  %v9927 = vmax.f32 %v9863, 0.0
  %v9928 = vmax.f32 %v9864, 0.0
  %v9929 = vmax.f32 %v9865, 0.0
  %v9930 = vmax.f32 %v9866, 0.0
  %v9931 = vmax.f32 %v9867, 0.0
  %v9932 = vmax.f32 %v9868, 0.0
  %v9933 = vmax.f32 %v9869, 0.0
  %v9934 = vmax.f32 %v9870, 0.0
  %v9935 = vmax.f32 %v9871, 0.0
  %v9936 = vmax.f32 %v9872, 0.0
  %v9937 = vmax.f32 %v9873, 0.0
  %v9938 = vmax.f32 %v9874, 0.0
  %v9939 = vmax.f32 %v9875, 0.0
  %v9940 = vmax.f32 %v9876, 0.0
  %v9941 = vmax.f32 %v9877, 0.0
  %v9942 = vmax.f32 %v9878, 0.0
  %v9943 = vmax.f32 %v9879, 0.0
  %v9944 = vmax.f32 %v9880, 0.0
  %9945 = vst.msk [vmem:[%s5] sm:$0xff] %vm151, %v9881
  %9946 = vst.msk [vmem:[%s5 + $0x8] sm:$0xff] %vm151, %v9882
  %9947 = vst.msk [vmem:[%s5 + $0x10] sm:$0xff] %vm151, %v9883
  %9948 = vst.msk [vmem:[%s5 + $0x18] sm:$0xff] %vm151, %v9884
  %9949 = vst.msk [vmem:[%s5 + $0x20] sm:$0xff] %vm151, %v9885
  %9950 = vst.msk [vmem:[%s5 + $0x28] sm:$0xff] %vm151, %v9886
  %9951 = vst.msk [vmem:[%s5 + $0x30] sm:$0xff] %vm151, %v9887
  %9952 = vst.msk [vmem:[%s5 + $0x38] sm:$0xff] %vm151, %v9888
  %9953 = vst.msk [vmem:[%s5 + $0x40] sm:$0xff] %vm151, %v9889
  %9954 = vst.msk [vmem:[%s5 + $0x48] sm:$0xff] %vm151, %v9890
  %9955 = vst.msk [vmem:[%s5 + $0x50] sm:$0xff] %vm151, %v9891
  %9956 = vst.msk [vmem:[%s5 + $0x58] sm:$0xff] %vm151, %v9892
  %9957 = vst.msk [vmem:[%s5 + $0x60] sm:$0xff] %vm151, %v9893
  %9958 = vst.msk [vmem:[%s5 + $0x68] sm:$0xff] %vm151, %v9894
  %9959 = vst.msk [vmem:[%s5 + $0x70] sm:$0xff] %vm151, %v9895
  %9960 = vst.msk [vmem:[%s5 + $0x78] sm:$0xff] %vm151, %v9896
  %9961 = vst.msk [vmem:[%s5 + $0x80] sm:$0xff] %vm151, %v9897
  %9962 = vst.msk [vmem:[%s5 + $0x88] sm:$0xff] %vm151, %v9898
  %9963 = vst.msk [vmem:[%s5 + $0x90] sm:$0xff] %vm151, %v9899
  %9964 = vst.msk [vmem:[%s5 + $0x98] sm:$0xff] %vm151, %v9900
  %9965 = vst.msk [vmem:[%s5 + $0xa0] sm:$0xff] %vm151, %v9901
  %9966 = vst.msk [vmem:[%s5 + $0xa8] sm:$0xff] %vm151, %v9902
  %9967 = vst.msk [vmem:[%s5 + $0xb0] sm:$0xff] %vm151, %v9903
  %9968 = vst.msk [vmem:[%s5 + $0xb8] sm:$0xff] %vm151, %v9904
  %9969 = vst.msk [vmem:[%s5 + $0xc0] sm:$0xff] %vm151, %v9905
  %9970 = vst.msk [vmem:[%s5 + $0xc8] sm:$0xff] %vm151, %v9906
  %9971 = vst.msk [vmem:[%s5 + $0xd0] sm:$0xff] %vm151, %v9907
  %9972 = vst.msk [vmem:[%s5 + $0xd8] sm:$0xff] %vm151, %v9908
  %9973 = vst.msk [vmem:[%s5 + $0xe0] sm:$0xff] %vm151, %v9909
  %9974 = vst.msk [vmem:[%s5 + $0xe8] sm:$0xff] %vm151, %v9910
  %9975 = vst.msk [vmem:[%s5 + $0xf0] sm:$0xff] %vm151, %v9911
  %9976 = vst.msk [vmem:[%s5 + $0xf8] sm:$0xff] %vm151, %v9912
  %9977 = vst.msk [vmem:[%s5 + $0x100] sm:$0xff] %vm151, %v9913
  %9978 = vst.msk [vmem:[%s5 + $0x108] sm:$0xff] %vm151, %v9914
  %9979 = vst.msk [vmem:[%s5 + $0x110] sm:$0xff] %vm151, %v9915
  %9980 = vst.msk [vmem:[%s5 + $0x118] sm:$0xff] %vm151, %v9916
  %9981 = vst.msk [vmem:[%s5 + $0x120] sm:$0xff] %vm151, %v9917
  %9982 = vst.msk [vmem:[%s5 + $0x128] sm:$0xff] %vm151, %v9918
  %9983 = vst.msk [vmem:[%s5 + $0x130] sm:$0xff] %vm151, %v9919
  %9984 = vst.msk [vmem:[%s5 + $0x138] sm:$0xff] %vm151, %v9920
  %9985 = vst.msk [vmem:[%s5 + $0x140] sm:$0xff] %vm151, %v9921
  %9986 = vst.msk [vmem:[%s5 + $0x148] sm:$0xff] %vm151, %v9922
  %9987 = vst.msk [vmem:[%s5 + $0x150] sm:$0xff] %vm151, %v9923
  %9988 = vst.msk [vmem:[%s5 + $0x158] sm:$0xff] %vm151, %v9924
  %9989 = vst.msk [vmem:[%s5 + $0x160] sm:$0xff] %vm151, %v9925
  %9990 = vst.msk [vmem:[%s5 + $0x168] sm:$0xff] %vm151, %v9926
  %9991 = vst.msk [vmem:[%s5 + $0x170] sm:$0xff] %vm151, %v9927
  %9992 = vst.msk [vmem:[%s5 + $0x178] sm:$0xff] %vm151, %v9928
  %9993 = vst.msk [vmem:[%s5 + $0x180] sm:$0xff] %vm151, %v9929
  %9994 = vst.msk [vmem:[%s5 + $0x188] sm:$0xff] %vm151, %v9930
  %9995 = vst.msk [vmem:[%s5 + $0x190] sm:$0xff] %vm151, %v9931
  %9996 = vst.msk [vmem:[%s5 + $0x198] sm:$0xff] %vm151, %v9932
  %9997 = vst.msk [vmem:[%s5 + $0x1a0] sm:$0xff] %vm151, %v9933
  %9998 = vst.msk [vmem:[%s5 + $0x1a8] sm:$0xff] %vm151, %v9934
  %9999 = vst.msk [vmem:[%s5 + $0x1b0] sm:$0xff] %vm151, %v9935
  %10000 = vst.msk [vmem:[%s5 + $0x1b8] sm:$0xff] %vm151, %v9936
  %10001 = vst.msk [vmem:[%s5 + $0x1c0] sm:$0xff] %vm151, %v9937
  %10002 = vst.msk [vmem:[%s5 + $0x1c8] sm:$0xff] %vm151, %v9938
  %10003 = vst.msk [vmem:[%s5 + $0x1d0] sm:$0xff] %vm151, %v9939
  %10004 = vst.msk [vmem:[%s5 + $0x1d8] sm:$0xff] %vm151, %v9940
  %10005 = vst.msk [vmem:[%s5 + $0x1e0] sm:$0xff] %vm151, %v9941
  %10006 = vst.msk [vmem:[%s5 + $0x1e8] sm:$0xff] %vm151, %v9942
  %10007 = vst.msk [vmem:[%s5 + $0x1f0] sm:$0xff] %vm151, %v9943
  %10008 = vst.msk [vmem:[%s5 + $0x1f8] sm:$0xff] %vm151, %v9944
  // Predicated region
  $region22: #{tpu_custom_call.1} parent=0 // pred_check
    _
  $region23: #{tpu_custom_call.1} parent=0 // pred_check_branch
    %10010 = sbr.rel (0) target = $region25
  $region24: #{tpu_custom_call.1} parent=0 // pred_region
    _
  $region25: #{tpu_custom_call.1} parent=0 // pred_fallthru
    _
  // Predicated region
  $region26: #{tpu_custom_call.1} parent=0 // pred_check
    _
  $region27: #{tpu_custom_call.1} parent=0 // pred_check_branch
    %10012 = sbr.rel (0) target = $region29
  $region28: #{tpu_custom_call.1} parent=0 // pred_region
    _
  $region29: #{tpu_custom_call.1} parent=0 // pred_fallthru
    _

</llo_original>
